<compile_context>
chip_gen: v7x
topology: tpu7x:2x2x1
jax: 0.10.0
libtpu: 0.0.40
codegen_flags: <defaults>
</compile_context>

<pallas_src>
import functools

import jax
import jax.numpy as jnp
from jax.experimental import pallas as pl
from jax.experimental.pallas import tpu as pltpu

_BN_EPS = 1e-5
_LRELU = 0.2


@functools.lru_cache(maxsize=1)
def _vmem_limit_bytes():
    """Generation-aware scoped-VMEM limit (~25% headroom); v7x only has 64 MiB."""
    cap = None
    try:
        cap = getattr(pltpu.get_tpu_info(), "vmem_capacity_bytes", None)
    except Exception:
        cap = None
    if cap is None:
        cap = 64 << 20  # conservative: smallest VMEM across supported gens
    return int(cap) * 3 // 4


def _tile_m(m, cap):
    """Largest power-of-two tile (>=16, <= cap) dividing m; prefer >= 2 grid
    steps so the "parallel" axis can shard over both v7x TensorCores."""
    best = m  # full block is always legal (block == array dim)
    t = 16
    while t <= min(cap, m):
        if m % t == 0:
            best = t
        t *= 2
    if best == m:
        t, cand = 16, None
        while t <= m // 2:
            if m % t == 0:
                cand = t
            t *= 2
        if cand is not None:
            best = cand
    return best


def _tile_images(batch, cap=64):
    """Images per head tile. Output block rows must be a multiple of 8 or
    equal the full batch; prefer >= 2 grid steps."""
    best = batch
    t = 8
    while t <= min(cap, batch // 2):
        if batch % t == 0:
            best = t
        t *= 2
    return best


def _params(semantics):
    return pltpu.CompilerParams(dimension_semantics=semantics,
                                vmem_limit_bytes=_vmem_limit_bytes())


# ---------------------------------------------------------------------------
# Kernel 1: GEMM + LeakyReLU (layer 1), M-tiled parallel grid, bf16 output.
# ---------------------------------------------------------------------------
def _gemm_lrelu_kernel(a_ref, w_ref, o_ref):
    y = jnp.dot(a_ref[...], w_ref[...], preferred_element_type=jnp.float32)
    y = jnp.where(y > 0, y, _LRELU * y)
    o_ref[...] = y.astype(o_ref.dtype)


def conv_gemm_lrelu(a, w, *, tm):
    """a: (M, K) bf16, w: (K, N) bf16 -> (M, N) bf16 with fused LeakyReLU."""
    M, K = a.shape
    K2, N = w.shape
    assert K == K2 and M % tm == 0
    cost = pl.CostEstimate(flops=2 * M * K * N, transcendentals=0,
                           bytes_accessed=M * K * 2 + K * N * 2 + M * N * 2)
    return pl.pallas_call(
        _gemm_lrelu_kernel,
        out_shape=jax.ShapeDtypeStruct((M, N), jnp.bfloat16),
        grid_spec=pltpu.PrefetchScalarGridSpec(
            num_scalar_prefetch=0,
            grid=(M // tm,),
            in_specs=[pl.BlockSpec((tm, K), lambda i: (i, 0)),
                      pl.BlockSpec((K, N), lambda i: (0, 0))],   # weight resident
            out_specs=pl.BlockSpec((tm, N), lambda i: (i, 0))),
        compiler_params=_params(("parallel",)),
        cost_estimate=cost,
    )(a, w)


# ---------------------------------------------------------------------------
# Kernel 2 (BN pass 1): M-tiled GEMM emitting per-tile partial sum / sum-sq.
# K fits VMEM (tk == K) so there is no reduction grid and no acc scratch.
# ---------------------------------------------------------------------------
def _gemm_stats_kernel(a_ref, w_ref, y_ref, s_ref, q_ref):
    y = jnp.dot(a_ref[...], w_ref[...], preferred_element_type=jnp.float32)
    y_ref[...] = y
    s_ref[0] = jnp.sum(y, axis=0, keepdims=True)          # (1, N) partial sum
    q_ref[0] = jnp.sum(y * y, axis=0, keepdims=True)      # (1, N) partial sum-sq


def conv_gemm_stats(a, w, *, tm):
    """Returns pre-BN conv output (M, N) f32 and per-tile stats (T, 1, N) x2."""
    M, K = a.shape
    K2, N = w.shape
    assert K == K2 and M % tm == 0
    T = M // tm
    cost = pl.CostEstimate(flops=2 * M * K * N + 3 * M * N, transcendentals=0,
                           bytes_accessed=M * K * 2 + K * N * 2 + M * N * 4)
    return pl.pallas_call(
        _gemm_stats_kernel,
        out_shape=(jax.ShapeDtypeStruct((M, N), jnp.float32),
                   jax.ShapeDtypeStruct((T, 1, N), jnp.float32),
                   jax.ShapeDtypeStruct((T, 1, N), jnp.float32)),
        grid_spec=pltpu.PrefetchScalarGridSpec(
            num_scalar_prefetch=0,
            grid=(T,),
            in_specs=[pl.BlockSpec((tm, K), lambda i: (i, 0)),
                      pl.BlockSpec((K, N), lambda i: (0, 0))],
            out_specs=[pl.BlockSpec((tm, N), lambda i: (i, 0)),
                       pl.BlockSpec((1, 1, N), lambda i: (i, 0, 0)),
                       pl.BlockSpec((1, 1, N), lambda i: (i, 0, 0))]),
        compiler_params=_params(("parallel",)),
        cost_estimate=cost,
    )(a, w)


def _fold_stats(s_ref, q_ref, g_ref, b_ref, inv_m):
    """Fold per-tile partials into BN scale/shift (recomputed per tile; tiny)."""
    s = jnp.sum(s_ref[...], axis=0)                        # (1, N)
    q = jnp.sum(q_ref[...], axis=0)                        # (1, N)
    mean = s * inv_m
    var = jnp.maximum(q * inv_m - mean * mean, 0.0)        # biased batch var
    scale = g_ref[...] * jax.lax.rsqrt(var + _BN_EPS)
    shift = b_ref[...] - mean * scale
    return scale, shift


# ---------------------------------------------------------------------------
# Kernel 3 (BN pass 2): apply gamma/beta + LeakyReLU, bf16 output, M-tiled.
# ---------------------------------------------------------------------------
def _bn_lrelu_kernel(y_ref, s_ref, q_ref, g_ref, b_ref, o_ref, *, inv_m):
    scale, shift = _fold_stats(s_ref, q_ref, g_ref, b_ref, inv_m)
    y = y_ref[...] * scale + shift
    y = jnp.where(y > 0, y, _LRELU * y)
    o_ref[...] = y.astype(o_ref.dtype)


def bn_lrelu_apply(y, psum, psq, gamma, beta, *, tm):
    M, N = y.shape
    assert M % tm == 0
    T = psum.shape[0]
    kernel = functools.partial(_bn_lrelu_kernel, inv_m=1.0 / M)
    return pl.pallas_call(
        kernel,
        out_shape=jax.ShapeDtypeStruct((M, N), jnp.bfloat16),
        grid_spec=pltpu.PrefetchScalarGridSpec(
            num_scalar_prefetch=0,
            grid=(M // tm,),
            in_specs=[pl.BlockSpec((tm, N), lambda i: (i, 0)),
                      pl.BlockSpec((T, 1, N), lambda i: (0, 0, 0)),
                      pl.BlockSpec((T, 1, N), lambda i: (0, 0, 0)),
                      pl.BlockSpec((1, N), lambda i: (0, 0)),
                      pl.BlockSpec((1, N), lambda i: (0, 0))],
            out_specs=pl.BlockSpec((tm, N), lambda i: (i, 0))),
        compiler_params=_params(("parallel",)),
    )(y, psum, psq, gamma, beta)


# ---------------------------------------------------------------------------
# Kernel 4 (layer-3 BN pass 2 + head): BN + LeakyReLU fused with the final
# Conv(512->1, k4 valid) and an exact, numerically-stable sigmoid.
# ---------------------------------------------------------------------------
def _bn_lrelu_head_kernel(y_ref, s_ref, q_ref, g_ref, b_ref, w4_ref, o_ref,
                          *, inv_m, imgs, pos):
    scale, shift = _fold_stats(s_ref, q_ref, g_ref, b_ref, inv_m)
    y = y_ref[...] * scale + shift                         # (imgs*pos, C) f32
    y = jnp.where(y > 0, y, _LRELU * y)

    # Fused final conv: per-image dot of the 4x4xC activation with w4.
    yt = y.reshape(imgs, pos, y.shape[-1])
    z = jnp.sum(yt * w4_ref[...][None, :, :], axis=2)      # (imgs, pos)
    logit = jnp.sum(z, axis=1, keepdims=True)              # (imgs, 1)

    # Stable (exact) sigmoid — runs once per tiny tile, keep full precision.
    e = jnp.exp(-jnp.abs(logit))
    sig_pos = 1.0 / (1.0 + e)                              # sigmoid(|x|)
    o_ref[...] = jnp.where(logit >= 0, sig_pos, 1.0 - sig_pos)


def bn_lrelu_head(y, psum, psq, gamma, beta, w4, *, batch, tb):
    M, N = y.shape
    pos = w4.shape[0]                                      # 16 spatial positions
    assert M == batch * pos and batch % tb == 0
    T = psum.shape[0]
    kernel = functools.partial(_bn_lrelu_head_kernel, inv_m=1.0 / M,
                               imgs=tb, pos=pos)
    return pl.pallas_call(
        kernel,
        out_shape=jax.ShapeDtypeStruct((batch, 1), jnp.float32),
        grid_spec=pltpu.PrefetchScalarGridSpec(
            num_scalar_prefetch=0,
            grid=(batch // tb,),
            in_specs=[pl.BlockSpec((tb * pos, N), lambda i: (i, 0)),
                      pl.BlockSpec((T, 1, N), lambda i: (0, 0, 0)),
                      pl.BlockSpec((T, 1, N), lambda i: (0, 0, 0)),
                      pl.BlockSpec((1, N), lambda i: (0, 0)),
                      pl.BlockSpec((1, N), lambda i: (0, 0)),
                      pl.BlockSpec((pos, N), lambda i: (0, 0))],
            out_specs=pl.BlockSpec((tb, 1), lambda i: (i, 0))),
        compiler_params=_params(("parallel",)),
    )(y, psum, psq, gamma, beta, w4)


# ---------------------------------------------------------------------------
# Host-side glue (XLA): im2col patch extraction + weight reshapes.
# ---------------------------------------------------------------------------
def _im2col(x_nhwc, k, stride, pad):
    """Extract k x k patches -> (B*Ho*Wo, k*k*C) in (ki, kj, c) minor order."""
    B, H, W, C = x_nhwc.shape
    if pad:
        x_nhwc = jnp.pad(x_nhwc, ((0, 0), (pad, pad), (pad, pad), (0, 0)))
    Ho = (H + 2 * pad - k) // stride + 1
    Wo = (W + 2 * pad - k) // stride + 1
    cols = []
    for ki in range(k):
        for kj in range(k):
            cols.append(
                x_nhwc[:, ki:ki + stride * Ho:stride, kj:kj + stride * Wo:stride, :])
    patches = jnp.concatenate(cols, axis=-1)               # (B, Ho, Wo, k*k*C)
    return patches.reshape(B * Ho * Wo, k * k * C), Ho, Wo


def _w_oihw_to_gemm(w_oihw):
    # (C_out, C_in, kH, kW) -> (kH*kW*C_in, C_out), matching _im2col ordering.
    return jnp.transpose(w_oihw, (2, 3, 1, 0)).reshape(-1, w_oihw.shape[0])


def init_params(key):
    """Deterministic synthetic parameters matching the PyTorch module shapes."""
    ks = jax.random.split(key, 5)

    def conv_w(k, cout, cin):
        fan_in = cin * 16
        bound = 1.0 / jnp.sqrt(fan_in)
        return jax.random.uniform(k, (cout, cin, 4, 4), jnp.float32, -bound, bound)

    return {
        "emb": jax.random.normal(ks[0], (10, 10), jnp.float32),  # nn.Embedding(10, 10)
        "w1": conv_w(ks[1], 128, 13),
        "w2": conv_w(ks[2], 256, 128),
        "w3": conv_w(ks[3], 512, 256),
        "w4": conv_w(ks[4], 1, 512),
        "g2": jnp.ones((256,), jnp.float32), "b2": jnp.zeros((256,), jnp.float32),
        "g3": jnp.ones((512,), jnp.float32), "b3": jnp.zeros((512,), jnp.float32),
    }


@jax.jit
def discriminator_forward(images, labels, params):
    """images: (B, 3, 32, 32) NCHW float32, labels: (B,) int32 in [0, 10)."""
    B, _, H, W = images.shape
    bf = jnp.bfloat16

    x = jnp.transpose(images, (0, 2, 3, 1))                       # NHWC
    emb = params["emb"][labels]                                   # (B, 10) gather (XLA glue)
    emb_map = jnp.broadcast_to(emb[:, None, None, :], (B, H, W, 10))
    x = jnp.concatenate([x, emb_map], axis=-1)                    # (B, 32, 32, 13)

    # Zero-pad 13 -> 16 input channels so layer-1 K = 4*4*16 = 256 (lane aligned).
    x = jnp.pad(x, ((0, 0), (0, 0), (0, 0), (0, 3)))
    w1 = jnp.pad(params["w1"], ((0, 0), (0, 3), (0, 0), (0, 0)))

    # Layer 1: Conv(16->128, k4 s2 p1) + LeakyReLU(0.2) -> bf16
    a, Ho, Wo = _im2col(x.astype(bf), 4, 2, 1)                    # (B*256, 256)
    y = conv_gemm_lrelu(a, _w_oihw_to_gemm(w1).astype(bf),
                        tm=_tile_m(a.shape[0], 1024))
    x = y.reshape(B, Ho, Wo, 128)                                 # bf16

    # Layer 2: Conv(128->256, k4 s2 p1) + BatchNorm2d(256) + LeakyReLU(0.2)
    a, Ho, Wo = _im2col(x, 4, 2, 1)                               # (B*64, 2048) bf16
    M2 = a.shape[0]
    y2, s2, q2 = conv_gemm_stats(a, _w_oihw_to_gemm(params["w2"]).astype(bf),
                                 tm=_tile_m(M2, 512))
    act2 = bn_lrelu_apply(y2, s2, q2, params["g2"][None, :], params["b2"][None, :],
                          tm=_tile_m(M2, 1024))                   # bf16
    x = act2.reshape(B, Ho, Wo, 256)

    # Layer 3: Conv(256->512, k4 s2 p1) + BatchNorm2d(512) + LeakyReLU(0.2),
    # pass 2 fused with the final Conv(512->1, k4, valid) + sigmoid (layer 4).
    a, Ho, Wo = _im2col(x, 4, 2, 1)                               # (B*16, 4096) bf16
    M3 = a.shape[0]
    y3, s3, q3 = conv_gemm_stats(a, _w_oihw_to_gemm(params["w3"]).astype(bf),
                                 tm=_tile_m(M3, 256))
    w4 = jnp.transpose(params["w4"][0], (1, 2, 0)).reshape(16, 512)  # (kh*kw, c_in)
    out = bn_lrelu_head(y3, s3, q3, params["g3"][None, :], params["b3"][None, :],
                        w4, batch=B, tb=_tile_images(B))
    return out.reshape(-1)                                        # y.view(-1)


def _ref_forward(images, labels, params):
    """Pure-JAX f32 reference using lax.conv (same semantics) for validation."""
    B, _, H, W = images.shape
    emb = params["emb"][labels]
    emb_map = jnp.broadcast_to(emb[:, :, None, None], (B, 10, H, W))
    x = jnp.concatenate([images, emb_map], axis=1)

    def conv(x, w, stride, pad):
        return jax.lax.conv_general_dilated(
            x, w, (stride, stride), [(pad, pad), (pad, pad)],
            dimension_numbers=("NCHW", "OIHW", "NCHW"),
            precision=jax.lax.Precision.HIGHEST)

    def bn(x, g, b):
        mean = jnp.mean(x, axis=(0, 2, 3), keepdims=True)
        var = jnp.mean((x - mean) ** 2, axis=(0, 2, 3), keepdims=True)
        xhat = (x - mean) * jax.lax.rsqrt(var + _BN_EPS)
        return xhat * g[None, :, None, None] + b[None, :, None, None]

    lrelu = lambda x: jnp.where(x > 0, x, _LRELU * x)

    x = lrelu(conv(x, params["w1"], 2, 1))
    x = lrelu(bn(conv(x, params["w2"], 2, 1), params["g2"], params["b2"]))
    x = lrelu(bn(conv(x, params["w3"], 2, 1), params["g3"], params["b3"]))
    x = conv(x, params["w4"], 1, 0)
    return jax.nn.sigmoid(x.reshape(-1))


if __name__ == "__main__":
    key = jax.random.PRNGKey(0)
    kp, ki, kl = jax.random.split(key, 3)
    params = init_params(kp)

    B = 2  # spatial 32x32 and channel widths are fixed by the module architecture
    images = jax.random.normal(ki, (B, 3, 32, 32), jnp.float32)
    labels = jax.random.randint(kl, (B,), 0, 10, jnp.int32)

    out = jax.block_until_ready(discriminator_forward(images, labels, params))
    assert out.shape == (B,), out.shape

    ref = jax.block_until_ready(_ref_forward(images, labels, params))
    # bf16 MXU operands / bf16 inter-layer activations (f32 accumulation & BN
    # statistics) -> slightly looser tolerance vs the f32 reference.
    assert jnp.allclose(out, ref, rtol=3e-2, atol=3e-2), (out, ref)

    print("KERNEL_OK")
</pallas_src>

<mosaic_0001>
module attributes {stable_mosaic.version = 11 : i64} {
  func.func @_gemm_lrelu_kernel(%arg0: i32, %arg1: memref<256x256xbf16, #tpu.memory_space<vmem>>, %arg2: memref<256x128xbf16, #tpu.memory_space<vmem>>, %arg3: memref<256x128xbf16, #tpu.memory_space<vmem>>) attributes {dimension_semantics = [#tpu.dimension_semantics<parallel>], iteration_bounds = array<i64: 2>, scalar_prefetch = 0 : i64, scratch_operands = 0 : i64, tpu.core_type = #tpu.core_type<tc>, window_params = [{transform_indices = @transform_0, window_bounds = array<i64: 256, 256>}, {pipeline_mode = #tpu.pipeline_mode<synchronous>, transform_indices = @transform_1, window_bounds = array<i64: 256, 128>}, {transform_indices = @transform_2, window_bounds = array<i64: 256, 128>}]} {
    %c0 = arith.constant 0 : index
    %c0_0 = arith.constant 0 : index
    %0 = vector.load %arg1[%c0, %c0_0] : memref<256x256xbf16, #tpu.memory_space<vmem>>, vector<256x256xbf16>
    %c0_1 = arith.constant 0 : index
    %c0_2 = arith.constant 0 : index
    %1 = vector.load %arg2[%c0_1, %c0_2] : memref<256x128xbf16, #tpu.memory_space<vmem>>, vector<256x128xbf16>
    %cst = arith.constant dense<0.000000e+00> : vector<256x128xf32>
    %2 = tpu.matmul %0, %1, %cst {dimension_numbers = #tpu.dot_dimension_numbers<[1], [0], [0], [1], [0, 0, 1, 1], [], []>} : vector<256x256xbf16>, vector<256x128xbf16>, vector<256x128xf32> -> vector<256x128xf32>
    %cst_3 = arith.constant 0.000000e+00 : f32
    %3 = vector.broadcast %cst_3 : f32 to vector<256x128xf32>
    %4 = arith.cmpf ogt, %2, %3 : vector<256x128xf32>
    %cst_4 = arith.constant 2.000000e-01 : f32
    %5 = vector.broadcast %cst_4 : f32 to vector<256x128xf32>
    %6 = arith.mulf %5, %2 : vector<256x128xf32>
    %7 = arith.select %4, %2, %6 : vector<256x128xi1>, vector<256x128xf32>
    %8 = arith.truncf %7 : vector<256x128xf32> to vector<256x128xbf16>
    %c0_5 = arith.constant 0 : index
    %c0_6 = arith.constant 0 : index
    %9 = vector.load %arg3[%c0_5, %c0_6] : memref<256x128xbf16, #tpu.memory_space<vmem>>, vector<256x128xbf16>
    tpu.vector_store %arg3[%c0_5, %c0_6], %8 {strides = array<i32>} : memref<256x128xbf16, #tpu.memory_space<vmem>>, vector<256x128xbf16>,
    return
  }
  func.func @transform_0(%arg0: i32) -> (i32, i32) {
    %c0_i32 = arith.constant 0 : i32
    %c0_i32_0 = arith.constant 0 : i32
    return %arg0, %c0_i32 : i32, i32
  }
  func.func @transform_1(%arg0: i32) -> (i32, i32) {
    %c0_i32 = arith.constant 0 : i32
    %c0_i32_0 = arith.constant 0 : i32
    %c0_i32_1 = arith.constant 0 : i32
    return %c0_i32, %c0_i32_0 : i32, i32
  }
  func.func @transform_2(%arg0: i32) -> (i32, i32) {
    %c0_i32 = arith.constant 0 : i32
    %c0_i32_0 = arith.constant 0 : i32
    return %arg0, %c0_i32 : i32, i32
  }
}

module attributes {stable_mosaic.version = 11 : i64} {
  func.func @_bn_lrelu_kernel(%arg0: i32, %arg1: memref<64x256xf32, #tpu.memory_space<vmem>>, %arg2: memref<2x1x256xf32, #tpu.memory_space<vmem>>, %arg3: memref<2x1x256xf32, #tpu.memory_space<vmem>>, %arg4: memref<1x256xf32, #tpu.memory_space<vmem>>, %arg5: memref<1x256xf32, #tpu.memory_space<vmem>>, %arg6: memref<64x256xbf16, #tpu.memory_space<vmem>>) attributes {dimension_semantics = [#tpu.dimension_semantics<parallel>], iteration_bounds = array<i64: 2>, scalar_prefetch = 0 : i64, scratch_operands = 0 : i64, tpu.core_type = #tpu.core_type<tc>, window_params = [{transform_indices = @transform_0, window_bounds = array<i64: 64, 256>}, {pipeline_mode = #tpu.pipeline_mode<synchronous>, transform_indices = @transform_1, window_bounds = array<i64: 2, 1, 256>}, {pipeline_mode = #tpu.pipeline_mode<synchronous>, transform_indices = @transform_2, window_bounds = array<i64: 2, 1, 256>}, {pipeline_mode = #tpu.pipeline_mode<synchronous>, transform_indices = @transform_3, window_bounds = array<i64: 1, 256>}, {pipeline_mode = #tpu.pipeline_mode<synchronous>, transform_indices = @transform_4, window_bounds = array<i64: 1, 256>}, {transform_indices = @transform_5, window_bounds = array<i64: 64, 256>}]} {
    %c0 = arith.constant 0 : index
    %c0_0 = arith.constant 0 : index
    %c0_1 = arith.constant 0 : index
    %0 = vector.load %arg2[%c0, %c0_0, %c0_1] : memref<2x1x256xf32, #tpu.memory_space<vmem>>, vector<2x1x256xf32>
    %cst = arith.constant dense<0.000000e+00> : vector<1x256xf32>
    %1 = vector.multi_reduction <add>, %0, %cst [0] : vector<2x1x256xf32> to vector<1x256xf32>
    %c0_2 = arith.constant 0 : index
    %c0_3 = arith.constant 0 : index
    %c0_4 = arith.constant 0 : index
    %2 = vector.load %arg3[%c0_2, %c0_3, %c0_4] : memref<2x1x256xf32, #tpu.memory_space<vmem>>, vector<2x1x256xf32>
    %cst_5 = arith.constant dense<0.000000e+00> : vector<1x256xf32>
    %3 = vector.multi_reduction <add>, %2, %cst_5 [0] : vector<2x1x256xf32> to vector<1x256xf32>
    %cst_6 = arith.constant 7.812500e-03 : f32
    %4 = vector.broadcast %cst_6 : f32 to vector<1x256xf32>
    %5 = arith.mulf %1, %4 : vector<1x256xf32>
    %cst_7 = arith.constant 7.812500e-03 : f32
    %6 = vector.broadcast %cst_7 : f32 to vector<1x256xf32>
    %7 = arith.mulf %3, %6 : vector<1x256xf32>
    %8 = arith.mulf %5, %5 : vector<1x256xf32>
    %9 = arith.subf %7, %8 : vector<1x256xf32>
    %cst_8 = arith.constant 0.000000e+00 : f32
    %10 = vector.broadcast %cst_8 : f32 to vector<1x256xf32>
    %11 = arith.maximumf %9, %10 : vector<1x256xf32>
    %c0_9 = arith.constant 0 : index
    %c0_10 = arith.constant 0 : index
    %12 = vector.load %arg4[%c0_9, %c0_10] : memref<1x256xf32, #tpu.memory_space<vmem>>, vector<1x256xf32>
    %cst_11 = arith.constant 9.99999974E-6 : f32
    %13 = vector.broadcast %cst_11 : f32 to vector<1x256xf32>
    %14 = arith.addf %11, %13 : vector<1x256xf32>
    %15 = math.rsqrt %14 : vector<1x256xf32>
    %16 = arith.mulf %12, %15 : vector<1x256xf32>
    %c0_12 = arith.constant 0 : index
    %c0_13 = arith.constant 0 : index
    %17 = vector.load %arg5[%c0_12, %c0_13] : memref<1x256xf32, #tpu.memory_space<vmem>>, vector<1x256xf32>
    %18 = arith.mulf %5, %16 : vector<1x256xf32>
    %19 = arith.subf %17, %18 : vector<1x256xf32>
    %c0_14 = arith.constant 0 : index
    %c0_15 = arith.constant 0 : index
    %20 = vector.load %arg1[%c0_14, %c0_15] : memref<64x256xf32, #tpu.memory_space<vmem>>, vector<64x256xf32>
    %21 = vector.broadcast %16 : vector<1x256xf32> to vector<64x256xf32>
    %22 = arith.mulf %20, %21 : vector<64x256xf32>
    %23 = vector.broadcast %19 : vector<1x256xf32> to vector<64x256xf32>
    %24 = arith.addf %22, %23 : vector<64x256xf32>
    %cst_16 = arith.constant 0.000000e+00 : f32
    %25 = vector.broadcast %cst_16 : f32 to vector<64x256xf32>
    %26 = arith.cmpf ogt, %24, %25 : vector<64x256xf32>
    %cst_17 = arith.constant 2.000000e-01 : f32
    %27 = vector.broadcast %cst_17 : f32 to vector<64x256xf32>
    %28 = arith.mulf %27, %24 : vector<64x256xf32>
    %29 = arith.select %26, %24, %28 : vector<64x256xi1>, vector<64x256xf32>
    %30 = arith.truncf %29 : vector<64x256xf32> to vector<64x256xbf16>
    %c0_18 = arith.constant 0 : index
    %c0_19 = arith.constant 0 : index
    %31 = vector.load %arg6[%c0_18, %c0_19] : memref<64x256xbf16, #tpu.memory_space<vmem>>, vector<64x256xbf16>
    tpu.vector_store %arg6[%c0_18, %c0_19], %30 {strides = array<i32>} : memref<64x256xbf16, #tpu.memory_space<vmem>>, vector<64x256xbf16>,
    return
  }
  func.func @transform_0(%arg0: i32) -> (i32, i32) {
    %c0_i32 = arith.constant 0 : i32
    %c0_i32_0 = arith.constant 0 : i32
    return %arg0, %c0_i32 : i32, i32
  }
  func.func @transform_1(%arg0: i32) -> (i32, i32, i32) {
    %c0_i32 = arith.constant 0 : i32
    %c0_i32_0 = arith.constant 0 : i32
    %c0_i32_1 = arith.constant 0 : i32
    %c0_i32_2 = arith.constant 0 : i32
    return %c0_i32, %c0_i32_0, %c0_i32_1 : i32, i32, i32
  }
  func.func @transform_2(%arg0: i32) -> (i32, i32, i32) {
    %c0_i32 = arith.constant 0 : i32
    %c0_i32_0 = arith.constant 0 : i32
    %c0_i32_1 = arith.constant 0 : i32
    %c0_i32_2 = arith.constant 0 : i32
    return %c0_i32, %c0_i32_0, %c0_i32_1 : i32, i32, i32
  }
  func.func @transform_3(%arg0: i32) -> (i32, i32) {
    %c0_i32 = arith.constant 0 : i32
    %c0_i32_0 = arith.constant 0 : i32
    %c0_i32_1 = arith.constant 0 : i32
    return %c0_i32, %c0_i32_0 : i32, i32
  }
  func.func @transform_4(%arg0: i32) -> (i32, i32) {
    %c0_i32 = arith.constant 0 : i32
    %c0_i32_0 = arith.constant 0 : i32
    %c0_i32_1 = arith.constant 0 : i32
    return %c0_i32, %c0_i32_0 : i32, i32
  }
  func.func @transform_5(%arg0: i32) -> (i32, i32) {
    %c0_i32 = arith.constant 0 : i32
    %c0_i32_0 = arith.constant 0 : i32
    return %arg0, %c0_i32 : i32, i32
  }
}

module attributes {stable_mosaic.version = 11 : i64} {
  func.func @_gemm_stats_kernel(%arg0: i32, %arg1: memref<64x2048xbf16, #tpu.memory_space<vmem>>, %arg2: memref<2048x256xbf16, #tpu.memory_space<vmem>>, %arg3: memref<64x256xf32, #tpu.memory_space<vmem>>, %arg4: memref<1x1x256xf32, #tpu.memory_space<vmem>>, %arg5: memref<1x1x256xf32, #tpu.memory_space<vmem>>) attributes {dimension_semantics = [#tpu.dimension_semantics<parallel>], iteration_bounds = array<i64: 2>, scalar_prefetch = 0 : i64, scratch_operands = 0 : i64, tpu.core_type = #tpu.core_type<tc>, window_params = [{transform_indices = @transform_0, window_bounds = array<i64: 64, 2048>}, {pipeline_mode = #tpu.pipeline_mode<synchronous>, transform_indices = @transform_1, window_bounds = array<i64: 2048, 256>}, {transform_indices = @transform_2, window_bounds = array<i64: 64, 256>}, {transform_indices = @transform_3, window_bounds = array<i64: 1, 1, 256>}, {transform_indices = @transform_4, window_bounds = array<i64: 1, 1, 256>}]} {
    %c0 = arith.constant 0 : index
    %c0_0 = arith.constant 0 : index
    %0 = vector.load %arg1[%c0, %c0_0] : memref<64x2048xbf16, #tpu.memory_space<vmem>>, vector<64x2048xbf16>
    %c0_1 = arith.constant 0 : index
    %c0_2 = arith.constant 0 : index
    %1 = vector.load %arg2[%c0_1, %c0_2] : memref<2048x256xbf16, #tpu.memory_space<vmem>>, vector<2048x256xbf16>
    %cst = arith.constant dense<0.000000e+00> : vector<64x256xf32>
    %2 = tpu.matmul %0, %1, %cst {dimension_numbers = #tpu.dot_dimension_numbers<[1], [0], [0], [1], [0, 0, 1, 1], [], []>} : vector<64x2048xbf16>, vector<2048x256xbf16>, vector<64x256xf32> -> vector<64x256xf32>
    %c0_3 = arith.constant 0 : index
    %c0_4 = arith.constant 0 : index
    %3 = vector.load %arg3[%c0_3, %c0_4] : memref<64x256xf32, #tpu.memory_space<vmem>>, vector<64x256xf32>
    tpu.vector_store %arg3[%c0_3, %c0_4], %2 {strides = array<i32>} : memref<64x256xf32, #tpu.memory_space<vmem>>, vector<64x256xf32>,
    %cst_5 = arith.constant dense<0.000000e+00> : vector<256xf32>
    %4 = vector.multi_reduction <add>, %2, %cst_5 [0] : vector<64x256xf32> to vector<256xf32>
    %5 = vector.shape_cast %4 : vector<256xf32> to vector<1x256xf32>
    %c0_6 = arith.constant 0 : index
    %c0_7 = arith.constant 0 : index
    %c0_8 = arith.constant 0 : index
    %6 = vector.load %arg4[%c0_6, %c0_7, %c0_8] : memref<1x1x256xf32, #tpu.memory_space<vmem>>, vector<1x1x256xf32>
    %7 = vector.shape_cast %6 : vector<1x1x256xf32> to vector<1x256xf32>
    %8 = vector.shape_cast %5 : vector<1x256xf32> to vector<1x1x256xf32>
    tpu.vector_store %arg4[%c0_6, %c0_7, %c0_8], %8 {strides = array<i32>} : memref<1x1x256xf32, #tpu.memory_space<vmem>>, vector<1x1x256xf32>,
    %9 = arith.mulf %2, %2 : vector<64x256xf32>
    %cst_9 = arith.constant dense<0.000000e+00> : vector<256xf32>
    %10 = vector.multi_reduction <add>, %9, %cst_9 [0] : vector<64x256xf32> to vector<256xf32>
    %11 = vector.shape_cast %10 : vector<256xf32> to vector<1x256xf32>
    %c0_10 = arith.constant 0 : index
    %c0_11 = arith.constant 0 : index
    %c0_12 = arith.constant 0 : index
    %12 = vector.load %arg5[%c0_10, %c0_11, %c0_12] : memref<1x1x256xf32, #tpu.memory_space<vmem>>, vector<1x1x256xf32>
    %13 = vector.shape_cast %12 : vector<1x1x256xf32> to vector<1x256xf32>
    %14 = vector.shape_cast %11 : vector<1x256xf32> to vector<1x1x256xf32>
    tpu.vector_store %arg5[%c0_10, %c0_11, %c0_12], %14 {strides = array<i32>} : memref<1x1x256xf32, #tpu.memory_space<vmem>>, vector<1x1x256xf32>,
    return
  }
  func.func @transform_0(%arg0: i32) -> (i32, i32) {
    %c0_i32 = arith.constant 0 : i32
    %c0_i32_0 = arith.constant 0 : i32
    return %arg0, %c0_i32 : i32, i32
  }
  func.func @transform_1(%arg0: i32) -> (i32, i32) {
    %c0_i32 = arith.constant 0 : i32
    %c0_i32_0 = arith.constant 0 : i32
    %c0_i32_1 = arith.constant 0 : i32
    return %c0_i32, %c0_i32_0 : i32, i32
  }
  func.func @transform_2(%arg0: i32) -> (i32, i32) {
    %c0_i32 = arith.constant 0 : i32
    %c0_i32_0 = arith.constant 0 : i32
    return %arg0, %c0_i32 : i32, i32
  }
  func.func @transform_3(%arg0: i32) -> (i32, i32, i32) {
    %c0_i32 = arith.constant 0 : i32
    %c0_i32_0 = arith.constant 0 : i32
    %c0_i32_1 = arith.constant 0 : i32
    return %arg0, %c0_i32, %c0_i32_0 : i32, i32, i32
  }
  func.func @transform_4(%arg0: i32) -> (i32, i32, i32) {
    %c0_i32 = arith.constant 0 : i32
    %c0_i32_0 = arith.constant 0 : i32
    %c0_i32_1 = arith.constant 0 : i32
    return %arg0, %c0_i32, %c0_i32_0 : i32, i32, i32
  }
}

module attributes {stable_mosaic.version = 11 : i64} {
  func.func @_gemm_stats_kernel(%arg0: i32, %arg1: memref<16x4096xbf16, #tpu.memory_space<vmem>>, %arg2: memref<4096x512xbf16, #tpu.memory_space<vmem>>, %arg3: memref<16x512xf32, #tpu.memory_space<vmem>>, %arg4: memref<1x1x512xf32, #tpu.memory_space<vmem>>, %arg5: memref<1x1x512xf32, #tpu.memory_space<vmem>>) attributes {dimension_semantics = [#tpu.dimension_semantics<parallel>], iteration_bounds = array<i64: 2>, scalar_prefetch = 0 : i64, scratch_operands = 0 : i64, tpu.core_type = #tpu.core_type<tc>, window_params = [{transform_indices = @transform_0, window_bounds = array<i64: 16, 4096>}, {pipeline_mode = #tpu.pipeline_mode<synchronous>, transform_indices = @transform_1, window_bounds = array<i64: 4096, 512>}, {transform_indices = @transform_2, window_bounds = array<i64: 16, 512>}, {transform_indices = @transform_3, window_bounds = array<i64: 1, 1, 512>}, {transform_indices = @transform_4, window_bounds = array<i64: 1, 1, 512>}]} {
    %c0 = arith.constant 0 : index
    %c0_0 = arith.constant 0 : index
    %0 = vector.load %arg1[%c0, %c0_0] : memref<16x4096xbf16, #tpu.memory_space<vmem>>, vector<16x4096xbf16>
    %c0_1 = arith.constant 0 : index
    %c0_2 = arith.constant 0 : index
    %1 = vector.load %arg2[%c0_1, %c0_2] : memref<4096x512xbf16, #tpu.memory_space<vmem>>, vector<4096x512xbf16>
    %cst = arith.constant dense<0.000000e+00> : vector<16x512xf32>
    %2 = tpu.matmul %0, %1, %cst {dimension_numbers = #tpu.dot_dimension_numbers<[1], [0], [0], [1], [0, 0, 1, 1], [], []>} : vector<16x4096xbf16>, vector<4096x512xbf16>, vector<16x512xf32> -> vector<16x512xf32>
    %c0_3 = arith.constant 0 : index
    %c0_4 = arith.constant 0 : index
    %3 = vector.load %arg3[%c0_3, %c0_4] : memref<16x512xf32, #tpu.memory_space<vmem>>, vector<16x512xf32>
    tpu.vector_store %arg3[%c0_3, %c0_4], %2 {strides = array<i32>} : memref<16x512xf32, #tpu.memory_space<vmem>>, vector<16x512xf32>,
    %cst_5 = arith.constant dense<0.000000e+00> : vector<512xf32>
    %4 = vector.multi_reduction <add>, %2, %cst_5 [0] : vector<16x512xf32> to vector<512xf32>
    %5 = vector.shape_cast %4 : vector<512xf32> to vector<1x512xf32>
    %c0_6 = arith.constant 0 : index
    %c0_7 = arith.constant 0 : index
    %c0_8 = arith.constant 0 : index
    %6 = vector.load %arg4[%c0_6, %c0_7, %c0_8] : memref<1x1x512xf32, #tpu.memory_space<vmem>>, vector<1x1x512xf32>
    %7 = vector.shape_cast %6 : vector<1x1x512xf32> to vector<1x512xf32>
    %8 = vector.shape_cast %5 : vector<1x512xf32> to vector<1x1x512xf32>
    tpu.vector_store %arg4[%c0_6, %c0_7, %c0_8], %8 {strides = array<i32>} : memref<1x1x512xf32, #tpu.memory_space<vmem>>, vector<1x1x512xf32>,
    %9 = arith.mulf %2, %2 : vector<16x512xf32>
    %cst_9 = arith.constant dense<0.000000e+00> : vector<512xf32>
    %10 = vector.multi_reduction <add>, %9, %cst_9 [0] : vector<16x512xf32> to vector<512xf32>
    %11 = vector.shape_cast %10 : vector<512xf32> to vector<1x512xf32>
    %c0_10 = arith.constant 0 : index
    %c0_11 = arith.constant 0 : index
    %c0_12 = arith.constant 0 : index
    %12 = vector.load %arg5[%c0_10, %c0_11, %c0_12] : memref<1x1x512xf32, #tpu.memory_space<vmem>>, vector<1x1x512xf32>
    %13 = vector.shape_cast %12 : vector<1x1x512xf32> to vector<1x512xf32>
    %14 = vector.shape_cast %11 : vector<1x512xf32> to vector<1x1x512xf32>
    tpu.vector_store %arg5[%c0_10, %c0_11, %c0_12], %14 {strides = array<i32>} : memref<1x1x512xf32, #tpu.memory_space<vmem>>, vector<1x1x512xf32>,
    return
  }
  func.func @transform_0(%arg0: i32) -> (i32, i32) {
    %c0_i32 = arith.constant 0 : i32
    %c0_i32_0 = arith.constant 0 : i32
    return %arg0, %c0_i32 : i32, i32
  }
  func.func @transform_1(%arg0: i32) -> (i32, i32) {
    %c0_i32 = arith.constant 0 : i32
    %c0_i32_0 = arith.constant 0 : i32
    %c0_i32_1 = arith.constant 0 : i32
    return %c0_i32, %c0_i32_0 : i32, i32
  }
  func.func @transform_2(%arg0: i32) -> (i32, i32) {
    %c0_i32 = arith.constant 0 : i32
    %c0_i32_0 = arith.constant 0 : i32
    return %arg0, %c0_i32 : i32, i32
  }
  func.func @transform_3(%arg0: i32) -> (i32, i32, i32) {
    %c0_i32 = arith.constant 0 : i32
    %c0_i32_0 = arith.constant 0 : i32
    %c0_i32_1 = arith.constant 0 : i32
    return %arg0, %c0_i32, %c0_i32_0 : i32, i32, i32
  }
  func.func @transform_4(%arg0: i32) -> (i32, i32, i32) {
    %c0_i32 = arith.constant 0 : i32
    %c0_i32_0 = arith.constant 0 : i32
    %c0_i32_1 = arith.constant 0 : i32
    return %arg0, %c0_i32, %c0_i32_0 : i32, i32, i32
  }
}

module attributes {stable_mosaic.version = 11 : i64} {
  func.func @_bn_lrelu_head_kernel(%arg0: i32, %arg1: memref<32x512xf32, #tpu.memory_space<vmem>>, %arg2: memref<2x1x512xf32, #tpu.memory_space<vmem>>, %arg3: memref<2x1x512xf32, #tpu.memory_space<vmem>>, %arg4: memref<1x512xf32, #tpu.memory_space<vmem>>, %arg5: memref<1x512xf32, #tpu.memory_space<vmem>>, %arg6: memref<16x512xf32, #tpu.memory_space<vmem>>, %arg7: memref<2x1xf32, #tpu.memory_space<vmem>>) attributes {dimension_semantics = [#tpu.dimension_semantics<parallel>], iteration_bounds = array<i64: 1>, scalar_prefetch = 0 : i64, scratch_operands = 0 : i64, tpu.core_type = #tpu.core_type<tc>, window_params = [{transform_indices = @transform_0, window_bounds = array<i64: 32, 512>}, {pipeline_mode = #tpu.pipeline_mode<synchronous>, transform_indices = @transform_1, window_bounds = array<i64: 2, 1, 512>}, {pipeline_mode = #tpu.pipeline_mode<synchronous>, transform_indices = @transform_2, window_bounds = array<i64: 2, 1, 512>}, {pipeline_mode = #tpu.pipeline_mode<synchronous>, transform_indices = @transform_3, window_bounds = array<i64: 1, 512>}, {pipeline_mode = #tpu.pipeline_mode<synchronous>, transform_indices = @transform_4, window_bounds = array<i64: 1, 512>}, {pipeline_mode = #tpu.pipeline_mode<synchronous>, transform_indices = @transform_5, window_bounds = array<i64: 16, 512>}, {transform_indices = @transform_6, window_bounds = array<i64: 2, 1>}]} {
    %c0 = arith.constant 0 : index
    %c0_0 = arith.constant 0 : index
    %c0_1 = arith.constant 0 : index
    %0 = vector.load %arg2[%c0, %c0_0, %c0_1] : memref<2x1x512xf32, #tpu.memory_space<vmem>>, vector<2x1x512xf32>
    %cst = arith.constant dense<0.000000e+00> : vector<1x512xf32>
    %1 = vector.multi_reduction <add>, %0, %cst [0] : vector<2x1x512xf32> to vector<1x512xf32>
    %c0_2 = arith.constant 0 : index
    %c0_3 = arith.constant 0 : index
    %c0_4 = arith.constant 0 : index
    %2 = vector.load %arg3[%c0_2, %c0_3, %c0_4] : memref<2x1x512xf32, #tpu.memory_space<vmem>>, vector<2x1x512xf32>
    %cst_5 = arith.constant dense<0.000000e+00> : vector<1x512xf32>
    %3 = vector.multi_reduction <add>, %2, %cst_5 [0] : vector<2x1x512xf32> to vector<1x512xf32>
    %cst_6 = arith.constant 3.125000e-02 : f32
    %4 = vector.broadcast %cst_6 : f32 to vector<1x512xf32>
    %5 = arith.mulf %1, %4 : vector<1x512xf32>
    %cst_7 = arith.constant 3.125000e-02 : f32
    %6 = vector.broadcast %cst_7 : f32 to vector<1x512xf32>
    %7 = arith.mulf %3, %6 : vector<1x512xf32>
    %8 = arith.mulf %5, %5 : vector<1x512xf32>
    %9 = arith.subf %7, %8 : vector<1x512xf32>
    %cst_8 = arith.constant 0.000000e+00 : f32
    %10 = vector.broadcast %cst_8 : f32 to vector<1x512xf32>
    %11 = arith.maximumf %9, %10 : vector<1x512xf32>
    %c0_9 = arith.constant 0 : index
    %c0_10 = arith.constant 0 : index
    %12 = vector.load %arg4[%c0_9, %c0_10] : memref<1x512xf32, #tpu.memory_space<vmem>>, vector<1x512xf32>
    %cst_11 = arith.constant 9.99999974E-6 : f32
    %13 = vector.broadcast %cst_11 : f32 to vector<1x512xf32>
    %14 = arith.addf %11, %13 : vector<1x512xf32>
    %15 = math.rsqrt %14 : vector<1x512xf32>
    %16 = arith.mulf %12, %15 : vector<1x512xf32>
    %c0_12 = arith.constant 0 : index
    %c0_13 = arith.constant 0 : index
    %17 = vector.load %arg5[%c0_12, %c0_13] : memref<1x512xf32, #tpu.memory_space<vmem>>, vector<1x512xf32>
    %18 = arith.mulf %5, %16 : vector<1x512xf32>
    %19 = arith.subf %17, %18 : vector<1x512xf32>
    %c0_14 = arith.constant 0 : index
    %c0_15 = arith.constant 0 : index
    %20 = vector.load %arg1[%c0_14, %c0_15] : memref<32x512xf32, #tpu.memory_space<vmem>>, vector<32x512xf32>
    %21 = vector.broadcast %16 : vector<1x512xf32> to vector<32x512xf32>
    %22 = arith.mulf %20, %21 : vector<32x512xf32>
    %23 = vector.broadcast %19 : vector<1x512xf32> to vector<32x512xf32>
    %24 = arith.addf %22, %23 : vector<32x512xf32>
    %cst_16 = arith.constant 0.000000e+00 : f32
    %25 = vector.broadcast %cst_16 : f32 to vector<32x512xf32>
    %26 = arith.cmpf ogt, %24, %25 : vector<32x512xf32>
    %cst_17 = arith.constant 2.000000e-01 : f32
    %27 = vector.broadcast %cst_17 : f32 to vector<32x512xf32>
    %28 = arith.mulf %27, %24 : vector<32x512xf32>
    %29 = arith.select %26, %24, %28 : vector<32x512xi1>, vector<32x512xf32>
    %30 = vector.shape_cast %29 : vector<32x512xf32> to vector<2x16x512xf32>
    %c0_18 = arith.constant 0 : index
    %c0_19 = arith.constant 0 : index
    %31 = vector.load %arg6[%c0_18, %c0_19] : memref<16x512xf32, #tpu.memory_space<vmem>>, vector<16x512xf32>
    %32 = vector.shape_cast %31 : vector<16x512xf32> to vector<1x16x512xf32>
    %33 = vector.broadcast %32 : vector<1x16x512xf32> to vector<2x16x512xf32>
    %34 = arith.mulf %30, %33 : vector<2x16x512xf32>
    %cst_20 = arith.constant dense<0.000000e+00> : vector<2x16xf32>
    %35 = vector.multi_reduction <add>, %34, %cst_20 [2] : vector<2x16x512xf32> to vector<2x16xf32>
    %cst_21 = arith.constant dense<0.000000e+00> : vector<2xf32>
    %36 = vector.multi_reduction <add>, %35, %cst_21 [1] : vector<2x16xf32> to vector<2xf32>
    %37 = vector.shape_cast %36 : vector<2xf32> to vector<2x1xf32>
    %38 = math.absf %37 : vector<2x1xf32>
    %cst_22 = arith.constant 0.000000e+00 : f32
    %39 = vector.broadcast %cst_22 : f32 to vector<2x1xf32>
    %40 = arith.subf %39, %38 : vector<2x1xf32>
    %41 = math.exp %40 : vector<2x1xf32>
    %cst_23 = arith.constant 1.000000e+00 : f32
    %42 = vector.broadcast %cst_23 : f32 to vector<2x1xf32>
    %43 = arith.addf %42, %41 : vector<2x1xf32>
    %cst_24 = arith.constant 1.000000e+00 : f32
    %44 = vector.broadcast %cst_24 : f32 to vector<2x1xf32>
    %45 = arith.divf %44, %43 : vector<2x1xf32>
    %cst_25 = arith.constant 0.000000e+00 : f32
    %46 = vector.broadcast %cst_25 : f32 to vector<2x1xf32>
    %47 = arith.cmpf oge, %37, %46 : vector<2x1xf32>
    %cst_26 = arith.constant 1.000000e+00 : f32
    %48 = vector.broadcast %cst_26 : f32 to vector<2x1xf32>
    %49 = arith.subf %48, %45 : vector<2x1xf32>
    %50 = arith.select %47, %45, %49 : vector<2x1xi1>, vector<2x1xf32>
    %c0_27 = arith.constant 0 : index
    %c0_28 = arith.constant 0 : index
    %51 = vector.load %arg7[%c0_27, %c0_28] : memref<2x1xf32, #tpu.memory_space<vmem>>, vector<2x1xf32>
    tpu.vector_store %arg7[%c0_27, %c0_28], %50 {strides = array<i32>} : memref<2x1xf32, #tpu.memory_space<vmem>>, vector<2x1xf32>,
    return
  }
  func.func @transform_0(%arg0: i32) -> (i32, i32) {
    %c0_i32 = arith.constant 0 : i32
    %c0_i32_0 = arith.constant 0 : i32
    return %arg0, %c0_i32 : i32, i32
  }
  func.func @transform_1(%arg0: i32) -> (i32, i32, i32) {
    %c0_i32 = arith.constant 0 : i32
    %c0_i32_0 = arith.constant 0 : i32
    %c0_i32_1 = arith.constant 0 : i32
    %c0_i32_2 = arith.constant 0 : i32
    return %c0_i32, %c0_i32_0, %c0_i32_1 : i32, i32, i32
  }
  func.func @transform_2(%arg0: i32) -> (i32, i32, i32) {
    %c0_i32 = arith.constant 0 : i32
    %c0_i32_0 = arith.constant 0 : i32
    %c0_i32_1 = arith.constant 0 : i32
    %c0_i32_2 = arith.constant 0 : i32
    return %c0_i32, %c0_i32_0, %c0_i32_1 : i32, i32, i32
  }
  func.func @transform_3(%arg0: i32) -> (i32, i32) {
    %c0_i32 = arith.constant 0 : i32
    %c0_i32_0 = arith.constant 0 : i32
    %c0_i32_1 = arith.constant 0 : i32
    return %c0_i32, %c0_i32_0 : i32, i32
  }
  func.func @transform_4(%arg0: i32) -> (i32, i32) {
    %c0_i32 = arith.constant 0 : i32
    %c0_i32_0 = arith.constant 0 : i32
    %c0_i32_1 = arith.constant 0 : i32
    return %c0_i32, %c0_i32_0 : i32, i32
  }
  func.func @transform_5(%arg0: i32) -> (i32, i32) {
    %c0_i32 = arith.constant 0 : i32
    %c0_i32_0 = arith.constant 0 : i32
    %c0_i32_1 = arith.constant 0 : i32
    return %c0_i32, %c0_i32_0 : i32, i32
  }
  func.func @transform_6(%arg0: i32) -> (i32, i32) {
    %c0_i32 = arith.constant 0 : i32
    %c0_i32_0 = arith.constant 0 : i32
    return %arg0, %c0_i32 : i32, i32
  }
}

</mosaic_0001>

<llo_original>
// kernel: discriminator_forward.5
$region0: #{discriminator_forward.5}
  #allocation0 [shape = 'u32[]', space=smem, size = 0x4, offset = 0x4, fixed_abs, tag = 'smem constant byte address 0x4 - core index']
  #allocation1 [shape = 'u32[144,128]{1,0:T(1,128)}', space=vmem, size = 0x12000, scoped, tag = 'internal scratch']
  %s0 = inlined_call_operand.vmem [shape: bf16[512,256], index: 0, kind: input, shape index: {}]
  %s1 = inlined_call_operand.vmem [shape: bf16[256,128], index: 1, kind: input, shape index: {}]
  %s2 = inlined_call_operand.vmem [shape: bf16[512,128], index: 2, kind: output, shape index: {}]
  %s3 = sld [smem:[#allocation0]]
  $region41: #{discriminator_forward.5} parent=0
    _
  %s5 = ssub.s32 1, %s3
  %s6 = scalar_select 0, %s5, %s3
  loop: start=0, step=1, limit=4
  $region2: #{discriminator_forward.5} parent=0 // loop_pre_header
    _
  $region3: #{discriminator_forward.5} parent=0 // loop_header
    %s8 = sphi 0, %s12
    %p9 = scmp.ge.s32.totalorder %s8, 4
    %s18 = sphi 0, %s20
    %s21 = sphi 0, %s18
    %s22 = sphi 0, %s21
    %s38 = sphi 0, %s22
    %s42 = sphi 0, %s42
    %s44 = sphi 0, %s42
    %s45 = sphi 0, %s44
    %s59 = sphi 0, %s45
    %s65 = sphi 0, %s67
    %s68 = sphi 0, %s65
    %s69 = sphi 0, %s68
    %s85 = sphi 0, %s69
  $region4: #{discriminator_forward.5} parent=0 // loop_header_branch
    %11 = sbr.rel (%p9) target = $region8
  $region5: #{discriminator_forward.5} parent=0 // loop_body
    %s13 = ssub.s32 %s8, 1
    %s14 = ssub.s32 %s8, 2
    %s15 = sadd.s32 %s8, 1
    %s16 = ssub.s32 %s8, %s15
    %p17 = scmp.eq.s32.totalorder %s16, 0
    %s19 = sadd.s32 %s18, 1
    %s20 = scalar_select %p17, %s18, %s19
    %p23 = pneg %p17
    %p24 = scmp.eq.s32.totalorder %s8, 1
    %p25 = por %p23, %p24
    %p26 = scmp.ne.s32.totalorder %s18, %s21
    %p27 = scmp.eq.s32.totalorder %s8, 0
    %p28 = por %p26, %p27
    %p29 = scmp.ne.s32.totalorder %s18, %s21
    %p30 = scmp.eq.s32.totalorder %s13, 1
    %p31 = por %p29, %p30
    %p32 = scmp.ne.s32.totalorder %s21, %s22
    %p33 = scmp.eq.s32.totalorder %s13, 0
    %p34 = por %p32, %p33
    %p35 = scmp.ne.s32.totalorder %s21, %s22
    %p36 = scmp.eq.s32.totalorder %s14, 1
    %p37 = por %p35, %p36
    %p39 = scmp.ne.s32.totalorder %s22, %s38
    %p40 = scmp.eq.s32.totalorder %s14, 0
    %p41 = por %p39, %p40
    %s43 = sadd.s32 %s42, 1
    %p46 = scmp.eq.s32.totalorder %s8, 1
    %p47 = scmp.ne.s32.totalorder %s42, %s44
    %p48 = scmp.eq.s32.totalorder %s8, 0
    %p49 = por %p47, %p48
    %p50 = scmp.ne.s32.totalorder %s42, %s44
    %p51 = scmp.eq.s32.totalorder %s13, 1
    %p52 = por %p50, %p51
    %p53 = scmp.ne.s32.totalorder %s44, %s45
    %p54 = scmp.eq.s32.totalorder %s13, 0
    %p55 = por %p53, %p54
    %p56 = scmp.ne.s32.totalorder %s44, %s45
    %p57 = scmp.eq.s32.totalorder %s14, 1
    %p58 = por %p56, %p57
    %p60 = scmp.ne.s32.totalorder %s45, %s59
    %p61 = scmp.eq.s32.totalorder %s14, 0
    %p62 = por %p60, %p61
    %s63 = ssub.s32 %s8, %s15
    %p64 = scmp.eq.s32.totalorder %s63, 0
    %s66 = sadd.s32 %s65, 1
    %s67 = scalar_select %p64, %s65, %s66
    %p70 = pneg %p64
    %p71 = scmp.eq.s32.totalorder %s8, 1
    %p72 = por %p70, %p71
    %p73 = scmp.ne.s32.totalorder %s65, %s68
    %p74 = scmp.eq.s32.totalorder %s8, 0
    %p75 = por %p73, %p74
    %p76 = scmp.ne.s32.totalorder %s65, %s68
    %p77 = scmp.eq.s32.totalorder %s13, 1
    %p78 = por %p76, %p77
    %p79 = scmp.ne.s32.totalorder %s68, %s69
    %p80 = scmp.eq.s32.totalorder %s13, 0
    %p81 = por %p79, %p80
    %p82 = scmp.ne.s32.totalorder %s68, %s69
    %p83 = scmp.eq.s32.totalorder %s14, 1
    %p84 = por %p82, %p83
    %p86 = scmp.ne.s32.totalorder %s69, %s85
    %p87 = scmp.eq.s32.totalorder %s14, 0
    %p88 = por %p86, %p87
    %p89 = scmp.le.s32.totalorder 1, %s8
    %p90 = scmp.lt.s32.totalorder %s8, 3
    %p91 = pnand %p89, %p90
    %p92 = pneg %p91
    // Predicated region
    $region9: #{discriminator_forward.5} parent=5 // pred_check
      _
    $region10: #{discriminator_forward.5} parent=5 // pred_check_branch
      %94 = sbr.rel (%p91) target = $region12
    $region11: #{discriminator_forward.5} parent=5 // pred_region
      %s95 = ssub.s32 %s8, 1
      // Predicated region
      $region13: #{discriminator_forward.5} parent=11 // pred_check
        %p96 = pneg %p55
      $region14: #{discriminator_forward.5} parent=11 // pred_check_branch
        %98 = sbr.rel (%p96) target = $region16
      $region15: #{discriminator_forward.5} parent=11 // pred_region
        _
      $region16: #{discriminator_forward.5} parent=11 // pred_fallthru
        _
    $region12: #{discriminator_forward.5} parent=5 // pred_fallthru
      _
    %p99 = scmp.lt.s32.totalorder %s8, 2
    // Predicated region
    $region17: #{discriminator_forward.5} parent=5 // pred_check
      %p100 = pneg %p99
    $region18: #{discriminator_forward.5} parent=5 // pred_check_branch
      %102 = sbr.rel (%p100) target = $region20
    $region19: #{discriminator_forward.5} parent=5 // pred_region
      // Predicated region
      $region21: #{discriminator_forward.5} parent=19 // pred_check
        %p103 = pneg %p28
      $region22: #{discriminator_forward.5} parent=19 // pred_check_branch
        %105 = sbr.rel (%p103) target = $region24
      $region23: #{discriminator_forward.5} parent=19 // pred_region
        %s106 = smul.u32 32, %s8
        %p107 = scmp.lt.s32.totalorder %s106, 63
        %s108 = scalar_select %p107, %s106, 63
        %s109 = smul.addr %s108, 2
        %s110 = smul.addr %s109, 4
        %s111 = scalar_lea.vmem %s0, %s110
        %s112 = smul.u32 32, %s8
      $region24: #{discriminator_forward.5} parent=19 // pred_fallthru
        _
    $region20: #{discriminator_forward.5} parent=5 // pred_fallthru
      _
    %p113 = scmp.le.s32.totalorder 1, %s8
    %p114 = scmp.lt.s32.totalorder %s8, 3
    %p115 = pnand %p113, %p114
    %p116 = pneg %p115
    // Predicated region
    $region25: #{discriminator_forward.5} parent=5 // pred_check
      _
    $region26: #{discriminator_forward.5} parent=5 // pred_check_branch
      %118 = sbr.rel (%p115) target = $region28
    $region27: #{discriminator_forward.5} parent=5 // pred_region
      %s119 = ssub.s32 %s8, 1
      %s120 = smul.u32 32, %s13
      %p121 = scmp.lt.s32.totalorder %s120, 63
      %s122 = scalar_select %p121, %s120, 63
      %s123 = smul.addr %s122, 2
      %s124 = smul.addr %s123, 4
      %s125 = scalar_lea.vmem %s0, %s124
      %p126 = pneg %p34
      %p127 = pneg %p31
      %p128 = pneg %p55
      %p129 = pneg %p52
      %p130 = pneg %p81
      %p131 = pneg %p78
      %s132 = smul.u32 32, %s13
      %p133 = scmp.lt.s32.totalorder %s132, 63
      %s134 = scalar_select %p133, %s132, 63
      %s135 = smul.addr %s134, 4
      %s136 = scalar_lea.vmem %s2, %s135
      %s137 = smul.u32 32, %s13
      %p138 = scmp.lt.s32.totalorder %s137, 63
      %s139 = scalar_select %p138, %s137, 63
      %s140 = smul.addr %s139, 2
      %s141 = smul.addr %s140, 4
      %s142 = scalar_lea.vmem %s0, %s141
      %s143 = smul.u32 32, %s13
      %s144 = smul.u32 32, %s13
      %p145 = scmp.lt.s32.totalorder %s144, 63
      %s146 = scalar_select %p145, %s144, 63
      %s147 = smul.addr %s146, 4
      %s148 = scalar_lea.vmem %s2, %s147
      %s149 = smul.u32 32, %s13
      %v151 = vld [vmem:[%s142] sm:$0xff]
      %v152 = vld [vmem:[%s142 + $0x8] sm:$0xff]
      %v153 = vld [vmem:[%s142 + $0x10] sm:$0xff]
      %v154 = vld [vmem:[%s142 + $0x18] sm:$0xff]
      %v155 = vld [vmem:[%s142 + $0x20] sm:$0xff]
      %v156 = vld [vmem:[%s142 + $0x28] sm:$0xff]
      %v157 = vld [vmem:[%s142 + $0x30] sm:$0xff]
      %v158 = vld [vmem:[%s142 + $0x38] sm:$0xff]
      %v159 = vld [vmem:[%s142 + $0x40] sm:$0xff]
      %v160 = vld [vmem:[%s142 + $0x48] sm:$0xff]
      %v161 = vld [vmem:[%s142 + $0x50] sm:$0xff]
      %v162 = vld [vmem:[%s142 + $0x58] sm:$0xff]
      %v163 = vld [vmem:[%s142 + $0x60] sm:$0xff]
      %v164 = vld [vmem:[%s142 + $0x68] sm:$0xff]
      %v165 = vld [vmem:[%s142 + $0x70] sm:$0xff]
      %v166 = vld [vmem:[%s142 + $0x78] sm:$0xff]
      %v167 = vld [vmem:[%s142 + $0x80] sm:$0xff]
      %v168 = vld [vmem:[%s142 + $0x88] sm:$0xff]
      %v169 = vld [vmem:[%s142 + $0x90] sm:$0xff]
      %v170 = vld [vmem:[%s142 + $0x98] sm:$0xff]
      %v171 = vld [vmem:[%s142 + $0xa0] sm:$0xff]
      %v172 = vld [vmem:[%s142 + $0xa8] sm:$0xff]
      %v173 = vld [vmem:[%s142 + $0xb0] sm:$0xff]
      %v174 = vld [vmem:[%s142 + $0xb8] sm:$0xff]
      %v175 = vld [vmem:[%s142 + $0xc0] sm:$0xff]
      %v176 = vld [vmem:[%s142 + $0xc8] sm:$0xff]
      %v177 = vld [vmem:[%s142 + $0xd0] sm:$0xff]
      %v178 = vld [vmem:[%s142 + $0xd8] sm:$0xff]
      %v179 = vld [vmem:[%s142 + $0xe0] sm:$0xff]
      %v180 = vld [vmem:[%s142 + $0xe8] sm:$0xff]
      %v181 = vld [vmem:[%s142 + $0xf0] sm:$0xff]
      %v182 = vld [vmem:[%s142 + $0xf8] sm:$0xff]
      %v183 = vld [vmem:[%s1] sm:$0xf]
      %v184 = vld [vmem:[%s1 + $0x4] sm:$0xf]
      %v185 = vld [vmem:[%s1 + $0x8] sm:$0xf]
      %v186 = vld [vmem:[%s1 + $0xc] sm:$0xf]
      %v187 = vld [vmem:[%s1 + $0x10] sm:$0xf]
      %v188 = vld [vmem:[%s1 + $0x14] sm:$0xf]
      %v189 = vld [vmem:[%s1 + $0x18] sm:$0xf]
      %v190 = vld [vmem:[%s1 + $0x1c] sm:$0xf]
      %v191 = vld [vmem:[%s1 + $0x20] sm:$0xf]
      %v192 = vld [vmem:[%s1 + $0x24] sm:$0xf]
      %v193 = vld [vmem:[%s1 + $0x28] sm:$0xf]
      %v194 = vld [vmem:[%s1 + $0x2c] sm:$0xf]
      %v195 = vld [vmem:[%s1 + $0x30] sm:$0xf]
      %v196 = vld [vmem:[%s1 + $0x34] sm:$0xf]
      %v197 = vld [vmem:[%s1 + $0x38] sm:$0xf]
      %v198 = vld [vmem:[%s1 + $0x3c] sm:$0xf]
      %v199 = vld [vmem:[%s1 + $0x40] sm:$0xf]
      %v200 = vld [vmem:[%s1 + $0x44] sm:$0xf]
      %v201 = vld [vmem:[%s1 + $0x48] sm:$0xf]
      %v202 = vld [vmem:[%s1 + $0x4c] sm:$0xf]
      %v203 = vld [vmem:[%s1 + $0x50] sm:$0xf]
      %v204 = vld [vmem:[%s1 + $0x54] sm:$0xf]
      %v205 = vld [vmem:[%s1 + $0x58] sm:$0xf]
      %v206 = vld [vmem:[%s1 + $0x5c] sm:$0xf]
      %v207 = vld [vmem:[%s1 + $0x60] sm:$0xf]
      %v208 = vld [vmem:[%s1 + $0x64] sm:$0xf]
      %v209 = vld [vmem:[%s1 + $0x68] sm:$0xf]
      %v210 = vld [vmem:[%s1 + $0x6c] sm:$0xf]
      %v211 = vld [vmem:[%s1 + $0x70] sm:$0xf]
      %v212 = vld [vmem:[%s1 + $0x74] sm:$0xf]
      %v213 = vld [vmem:[%s1 + $0x78] sm:$0xf]
      %v214 = vld [vmem:[%s1 + $0x7c] sm:$0xf]
      %v247 = vunpack.c.l.b16 %v151
      %v248 = vunpack.c.h.b16 %v151
      %v249 = vunpack.c.l.b16 %v152
      %v250 = vunpack.c.h.b16 %v152
      %v251 = vunpack.c.l.b16 %v153
      %v252 = vunpack.c.h.b16 %v153
      %v253 = vunpack.c.l.b16 %v154
      %v254 = vunpack.c.h.b16 %v154
      %v255 = vunpack.c.l.b16 %v155
      %v256 = vunpack.c.h.b16 %v155
      %v257 = vunpack.c.l.b16 %v156
      %v258 = vunpack.c.h.b16 %v156
      %v259 = vunpack.c.l.b16 %v157
      %v260 = vunpack.c.h.b16 %v157
      %v261 = vunpack.c.l.b16 %v158
      %v262 = vunpack.c.h.b16 %v158
      %v263 = vunpack.c.l.b16 %v159
      %v264 = vunpack.c.h.b16 %v159
      %v265 = vunpack.c.l.b16 %v160
      %v266 = vunpack.c.h.b16 %v160
      %v267 = vunpack.c.l.b16 %v161
      %v268 = vunpack.c.h.b16 %v161
      %v269 = vunpack.c.l.b16 %v162
      %v270 = vunpack.c.h.b16 %v162
      %v271 = vunpack.c.l.b16 %v163
      %v272 = vunpack.c.h.b16 %v163
      %v273 = vunpack.c.l.b16 %v164
      %v274 = vunpack.c.h.b16 %v164
      %v275 = vunpack.c.l.b16 %v165
      %v276 = vunpack.c.h.b16 %v165
      %v277 = vunpack.c.l.b16 %v166
      %v278 = vunpack.c.h.b16 %v166
      %v279 = vunpack.c.l.b16 %v167
      %v280 = vunpack.c.h.b16 %v167
      %v281 = vunpack.c.l.b16 %v168
      %v282 = vunpack.c.h.b16 %v168
      %v283 = vunpack.c.l.b16 %v169
      %v284 = vunpack.c.h.b16 %v169
      %v285 = vunpack.c.l.b16 %v170
      %v286 = vunpack.c.h.b16 %v170
      %v287 = vunpack.c.l.b16 %v171
      %v288 = vunpack.c.h.b16 %v171
      %v289 = vunpack.c.l.b16 %v172
      %v290 = vunpack.c.h.b16 %v172
      %v291 = vunpack.c.l.b16 %v173
      %v292 = vunpack.c.h.b16 %v173
      %v293 = vunpack.c.l.b16 %v174
      %v294 = vunpack.c.h.b16 %v174
      %v295 = vunpack.c.l.b16 %v175
      %v296 = vunpack.c.h.b16 %v175
      %v297 = vunpack.c.l.b16 %v176
      %v298 = vunpack.c.h.b16 %v176
      %v299 = vunpack.c.l.b16 %v177
      %v300 = vunpack.c.h.b16 %v177
      %v301 = vunpack.c.l.b16 %v178
      %v302 = vunpack.c.h.b16 %v178
      %v303 = vunpack.c.l.b16 %v179
      %v304 = vunpack.c.h.b16 %v179
      %v305 = vunpack.c.l.b16 %v180
      %v306 = vunpack.c.h.b16 %v180
      %v307 = vunpack.c.l.b16 %v181
      %v308 = vunpack.c.h.b16 %v181
      %v309 = vunpack.c.l.b16 %v182
      %v310 = vunpack.c.h.b16 %v182
      %v311 = vpack.c.b16 %v249, %v247
      %v312 = vpack.c.b16 %v250, %v248
      %v313 = vpack.c.b16 %v253, %v251
      %v314 = vpack.c.b16 %v254, %v252
      %v315 = vpack.c.b16 %v257, %v255
      %v316 = vpack.c.b16 %v258, %v256
      %v317 = vpack.c.b16 %v261, %v259
      %v318 = vpack.c.b16 %v262, %v260
      %v319 = vpack.c.b16 %v265, %v263
      %v320 = vpack.c.b16 %v266, %v264
      %v321 = vpack.c.b16 %v269, %v267
      %v322 = vpack.c.b16 %v270, %v268
      %v323 = vpack.c.b16 %v273, %v271
      %v324 = vpack.c.b16 %v274, %v272
      %v325 = vpack.c.b16 %v277, %v275
      %v326 = vpack.c.b16 %v278, %v276
      %v327 = vpack.c.b16 %v281, %v279
      %v328 = vpack.c.b16 %v282, %v280
      %v329 = vpack.c.b16 %v285, %v283
      %v330 = vpack.c.b16 %v286, %v284
      %v331 = vpack.c.b16 %v289, %v287
      %v332 = vpack.c.b16 %v290, %v288
      %v333 = vpack.c.b16 %v293, %v291
      %v334 = vpack.c.b16 %v294, %v292
      %v335 = vpack.c.b16 %v297, %v295
      %v336 = vpack.c.b16 %v298, %v296
      %v337 = vpack.c.b16 %v301, %v299
      %v338 = vpack.c.b16 %v302, %v300
      %v339 = vpack.c.b16 %v305, %v303
      %v340 = vpack.c.b16 %v306, %v304
      %v341 = vpack.c.b16 %v309, %v307
      %v342 = vpack.c.b16 %v310, %v308
      %v407 = vunpack.c.l.b16 %v183
      %v408 = vunpack.c.l.b16 %v184
      %v409 = vunpack.c.l.b16 %v185
      %v410 = vunpack.c.l.b16 %v186
      %v411 = vunpack.c.l.b16 %v187
      %v412 = vunpack.c.l.b16 %v188
      %v413 = vunpack.c.l.b16 %v189
      %v414 = vunpack.c.l.b16 %v190
      %v415 = vunpack.c.l.b16 %v191
      %v416 = vunpack.c.l.b16 %v192
      %v417 = vunpack.c.l.b16 %v193
      %v418 = vunpack.c.l.b16 %v194
      %v419 = vunpack.c.l.b16 %v195
      %v420 = vunpack.c.l.b16 %v196
      %v421 = vunpack.c.l.b16 %v197
      %v422 = vunpack.c.l.b16 %v198
      %v423 = vunpack.c.l.b16 %v199
      %v424 = vunpack.c.l.b16 %v200
      %v425 = vunpack.c.l.b16 %v201
      %v426 = vunpack.c.l.b16 %v202
      %v427 = vunpack.c.l.b16 %v203
      %v428 = vunpack.c.l.b16 %v204
      %v429 = vunpack.c.l.b16 %v205
      %v430 = vunpack.c.l.b16 %v206
      %v431 = vunpack.c.l.b16 %v207
      %v432 = vunpack.c.l.b16 %v208
      %v433 = vunpack.c.l.b16 %v209
      %v434 = vunpack.c.l.b16 %v210
      %v435 = vunpack.c.l.b16 %v211
      %v436 = vunpack.c.l.b16 %v212
      %v437 = vunpack.c.l.b16 %v213
      %v438 = vunpack.c.l.b16 %v214
      %v439 = vpack.c.b16 %v408, %v407
      %v440 = vpack.c.b16 %v410, %v409
      %v441 = vpack.c.b16 %v412, %v411
      %v442 = vpack.c.b16 %v414, %v413
      %v443 = vpack.c.b16 %v416, %v415
      %v444 = vpack.c.b16 %v418, %v417
      %v445 = vpack.c.b16 %v420, %v419
      %v446 = vpack.c.b16 %v422, %v421
      %v447 = vpack.c.b16 %v424, %v423
      %v448 = vpack.c.b16 %v426, %v425
      %v449 = vpack.c.b16 %v428, %v427
      %v450 = vpack.c.b16 %v430, %v429
      %v451 = vpack.c.b16 %v432, %v431
      %v452 = vpack.c.b16 %v434, %v433
      %v453 = vpack.c.b16 %v436, %v435
      %v454 = vpack.c.b16 %v438, %v437
      %471 = vmatprep.subr.bf16.mxu0 0
      %472 = vmatpush1.bf16.msra.mxu0 %v439
      %473 = vmatprep.subr.bf16.mxu0 0
      %474 = vmatpush1.bf16.msra.mxu0 %v440
      %475 = vmatprep.subr.bf16.mxu0 0
      %476 = vmatpush1.bf16.msra.mxu0 %v441
      %477 = vmatprep.subr.bf16.mxu0 0
      %478 = vmatpush1.bf16.msra.mxu0 %v442
      %479 = vmatprep.subr.bf16.mxu0 0
      %480 = vmatpush1.bf16.msra.mxu0 %v443
      %481 = vmatprep.subr.bf16.mxu0 0
      %482 = vmatpush1.bf16.msra.mxu0 %v444
      %483 = vmatprep.subr.bf16.mxu0 0
      %484 = vmatpush1.bf16.msra.mxu0 %v445
      %485 = vmatprep.subr.bf16.mxu0 0
      %486 = vmatpush1.bf16.msra.mxu0 %v446
      %487 = vmatprep.subr.bf16.mxu0 0
      %488 = vmatpush1.bf16.msra.mxu0 %v447
      %489 = vmatprep.subr.bf16.mxu0 0
      %490 = vmatpush1.bf16.msra.mxu0 %v448
      %491 = vmatprep.subr.bf16.mxu0 0
      %492 = vmatpush1.bf16.msra.mxu0 %v449
      %493 = vmatprep.subr.bf16.mxu0 0
      %494 = vmatpush1.bf16.msra.mxu0 %v450
      %495 = vmatprep.subr.bf16.mxu0 0
      %496 = vmatpush1.bf16.msra.mxu0 %v451
      %497 = vmatprep.subr.bf16.mxu0 0
      %498 = vmatpush1.bf16.msra.mxu0 %v452
      %499 = vmatprep.subr.bf16.mxu0 0
      %500 = vmatpush1.bf16.msra.mxu0 %v453
      %501 = vmatprep.subr.bf16.mxu0 0
      %502 = vmatpush1.bf16.msra.mxu0 %v454
      %503 = vmatprep.mubr.bf16.mxu0 %v312
      %504 = vmatmul.mubr.bf16.gmra.mrb[0].mxu0 %v311
      %v505 = vpop.f32.mrb[0].mxu0
      %v506 = vadd.f32 0.0, %v505
      %v507 = vpop.f32.mrb[0].mxu0
      %v508 = vpop.f32.mrb[0].mxu0
      %v509 = vadd.f32 0.0, %v508
      %v510 = vpop.f32.mrb[0].mxu0
      %511 = vmatprep.mubr.bf16.mxu0 %v314
      %512 = vmatmul.mubr.bf16.gmra.mrb[0].mxu0 %v313
      %v513 = vpop.f32.mrb[0].mxu0
      %v514 = vadd.f32 0.0, %v513
      %v515 = vpop.f32.mrb[0].mxu0
      %v516 = vpop.f32.mrb[0].mxu0
      %v517 = vadd.f32 0.0, %v516
      %v518 = vpop.f32.mrb[0].mxu0
      %519 = vmatprep.mubr.bf16.mxu0 %v316
      %520 = vmatmul.mubr.bf16.gmra.mrb[0].mxu0 %v315
      %v521 = vpop.f32.mrb[0].mxu0
      %v522 = vadd.f32 0.0, %v521
      %v523 = vpop.f32.mrb[0].mxu0
      %v524 = vpop.f32.mrb[0].mxu0
      %v525 = vadd.f32 0.0, %v524
      %v526 = vpop.f32.mrb[0].mxu0
      %527 = vmatprep.mubr.bf16.mxu0 %v318
      %528 = vmatmul.mubr.bf16.gmra.mrb[0].mxu0 %v317
      %v529 = vpop.f32.mrb[0].mxu0
      %v530 = vadd.f32 0.0, %v529
      %v531 = vpop.f32.mrb[0].mxu0
      %v532 = vpop.f32.mrb[0].mxu0
      %v533 = vadd.f32 0.0, %v532
      %v534 = vpop.f32.mrb[0].mxu0
      %535 = vmatprep.mubr.bf16.mxu0 %v320
      %536 = vmatmul.mubr.bf16.gmra.mrb[0].mxu0 %v319
      %v537 = vpop.f32.mrb[0].mxu0
      %v538 = vadd.f32 0.0, %v537
      %v539 = vpop.f32.mrb[0].mxu0
      %v540 = vpop.f32.mrb[0].mxu0
      %v541 = vadd.f32 0.0, %v540
      %v542 = vpop.f32.mrb[0].mxu0
      %543 = vmatprep.mubr.bf16.mxu0 %v322
      %544 = vmatmul.mubr.bf16.gmra.mrb[0].mxu0 %v321
      %v545 = vpop.f32.mrb[0].mxu0
      %v546 = vadd.f32 0.0, %v545
      %v547 = vpop.f32.mrb[0].mxu0
      %v548 = vpop.f32.mrb[0].mxu0
      %v549 = vadd.f32 0.0, %v548
      %v550 = vpop.f32.mrb[0].mxu0
      %551 = vmatprep.mubr.bf16.mxu0 %v324
      %552 = vmatmul.mubr.bf16.gmra.mrb[0].mxu0 %v323
      %v553 = vpop.f32.mrb[0].mxu0
      %v554 = vadd.f32 0.0, %v553
      %v555 = vpop.f32.mrb[0].mxu0
      %v556 = vpop.f32.mrb[0].mxu0
      %v557 = vadd.f32 0.0, %v556
      %v558 = vpop.f32.mrb[0].mxu0
      %559 = vmatprep.mubr.bf16.mxu0 %v326
      %560 = vmatmul.mubr.bf16.gmra.mrb[0].mxu0 %v325
      %v561 = vpop.f32.mrb[0].mxu0
      %v562 = vadd.f32 0.0, %v561
      %v563 = vpop.f32.mrb[0].mxu0
      %v564 = vpop.f32.mrb[0].mxu0
      %v565 = vadd.f32 0.0, %v564
      %v566 = vpop.f32.mrb[0].mxu0
      %567 = vmatprep.mubr.bf16.mxu0 %v328
      %568 = vmatmul.mubr.bf16.gmra.mrb[0].mxu0 %v327
      %v569 = vpop.f32.mrb[0].mxu0
      %v570 = vadd.f32 0.0, %v569
      %v571 = vpop.f32.mrb[0].mxu0
      %v572 = vpop.f32.mrb[0].mxu0
      %v573 = vadd.f32 0.0, %v572
      %v574 = vpop.f32.mrb[0].mxu0
      %575 = vmatprep.mubr.bf16.mxu0 %v330
      %576 = vmatmul.mubr.bf16.gmra.mrb[0].mxu0 %v329
      %v577 = vpop.f32.mrb[0].mxu0
      %v578 = vadd.f32 0.0, %v577
      %v579 = vpop.f32.mrb[0].mxu0
      %v580 = vpop.f32.mrb[0].mxu0
      %v581 = vadd.f32 0.0, %v580
      %v582 = vpop.f32.mrb[0].mxu0
      %583 = vmatprep.mubr.bf16.mxu0 %v332
      %584 = vmatmul.mubr.bf16.gmra.mrb[0].mxu0 %v331
      %v585 = vpop.f32.mrb[0].mxu0
      %v586 = vadd.f32 0.0, %v585
      %v587 = vpop.f32.mrb[0].mxu0
      %v588 = vpop.f32.mrb[0].mxu0
      %v589 = vadd.f32 0.0, %v588
      %v590 = vpop.f32.mrb[0].mxu0
      %591 = vmatprep.mubr.bf16.mxu0 %v334
      %592 = vmatmul.mubr.bf16.gmra.mrb[0].mxu0 %v333
      %v593 = vpop.f32.mrb[0].mxu0
      %v594 = vadd.f32 0.0, %v593
      %v595 = vpop.f32.mrb[0].mxu0
      %v596 = vpop.f32.mrb[0].mxu0
      %v597 = vadd.f32 0.0, %v596
      %v598 = vpop.f32.mrb[0].mxu0
      %599 = vmatprep.mubr.bf16.mxu0 %v336
      %600 = vmatmul.mubr.bf16.gmra.mrb[0].mxu0 %v335
      %v601 = vpop.f32.mrb[0].mxu0
      %v602 = vadd.f32 0.0, %v601
      %v603 = vpop.f32.mrb[0].mxu0
      %v604 = vpop.f32.mrb[0].mxu0
      %v605 = vadd.f32 0.0, %v604
      %v606 = vpop.f32.mrb[0].mxu0
      %607 = vmatprep.mubr.bf16.mxu0 %v338
      %608 = vmatmul.mubr.bf16.gmra.mrb[0].mxu0 %v337
      %v609 = vpop.f32.mrb[0].mxu0
      %v610 = vadd.f32 0.0, %v609
      %v611 = vpop.f32.mrb[0].mxu0
      %v612 = vpop.f32.mrb[0].mxu0
      %v613 = vadd.f32 0.0, %v612
      %v614 = vpop.f32.mrb[0].mxu0
      %615 = vmatprep.mubr.bf16.mxu0 %v340
      %616 = vmatmul.mubr.bf16.gmra.mrb[0].mxu0 %v339
      %v617 = vpop.f32.mrb[0].mxu0
      %v618 = vadd.f32 0.0, %v617
      %v619 = vpop.f32.mrb[0].mxu0
      %v620 = vpop.f32.mrb[0].mxu0
      %v621 = vadd.f32 0.0, %v620
      %v622 = vpop.f32.mrb[0].mxu0
      %623 = vmatprep.mubr.bf16.mxu0 %v342
      %624 = vmatmul.mubr.bf16.gmra.mrb[0].mxu0 %v341
      %v625 = vpop.f32.mrb[0].mxu0
      %v626 = vadd.f32 0.0, %v625
      %v627 = vpop.f32.mrb[0].mxu0
      %v628 = vpop.f32.mrb[0].mxu0
      %v629 = vadd.f32 0.0, %v628
      %v630 = vpop.f32.mrb[0].mxu0
      %631 = vdwg.mxu0
      %vm632 = vcmp.gt.f32.partialorder %v506, 0.0
      %vm633 = vcmp.gt.f32.partialorder %v509, 0.0
      %vm634 = vcmp.gt.f32.partialorder %v514, 0.0
      %vm635 = vcmp.gt.f32.partialorder %v517, 0.0
      %vm636 = vcmp.gt.f32.partialorder %v522, 0.0
      %vm637 = vcmp.gt.f32.partialorder %v525, 0.0
      %vm638 = vcmp.gt.f32.partialorder %v530, 0.0
      %vm639 = vcmp.gt.f32.partialorder %v533, 0.0
      %vm640 = vcmp.gt.f32.partialorder %v538, 0.0
      %vm641 = vcmp.gt.f32.partialorder %v541, 0.0
      %vm642 = vcmp.gt.f32.partialorder %v546, 0.0
      %vm643 = vcmp.gt.f32.partialorder %v549, 0.0
      %vm644 = vcmp.gt.f32.partialorder %v554, 0.0
      %vm645 = vcmp.gt.f32.partialorder %v557, 0.0
      %vm646 = vcmp.gt.f32.partialorder %v562, 0.0
      %vm647 = vcmp.gt.f32.partialorder %v565, 0.0
      %vm648 = vcmp.gt.f32.partialorder %v570, 0.0
      %vm649 = vcmp.gt.f32.partialorder %v573, 0.0
      %vm650 = vcmp.gt.f32.partialorder %v578, 0.0
      %vm651 = vcmp.gt.f32.partialorder %v581, 0.0
      %vm652 = vcmp.gt.f32.partialorder %v586, 0.0
      %vm653 = vcmp.gt.f32.partialorder %v589, 0.0
      %vm654 = vcmp.gt.f32.partialorder %v594, 0.0
      %vm655 = vcmp.gt.f32.partialorder %v597, 0.0
      %vm656 = vcmp.gt.f32.partialorder %v602, 0.0
      %vm657 = vcmp.gt.f32.partialorder %v605, 0.0
      %vm658 = vcmp.gt.f32.partialorder %v610, 0.0
      %vm659 = vcmp.gt.f32.partialorder %v613, 0.0
      %vm660 = vcmp.gt.f32.partialorder %v618, 0.0
      %vm661 = vcmp.gt.f32.partialorder %v621, 0.0
      %vm662 = vcmp.gt.f32.partialorder %v626, 0.0
      %vm663 = vcmp.gt.f32.partialorder %v629, 0.0
      %v664 = vmul.f32 %v506, 0.2
      %v665 = vmul.f32 %v509, 0.2
      %v666 = vmul.f32 %v514, 0.2
      %v667 = vmul.f32 %v517, 0.2
      %v668 = vmul.f32 %v522, 0.2
      %v669 = vmul.f32 %v525, 0.2
      %v670 = vmul.f32 %v530, 0.2
      %v671 = vmul.f32 %v533, 0.2
      %v672 = vmul.f32 %v538, 0.2
      %v673 = vmul.f32 %v541, 0.2
      %v674 = vmul.f32 %v546, 0.2
      %v675 = vmul.f32 %v549, 0.2
      %v676 = vmul.f32 %v554, 0.2
      %v677 = vmul.f32 %v557, 0.2
      %v678 = vmul.f32 %v562, 0.2
      %v679 = vmul.f32 %v565, 0.2
      %v680 = vmul.f32 %v570, 0.2
      %v681 = vmul.f32 %v573, 0.2
      %v682 = vmul.f32 %v578, 0.2
      %v683 = vmul.f32 %v581, 0.2
      %v684 = vmul.f32 %v586, 0.2
      %v685 = vmul.f32 %v589, 0.2
      %v686 = vmul.f32 %v594, 0.2
      %v687 = vmul.f32 %v597, 0.2
      %v688 = vmul.f32 %v602, 0.2
      %v689 = vmul.f32 %v605, 0.2
      %v690 = vmul.f32 %v610, 0.2
      %v691 = vmul.f32 %v613, 0.2
      %v692 = vmul.f32 %v618, 0.2
      %v693 = vmul.f32 %v621, 0.2
      %v694 = vmul.f32 %v626, 0.2
      %v695 = vmul.f32 %v629, 0.2
      %v696 = vsel %vm632, %v506, %v664
      %v697 = vsel %vm633, %v509, %v665
      %v698 = vsel %vm634, %v514, %v666
      %v699 = vsel %vm635, %v517, %v667
      %v700 = vsel %vm636, %v522, %v668
      %v701 = vsel %vm637, %v525, %v669
      %v702 = vsel %vm638, %v530, %v670
      %v703 = vsel %vm639, %v533, %v671
      %v704 = vsel %vm640, %v538, %v672
      %v705 = vsel %vm641, %v541, %v673
      %v706 = vsel %vm642, %v546, %v674
      %v707 = vsel %vm643, %v549, %v675
      %v708 = vsel %vm644, %v554, %v676
      %v709 = vsel %vm645, %v557, %v677
      %v710 = vsel %vm646, %v562, %v678
      %v711 = vsel %vm647, %v565, %v679
      %v712 = vsel %vm648, %v570, %v680
      %v713 = vsel %vm649, %v573, %v681
      %v714 = vsel %vm650, %v578, %v682
      %v715 = vsel %vm651, %v581, %v683
      %v716 = vsel %vm652, %v586, %v684
      %v717 = vsel %vm653, %v589, %v685
      %v718 = vsel %vm654, %v594, %v686
      %v719 = vsel %vm655, %v597, %v687
      %v720 = vsel %vm656, %v602, %v688
      %v721 = vsel %vm657, %v605, %v689
      %v722 = vsel %vm658, %v610, %v690
      %v723 = vsel %vm659, %v613, %v691
      %v724 = vsel %vm660, %v618, %v692
      %v725 = vsel %vm661, %v621, %v693
      %v726 = vsel %vm662, %v626, %v694
      %v727 = vsel %vm663, %v629, %v695
      %v728 = vpack.c.bf16 %v697, %v696
      %v729 = vpack.c.bf16 %v699, %v698
      %v730 = vpack.c.bf16 %v701, %v700
      %v731 = vpack.c.bf16 %v703, %v702
      %v732 = vpack.c.bf16 %v705, %v704
      %v733 = vpack.c.bf16 %v707, %v706
      %v734 = vpack.c.bf16 %v709, %v708
      %v735 = vpack.c.bf16 %v711, %v710
      %v736 = vpack.c.bf16 %v713, %v712
      %v737 = vpack.c.bf16 %v715, %v714
      %v738 = vpack.c.bf16 %v717, %v716
      %v739 = vpack.c.bf16 %v719, %v718
      %v740 = vpack.c.bf16 %v721, %v720
      %v741 = vpack.c.bf16 %v723, %v722
      %v742 = vpack.c.bf16 %v725, %v724
      %v743 = vpack.c.bf16 %v727, %v726
      %v760 = vunpack.c.l.b16 %v728
      %v761 = vunpack.c.h.b16 %v728
      %v762 = vunpack.c.l.b16 %v729
      %v763 = vunpack.c.h.b16 %v729
      %v764 = vunpack.c.l.b16 %v730
      %v765 = vunpack.c.h.b16 %v730
      %v766 = vunpack.c.l.b16 %v731
      %v767 = vunpack.c.h.b16 %v731
      %v768 = vunpack.c.l.b16 %v732
      %v769 = vunpack.c.h.b16 %v732
      %v770 = vunpack.c.l.b16 %v733
      %v771 = vunpack.c.h.b16 %v733
      %v772 = vunpack.c.l.b16 %v734
      %v773 = vunpack.c.h.b16 %v734
      %v774 = vunpack.c.l.b16 %v735
      %v775 = vunpack.c.h.b16 %v735
      %v776 = vunpack.c.l.b16 %v736
      %v777 = vunpack.c.h.b16 %v736
      %v778 = vunpack.c.l.b16 %v737
      %v779 = vunpack.c.h.b16 %v737
      %v780 = vunpack.c.l.b16 %v738
      %v781 = vunpack.c.h.b16 %v738
      %v782 = vunpack.c.l.b16 %v739
      %v783 = vunpack.c.h.b16 %v739
      %v784 = vunpack.c.l.b16 %v740
      %v785 = vunpack.c.h.b16 %v740
      %v786 = vunpack.c.l.b16 %v741
      %v787 = vunpack.c.h.b16 %v741
      %v788 = vunpack.c.l.b16 %v742
      %v789 = vunpack.c.h.b16 %v742
      %v790 = vunpack.c.l.b16 %v743
      %v791 = vunpack.c.h.b16 %v743
      %v792 = vpack.c.b16 %v760, %v760
      %v793 = vpack.c.b16 %v761, %v761
      %v794 = vpack.c.b16 %v762, %v762
      %v795 = vpack.c.b16 %v763, %v763
      %v796 = vpack.c.b16 %v764, %v764
      %v797 = vpack.c.b16 %v765, %v765
      %v798 = vpack.c.b16 %v766, %v766
      %v799 = vpack.c.b16 %v767, %v767
      %v800 = vpack.c.b16 %v768, %v768
      %v801 = vpack.c.b16 %v769, %v769
      %v802 = vpack.c.b16 %v770, %v770
      %v803 = vpack.c.b16 %v771, %v771
      %v804 = vpack.c.b16 %v772, %v772
      %v805 = vpack.c.b16 %v773, %v773
      %v806 = vpack.c.b16 %v774, %v774
      %v807 = vpack.c.b16 %v775, %v775
      %v808 = vpack.c.b16 %v776, %v776
      %v809 = vpack.c.b16 %v777, %v777
      %v810 = vpack.c.b16 %v778, %v778
      %v811 = vpack.c.b16 %v779, %v779
      %v812 = vpack.c.b16 %v780, %v780
      %v813 = vpack.c.b16 %v781, %v781
      %v814 = vpack.c.b16 %v782, %v782
      %v815 = vpack.c.b16 %v783, %v783
      %v816 = vpack.c.b16 %v784, %v784
      %v817 = vpack.c.b16 %v785, %v785
      %v818 = vpack.c.b16 %v786, %v786
      %v819 = vpack.c.b16 %v787, %v787
      %v820 = vpack.c.b16 %v788, %v788
      %v821 = vpack.c.b16 %v789, %v789
      %v822 = vpack.c.b16 %v790, %v790
      %v823 = vpack.c.b16 %v791, %v791
      %856 = vst [vmem:[%s148] sm:$0xf] %v792
      %857 = vst [vmem:[%s148 + $0x4] sm:$0xf] %v793
      %858 = vst [vmem:[%s148 + $0x8] sm:$0xf] %v794
      %859 = vst [vmem:[%s148 + $0xc] sm:$0xf] %v795
      %860 = vst [vmem:[%s148 + $0x10] sm:$0xf] %v796
      %861 = vst [vmem:[%s148 + $0x14] sm:$0xf] %v797
      %862 = vst [vmem:[%s148 + $0x18] sm:$0xf] %v798
      %863 = vst [vmem:[%s148 + $0x1c] sm:$0xf] %v799
      %864 = vst [vmem:[%s148 + $0x20] sm:$0xf] %v800
      %865 = vst [vmem:[%s148 + $0x24] sm:$0xf] %v801
      %866 = vst [vmem:[%s148 + $0x28] sm:$0xf] %v802
      %867 = vst [vmem:[%s148 + $0x2c] sm:$0xf] %v803
      %868 = vst [vmem:[%s148 + $0x30] sm:$0xf] %v804
      %869 = vst [vmem:[%s148 + $0x34] sm:$0xf] %v805
      %870 = vst [vmem:[%s148 + $0x38] sm:$0xf] %v806
      %871 = vst [vmem:[%s148 + $0x3c] sm:$0xf] %v807
      %872 = vst [vmem:[%s148 + $0x40] sm:$0xf] %v808
      %873 = vst [vmem:[%s148 + $0x44] sm:$0xf] %v809
      %874 = vst [vmem:[%s148 + $0x48] sm:$0xf] %v810
      %875 = vst [vmem:[%s148 + $0x4c] sm:$0xf] %v811
      %876 = vst [vmem:[%s148 + $0x50] sm:$0xf] %v812
      %877 = vst [vmem:[%s148 + $0x54] sm:$0xf] %v813
      %878 = vst [vmem:[%s148 + $0x58] sm:$0xf] %v814
      %879 = vst [vmem:[%s148 + $0x5c] sm:$0xf] %v815
      %880 = vst [vmem:[%s148 + $0x60] sm:$0xf] %v816
      %881 = vst [vmem:[%s148 + $0x64] sm:$0xf] %v817
      %882 = vst [vmem:[%s148 + $0x68] sm:$0xf] %v818
      %883 = vst [vmem:[%s148 + $0x6c] sm:$0xf] %v819
      %884 = vst [vmem:[%s148 + $0x70] sm:$0xf] %v820
      %885 = vst [vmem:[%s148 + $0x74] sm:$0xf] %v821
      %886 = vst [vmem:[%s148 + $0x78] sm:$0xf] %v822
      %887 = vst [vmem:[%s148 + $0x7c] sm:$0xf] %v823
      %s888 = smul.u32 32, %s13
      %p889 = scmp.lt.s32.totalorder %s888, 63
      %s890 = scalar_select %p889, %s888, 63
      %s891 = smul.addr %s890, 4
      %s892 = scalar_lea.vmem %s2, %s891
      // Predicated region
      $region29: #{discriminator_forward.5} parent=27 // pred_check
        %p893 = pneg %p78
      $region30: #{discriminator_forward.5} parent=27 // pred_check_branch
        %895 = sbr.rel (%p893) target = $region32
      $region31: #{discriminator_forward.5} parent=27 // pred_region
        %s896 = smul.u32 32, %s13
      $region32: #{discriminator_forward.5} parent=27 // pred_fallthru
        _
    $region28: #{discriminator_forward.5} parent=5 // pred_fallthru
      _
    %p897 = scmp.le.s32.totalorder 2, %s8
    // Predicated region
    $region33: #{discriminator_forward.5} parent=5 // pred_check
      %p898 = pneg %p897
    $region34: #{discriminator_forward.5} parent=5 // pred_check_branch
      %900 = sbr.rel (%p898) target = $region36
    $region35: #{discriminator_forward.5} parent=5 // pred_region
      %s901 = ssub.s32 %s8, 2
      // Predicated region
      $region37: #{discriminator_forward.5} parent=35 // pred_check
        %p902 = pneg %p84
      $region38: #{discriminator_forward.5} parent=35 // pred_check_branch
        %904 = sbr.rel (%p902) target = $region40
      $region39: #{discriminator_forward.5} parent=35 // pred_region
        %s905 = smul.u32 32, %s14
        %p906 = scmp.lt.s32.totalorder %s905, 63
        %s907 = scalar_select %p906, %s905, 63
        %s908 = smul.addr %s907, 4
        %s909 = scalar_lea.vmem %s2, %s908
      $region40: #{discriminator_forward.5} parent=35 // pred_fallthru
        _
    $region36: #{discriminator_forward.5} parent=5 // pred_fallthru
      _
  $region6: #{discriminator_forward.5} parent=0 // loop_footer
    %s12 = sadd.s32 1, %s8
  $region7: #{discriminator_forward.5} parent=0 // loop_footer_branch
    %7 = sbr.rel target = $region3
  $region8: #{discriminator_forward.5} parent=0 // loop_exit
    _

// kernel: discriminator_forward.7
$region0: #{discriminator_forward.7}
  #allocation0 [shape = 'u32[]', space=smem, size = 0x4, offset = 0x4, fixed_abs, tag = 'smem constant byte address 0x4 - core index']
  #allocation1 [shape = 'u32[144,128]{1,0:T(1,128)}', space=vmem, size = 0x12000, scoped, tag = 'internal scratch']
  %s0 = inlined_call_operand.vmem [shape: f32[128,256], index: 0, kind: input, shape index: {}]
  %s1 = inlined_call_operand.vmem [shape: f32[2,1,256], index: 1, kind: input, shape index: {}]
  %s2 = inlined_call_operand.vmem [shape: f32[2,1,256], index: 2, kind: input, shape index: {}]
  %s3 = inlined_call_operand.vmem [shape: f32[1,256], index: 3, kind: input, shape index: {}]
  %s4 = inlined_call_operand.vmem [shape: f32[1,256], index: 4, kind: input, shape index: {}]
  %s5 = inlined_call_operand.vmem [shape: bf16[128,256], index: 5, kind: output, shape index: {}]
  %s6 = sld [smem:[#allocation0]]
  $region53: #{discriminator_forward.7} parent=0
    _
  %s8 = ssub.s32 1, %s6
  %s9 = scalar_select 0, %s8, %s6
  loop: start=0, step=1, limit=4
  $region2: #{discriminator_forward.7} parent=0 // loop_pre_header
    _
  $region3: #{discriminator_forward.7} parent=0 // loop_header
    %s11 = sphi 0, %s15
    %p12 = scmp.ge.s32.totalorder %s11, 4
    %s21 = sphi 0, %s23
    %s24 = sphi 0, %s21
    %s25 = sphi 0, %s24
    %s41 = sphi 0, %s25
    %s45 = sphi 0, %s45
    %s47 = sphi 0, %s45
    %s48 = sphi 0, %s47
    %s62 = sphi 0, %s48
    %s66 = sphi 0, %s66
    %s68 = sphi 0, %s66
    %s69 = sphi 0, %s68
    %s83 = sphi 0, %s69
    %s87 = sphi 0, %s87
    %s89 = sphi 0, %s87
    %s90 = sphi 0, %s89
    %s104 = sphi 0, %s90
    %s108 = sphi 0, %s108
    %s110 = sphi 0, %s108
    %s111 = sphi 0, %s110
    %s125 = sphi 0, %s111
    %s131 = sphi 0, %s133
    %s134 = sphi 0, %s131
    %s135 = sphi 0, %s134
    %s151 = sphi 0, %s135
  $region4: #{discriminator_forward.7} parent=0 // loop_header_branch
    %14 = sbr.rel (%p12) target = $region8
  $region5: #{discriminator_forward.7} parent=0 // loop_body
    %s16 = ssub.s32 %s11, 1
    %s17 = ssub.s32 %s11, 2
    %s18 = sadd.s32 %s11, 1
    %s19 = ssub.s32 %s11, %s18
    %p20 = scmp.eq.s32.totalorder %s19, 0
    %s22 = sadd.s32 %s21, 1
    %s23 = scalar_select %p20, %s21, %s22
    %p26 = pneg %p20
    %p27 = scmp.eq.s32.totalorder %s11, 1
    %p28 = por %p26, %p27
    %p29 = scmp.ne.s32.totalorder %s21, %s24
    %p30 = scmp.eq.s32.totalorder %s11, 0
    %p31 = por %p29, %p30
    %p32 = scmp.ne.s32.totalorder %s21, %s24
    %p33 = scmp.eq.s32.totalorder %s16, 1
    %p34 = por %p32, %p33
    %p35 = scmp.ne.s32.totalorder %s24, %s25
    %p36 = scmp.eq.s32.totalorder %s16, 0
    %p37 = por %p35, %p36
    %p38 = scmp.ne.s32.totalorder %s24, %s25
    %p39 = scmp.eq.s32.totalorder %s17, 1
    %p40 = por %p38, %p39
    %p42 = scmp.ne.s32.totalorder %s25, %s41
    %p43 = scmp.eq.s32.totalorder %s17, 0
    %p44 = por %p42, %p43
    %s46 = sadd.s32 %s45, 1
    %p49 = scmp.eq.s32.totalorder %s11, 1
    %p50 = scmp.ne.s32.totalorder %s45, %s47
    %p51 = scmp.eq.s32.totalorder %s11, 0
    %p52 = por %p50, %p51
    %p53 = scmp.ne.s32.totalorder %s45, %s47
    %p54 = scmp.eq.s32.totalorder %s16, 1
    %p55 = por %p53, %p54
    %p56 = scmp.ne.s32.totalorder %s47, %s48
    %p57 = scmp.eq.s32.totalorder %s16, 0
    %p58 = por %p56, %p57
    %p59 = scmp.ne.s32.totalorder %s47, %s48
    %p60 = scmp.eq.s32.totalorder %s17, 1
    %p61 = por %p59, %p60
    %p63 = scmp.ne.s32.totalorder %s48, %s62
    %p64 = scmp.eq.s32.totalorder %s17, 0
    %p65 = por %p63, %p64
    %s67 = sadd.s32 %s66, 1
    %p70 = scmp.eq.s32.totalorder %s11, 1
    %p71 = scmp.ne.s32.totalorder %s66, %s68
    %p72 = scmp.eq.s32.totalorder %s11, 0
    %p73 = por %p71, %p72
    %p74 = scmp.ne.s32.totalorder %s66, %s68
    %p75 = scmp.eq.s32.totalorder %s16, 1
    %p76 = por %p74, %p75
    %p77 = scmp.ne.s32.totalorder %s68, %s69
    %p78 = scmp.eq.s32.totalorder %s16, 0
    %p79 = por %p77, %p78
    %p80 = scmp.ne.s32.totalorder %s68, %s69
    %p81 = scmp.eq.s32.totalorder %s17, 1
    %p82 = por %p80, %p81
    %p84 = scmp.ne.s32.totalorder %s69, %s83
    %p85 = scmp.eq.s32.totalorder %s17, 0
    %p86 = por %p84, %p85
    %s88 = sadd.s32 %s87, 1
    %p91 = scmp.eq.s32.totalorder %s11, 1
    %p92 = scmp.ne.s32.totalorder %s87, %s89
    %p93 = scmp.eq.s32.totalorder %s11, 0
    %p94 = por %p92, %p93
    %p95 = scmp.ne.s32.totalorder %s87, %s89
    %p96 = scmp.eq.s32.totalorder %s16, 1
    %p97 = por %p95, %p96
    %p98 = scmp.ne.s32.totalorder %s89, %s90
    %p99 = scmp.eq.s32.totalorder %s16, 0
    %p100 = por %p98, %p99
    %p101 = scmp.ne.s32.totalorder %s89, %s90
    %p102 = scmp.eq.s32.totalorder %s17, 1
    %p103 = por %p101, %p102
    %p105 = scmp.ne.s32.totalorder %s90, %s104
    %p106 = scmp.eq.s32.totalorder %s17, 0
    %p107 = por %p105, %p106
    %s109 = sadd.s32 %s108, 1
    %p112 = scmp.eq.s32.totalorder %s11, 1
    %p113 = scmp.ne.s32.totalorder %s108, %s110
    %p114 = scmp.eq.s32.totalorder %s11, 0
    %p115 = por %p113, %p114
    %p116 = scmp.ne.s32.totalorder %s108, %s110
    %p117 = scmp.eq.s32.totalorder %s16, 1
    %p118 = por %p116, %p117
    %p119 = scmp.ne.s32.totalorder %s110, %s111
    %p120 = scmp.eq.s32.totalorder %s16, 0
    %p121 = por %p119, %p120
    %p122 = scmp.ne.s32.totalorder %s110, %s111
    %p123 = scmp.eq.s32.totalorder %s17, 1
    %p124 = por %p122, %p123
    %p126 = scmp.ne.s32.totalorder %s111, %s125
    %p127 = scmp.eq.s32.totalorder %s17, 0
    %p128 = por %p126, %p127
    %s129 = ssub.s32 %s11, %s18
    %p130 = scmp.eq.s32.totalorder %s129, 0
    %s132 = sadd.s32 %s131, 1
    %s133 = scalar_select %p130, %s131, %s132
    %p136 = pneg %p130
    %p137 = scmp.eq.s32.totalorder %s11, 1
    %p138 = por %p136, %p137
    %p139 = scmp.ne.s32.totalorder %s131, %s134
    %p140 = scmp.eq.s32.totalorder %s11, 0
    %p141 = por %p139, %p140
    %p142 = scmp.ne.s32.totalorder %s131, %s134
    %p143 = scmp.eq.s32.totalorder %s16, 1
    %p144 = por %p142, %p143
    %p145 = scmp.ne.s32.totalorder %s134, %s135
    %p146 = scmp.eq.s32.totalorder %s16, 0
    %p147 = por %p145, %p146
    %p148 = scmp.ne.s32.totalorder %s134, %s135
    %p149 = scmp.eq.s32.totalorder %s17, 1
    %p150 = por %p148, %p149
    %p152 = scmp.ne.s32.totalorder %s135, %s151
    %p153 = scmp.eq.s32.totalorder %s17, 0
    %p154 = por %p152, %p153
    %p155 = scmp.le.s32.totalorder 1, %s11
    %p156 = scmp.lt.s32.totalorder %s11, 3
    %p157 = pnand %p155, %p156
    %p158 = pneg %p157
    // Predicated region
    $region9: #{discriminator_forward.7} parent=5 // pred_check
      _
    $region10: #{discriminator_forward.7} parent=5 // pred_check_branch
      %160 = sbr.rel (%p157) target = $region12
    $region11: #{discriminator_forward.7} parent=5 // pred_region
      %s161 = ssub.s32 %s11, 1
      // Predicated region
      $region13: #{discriminator_forward.7} parent=11 // pred_check
        %p162 = pneg %p58
      $region14: #{discriminator_forward.7} parent=11 // pred_check_branch
        %164 = sbr.rel (%p162) target = $region16
      $region15: #{discriminator_forward.7} parent=11 // pred_region
        _
      $region16: #{discriminator_forward.7} parent=11 // pred_fallthru
        _
      // Predicated region
      $region17: #{discriminator_forward.7} parent=11 // pred_check
        %p165 = pneg %p79
      $region18: #{discriminator_forward.7} parent=11 // pred_check_branch
        %167 = sbr.rel (%p165) target = $region20
      $region19: #{discriminator_forward.7} parent=11 // pred_region
        _
      $region20: #{discriminator_forward.7} parent=11 // pred_fallthru
        _
      // Predicated region
      $region21: #{discriminator_forward.7} parent=11 // pred_check
        %p168 = pneg %p100
      $region22: #{discriminator_forward.7} parent=11 // pred_check_branch
        %170 = sbr.rel (%p168) target = $region24
      $region23: #{discriminator_forward.7} parent=11 // pred_region
        _
      $region24: #{discriminator_forward.7} parent=11 // pred_fallthru
        _
      // Predicated region
      $region25: #{discriminator_forward.7} parent=11 // pred_check
        %p171 = pneg %p121
      $region26: #{discriminator_forward.7} parent=11 // pred_check_branch
        %173 = sbr.rel (%p171) target = $region28
      $region27: #{discriminator_forward.7} parent=11 // pred_region
        _
      $region28: #{discriminator_forward.7} parent=11 // pred_fallthru
        _
    $region12: #{discriminator_forward.7} parent=5 // pred_fallthru
      _
    %p174 = scmp.lt.s32.totalorder %s11, 2
    // Predicated region
    $region29: #{discriminator_forward.7} parent=5 // pred_check
      %p175 = pneg %p174
    $region30: #{discriminator_forward.7} parent=5 // pred_check_branch
      %177 = sbr.rel (%p175) target = $region32
    $region31: #{discriminator_forward.7} parent=5 // pred_region
      // Predicated region
      $region33: #{discriminator_forward.7} parent=31 // pred_check
        %p178 = pneg %p31
      $region34: #{discriminator_forward.7} parent=31 // pred_check_branch
        %180 = sbr.rel (%p178) target = $region36
      $region35: #{discriminator_forward.7} parent=31 // pred_region
        %s181 = smul.u32 8, %s11
        %p182 = scmp.lt.s32.totalorder %s181, 15
        %s183 = scalar_select %p182, %s181, 15
        %s184 = smul.addr %s183, 2
        %s185 = smul.addr %s184, 8
        %s186 = scalar_lea.vmem %s0, %s185
        %s187 = smul.u32 8, %s11
      $region36: #{discriminator_forward.7} parent=31 // pred_fallthru
        _
    $region32: #{discriminator_forward.7} parent=5 // pred_fallthru
      _
    %p188 = scmp.le.s32.totalorder 1, %s11
    %p189 = scmp.lt.s32.totalorder %s11, 3
    %p190 = pnand %p188, %p189
    %p191 = pneg %p190
    // Predicated region
    $region37: #{discriminator_forward.7} parent=5 // pred_check
      _
    $region38: #{discriminator_forward.7} parent=5 // pred_check_branch
      %193 = sbr.rel (%p190) target = $region40
    $region39: #{discriminator_forward.7} parent=5 // pred_region
      %s194 = ssub.s32 %s11, 1
      %s195 = smul.u32 8, %s16
      %p196 = scmp.lt.s32.totalorder %s195, 15
      %s197 = scalar_select %p196, %s195, 15
      %s198 = smul.addr %s197, 2
      %s199 = smul.addr %s198, 8
      %s200 = scalar_lea.vmem %s0, %s199
      %p201 = pneg %p37
      %p202 = pneg %p34
      %p203 = pneg %p58
      %p204 = pneg %p55
      %p205 = pneg %p79
      %p206 = pneg %p76
      %p207 = pneg %p100
      %p208 = pneg %p97
      %p209 = pneg %p121
      %p210 = pneg %p118
      %p211 = pneg %p147
      %p212 = pneg %p144
      %s213 = smul.u32 8, %s16
      %p214 = scmp.lt.s32.totalorder %s213, 15
      %s215 = scalar_select %p214, %s213, 15
      %s216 = smul.addr %s215, 2
      %s217 = smul.addr %s216, 4
      %s218 = scalar_lea.vmem %s5, %s217
      %s219 = smul.u32 8, %s16
      %p220 = scmp.lt.s32.totalorder %s219, 15
      %s221 = scalar_select %p220, %s219, 15
      %s222 = smul.addr %s221, 2
      %s223 = smul.addr %s222, 8
      %s224 = scalar_lea.vmem %s0, %s223
      %s225 = smul.u32 8, %s16
      %s226 = smul.u32 8, %s16
      %p227 = scmp.lt.s32.totalorder %s226, 15
      %s228 = scalar_select %p227, %s226, 15
      %s229 = smul.addr %s228, 2
      %s230 = smul.addr %s229, 4
      %s231 = scalar_lea.vmem %s5, %s230
      %s232 = smul.u32 8, %s16
      %v233 = vld [vmem:[%s1] sm:$0x3]
      %v234 = vld [vmem:[%s1 + $0x2] sm:$0x3]
      %v237 = vlaneseq
      %v238 = vshrl.u32 %v237, 7
      %v239 = vsub.s32 0, %v238
      %v240 = vrot.slane %v233, %v239
      %v241 = vlaneseq
      %v242 = vshrl.u32 %v241, 7
      %v243 = vsub.s32 1, %v242
      %v244 = vrot.slane %v233, %v243
      %v245 = vlaneseq
      %v246 = vshrl.u32 %v245, 7
      %v247 = vsub.s32 0, %v246
      %v248 = vrot.slane %v234, %v247
      %v249 = vlaneseq
      %v250 = vshrl.u32 %v249, 7
      %v251 = vsub.s32 1, %v250
      %v252 = vrot.slane %v234, %v251
      %vm257 = vcmask 1040384
      %v258 = vsel %vm257, %v240, 0.0
      %v259 = vsel %vm257, %v248, 0.0
      %v260 = vadd.f32 %v258, %v259
      %v261 = vsel %vm257, %v244, 0.0
      %v262 = vsel %vm257, %v252, 0.0
      %v263 = vadd.f32 %v261, %v262
      %v264 = vld [vmem:[%s2] sm:$0x3]
      %v265 = vld [vmem:[%s2 + $0x2] sm:$0x3]
      %v268 = vlaneseq
      %v269 = vshrl.u32 %v268, 7
      %v270 = vsub.s32 0, %v269
      %v271 = vrot.slane %v264, %v270
      %v272 = vlaneseq
      %v273 = vshrl.u32 %v272, 7
      %v274 = vsub.s32 1, %v273
      %v275 = vrot.slane %v264, %v274
      %v276 = vlaneseq
      %v277 = vshrl.u32 %v276, 7
      %v278 = vsub.s32 0, %v277
      %v279 = vrot.slane %v265, %v278
      %v280 = vlaneseq
      %v281 = vshrl.u32 %v280, 7
      %v282 = vsub.s32 1, %v281
      %v283 = vrot.slane %v265, %v282
      %v288 = vsel %vm257, %v271, 0.0
      %v289 = vsel %vm257, %v279, 0.0
      %v290 = vadd.f32 %v288, %v289
      %v291 = vsel %vm257, %v275, 0.0
      %v292 = vsel %vm257, %v283, 0.0
      %v293 = vadd.f32 %v291, %v292
      %v294 = vmul.f32 %v260, 0.0078125
      %v295 = vmul.f32 %v263, 0.0078125
      %v296 = vmul.f32 %v290, 0.0078125
      %v297 = vmul.f32 %v293, 0.0078125
      %v298 = vmul.f32 %v294, %v294
      %v299 = vmul.f32 %v295, %v295
      %v300 = vsub.f32 %v296, %v298
      %v301 = vsub.f32 %v297, %v299
      %v302 = vmax.f32 %v300, 0.0
      %v303 = vmax.f32 %v301, 0.0
      %v304 = vld [vmem:[%s3] sm:$0x3]
      %v305 = vadd.f32 %v302, 1e-05
      %v306 = vadd.f32 %v303, 1e-05
      %v307 = vrsqrt.pop %v305
      %v308 = vrsqrt.pop %v306
      %v311 = vcombine.low %v307, %v308
      %v313 = vunpack.c.l.s4 1966171168
      %v314 = vunpack.c.0.s8 %v313
      %v315 = vlaneseq
      %v316 = vshrl.u32 %v315, 7
      %v317 = vsub.s32 %v314, %v316
      %v318 = vrot.slane %v311, %v317
      %v320 = vunpack.c.l.s4 1966171168
      %v321 = vunpack.c.0.s8 %v320
      %v322 = vlaneseq
      %v323 = vshrl.u32 %v322, 7
      %v324 = vsub.s32 %v321, %v323
      %v325 = vrot.slane %v318, %v324
      %v327 = vmul.f32 %v304, %v325
      %v328 = vld [vmem:[%s4] sm:$0x3]
      %v330 = vlaneseq
      %v331 = vshrl.u32 %v330, 7
      %v332 = vsub.s32 0, %v331
      %v333 = vrot.slane %v327, %v332
      %v334 = vlaneseq
      %v335 = vshrl.u32 %v334, 7
      %v336 = vsub.s32 1, %v335
      %v337 = vrot.slane %v327, %v336
      %v340 = vmul.f32 %v294, %v333
      %v341 = vmul.f32 %v295, %v337
      %v344 = vcombine.low %v340, %v341
      %v346 = vunpack.c.l.s4 1966171168
      %v347 = vunpack.c.0.s8 %v346
      %v348 = vlaneseq
      %v349 = vshrl.u32 %v348, 7
      %v350 = vsub.s32 %v347, %v349
      %v351 = vrot.slane %v344, %v350
      %v353 = vunpack.c.l.s4 1966171168
      %v354 = vunpack.c.0.s8 %v353
      %v355 = vlaneseq
      %v356 = vshrl.u32 %v355, 7
      %v357 = vsub.s32 %v354, %v356
      %v358 = vrot.slane %v351, %v357
      %v360 = vsub.f32 %v328, %v358
      %v361 = vld [vmem:[%s224] sm:$0xff]
      %v362 = vld [vmem:[%s224 + $0x8] sm:$0xff]
      %v363 = vld [vmem:[%s224 + $0x10] sm:$0xff]
      %v364 = vld [vmem:[%s224 + $0x18] sm:$0xff]
      %v365 = vld [vmem:[%s224 + $0x20] sm:$0xff]
      %v366 = vld [vmem:[%s224 + $0x28] sm:$0xff]
      %v367 = vld [vmem:[%s224 + $0x30] sm:$0xff]
      %v368 = vld [vmem:[%s224 + $0x38] sm:$0xff]
      %v369 = vld [vmem:[%s224 + $0x40] sm:$0xff]
      %v370 = vld [vmem:[%s224 + $0x48] sm:$0xff]
      %v371 = vld [vmem:[%s224 + $0x50] sm:$0xff]
      %v372 = vld [vmem:[%s224 + $0x58] sm:$0xff]
      %v373 = vld [vmem:[%s224 + $0x60] sm:$0xff]
      %v374 = vld [vmem:[%s224 + $0x68] sm:$0xff]
      %v375 = vld [vmem:[%s224 + $0x70] sm:$0xff]
      %v376 = vld [vmem:[%s224 + $0x78] sm:$0xff]
      %v377 = vmul.f32 %v361, %v333
      %v378 = vmul.f32 %v362, %v337
      %v379 = vmul.f32 %v363, %v333
      %v380 = vmul.f32 %v364, %v337
      %v381 = vmul.f32 %v365, %v333
      %v382 = vmul.f32 %v366, %v337
      %v383 = vmul.f32 %v367, %v333
      %v384 = vmul.f32 %v368, %v337
      %v385 = vmul.f32 %v369, %v333
      %v386 = vmul.f32 %v370, %v337
      %v387 = vmul.f32 %v371, %v333
      %v388 = vmul.f32 %v372, %v337
      %v389 = vmul.f32 %v373, %v333
      %v390 = vmul.f32 %v374, %v337
      %v391 = vmul.f32 %v375, %v333
      %v392 = vmul.f32 %v376, %v337
      %v394 = vlaneseq
      %v395 = vshrl.u32 %v394, 7
      %v396 = vsub.s32 0, %v395
      %v397 = vrot.slane %v360, %v396
      %v398 = vlaneseq
      %v399 = vshrl.u32 %v398, 7
      %v400 = vsub.s32 1, %v399
      %v401 = vrot.slane %v360, %v400
      %v404 = vadd.f32 %v377, %v397
      %v405 = vadd.f32 %v378, %v401
      %v406 = vadd.f32 %v379, %v397
      %v407 = vadd.f32 %v380, %v401
      %v408 = vadd.f32 %v381, %v397
      %v409 = vadd.f32 %v382, %v401
      %v410 = vadd.f32 %v383, %v397
      %v411 = vadd.f32 %v384, %v401
      %v412 = vadd.f32 %v385, %v397
      %v413 = vadd.f32 %v386, %v401
      %v414 = vadd.f32 %v387, %v397
      %v415 = vadd.f32 %v388, %v401
      %v416 = vadd.f32 %v389, %v397
      %v417 = vadd.f32 %v390, %v401
      %v418 = vadd.f32 %v391, %v397
      %v419 = vadd.f32 %v392, %v401
      %vm420 = vcmp.gt.f32.partialorder %v404, 0.0
      %vm421 = vcmp.gt.f32.partialorder %v405, 0.0
      %vm422 = vcmp.gt.f32.partialorder %v406, 0.0
      %vm423 = vcmp.gt.f32.partialorder %v407, 0.0
      %vm424 = vcmp.gt.f32.partialorder %v408, 0.0
      %vm425 = vcmp.gt.f32.partialorder %v409, 0.0
      %vm426 = vcmp.gt.f32.partialorder %v410, 0.0
      %vm427 = vcmp.gt.f32.partialorder %v411, 0.0
      %vm428 = vcmp.gt.f32.partialorder %v412, 0.0
      %vm429 = vcmp.gt.f32.partialorder %v413, 0.0
      %vm430 = vcmp.gt.f32.partialorder %v414, 0.0
      %vm431 = vcmp.gt.f32.partialorder %v415, 0.0
      %vm432 = vcmp.gt.f32.partialorder %v416, 0.0
      %vm433 = vcmp.gt.f32.partialorder %v417, 0.0
      %vm434 = vcmp.gt.f32.partialorder %v418, 0.0
      %vm435 = vcmp.gt.f32.partialorder %v419, 0.0
      %v436 = vmul.f32 %v404, 0.2
      %v437 = vmul.f32 %v405, 0.2
      %v438 = vmul.f32 %v406, 0.2
      %v439 = vmul.f32 %v407, 0.2
      %v440 = vmul.f32 %v408, 0.2
      %v441 = vmul.f32 %v409, 0.2
      %v442 = vmul.f32 %v410, 0.2
      %v443 = vmul.f32 %v411, 0.2
      %v444 = vmul.f32 %v412, 0.2
      %v445 = vmul.f32 %v413, 0.2
      %v446 = vmul.f32 %v414, 0.2
      %v447 = vmul.f32 %v415, 0.2
      %v448 = vmul.f32 %v416, 0.2
      %v449 = vmul.f32 %v417, 0.2
      %v450 = vmul.f32 %v418, 0.2
      %v451 = vmul.f32 %v419, 0.2
      %v452 = vsel %vm420, %v404, %v436
      %v453 = vsel %vm421, %v405, %v437
      %v454 = vsel %vm422, %v406, %v438
      %v455 = vsel %vm423, %v407, %v439
      %v456 = vsel %vm424, %v408, %v440
      %v457 = vsel %vm425, %v409, %v441
      %v458 = vsel %vm426, %v410, %v442
      %v459 = vsel %vm427, %v411, %v443
      %v460 = vsel %vm428, %v412, %v444
      %v461 = vsel %vm429, %v413, %v445
      %v462 = vsel %vm430, %v414, %v446
      %v463 = vsel %vm431, %v415, %v447
      %v464 = vsel %vm432, %v416, %v448
      %v465 = vsel %vm433, %v417, %v449
      %v466 = vsel %vm434, %v418, %v450
      %v467 = vsel %vm435, %v419, %v451
      %v468 = vpack.c.bf16 %v454, %v452
      %v469 = vpack.c.bf16 %v455, %v453
      %v470 = vpack.c.bf16 %v458, %v456
      %v471 = vpack.c.bf16 %v459, %v457
      %v472 = vpack.c.bf16 %v462, %v460
      %v473 = vpack.c.bf16 %v463, %v461
      %v474 = vpack.c.bf16 %v466, %v464
      %v475 = vpack.c.bf16 %v467, %v465
      %v484 = vunpack.c.l.b16 %v468
      %v485 = vunpack.c.l.b16 %v469
      %v486 = vunpack.c.h.b16 %v468
      %v487 = vunpack.c.h.b16 %v469
      %v488 = vunpack.c.l.b16 %v470
      %v489 = vunpack.c.l.b16 %v471
      %v490 = vunpack.c.h.b16 %v470
      %v491 = vunpack.c.h.b16 %v471
      %v492 = vunpack.c.l.b16 %v472
      %v493 = vunpack.c.l.b16 %v473
      %v494 = vunpack.c.h.b16 %v472
      %v495 = vunpack.c.h.b16 %v473
      %v496 = vunpack.c.l.b16 %v474
      %v497 = vunpack.c.l.b16 %v475
      %v498 = vunpack.c.h.b16 %v474
      %v499 = vunpack.c.h.b16 %v475
      %v500 = vpack.c.b16 %v485, %v484
      %v501 = vpack.c.b16 %v487, %v486
      %v502 = vpack.c.b16 %v489, %v488
      %v503 = vpack.c.b16 %v491, %v490
      %v504 = vpack.c.b16 %v493, %v492
      %v505 = vpack.c.b16 %v495, %v494
      %v506 = vpack.c.b16 %v497, %v496
      %v507 = vpack.c.b16 %v499, %v498
      %516 = vst [vmem:[%s231] sm:$0xff] %v500
      %517 = vst [vmem:[%s231 + $0x8] sm:$0xff] %v501
      %518 = vst [vmem:[%s231 + $0x10] sm:$0xff] %v502
      %519 = vst [vmem:[%s231 + $0x18] sm:$0xff] %v503
      %520 = vst [vmem:[%s231 + $0x20] sm:$0xff] %v504
      %521 = vst [vmem:[%s231 + $0x28] sm:$0xff] %v505
      %522 = vst [vmem:[%s231 + $0x30] sm:$0xff] %v506
      %523 = vst [vmem:[%s231 + $0x38] sm:$0xff] %v507
      %s524 = smul.u32 8, %s16
      %p525 = scmp.lt.s32.totalorder %s524, 15
      %s526 = scalar_select %p525, %s524, 15
      %s527 = smul.addr %s526, 2
      %s528 = smul.addr %s527, 4
      %s529 = scalar_lea.vmem %s5, %s528
      // Predicated region
      $region41: #{discriminator_forward.7} parent=39 // pred_check
        %p530 = pneg %p144
      $region42: #{discriminator_forward.7} parent=39 // pred_check_branch
        %532 = sbr.rel (%p530) target = $region44
      $region43: #{discriminator_forward.7} parent=39 // pred_region
        %s533 = smul.u32 8, %s16
      $region44: #{discriminator_forward.7} parent=39 // pred_fallthru
        _
    $region40: #{discriminator_forward.7} parent=5 // pred_fallthru
      _
    %p534 = scmp.le.s32.totalorder 2, %s11
    // Predicated region
    $region45: #{discriminator_forward.7} parent=5 // pred_check
      %p535 = pneg %p534
    $region46: #{discriminator_forward.7} parent=5 // pred_check_branch
      %537 = sbr.rel (%p535) target = $region48
    $region47: #{discriminator_forward.7} parent=5 // pred_region
      %s538 = ssub.s32 %s11, 2
      // Predicated region
      $region49: #{discriminator_forward.7} parent=47 // pred_check
        %p539 = pneg %p150
      $region50: #{discriminator_forward.7} parent=47 // pred_check_branch
        %541 = sbr.rel (%p539) target = $region52
      $region51: #{discriminator_forward.7} parent=47 // pred_region
        %s542 = smul.u32 8, %s17
        %p543 = scmp.lt.s32.totalorder %s542, 15
        %s544 = scalar_select %p543, %s542, 15
        %s545 = smul.addr %s544, 2
        %s546 = smul.addr %s545, 4
        %s547 = scalar_lea.vmem %s5, %s546
      $region52: #{discriminator_forward.7} parent=47 // pred_fallthru
        _
    $region48: #{discriminator_forward.7} parent=5 // pred_fallthru
      _
  $region6: #{discriminator_forward.7} parent=0 // loop_footer
    %s15 = sadd.s32 1, %s11
  $region7: #{discriminator_forward.7} parent=0 // loop_footer_branch
    %10 = sbr.rel target = $region3
  $region8: #{discriminator_forward.7} parent=0 // loop_exit
    _

// kernel: discriminator_forward.6
$region0: #{discriminator_forward.6}
  #allocation0 [shape = 'u32[]', space=smem, size = 0x4, offset = 0x4, fixed_abs, tag = 'smem constant byte address 0x4 - core index']
  #allocation1 [shape = 'u32[144,128]{1,0:T(1,128)}', space=vmem, size = 0x12000, scoped, tag = 'internal scratch']
  %s0 = inlined_call_operand.vmem [shape: bf16[128,2048], index: 0, kind: input, shape index: {}]
  %s1 = inlined_call_operand.vmem [shape: bf16[2048,256], index: 1, kind: input, shape index: {}]
  %s2 = inlined_call_operand.vmem [shape: f32[128,256], index: 2, kind: output, shape index: {0}]
  %s3 = inlined_call_operand.vmem [shape: f32[2,1,256], index: 3, kind: output, shape index: {1}]
  %s4 = inlined_call_operand.vmem [shape: f32[2,1,256], index: 4, kind: output, shape index: {2}]
  %5 = xla_tuple %s2, %s3, %s4
  %s6 = sld [smem:[#allocation0]]
  $region57: #{discriminator_forward.6} parent=0
    _
  %s8 = ssub.s32 1, %s6
  %s9 = scalar_select 0, %s8, %s6
  loop: start=0, step=1, limit=4
  $region2: #{discriminator_forward.6} parent=0 // loop_pre_header
    _
  $region3: #{discriminator_forward.6} parent=0 // loop_header
    %s11 = sphi 0, %s15
    %p12 = scmp.ge.s32.totalorder %s11, 4
    %s21 = sphi 0, %s23
    %s24 = sphi 0, %s21
    %s25 = sphi 0, %s24
    %s41 = sphi 0, %s25
    %s45 = sphi 0, %s45
    %s47 = sphi 0, %s45
    %s48 = sphi 0, %s47
    %s62 = sphi 0, %s48
    %s68 = sphi 0, %s70
    %s71 = sphi 0, %s68
    %s72 = sphi 0, %s71
    %s88 = sphi 0, %s72
    %s94 = sphi 0, %s96
    %s97 = sphi 0, %s94
    %s98 = sphi 0, %s97
    %s114 = sphi 0, %s98
    %s120 = sphi 0, %s122
    %s123 = sphi 0, %s120
    %s124 = sphi 0, %s123
    %s140 = sphi 0, %s124
  $region4: #{discriminator_forward.6} parent=0 // loop_header_branch
    %14 = sbr.rel (%p12) target = $region8
  $region5: #{discriminator_forward.6} parent=0 // loop_body
    %s16 = ssub.s32 %s11, 1
    %s17 = ssub.s32 %s11, 2
    %s18 = sadd.s32 %s11, 1
    %s19 = ssub.s32 %s11, %s18
    %p20 = scmp.eq.s32.totalorder %s19, 0
    %s22 = sadd.s32 %s21, 1
    %s23 = scalar_select %p20, %s21, %s22
    %p26 = pneg %p20
    %p27 = scmp.eq.s32.totalorder %s11, 1
    %p28 = por %p26, %p27
    %p29 = scmp.ne.s32.totalorder %s21, %s24
    %p30 = scmp.eq.s32.totalorder %s11, 0
    %p31 = por %p29, %p30
    %p32 = scmp.ne.s32.totalorder %s21, %s24
    %p33 = scmp.eq.s32.totalorder %s16, 1
    %p34 = por %p32, %p33
    %p35 = scmp.ne.s32.totalorder %s24, %s25
    %p36 = scmp.eq.s32.totalorder %s16, 0
    %p37 = por %p35, %p36
    %p38 = scmp.ne.s32.totalorder %s24, %s25
    %p39 = scmp.eq.s32.totalorder %s17, 1
    %p40 = por %p38, %p39
    %p42 = scmp.ne.s32.totalorder %s25, %s41
    %p43 = scmp.eq.s32.totalorder %s17, 0
    %p44 = por %p42, %p43
    %s46 = sadd.s32 %s45, 1
    %p49 = scmp.eq.s32.totalorder %s11, 1
    %p50 = scmp.ne.s32.totalorder %s45, %s47
    %p51 = scmp.eq.s32.totalorder %s11, 0
    %p52 = por %p50, %p51
    %p53 = scmp.ne.s32.totalorder %s45, %s47
    %p54 = scmp.eq.s32.totalorder %s16, 1
    %p55 = por %p53, %p54
    %p56 = scmp.ne.s32.totalorder %s47, %s48
    %p57 = scmp.eq.s32.totalorder %s16, 0
    %p58 = por %p56, %p57
    %p59 = scmp.ne.s32.totalorder %s47, %s48
    %p60 = scmp.eq.s32.totalorder %s17, 1
    %p61 = por %p59, %p60
    %p63 = scmp.ne.s32.totalorder %s48, %s62
    %p64 = scmp.eq.s32.totalorder %s17, 0
    %p65 = por %p63, %p64
    %s66 = ssub.s32 %s11, %s18
    %p67 = scmp.eq.s32.totalorder %s66, 0
    %s69 = sadd.s32 %s68, 1
    %s70 = scalar_select %p67, %s68, %s69
    %p73 = pneg %p67
    %p74 = scmp.eq.s32.totalorder %s11, 1
    %p75 = por %p73, %p74
    %p76 = scmp.ne.s32.totalorder %s68, %s71
    %p77 = scmp.eq.s32.totalorder %s11, 0
    %p78 = por %p76, %p77
    %p79 = scmp.ne.s32.totalorder %s68, %s71
    %p80 = scmp.eq.s32.totalorder %s16, 1
    %p81 = por %p79, %p80
    %p82 = scmp.ne.s32.totalorder %s71, %s72
    %p83 = scmp.eq.s32.totalorder %s16, 0
    %p84 = por %p82, %p83
    %p85 = scmp.ne.s32.totalorder %s71, %s72
    %p86 = scmp.eq.s32.totalorder %s17, 1
    %p87 = por %p85, %p86
    %p89 = scmp.ne.s32.totalorder %s72, %s88
    %p90 = scmp.eq.s32.totalorder %s17, 0
    %p91 = por %p89, %p90
    %s92 = ssub.s32 %s11, %s18
    %p93 = scmp.eq.s32.totalorder %s92, 0
    %s95 = sadd.s32 %s94, 1
    %s96 = scalar_select %p93, %s94, %s95
    %p99 = pneg %p93
    %p100 = scmp.eq.s32.totalorder %s11, 1
    %p101 = por %p99, %p100
    %p102 = scmp.ne.s32.totalorder %s94, %s97
    %p103 = scmp.eq.s32.totalorder %s11, 0
    %p104 = por %p102, %p103
    %p105 = scmp.ne.s32.totalorder %s94, %s97
    %p106 = scmp.eq.s32.totalorder %s16, 1
    %p107 = por %p105, %p106
    %p108 = scmp.ne.s32.totalorder %s97, %s98
    %p109 = scmp.eq.s32.totalorder %s16, 0
    %p110 = por %p108, %p109
    %p111 = scmp.ne.s32.totalorder %s97, %s98
    %p112 = scmp.eq.s32.totalorder %s17, 1
    %p113 = por %p111, %p112
    %p115 = scmp.ne.s32.totalorder %s98, %s114
    %p116 = scmp.eq.s32.totalorder %s17, 0
    %p117 = por %p115, %p116
    %s118 = ssub.s32 %s11, %s18
    %p119 = scmp.eq.s32.totalorder %s118, 0
    %s121 = sadd.s32 %s120, 1
    %s122 = scalar_select %p119, %s120, %s121
    %p125 = pneg %p119
    %p126 = scmp.eq.s32.totalorder %s11, 1
    %p127 = por %p125, %p126
    %p128 = scmp.ne.s32.totalorder %s120, %s123
    %p129 = scmp.eq.s32.totalorder %s11, 0
    %p130 = por %p128, %p129
    %p131 = scmp.ne.s32.totalorder %s120, %s123
    %p132 = scmp.eq.s32.totalorder %s16, 1
    %p133 = por %p131, %p132
    %p134 = scmp.ne.s32.totalorder %s123, %s124
    %p135 = scmp.eq.s32.totalorder %s16, 0
    %p136 = por %p134, %p135
    %p137 = scmp.ne.s32.totalorder %s123, %s124
    %p138 = scmp.eq.s32.totalorder %s17, 1
    %p139 = por %p137, %p138
    %p141 = scmp.ne.s32.totalorder %s124, %s140
    %p142 = scmp.eq.s32.totalorder %s17, 0
    %p143 = por %p141, %p142
    %p144 = scmp.le.s32.totalorder 1, %s11
    %p145 = scmp.lt.s32.totalorder %s11, 3
    %p146 = pnand %p144, %p145
    %p147 = pneg %p146
    // Predicated region
    $region9: #{discriminator_forward.6} parent=5 // pred_check
      _
    $region10: #{discriminator_forward.6} parent=5 // pred_check_branch
      %149 = sbr.rel (%p146) target = $region12
    $region11: #{discriminator_forward.6} parent=5 // pred_region
      %s150 = ssub.s32 %s11, 1
      // Predicated region
      $region13: #{discriminator_forward.6} parent=11 // pred_check
        %p151 = pneg %p58
      $region14: #{discriminator_forward.6} parent=11 // pred_check_branch
        %153 = sbr.rel (%p151) target = $region16
      $region15: #{discriminator_forward.6} parent=11 // pred_region
        _
      $region16: #{discriminator_forward.6} parent=11 // pred_fallthru
        _
    $region12: #{discriminator_forward.6} parent=5 // pred_fallthru
      _
    %p154 = scmp.lt.s32.totalorder %s11, 2
    // Predicated region
    $region17: #{discriminator_forward.6} parent=5 // pred_check
      %p155 = pneg %p154
    $region18: #{discriminator_forward.6} parent=5 // pred_check_branch
      %157 = sbr.rel (%p155) target = $region20
    $region19: #{discriminator_forward.6} parent=5 // pred_region
      // Predicated region
      $region21: #{discriminator_forward.6} parent=19 // pred_check
        %p158 = pneg %p31
      $region22: #{discriminator_forward.6} parent=19 // pred_check_branch
        %160 = sbr.rel (%p158) target = $region24
      $region23: #{discriminator_forward.6} parent=19 // pred_region
        %s161 = smul.u32 8, %s11
        %p162 = scmp.lt.s32.totalorder %s161, 15
        %s163 = scalar_select %p162, %s161, 15
        %s164 = smul.addr %s163, 16
        %s165 = smul.addr %s164, 4
        %s166 = scalar_lea.vmem %s0, %s165
        %s167 = smul.u32 8, %s11
      $region24: #{discriminator_forward.6} parent=19 // pred_fallthru
        _
    $region20: #{discriminator_forward.6} parent=5 // pred_fallthru
      _
    %p168 = scmp.le.s32.totalorder 1, %s11
    %p169 = scmp.lt.s32.totalorder %s11, 3
    %p170 = pnand %p168, %p169
    %p171 = pneg %p170
    // Predicated region
    $region25: #{discriminator_forward.6} parent=5 // pred_check
      _
    $region26: #{discriminator_forward.6} parent=5 // pred_check_branch
      %173 = sbr.rel (%p170) target = $region28
    $region27: #{discriminator_forward.6} parent=5 // pred_region
      %s174 = ssub.s32 %s11, 1
      %s175 = smul.u32 8, %s16
      %p176 = scmp.lt.s32.totalorder %s175, 15
      %s177 = scalar_select %p176, %s175, 15
      %s178 = smul.addr %s177, 16
      %s179 = smul.addr %s178, 4
      %s180 = scalar_lea.vmem %s0, %s179
      %p181 = pneg %p37
      %p182 = pneg %p34
      %p183 = pneg %p58
      %p184 = pneg %p55
      %p185 = pneg %p84
      %p186 = pneg %p81
      %s187 = smul.u32 8, %s16
      %p188 = scmp.lt.s32.totalorder %s187, 15
      %s189 = scalar_select %p188, %s187, 15
      %s190 = smul.addr %s189, 2
      %s191 = smul.addr %s190, 8
      %s192 = scalar_lea.vmem %s2, %s191
      %p193 = pneg %p110
      %p194 = pneg %p107
      %p195 = scmp.lt.s32.totalorder %s16, 1
      %s196 = scalar_select %p195, %s16, 1
      %s197 = smul.addr %s196, 2
      %s198 = scalar_lea.vmem %s3, %s197
      %p199 = pneg %p136
      %p200 = pneg %p133
      %p201 = scmp.lt.s32.totalorder %s16, 1
      %s202 = scalar_select %p201, %s16, 1
      %s203 = smul.addr %s202, 2
      %s204 = scalar_lea.vmem %s4, %s203
      %s205 = smul.u32 8, %s16
      %p206 = scmp.lt.s32.totalorder %s205, 15
      %s207 = scalar_select %p206, %s205, 15
      %s208 = smul.addr %s207, 16
      %s209 = smul.addr %s208, 4
      %s210 = scalar_lea.vmem %s0, %s209
      %s211 = smul.u32 8, %s16
      %s212 = smul.u32 8, %s16
      %p213 = scmp.lt.s32.totalorder %s212, 15
      %s214 = scalar_select %p213, %s212, 15
      %s215 = smul.addr %s214, 2
      %s216 = smul.addr %s215, 8
      %s217 = scalar_lea.vmem %s2, %s216
      %s218 = smul.u32 8, %s16
      %p219 = scmp.lt.s32.totalorder %s16, 1
      %s220 = scalar_select %p219, %s16, 1
      %s221 = smul.addr %s220, 2
      %s222 = scalar_lea.vmem %s3, %s221
      %p223 = scmp.lt.s32.totalorder %s16, 1
      %s224 = scalar_select %p223, %s16, 1
      %s225 = smul.addr %s224, 2
      %s226 = scalar_lea.vmem %s4, %s225
      %v227 = vld [vmem:[%s210] sm:$0xff]
      %v228 = vld [vmem:[%s210 + $0x8] sm:$0xff]
      %v229 = vld [vmem:[%s210 + $0x10] sm:$0xff]
      %v230 = vld [vmem:[%s210 + $0x18] sm:$0xff]
      %v231 = vld [vmem:[%s210 + $0x20] sm:$0xff]
      %v232 = vld [vmem:[%s210 + $0x28] sm:$0xff]
      %v233 = vld [vmem:[%s210 + $0x30] sm:$0xff]
      %v234 = vld [vmem:[%s210 + $0x38] sm:$0xff]
      %v235 = vld [vmem:[%s210 + $0x40] sm:$0xff]
      %v236 = vld [vmem:[%s210 + $0x48] sm:$0xff]
      %v237 = vld [vmem:[%s210 + $0x50] sm:$0xff]
      %v238 = vld [vmem:[%s210 + $0x58] sm:$0xff]
      %v239 = vld [vmem:[%s210 + $0x60] sm:$0xff]
      %v240 = vld [vmem:[%s210 + $0x68] sm:$0xff]
      %v241 = vld [vmem:[%s210 + $0x70] sm:$0xff]
      %v242 = vld [vmem:[%s210 + $0x78] sm:$0xff]
      %v243 = vld [vmem:[%s210 + $0x80] sm:$0xff]
      %v244 = vld [vmem:[%s210 + $0x88] sm:$0xff]
      %v245 = vld [vmem:[%s210 + $0x90] sm:$0xff]
      %v246 = vld [vmem:[%s210 + $0x98] sm:$0xff]
      %v247 = vld [vmem:[%s210 + $0xa0] sm:$0xff]
      %v248 = vld [vmem:[%s210 + $0xa8] sm:$0xff]
      %v249 = vld [vmem:[%s210 + $0xb0] sm:$0xff]
      %v250 = vld [vmem:[%s210 + $0xb8] sm:$0xff]
      %v251 = vld [vmem:[%s210 + $0xc0] sm:$0xff]
      %v252 = vld [vmem:[%s210 + $0xc8] sm:$0xff]
      %v253 = vld [vmem:[%s210 + $0xd0] sm:$0xff]
      %v254 = vld [vmem:[%s210 + $0xd8] sm:$0xff]
      %v255 = vld [vmem:[%s210 + $0xe0] sm:$0xff]
      %v256 = vld [vmem:[%s210 + $0xe8] sm:$0xff]
      %v257 = vld [vmem:[%s210 + $0xf0] sm:$0xff]
      %v258 = vld [vmem:[%s210 + $0xf8] sm:$0xff]
      %v259 = vld [vmem:[%s210 + $0x100] sm:$0xff]
      %v260 = vld [vmem:[%s210 + $0x108] sm:$0xff]
      %v261 = vld [vmem:[%s210 + $0x110] sm:$0xff]
      %v262 = vld [vmem:[%s210 + $0x118] sm:$0xff]
      %v263 = vld [vmem:[%s210 + $0x120] sm:$0xff]
      %v264 = vld [vmem:[%s210 + $0x128] sm:$0xff]
      %v265 = vld [vmem:[%s210 + $0x130] sm:$0xff]
      %v266 = vld [vmem:[%s210 + $0x138] sm:$0xff]
      %v267 = vld [vmem:[%s210 + $0x140] sm:$0xff]
      %v268 = vld [vmem:[%s210 + $0x148] sm:$0xff]
      %v269 = vld [vmem:[%s210 + $0x150] sm:$0xff]
      %v270 = vld [vmem:[%s210 + $0x158] sm:$0xff]
      %v271 = vld [vmem:[%s210 + $0x160] sm:$0xff]
      %v272 = vld [vmem:[%s210 + $0x168] sm:$0xff]
      %v273 = vld [vmem:[%s210 + $0x170] sm:$0xff]
      %v274 = vld [vmem:[%s210 + $0x178] sm:$0xff]
      %v275 = vld [vmem:[%s210 + $0x180] sm:$0xff]
      %v276 = vld [vmem:[%s210 + $0x188] sm:$0xff]
      %v277 = vld [vmem:[%s210 + $0x190] sm:$0xff]
      %v278 = vld [vmem:[%s210 + $0x198] sm:$0xff]
      %v279 = vld [vmem:[%s210 + $0x1a0] sm:$0xff]
      %v280 = vld [vmem:[%s210 + $0x1a8] sm:$0xff]
      %v281 = vld [vmem:[%s210 + $0x1b0] sm:$0xff]
      %v282 = vld [vmem:[%s210 + $0x1b8] sm:$0xff]
      %v283 = vld [vmem:[%s210 + $0x1c0] sm:$0xff]
      %v284 = vld [vmem:[%s210 + $0x1c8] sm:$0xff]
      %v285 = vld [vmem:[%s210 + $0x1d0] sm:$0xff]
      %v286 = vld [vmem:[%s210 + $0x1d8] sm:$0xff]
      %v287 = vld [vmem:[%s210 + $0x1e0] sm:$0xff]
      %v288 = vld [vmem:[%s210 + $0x1e8] sm:$0xff]
      %v289 = vld [vmem:[%s210 + $0x1f0] sm:$0xff]
      %v290 = vld [vmem:[%s210 + $0x1f8] sm:$0xff]
      %v291 = vld [vmem:[%s1] sm:$0xff]
      %v292 = vld [vmem:[%s1 + $0x8] sm:$0xff]
      %v293 = vld [vmem:[%s1 + $0x10] sm:$0xff]
      %v294 = vld [vmem:[%s1 + $0x18] sm:$0xff]
      %v295 = vld [vmem:[%s1 + $0x20] sm:$0xff]
      %v296 = vld [vmem:[%s1 + $0x28] sm:$0xff]
      %v297 = vld [vmem:[%s1 + $0x30] sm:$0xff]
      %v298 = vld [vmem:[%s1 + $0x38] sm:$0xff]
      %v299 = vld [vmem:[%s1 + $0x40] sm:$0xff]
      %v300 = vld [vmem:[%s1 + $0x48] sm:$0xff]
      %v301 = vld [vmem:[%s1 + $0x50] sm:$0xff]
      %v302 = vld [vmem:[%s1 + $0x58] sm:$0xff]
      %v303 = vld [vmem:[%s1 + $0x60] sm:$0xff]
      %v304 = vld [vmem:[%s1 + $0x68] sm:$0xff]
      %v305 = vld [vmem:[%s1 + $0x70] sm:$0xff]
      %v306 = vld [vmem:[%s1 + $0x78] sm:$0xff]
      %v307 = vld [vmem:[%s1 + $0x80] sm:$0xff]
      %v308 = vld [vmem:[%s1 + $0x88] sm:$0xff]
      %v309 = vld [vmem:[%s1 + $0x90] sm:$0xff]
      %v310 = vld [vmem:[%s1 + $0x98] sm:$0xff]
      %v311 = vld [vmem:[%s1 + $0xa0] sm:$0xff]
      %v312 = vld [vmem:[%s1 + $0xa8] sm:$0xff]
      %v313 = vld [vmem:[%s1 + $0xb0] sm:$0xff]
      %v314 = vld [vmem:[%s1 + $0xb8] sm:$0xff]
      %v315 = vld [vmem:[%s1 + $0xc0] sm:$0xff]
      %v316 = vld [vmem:[%s1 + $0xc8] sm:$0xff]
      %v317 = vld [vmem:[%s1 + $0xd0] sm:$0xff]
      %v318 = vld [vmem:[%s1 + $0xd8] sm:$0xff]
      %v319 = vld [vmem:[%s1 + $0xe0] sm:$0xff]
      %v320 = vld [vmem:[%s1 + $0xe8] sm:$0xff]
      %v321 = vld [vmem:[%s1 + $0xf0] sm:$0xff]
      %v322 = vld [vmem:[%s1 + $0xf8] sm:$0xff]
      %v323 = vld [vmem:[%s1 + $0x100] sm:$0xff]
      %v324 = vld [vmem:[%s1 + $0x108] sm:$0xff]
      %v325 = vld [vmem:[%s1 + $0x110] sm:$0xff]
      %v326 = vld [vmem:[%s1 + $0x118] sm:$0xff]
      %v327 = vld [vmem:[%s1 + $0x120] sm:$0xff]
      %v328 = vld [vmem:[%s1 + $0x128] sm:$0xff]
      %v329 = vld [vmem:[%s1 + $0x130] sm:$0xff]
      %v330 = vld [vmem:[%s1 + $0x138] sm:$0xff]
      %v331 = vld [vmem:[%s1 + $0x140] sm:$0xff]
      %v332 = vld [vmem:[%s1 + $0x148] sm:$0xff]
      %v333 = vld [vmem:[%s1 + $0x150] sm:$0xff]
      %v334 = vld [vmem:[%s1 + $0x158] sm:$0xff]
      %v335 = vld [vmem:[%s1 + $0x160] sm:$0xff]
      %v336 = vld [vmem:[%s1 + $0x168] sm:$0xff]
      %v337 = vld [vmem:[%s1 + $0x170] sm:$0xff]
      %v338 = vld [vmem:[%s1 + $0x178] sm:$0xff]
      %v339 = vld [vmem:[%s1 + $0x180] sm:$0xff]
      %v340 = vld [vmem:[%s1 + $0x188] sm:$0xff]
      %v341 = vld [vmem:[%s1 + $0x190] sm:$0xff]
      %v342 = vld [vmem:[%s1 + $0x198] sm:$0xff]
      %v343 = vld [vmem:[%s1 + $0x1a0] sm:$0xff]
      %v344 = vld [vmem:[%s1 + $0x1a8] sm:$0xff]
      %v345 = vld [vmem:[%s1 + $0x1b0] sm:$0xff]
      %v346 = vld [vmem:[%s1 + $0x1b8] sm:$0xff]
      %v347 = vld [vmem:[%s1 + $0x1c0] sm:$0xff]
      %v348 = vld [vmem:[%s1 + $0x1c8] sm:$0xff]
      %v349 = vld [vmem:[%s1 + $0x1d0] sm:$0xff]
      %v350 = vld [vmem:[%s1 + $0x1d8] sm:$0xff]
      %v351 = vld [vmem:[%s1 + $0x1e0] sm:$0xff]
      %v352 = vld [vmem:[%s1 + $0x1e8] sm:$0xff]
      %v353 = vld [vmem:[%s1 + $0x1f0] sm:$0xff]
      %v354 = vld [vmem:[%s1 + $0x1f8] sm:$0xff]
      %v355 = vld [vmem:[%s1 + $0x200] sm:$0xff]
      %v356 = vld [vmem:[%s1 + $0x208] sm:$0xff]
      %v357 = vld [vmem:[%s1 + $0x210] sm:$0xff]
      %v358 = vld [vmem:[%s1 + $0x218] sm:$0xff]
      %v359 = vld [vmem:[%s1 + $0x220] sm:$0xff]
      %v360 = vld [vmem:[%s1 + $0x228] sm:$0xff]
      %v361 = vld [vmem:[%s1 + $0x230] sm:$0xff]
      %v362 = vld [vmem:[%s1 + $0x238] sm:$0xff]
      %v363 = vld [vmem:[%s1 + $0x240] sm:$0xff]
      %v364 = vld [vmem:[%s1 + $0x248] sm:$0xff]
      %v365 = vld [vmem:[%s1 + $0x250] sm:$0xff]
      %v366 = vld [vmem:[%s1 + $0x258] sm:$0xff]
      %v367 = vld [vmem:[%s1 + $0x260] sm:$0xff]
      %v368 = vld [vmem:[%s1 + $0x268] sm:$0xff]
      %v369 = vld [vmem:[%s1 + $0x270] sm:$0xff]
      %v370 = vld [vmem:[%s1 + $0x278] sm:$0xff]
      %v371 = vld [vmem:[%s1 + $0x280] sm:$0xff]
      %v372 = vld [vmem:[%s1 + $0x288] sm:$0xff]
      %v373 = vld [vmem:[%s1 + $0x290] sm:$0xff]
      %v374 = vld [vmem:[%s1 + $0x298] sm:$0xff]
      %v375 = vld [vmem:[%s1 + $0x2a0] sm:$0xff]
      %v376 = vld [vmem:[%s1 + $0x2a8] sm:$0xff]
      %v377 = vld [vmem:[%s1 + $0x2b0] sm:$0xff]
      %v378 = vld [vmem:[%s1 + $0x2b8] sm:$0xff]
      %v379 = vld [vmem:[%s1 + $0x2c0] sm:$0xff]
      %v380 = vld [vmem:[%s1 + $0x2c8] sm:$0xff]
      %v381 = vld [vmem:[%s1 + $0x2d0] sm:$0xff]
      %v382 = vld [vmem:[%s1 + $0x2d8] sm:$0xff]
      %v383 = vld [vmem:[%s1 + $0x2e0] sm:$0xff]
      %v384 = vld [vmem:[%s1 + $0x2e8] sm:$0xff]
      %v385 = vld [vmem:[%s1 + $0x2f0] sm:$0xff]
      %v386 = vld [vmem:[%s1 + $0x2f8] sm:$0xff]
      %v387 = vld [vmem:[%s1 + $0x300] sm:$0xff]
      %v388 = vld [vmem:[%s1 + $0x308] sm:$0xff]
      %v389 = vld [vmem:[%s1 + $0x310] sm:$0xff]
      %v390 = vld [vmem:[%s1 + $0x318] sm:$0xff]
      %v391 = vld [vmem:[%s1 + $0x320] sm:$0xff]
      %v392 = vld [vmem:[%s1 + $0x328] sm:$0xff]
      %v393 = vld [vmem:[%s1 + $0x330] sm:$0xff]
      %v394 = vld [vmem:[%s1 + $0x338] sm:$0xff]
      %v395 = vld [vmem:[%s1 + $0x340] sm:$0xff]
      %v396 = vld [vmem:[%s1 + $0x348] sm:$0xff]
      %v397 = vld [vmem:[%s1 + $0x350] sm:$0xff]
      %v398 = vld [vmem:[%s1 + $0x358] sm:$0xff]
      %v399 = vld [vmem:[%s1 + $0x360] sm:$0xff]
      %v400 = vld [vmem:[%s1 + $0x368] sm:$0xff]
      %v401 = vld [vmem:[%s1 + $0x370] sm:$0xff]
      %v402 = vld [vmem:[%s1 + $0x378] sm:$0xff]
      %v403 = vld [vmem:[%s1 + $0x380] sm:$0xff]
      %v404 = vld [vmem:[%s1 + $0x388] sm:$0xff]
      %v405 = vld [vmem:[%s1 + $0x390] sm:$0xff]
      %v406 = vld [vmem:[%s1 + $0x398] sm:$0xff]
      %v407 = vld [vmem:[%s1 + $0x3a0] sm:$0xff]
      %v408 = vld [vmem:[%s1 + $0x3a8] sm:$0xff]
      %v409 = vld [vmem:[%s1 + $0x3b0] sm:$0xff]
      %v410 = vld [vmem:[%s1 + $0x3b8] sm:$0xff]
      %v411 = vld [vmem:[%s1 + $0x3c0] sm:$0xff]
      %v412 = vld [vmem:[%s1 + $0x3c8] sm:$0xff]
      %v413 = vld [vmem:[%s1 + $0x3d0] sm:$0xff]
      %v414 = vld [vmem:[%s1 + $0x3d8] sm:$0xff]
      %v415 = vld [vmem:[%s1 + $0x3e0] sm:$0xff]
      %v416 = vld [vmem:[%s1 + $0x3e8] sm:$0xff]
      %v417 = vld [vmem:[%s1 + $0x3f0] sm:$0xff]
      %v418 = vld [vmem:[%s1 + $0x3f8] sm:$0xff]
      %v419 = vld [vmem:[%s1 + $0x400] sm:$0xff]
      %v420 = vld [vmem:[%s1 + $0x408] sm:$0xff]
      %v421 = vld [vmem:[%s1 + $0x410] sm:$0xff]
      %v422 = vld [vmem:[%s1 + $0x418] sm:$0xff]
      %v423 = vld [vmem:[%s1 + $0x420] sm:$0xff]
      %v424 = vld [vmem:[%s1 + $0x428] sm:$0xff]
      %v425 = vld [vmem:[%s1 + $0x430] sm:$0xff]
      %v426 = vld [vmem:[%s1 + $0x438] sm:$0xff]
      %v427 = vld [vmem:[%s1 + $0x440] sm:$0xff]
      %v428 = vld [vmem:[%s1 + $0x448] sm:$0xff]
      %v429 = vld [vmem:[%s1 + $0x450] sm:$0xff]
      %v430 = vld [vmem:[%s1 + $0x458] sm:$0xff]
      %v431 = vld [vmem:[%s1 + $0x460] sm:$0xff]
      %v432 = vld [vmem:[%s1 + $0x468] sm:$0xff]
      %v433 = vld [vmem:[%s1 + $0x470] sm:$0xff]
      %v434 = vld [vmem:[%s1 + $0x478] sm:$0xff]
      %v435 = vld [vmem:[%s1 + $0x480] sm:$0xff]
      %v436 = vld [vmem:[%s1 + $0x488] sm:$0xff]
      %v437 = vld [vmem:[%s1 + $0x490] sm:$0xff]
      %v438 = vld [vmem:[%s1 + $0x498] sm:$0xff]
      %v439 = vld [vmem:[%s1 + $0x4a0] sm:$0xff]
      %v440 = vld [vmem:[%s1 + $0x4a8] sm:$0xff]
      %v441 = vld [vmem:[%s1 + $0x4b0] sm:$0xff]
      %v442 = vld [vmem:[%s1 + $0x4b8] sm:$0xff]
      %v443 = vld [vmem:[%s1 + $0x4c0] sm:$0xff]
      %v444 = vld [vmem:[%s1 + $0x4c8] sm:$0xff]
      %v445 = vld [vmem:[%s1 + $0x4d0] sm:$0xff]
      %v446 = vld [vmem:[%s1 + $0x4d8] sm:$0xff]
      %v447 = vld [vmem:[%s1 + $0x4e0] sm:$0xff]
      %v448 = vld [vmem:[%s1 + $0x4e8] sm:$0xff]
      %v449 = vld [vmem:[%s1 + $0x4f0] sm:$0xff]
      %v450 = vld [vmem:[%s1 + $0x4f8] sm:$0xff]
      %v451 = vld [vmem:[%s1 + $0x500] sm:$0xff]
      %v452 = vld [vmem:[%s1 + $0x508] sm:$0xff]
      %v453 = vld [vmem:[%s1 + $0x510] sm:$0xff]
      %v454 = vld [vmem:[%s1 + $0x518] sm:$0xff]
      %v455 = vld [vmem:[%s1 + $0x520] sm:$0xff]
      %v456 = vld [vmem:[%s1 + $0x528] sm:$0xff]
      %v457 = vld [vmem:[%s1 + $0x530] sm:$0xff]
      %v458 = vld [vmem:[%s1 + $0x538] sm:$0xff]
      %v459 = vld [vmem:[%s1 + $0x540] sm:$0xff]
      %v460 = vld [vmem:[%s1 + $0x548] sm:$0xff]
      %v461 = vld [vmem:[%s1 + $0x550] sm:$0xff]
      %v462 = vld [vmem:[%s1 + $0x558] sm:$0xff]
      %v463 = vld [vmem:[%s1 + $0x560] sm:$0xff]
      %v464 = vld [vmem:[%s1 + $0x568] sm:$0xff]
      %v465 = vld [vmem:[%s1 + $0x570] sm:$0xff]
      %v466 = vld [vmem:[%s1 + $0x578] sm:$0xff]
      %v467 = vld [vmem:[%s1 + $0x580] sm:$0xff]
      %v468 = vld [vmem:[%s1 + $0x588] sm:$0xff]
      %v469 = vld [vmem:[%s1 + $0x590] sm:$0xff]
      %v470 = vld [vmem:[%s1 + $0x598] sm:$0xff]
      %v471 = vld [vmem:[%s1 + $0x5a0] sm:$0xff]
      %v472 = vld [vmem:[%s1 + $0x5a8] sm:$0xff]
      %v473 = vld [vmem:[%s1 + $0x5b0] sm:$0xff]
      %v474 = vld [vmem:[%s1 + $0x5b8] sm:$0xff]
      %v475 = vld [vmem:[%s1 + $0x5c0] sm:$0xff]
      %v476 = vld [vmem:[%s1 + $0x5c8] sm:$0xff]
      %v477 = vld [vmem:[%s1 + $0x5d0] sm:$0xff]
      %v478 = vld [vmem:[%s1 + $0x5d8] sm:$0xff]
      %v479 = vld [vmem:[%s1 + $0x5e0] sm:$0xff]
      %v480 = vld [vmem:[%s1 + $0x5e8] sm:$0xff]
      %v481 = vld [vmem:[%s1 + $0x5f0] sm:$0xff]
      %v482 = vld [vmem:[%s1 + $0x5f8] sm:$0xff]
      %v483 = vld [vmem:[%s1 + $0x600] sm:$0xff]
      %v484 = vld [vmem:[%s1 + $0x608] sm:$0xff]
      %v485 = vld [vmem:[%s1 + $0x610] sm:$0xff]
      %v486 = vld [vmem:[%s1 + $0x618] sm:$0xff]
      %v487 = vld [vmem:[%s1 + $0x620] sm:$0xff]
      %v488 = vld [vmem:[%s1 + $0x628] sm:$0xff]
      %v489 = vld [vmem:[%s1 + $0x630] sm:$0xff]
      %v490 = vld [vmem:[%s1 + $0x638] sm:$0xff]
      %v491 = vld [vmem:[%s1 + $0x640] sm:$0xff]
      %v492 = vld [vmem:[%s1 + $0x648] sm:$0xff]
      %v493 = vld [vmem:[%s1 + $0x650] sm:$0xff]
      %v494 = vld [vmem:[%s1 + $0x658] sm:$0xff]
      %v495 = vld [vmem:[%s1 + $0x660] sm:$0xff]
      %v496 = vld [vmem:[%s1 + $0x668] sm:$0xff]
      %v497 = vld [vmem:[%s1 + $0x670] sm:$0xff]
      %v498 = vld [vmem:[%s1 + $0x678] sm:$0xff]
      %v499 = vld [vmem:[%s1 + $0x680] sm:$0xff]
      %v500 = vld [vmem:[%s1 + $0x688] sm:$0xff]
      %v501 = vld [vmem:[%s1 + $0x690] sm:$0xff]
      %v502 = vld [vmem:[%s1 + $0x698] sm:$0xff]
      %v503 = vld [vmem:[%s1 + $0x6a0] sm:$0xff]
      %v504 = vld [vmem:[%s1 + $0x6a8] sm:$0xff]
      %v505 = vld [vmem:[%s1 + $0x6b0] sm:$0xff]
      %v506 = vld [vmem:[%s1 + $0x6b8] sm:$0xff]
      %v507 = vld [vmem:[%s1 + $0x6c0] sm:$0xff]
      %v508 = vld [vmem:[%s1 + $0x6c8] sm:$0xff]
      %v509 = vld [vmem:[%s1 + $0x6d0] sm:$0xff]
      %v510 = vld [vmem:[%s1 + $0x6d8] sm:$0xff]
      %v511 = vld [vmem:[%s1 + $0x6e0] sm:$0xff]
      %v512 = vld [vmem:[%s1 + $0x6e8] sm:$0xff]
      %v513 = vld [vmem:[%s1 + $0x6f0] sm:$0xff]
      %v514 = vld [vmem:[%s1 + $0x6f8] sm:$0xff]
      %v515 = vld [vmem:[%s1 + $0x700] sm:$0xff]
      %v516 = vld [vmem:[%s1 + $0x708] sm:$0xff]
      %v517 = vld [vmem:[%s1 + $0x710] sm:$0xff]
      %v518 = vld [vmem:[%s1 + $0x718] sm:$0xff]
      %v519 = vld [vmem:[%s1 + $0x720] sm:$0xff]
      %v520 = vld [vmem:[%s1 + $0x728] sm:$0xff]
      %v521 = vld [vmem:[%s1 + $0x730] sm:$0xff]
      %v522 = vld [vmem:[%s1 + $0x738] sm:$0xff]
      %v523 = vld [vmem:[%s1 + $0x740] sm:$0xff]
      %v524 = vld [vmem:[%s1 + $0x748] sm:$0xff]
      %v525 = vld [vmem:[%s1 + $0x750] sm:$0xff]
      %v526 = vld [vmem:[%s1 + $0x758] sm:$0xff]
      %v527 = vld [vmem:[%s1 + $0x760] sm:$0xff]
      %v528 = vld [vmem:[%s1 + $0x768] sm:$0xff]
      %v529 = vld [vmem:[%s1 + $0x770] sm:$0xff]
      %v530 = vld [vmem:[%s1 + $0x778] sm:$0xff]
      %v531 = vld [vmem:[%s1 + $0x780] sm:$0xff]
      %v532 = vld [vmem:[%s1 + $0x788] sm:$0xff]
      %v533 = vld [vmem:[%s1 + $0x790] sm:$0xff]
      %v534 = vld [vmem:[%s1 + $0x798] sm:$0xff]
      %v535 = vld [vmem:[%s1 + $0x7a0] sm:$0xff]
      %v536 = vld [vmem:[%s1 + $0x7a8] sm:$0xff]
      %v537 = vld [vmem:[%s1 + $0x7b0] sm:$0xff]
      %v538 = vld [vmem:[%s1 + $0x7b8] sm:$0xff]
      %v539 = vld [vmem:[%s1 + $0x7c0] sm:$0xff]
      %v540 = vld [vmem:[%s1 + $0x7c8] sm:$0xff]
      %v541 = vld [vmem:[%s1 + $0x7d0] sm:$0xff]
      %v542 = vld [vmem:[%s1 + $0x7d8] sm:$0xff]
      %v543 = vld [vmem:[%s1 + $0x7e0] sm:$0xff]
      %v544 = vld [vmem:[%s1 + $0x7e8] sm:$0xff]
      %v545 = vld [vmem:[%s1 + $0x7f0] sm:$0xff]
      %v546 = vld [vmem:[%s1 + $0x7f8] sm:$0xff]
      %v611 = vunpack.c.l.b16 %v227
      %v612 = vunpack.c.h.b16 %v227
      %v613 = vunpack.c.l.b16 %v228
      %v614 = vunpack.c.h.b16 %v228
      %v615 = vunpack.c.l.b16 %v229
      %v616 = vunpack.c.h.b16 %v229
      %v617 = vunpack.c.l.b16 %v230
      %v618 = vunpack.c.h.b16 %v230
      %v619 = vunpack.c.l.b16 %v231
      %v620 = vunpack.c.h.b16 %v231
      %v621 = vunpack.c.l.b16 %v232
      %v622 = vunpack.c.h.b16 %v232
      %v623 = vunpack.c.l.b16 %v233
      %v624 = vunpack.c.h.b16 %v233
      %v625 = vunpack.c.l.b16 %v234
      %v626 = vunpack.c.h.b16 %v234
      %v627 = vunpack.c.l.b16 %v235
      %v628 = vunpack.c.h.b16 %v235
      %v629 = vunpack.c.l.b16 %v236
      %v630 = vunpack.c.h.b16 %v236
      %v631 = vunpack.c.l.b16 %v237
      %v632 = vunpack.c.h.b16 %v237
      %v633 = vunpack.c.l.b16 %v238
      %v634 = vunpack.c.h.b16 %v238
      %v635 = vunpack.c.l.b16 %v239
      %v636 = vunpack.c.h.b16 %v239
      %v637 = vunpack.c.l.b16 %v240
      %v638 = vunpack.c.h.b16 %v240
      %v639 = vunpack.c.l.b16 %v241
      %v640 = vunpack.c.h.b16 %v241
      %v641 = vunpack.c.l.b16 %v242
      %v642 = vunpack.c.h.b16 %v242
      %v643 = vunpack.c.l.b16 %v243
      %v644 = vunpack.c.h.b16 %v243
      %v645 = vunpack.c.l.b16 %v244
      %v646 = vunpack.c.h.b16 %v244
      %v647 = vunpack.c.l.b16 %v245
      %v648 = vunpack.c.h.b16 %v245
      %v649 = vunpack.c.l.b16 %v246
      %v650 = vunpack.c.h.b16 %v246
      %v651 = vunpack.c.l.b16 %v247
      %v652 = vunpack.c.h.b16 %v247
      %v653 = vunpack.c.l.b16 %v248
      %v654 = vunpack.c.h.b16 %v248
      %v655 = vunpack.c.l.b16 %v249
      %v656 = vunpack.c.h.b16 %v249
      %v657 = vunpack.c.l.b16 %v250
      %v658 = vunpack.c.h.b16 %v250
      %v659 = vunpack.c.l.b16 %v251
      %v660 = vunpack.c.h.b16 %v251
      %v661 = vunpack.c.l.b16 %v252
      %v662 = vunpack.c.h.b16 %v252
      %v663 = vunpack.c.l.b16 %v253
      %v664 = vunpack.c.h.b16 %v253
      %v665 = vunpack.c.l.b16 %v254
      %v666 = vunpack.c.h.b16 %v254
      %v667 = vunpack.c.l.b16 %v255
      %v668 = vunpack.c.h.b16 %v255
      %v669 = vunpack.c.l.b16 %v256
      %v670 = vunpack.c.h.b16 %v256
      %v671 = vunpack.c.l.b16 %v257
      %v672 = vunpack.c.h.b16 %v257
      %v673 = vunpack.c.l.b16 %v258
      %v674 = vunpack.c.h.b16 %v258
      %v675 = vunpack.c.l.b16 %v259
      %v676 = vunpack.c.h.b16 %v259
      %v677 = vunpack.c.l.b16 %v260
      %v678 = vunpack.c.h.b16 %v260
      %v679 = vunpack.c.l.b16 %v261
      %v680 = vunpack.c.h.b16 %v261
      %v681 = vunpack.c.l.b16 %v262
      %v682 = vunpack.c.h.b16 %v262
      %v683 = vunpack.c.l.b16 %v263
      %v684 = vunpack.c.h.b16 %v263
      %v685 = vunpack.c.l.b16 %v264
      %v686 = vunpack.c.h.b16 %v264
      %v687 = vunpack.c.l.b16 %v265
      %v688 = vunpack.c.h.b16 %v265
      %v689 = vunpack.c.l.b16 %v266
      %v690 = vunpack.c.h.b16 %v266
      %v691 = vunpack.c.l.b16 %v267
      %v692 = vunpack.c.h.b16 %v267
      %v693 = vunpack.c.l.b16 %v268
      %v694 = vunpack.c.h.b16 %v268
      %v695 = vunpack.c.l.b16 %v269
      %v696 = vunpack.c.h.b16 %v269
      %v697 = vunpack.c.l.b16 %v270
      %v698 = vunpack.c.h.b16 %v270
      %v699 = vunpack.c.l.b16 %v271
      %v700 = vunpack.c.h.b16 %v271
      %v701 = vunpack.c.l.b16 %v272
      %v702 = vunpack.c.h.b16 %v272
      %v703 = vunpack.c.l.b16 %v273
      %v704 = vunpack.c.h.b16 %v273
      %v705 = vunpack.c.l.b16 %v274
      %v706 = vunpack.c.h.b16 %v274
      %v707 = vunpack.c.l.b16 %v275
      %v708 = vunpack.c.h.b16 %v275
      %v709 = vunpack.c.l.b16 %v276
      %v710 = vunpack.c.h.b16 %v276
      %v711 = vunpack.c.l.b16 %v277
      %v712 = vunpack.c.h.b16 %v277
      %v713 = vunpack.c.l.b16 %v278
      %v714 = vunpack.c.h.b16 %v278
      %v715 = vunpack.c.l.b16 %v279
      %v716 = vunpack.c.h.b16 %v279
      %v717 = vunpack.c.l.b16 %v280
      %v718 = vunpack.c.h.b16 %v280
      %v719 = vunpack.c.l.b16 %v281
      %v720 = vunpack.c.h.b16 %v281
      %v721 = vunpack.c.l.b16 %v282
      %v722 = vunpack.c.h.b16 %v282
      %v723 = vunpack.c.l.b16 %v283
      %v724 = vunpack.c.h.b16 %v283
      %v725 = vunpack.c.l.b16 %v284
      %v726 = vunpack.c.h.b16 %v284
      %v727 = vunpack.c.l.b16 %v285
      %v728 = vunpack.c.h.b16 %v285
      %v729 = vunpack.c.l.b16 %v286
      %v730 = vunpack.c.h.b16 %v286
      %v731 = vunpack.c.l.b16 %v287
      %v732 = vunpack.c.h.b16 %v287
      %v733 = vunpack.c.l.b16 %v288
      %v734 = vunpack.c.h.b16 %v288
      %v735 = vunpack.c.l.b16 %v289
      %v736 = vunpack.c.h.b16 %v289
      %v737 = vunpack.c.l.b16 %v290
      %v738 = vunpack.c.h.b16 %v290
      %v739 = vpack.c.b16 %v627, %v611
      %v740 = vpack.c.b16 %v628, %v612
      %v741 = vpack.c.b16 %v629, %v613
      %v742 = vpack.c.b16 %v630, %v614
      %v743 = vpack.c.b16 %v631, %v615
      %v744 = vpack.c.b16 %v632, %v616
      %v745 = vpack.c.b16 %v633, %v617
      %v746 = vpack.c.b16 %v634, %v618
      %v747 = vpack.c.b16 %v635, %v619
      %v748 = vpack.c.b16 %v636, %v620
      %v749 = vpack.c.b16 %v637, %v621
      %v750 = vpack.c.b16 %v638, %v622
      %v751 = vpack.c.b16 %v639, %v623
      %v752 = vpack.c.b16 %v640, %v624
      %v753 = vpack.c.b16 %v641, %v625
      %v754 = vpack.c.b16 %v642, %v626
      %v755 = vpack.c.b16 %v659, %v643
      %v756 = vpack.c.b16 %v660, %v644
      %v757 = vpack.c.b16 %v661, %v645
      %v758 = vpack.c.b16 %v662, %v646
      %v759 = vpack.c.b16 %v663, %v647
      %v760 = vpack.c.b16 %v664, %v648
      %v761 = vpack.c.b16 %v665, %v649
      %v762 = vpack.c.b16 %v666, %v650
      %v763 = vpack.c.b16 %v667, %v651
      %v764 = vpack.c.b16 %v668, %v652
      %v765 = vpack.c.b16 %v669, %v653
      %v766 = vpack.c.b16 %v670, %v654
      %v767 = vpack.c.b16 %v671, %v655
      %v768 = vpack.c.b16 %v672, %v656
      %v769 = vpack.c.b16 %v673, %v657
      %v770 = vpack.c.b16 %v674, %v658
      %v771 = vpack.c.b16 %v691, %v675
      %v772 = vpack.c.b16 %v692, %v676
      %v773 = vpack.c.b16 %v693, %v677
      %v774 = vpack.c.b16 %v694, %v678
      %v775 = vpack.c.b16 %v695, %v679
      %v776 = vpack.c.b16 %v696, %v680
      %v777 = vpack.c.b16 %v697, %v681
      %v778 = vpack.c.b16 %v698, %v682
      %v779 = vpack.c.b16 %v699, %v683
      %v780 = vpack.c.b16 %v700, %v684
      %v781 = vpack.c.b16 %v701, %v685
      %v782 = vpack.c.b16 %v702, %v686
      %v783 = vpack.c.b16 %v703, %v687
      %v784 = vpack.c.b16 %v704, %v688
      %v785 = vpack.c.b16 %v705, %v689
      %v786 = vpack.c.b16 %v706, %v690
      %v787 = vpack.c.b16 %v723, %v707
      %v788 = vpack.c.b16 %v724, %v708
      %v789 = vpack.c.b16 %v725, %v709
      %v790 = vpack.c.b16 %v726, %v710
      %v791 = vpack.c.b16 %v727, %v711
      %v792 = vpack.c.b16 %v728, %v712
      %v793 = vpack.c.b16 %v729, %v713
      %v794 = vpack.c.b16 %v730, %v714
      %v795 = vpack.c.b16 %v731, %v715
      %v796 = vpack.c.b16 %v732, %v716
      %v797 = vpack.c.b16 %v733, %v717
      %v798 = vpack.c.b16 %v734, %v718
      %v799 = vpack.c.b16 %v735, %v719
      %v800 = vpack.c.b16 %v736, %v720
      %v801 = vpack.c.b16 %v737, %v721
      %v802 = vpack.c.b16 %v738, %v722
      %v1123 = vunpack.c.l.b16 %v291
      %v1124 = vunpack.c.h.b16 %v291
      %v1125 = vunpack.c.l.b16 %v292
      %v1126 = vunpack.c.h.b16 %v292
      %v1127 = vunpack.c.l.b16 %v293
      %v1128 = vunpack.c.h.b16 %v293
      %v1129 = vunpack.c.l.b16 %v294
      %v1130 = vunpack.c.h.b16 %v294
      %v1131 = vunpack.c.l.b16 %v295
      %v1132 = vunpack.c.h.b16 %v295
      %v1133 = vunpack.c.l.b16 %v296
      %v1134 = vunpack.c.h.b16 %v296
      %v1135 = vunpack.c.l.b16 %v297
      %v1136 = vunpack.c.h.b16 %v297
      %v1137 = vunpack.c.l.b16 %v298
      %v1138 = vunpack.c.h.b16 %v298
      %v1139 = vunpack.c.l.b16 %v299
      %v1140 = vunpack.c.h.b16 %v299
      %v1141 = vunpack.c.l.b16 %v300
      %v1142 = vunpack.c.h.b16 %v300
      %v1143 = vunpack.c.l.b16 %v301
      %v1144 = vunpack.c.h.b16 %v301
      %v1145 = vunpack.c.l.b16 %v302
      %v1146 = vunpack.c.h.b16 %v302
      %v1147 = vunpack.c.l.b16 %v303
      %v1148 = vunpack.c.h.b16 %v303
      %v1149 = vunpack.c.l.b16 %v304
      %v1150 = vunpack.c.h.b16 %v304
      %v1151 = vunpack.c.l.b16 %v305
      %v1152 = vunpack.c.h.b16 %v305
      %v1153 = vunpack.c.l.b16 %v306
      %v1154 = vunpack.c.h.b16 %v306
      %v1155 = vunpack.c.l.b16 %v307
      %v1156 = vunpack.c.h.b16 %v307
      %v1157 = vunpack.c.l.b16 %v308
      %v1158 = vunpack.c.h.b16 %v308
      %v1159 = vunpack.c.l.b16 %v309
      %v1160 = vunpack.c.h.b16 %v309
      %v1161 = vunpack.c.l.b16 %v310
      %v1162 = vunpack.c.h.b16 %v310
      %v1163 = vunpack.c.l.b16 %v311
      %v1164 = vunpack.c.h.b16 %v311
      %v1165 = vunpack.c.l.b16 %v312
      %v1166 = vunpack.c.h.b16 %v312
      %v1167 = vunpack.c.l.b16 %v313
      %v1168 = vunpack.c.h.b16 %v313
      %v1169 = vunpack.c.l.b16 %v314
      %v1170 = vunpack.c.h.b16 %v314
      %v1171 = vunpack.c.l.b16 %v315
      %v1172 = vunpack.c.h.b16 %v315
      %v1173 = vunpack.c.l.b16 %v316
      %v1174 = vunpack.c.h.b16 %v316
      %v1175 = vunpack.c.l.b16 %v317
      %v1176 = vunpack.c.h.b16 %v317
      %v1177 = vunpack.c.l.b16 %v318
      %v1178 = vunpack.c.h.b16 %v318
      %v1179 = vunpack.c.l.b16 %v319
      %v1180 = vunpack.c.h.b16 %v319
      %v1181 = vunpack.c.l.b16 %v320
      %v1182 = vunpack.c.h.b16 %v320
      %v1183 = vunpack.c.l.b16 %v321
      %v1184 = vunpack.c.h.b16 %v321
      %v1185 = vunpack.c.l.b16 %v322
      %v1186 = vunpack.c.h.b16 %v322
      %v1187 = vunpack.c.l.b16 %v323
      %v1188 = vunpack.c.h.b16 %v323
      %v1189 = vunpack.c.l.b16 %v324
      %v1190 = vunpack.c.h.b16 %v324
      %v1191 = vunpack.c.l.b16 %v325
      %v1192 = vunpack.c.h.b16 %v325
      %v1193 = vunpack.c.l.b16 %v326
      %v1194 = vunpack.c.h.b16 %v326
      %v1195 = vunpack.c.l.b16 %v327
      %v1196 = vunpack.c.h.b16 %v327
      %v1197 = vunpack.c.l.b16 %v328
      %v1198 = vunpack.c.h.b16 %v328
      %v1199 = vunpack.c.l.b16 %v329
      %v1200 = vunpack.c.h.b16 %v329
      %v1201 = vunpack.c.l.b16 %v330
      %v1202 = vunpack.c.h.b16 %v330
      %v1203 = vunpack.c.l.b16 %v331
      %v1204 = vunpack.c.h.b16 %v331
      %v1205 = vunpack.c.l.b16 %v332
      %v1206 = vunpack.c.h.b16 %v332
      %v1207 = vunpack.c.l.b16 %v333
      %v1208 = vunpack.c.h.b16 %v333
      %v1209 = vunpack.c.l.b16 %v334
      %v1210 = vunpack.c.h.b16 %v334
      %v1211 = vunpack.c.l.b16 %v335
      %v1212 = vunpack.c.h.b16 %v335
      %v1213 = vunpack.c.l.b16 %v336
      %v1214 = vunpack.c.h.b16 %v336
      %v1215 = vunpack.c.l.b16 %v337
      %v1216 = vunpack.c.h.b16 %v337
      %v1217 = vunpack.c.l.b16 %v338
      %v1218 = vunpack.c.h.b16 %v338
      %v1219 = vunpack.c.l.b16 %v339
      %v1220 = vunpack.c.h.b16 %v339
      %v1221 = vunpack.c.l.b16 %v340
      %v1222 = vunpack.c.h.b16 %v340
      %v1223 = vunpack.c.l.b16 %v341
      %v1224 = vunpack.c.h.b16 %v341
      %v1225 = vunpack.c.l.b16 %v342
      %v1226 = vunpack.c.h.b16 %v342
      %v1227 = vunpack.c.l.b16 %v343
      %v1228 = vunpack.c.h.b16 %v343
      %v1229 = vunpack.c.l.b16 %v344
      %v1230 = vunpack.c.h.b16 %v344
      %v1231 = vunpack.c.l.b16 %v345
      %v1232 = vunpack.c.h.b16 %v345
      %v1233 = vunpack.c.l.b16 %v346
      %v1234 = vunpack.c.h.b16 %v346
      %v1235 = vunpack.c.l.b16 %v347
      %v1236 = vunpack.c.h.b16 %v347
      %v1237 = vunpack.c.l.b16 %v348
      %v1238 = vunpack.c.h.b16 %v348
      %v1239 = vunpack.c.l.b16 %v349
      %v1240 = vunpack.c.h.b16 %v349
      %v1241 = vunpack.c.l.b16 %v350
      %v1242 = vunpack.c.h.b16 %v350
      %v1243 = vunpack.c.l.b16 %v351
      %v1244 = vunpack.c.h.b16 %v351
      %v1245 = vunpack.c.l.b16 %v352
      %v1246 = vunpack.c.h.b16 %v352
      %v1247 = vunpack.c.l.b16 %v353
      %v1248 = vunpack.c.h.b16 %v353
      %v1249 = vunpack.c.l.b16 %v354
      %v1250 = vunpack.c.h.b16 %v354
      %v1251 = vunpack.c.l.b16 %v355
      %v1252 = vunpack.c.h.b16 %v355
      %v1253 = vunpack.c.l.b16 %v356
      %v1254 = vunpack.c.h.b16 %v356
      %v1255 = vunpack.c.l.b16 %v357
      %v1256 = vunpack.c.h.b16 %v357
      %v1257 = vunpack.c.l.b16 %v358
      %v1258 = vunpack.c.h.b16 %v358
      %v1259 = vunpack.c.l.b16 %v359
      %v1260 = vunpack.c.h.b16 %v359
      %v1261 = vunpack.c.l.b16 %v360
      %v1262 = vunpack.c.h.b16 %v360
      %v1263 = vunpack.c.l.b16 %v361
      %v1264 = vunpack.c.h.b16 %v361
      %v1265 = vunpack.c.l.b16 %v362
      %v1266 = vunpack.c.h.b16 %v362
      %v1267 = vunpack.c.l.b16 %v363
      %v1268 = vunpack.c.h.b16 %v363
      %v1269 = vunpack.c.l.b16 %v364
      %v1270 = vunpack.c.h.b16 %v364
      %v1271 = vunpack.c.l.b16 %v365
      %v1272 = vunpack.c.h.b16 %v365
      %v1273 = vunpack.c.l.b16 %v366
      %v1274 = vunpack.c.h.b16 %v366
      %v1275 = vunpack.c.l.b16 %v367
      %v1276 = vunpack.c.h.b16 %v367
      %v1277 = vunpack.c.l.b16 %v368
      %v1278 = vunpack.c.h.b16 %v368
      %v1279 = vunpack.c.l.b16 %v369
      %v1280 = vunpack.c.h.b16 %v369
      %v1281 = vunpack.c.l.b16 %v370
      %v1282 = vunpack.c.h.b16 %v370
      %v1283 = vunpack.c.l.b16 %v371
      %v1284 = vunpack.c.h.b16 %v371
      %v1285 = vunpack.c.l.b16 %v372
      %v1286 = vunpack.c.h.b16 %v372
      %v1287 = vunpack.c.l.b16 %v373
      %v1288 = vunpack.c.h.b16 %v373
      %v1289 = vunpack.c.l.b16 %v374
      %v1290 = vunpack.c.h.b16 %v374
      %v1291 = vunpack.c.l.b16 %v375
      %v1292 = vunpack.c.h.b16 %v375
      %v1293 = vunpack.c.l.b16 %v376
      %v1294 = vunpack.c.h.b16 %v376
      %v1295 = vunpack.c.l.b16 %v377
      %v1296 = vunpack.c.h.b16 %v377
      %v1297 = vunpack.c.l.b16 %v378
      %v1298 = vunpack.c.h.b16 %v378
      %v1299 = vunpack.c.l.b16 %v379
      %v1300 = vunpack.c.h.b16 %v379
      %v1301 = vunpack.c.l.b16 %v380
      %v1302 = vunpack.c.h.b16 %v380
      %v1303 = vunpack.c.l.b16 %v381
      %v1304 = vunpack.c.h.b16 %v381
      %v1305 = vunpack.c.l.b16 %v382
      %v1306 = vunpack.c.h.b16 %v382
      %v1307 = vunpack.c.l.b16 %v383
      %v1308 = vunpack.c.h.b16 %v383
      %v1309 = vunpack.c.l.b16 %v384
      %v1310 = vunpack.c.h.b16 %v384
      %v1311 = vunpack.c.l.b16 %v385
      %v1312 = vunpack.c.h.b16 %v385
      %v1313 = vunpack.c.l.b16 %v386
      %v1314 = vunpack.c.h.b16 %v386
      %v1315 = vunpack.c.l.b16 %v387
      %v1316 = vunpack.c.h.b16 %v387
      %v1317 = vunpack.c.l.b16 %v388
      %v1318 = vunpack.c.h.b16 %v388
      %v1319 = vunpack.c.l.b16 %v389
      %v1320 = vunpack.c.h.b16 %v389
      %v1321 = vunpack.c.l.b16 %v390
      %v1322 = vunpack.c.h.b16 %v390
      %v1323 = vunpack.c.l.b16 %v391
      %v1324 = vunpack.c.h.b16 %v391
      %v1325 = vunpack.c.l.b16 %v392
      %v1326 = vunpack.c.h.b16 %v392
      %v1327 = vunpack.c.l.b16 %v393
      %v1328 = vunpack.c.h.b16 %v393
      %v1329 = vunpack.c.l.b16 %v394
      %v1330 = vunpack.c.h.b16 %v394
      %v1331 = vunpack.c.l.b16 %v395
      %v1332 = vunpack.c.h.b16 %v395
      %v1333 = vunpack.c.l.b16 %v396
      %v1334 = vunpack.c.h.b16 %v396
      %v1335 = vunpack.c.l.b16 %v397
      %v1336 = vunpack.c.h.b16 %v397
      %v1337 = vunpack.c.l.b16 %v398
      %v1338 = vunpack.c.h.b16 %v398
      %v1339 = vunpack.c.l.b16 %v399
      %v1340 = vunpack.c.h.b16 %v399
      %v1341 = vunpack.c.l.b16 %v400
      %v1342 = vunpack.c.h.b16 %v400
      %v1343 = vunpack.c.l.b16 %v401
      %v1344 = vunpack.c.h.b16 %v401
      %v1345 = vunpack.c.l.b16 %v402
      %v1346 = vunpack.c.h.b16 %v402
      %v1347 = vunpack.c.l.b16 %v403
      %v1348 = vunpack.c.h.b16 %v403
      %v1349 = vunpack.c.l.b16 %v404
      %v1350 = vunpack.c.h.b16 %v404
      %v1351 = vunpack.c.l.b16 %v405
      %v1352 = vunpack.c.h.b16 %v405
      %v1353 = vunpack.c.l.b16 %v406
      %v1354 = vunpack.c.h.b16 %v406
      %v1355 = vunpack.c.l.b16 %v407
      %v1356 = vunpack.c.h.b16 %v407
      %v1357 = vunpack.c.l.b16 %v408
      %v1358 = vunpack.c.h.b16 %v408
      %v1359 = vunpack.c.l.b16 %v409
      %v1360 = vunpack.c.h.b16 %v409
      %v1361 = vunpack.c.l.b16 %v410
      %v1362 = vunpack.c.h.b16 %v410
      %v1363 = vunpack.c.l.b16 %v411
      %v1364 = vunpack.c.h.b16 %v411
      %v1365 = vunpack.c.l.b16 %v412
      %v1366 = vunpack.c.h.b16 %v412
      %v1367 = vunpack.c.l.b16 %v413
      %v1368 = vunpack.c.h.b16 %v413
      %v1369 = vunpack.c.l.b16 %v414
      %v1370 = vunpack.c.h.b16 %v414
      %v1371 = vunpack.c.l.b16 %v415
      %v1372 = vunpack.c.h.b16 %v415
      %v1373 = vunpack.c.l.b16 %v416
      %v1374 = vunpack.c.h.b16 %v416
      %v1375 = vunpack.c.l.b16 %v417
      %v1376 = vunpack.c.h.b16 %v417
      %v1377 = vunpack.c.l.b16 %v418
      %v1378 = vunpack.c.h.b16 %v418
      %v1379 = vunpack.c.l.b16 %v419
      %v1380 = vunpack.c.h.b16 %v419
      %v1381 = vunpack.c.l.b16 %v420
      %v1382 = vunpack.c.h.b16 %v420
      %v1383 = vunpack.c.l.b16 %v421
      %v1384 = vunpack.c.h.b16 %v421
      %v1385 = vunpack.c.l.b16 %v422
      %v1386 = vunpack.c.h.b16 %v422
      %v1387 = vunpack.c.l.b16 %v423
      %v1388 = vunpack.c.h.b16 %v423
      %v1389 = vunpack.c.l.b16 %v424
      %v1390 = vunpack.c.h.b16 %v424
      %v1391 = vunpack.c.l.b16 %v425
      %v1392 = vunpack.c.h.b16 %v425
      %v1393 = vunpack.c.l.b16 %v426
      %v1394 = vunpack.c.h.b16 %v426
      %v1395 = vunpack.c.l.b16 %v427
      %v1396 = vunpack.c.h.b16 %v427
      %v1397 = vunpack.c.l.b16 %v428
      %v1398 = vunpack.c.h.b16 %v428
      %v1399 = vunpack.c.l.b16 %v429
      %v1400 = vunpack.c.h.b16 %v429
      %v1401 = vunpack.c.l.b16 %v430
      %v1402 = vunpack.c.h.b16 %v430
      %v1403 = vunpack.c.l.b16 %v431
      %v1404 = vunpack.c.h.b16 %v431
      %v1405 = vunpack.c.l.b16 %v432
      %v1406 = vunpack.c.h.b16 %v432
      %v1407 = vunpack.c.l.b16 %v433
      %v1408 = vunpack.c.h.b16 %v433
      %v1409 = vunpack.c.l.b16 %v434
      %v1410 = vunpack.c.h.b16 %v434
      %v1411 = vunpack.c.l.b16 %v435
      %v1412 = vunpack.c.h.b16 %v435
      %v1413 = vunpack.c.l.b16 %v436
      %v1414 = vunpack.c.h.b16 %v436
      %v1415 = vunpack.c.l.b16 %v437
      %v1416 = vunpack.c.h.b16 %v437
      %v1417 = vunpack.c.l.b16 %v438
      %v1418 = vunpack.c.h.b16 %v438
      %v1419 = vunpack.c.l.b16 %v439
      %v1420 = vunpack.c.h.b16 %v439
      %v1421 = vunpack.c.l.b16 %v440
      %v1422 = vunpack.c.h.b16 %v440
      %v1423 = vunpack.c.l.b16 %v441
      %v1424 = vunpack.c.h.b16 %v441
      %v1425 = vunpack.c.l.b16 %v442
      %v1426 = vunpack.c.h.b16 %v442
      %v1427 = vunpack.c.l.b16 %v443
      %v1428 = vunpack.c.h.b16 %v443
      %v1429 = vunpack.c.l.b16 %v444
      %v1430 = vunpack.c.h.b16 %v444
      %v1431 = vunpack.c.l.b16 %v445
      %v1432 = vunpack.c.h.b16 %v445
      %v1433 = vunpack.c.l.b16 %v446
      %v1434 = vunpack.c.h.b16 %v446
      %v1435 = vunpack.c.l.b16 %v447
      %v1436 = vunpack.c.h.b16 %v447
      %v1437 = vunpack.c.l.b16 %v448
      %v1438 = vunpack.c.h.b16 %v448
      %v1439 = vunpack.c.l.b16 %v449
      %v1440 = vunpack.c.h.b16 %v449
      %v1441 = vunpack.c.l.b16 %v450
      %v1442 = vunpack.c.h.b16 %v450
      %v1443 = vunpack.c.l.b16 %v451
      %v1444 = vunpack.c.h.b16 %v451
      %v1445 = vunpack.c.l.b16 %v452
      %v1446 = vunpack.c.h.b16 %v452
      %v1447 = vunpack.c.l.b16 %v453
      %v1448 = vunpack.c.h.b16 %v453
      %v1449 = vunpack.c.l.b16 %v454
      %v1450 = vunpack.c.h.b16 %v454
      %v1451 = vunpack.c.l.b16 %v455
      %v1452 = vunpack.c.h.b16 %v455
      %v1453 = vunpack.c.l.b16 %v456
      %v1454 = vunpack.c.h.b16 %v456
      %v1455 = vunpack.c.l.b16 %v457
      %v1456 = vunpack.c.h.b16 %v457
      %v1457 = vunpack.c.l.b16 %v458
      %v1458 = vunpack.c.h.b16 %v458
      %v1459 = vunpack.c.l.b16 %v459
      %v1460 = vunpack.c.h.b16 %v459
      %v1461 = vunpack.c.l.b16 %v460
      %v1462 = vunpack.c.h.b16 %v460
      %v1463 = vunpack.c.l.b16 %v461
      %v1464 = vunpack.c.h.b16 %v461
      %v1465 = vunpack.c.l.b16 %v462
      %v1466 = vunpack.c.h.b16 %v462
      %v1467 = vunpack.c.l.b16 %v463
      %v1468 = vunpack.c.h.b16 %v463
      %v1469 = vunpack.c.l.b16 %v464
      %v1470 = vunpack.c.h.b16 %v464
      %v1471 = vunpack.c.l.b16 %v465
      %v1472 = vunpack.c.h.b16 %v465
      %v1473 = vunpack.c.l.b16 %v466
      %v1474 = vunpack.c.h.b16 %v466
      %v1475 = vunpack.c.l.b16 %v467
      %v1476 = vunpack.c.h.b16 %v467
      %v1477 = vunpack.c.l.b16 %v468
      %v1478 = vunpack.c.h.b16 %v468
      %v1479 = vunpack.c.l.b16 %v469
      %v1480 = vunpack.c.h.b16 %v469
      %v1481 = vunpack.c.l.b16 %v470
      %v1482 = vunpack.c.h.b16 %v470
      %v1483 = vunpack.c.l.b16 %v471
      %v1484 = vunpack.c.h.b16 %v471
      %v1485 = vunpack.c.l.b16 %v472
      %v1486 = vunpack.c.h.b16 %v472
      %v1487 = vunpack.c.l.b16 %v473
      %v1488 = vunpack.c.h.b16 %v473
      %v1489 = vunpack.c.l.b16 %v474
      %v1490 = vunpack.c.h.b16 %v474
      %v1491 = vunpack.c.l.b16 %v475
      %v1492 = vunpack.c.h.b16 %v475
      %v1493 = vunpack.c.l.b16 %v476
      %v1494 = vunpack.c.h.b16 %v476
      %v1495 = vunpack.c.l.b16 %v477
      %v1496 = vunpack.c.h.b16 %v477
      %v1497 = vunpack.c.l.b16 %v478
      %v1498 = vunpack.c.h.b16 %v478
      %v1499 = vunpack.c.l.b16 %v479
      %v1500 = vunpack.c.h.b16 %v479
      %v1501 = vunpack.c.l.b16 %v480
      %v1502 = vunpack.c.h.b16 %v480
      %v1503 = vunpack.c.l.b16 %v481
      %v1504 = vunpack.c.h.b16 %v481
      %v1505 = vunpack.c.l.b16 %v482
      %v1506 = vunpack.c.h.b16 %v482
      %v1507 = vunpack.c.l.b16 %v483
      %v1508 = vunpack.c.h.b16 %v483
      %v1509 = vunpack.c.l.b16 %v484
      %v1510 = vunpack.c.h.b16 %v484
      %v1511 = vunpack.c.l.b16 %v485
      %v1512 = vunpack.c.h.b16 %v485
      %v1513 = vunpack.c.l.b16 %v486
      %v1514 = vunpack.c.h.b16 %v486
      %v1515 = vunpack.c.l.b16 %v487
      %v1516 = vunpack.c.h.b16 %v487
      %v1517 = vunpack.c.l.b16 %v488
      %v1518 = vunpack.c.h.b16 %v488
      %v1519 = vunpack.c.l.b16 %v489
      %v1520 = vunpack.c.h.b16 %v489
      %v1521 = vunpack.c.l.b16 %v490
      %v1522 = vunpack.c.h.b16 %v490
      %v1523 = vunpack.c.l.b16 %v491
      %v1524 = vunpack.c.h.b16 %v491
      %v1525 = vunpack.c.l.b16 %v492
      %v1526 = vunpack.c.h.b16 %v492
      %v1527 = vunpack.c.l.b16 %v493
      %v1528 = vunpack.c.h.b16 %v493
      %v1529 = vunpack.c.l.b16 %v494
      %v1530 = vunpack.c.h.b16 %v494
      %v1531 = vunpack.c.l.b16 %v495
      %v1532 = vunpack.c.h.b16 %v495
      %v1533 = vunpack.c.l.b16 %v496
      %v1534 = vunpack.c.h.b16 %v496
      %v1535 = vunpack.c.l.b16 %v497
      %v1536 = vunpack.c.h.b16 %v497
      %v1537 = vunpack.c.l.b16 %v498
      %v1538 = vunpack.c.h.b16 %v498
      %v1539 = vunpack.c.l.b16 %v499
      %v1540 = vunpack.c.h.b16 %v499
      %v1541 = vunpack.c.l.b16 %v500
      %v1542 = vunpack.c.h.b16 %v500
      %v1543 = vunpack.c.l.b16 %v501
      %v1544 = vunpack.c.h.b16 %v501
      %v1545 = vunpack.c.l.b16 %v502
      %v1546 = vunpack.c.h.b16 %v502
      %v1547 = vunpack.c.l.b16 %v503
      %v1548 = vunpack.c.h.b16 %v503
      %v1549 = vunpack.c.l.b16 %v504
      %v1550 = vunpack.c.h.b16 %v504
      %v1551 = vunpack.c.l.b16 %v505
      %v1552 = vunpack.c.h.b16 %v505
      %v1553 = vunpack.c.l.b16 %v506
      %v1554 = vunpack.c.h.b16 %v506
      %v1555 = vunpack.c.l.b16 %v507
      %v1556 = vunpack.c.h.b16 %v507
      %v1557 = vunpack.c.l.b16 %v508
      %v1558 = vunpack.c.h.b16 %v508
      %v1559 = vunpack.c.l.b16 %v509
      %v1560 = vunpack.c.h.b16 %v509
      %v1561 = vunpack.c.l.b16 %v510
      %v1562 = vunpack.c.h.b16 %v510
      %v1563 = vunpack.c.l.b16 %v511
      %v1564 = vunpack.c.h.b16 %v511
      %v1565 = vunpack.c.l.b16 %v512
      %v1566 = vunpack.c.h.b16 %v512
      %v1567 = vunpack.c.l.b16 %v513
      %v1568 = vunpack.c.h.b16 %v513
      %v1569 = vunpack.c.l.b16 %v514
      %v1570 = vunpack.c.h.b16 %v514
      %v1571 = vunpack.c.l.b16 %v515
      %v1572 = vunpack.c.h.b16 %v515
      %v1573 = vunpack.c.l.b16 %v516
      %v1574 = vunpack.c.h.b16 %v516
      %v1575 = vunpack.c.l.b16 %v517
      %v1576 = vunpack.c.h.b16 %v517
      %v1577 = vunpack.c.l.b16 %v518
      %v1578 = vunpack.c.h.b16 %v518
      %v1579 = vunpack.c.l.b16 %v519
      %v1580 = vunpack.c.h.b16 %v519
      %v1581 = vunpack.c.l.b16 %v520
      %v1582 = vunpack.c.h.b16 %v520
      %v1583 = vunpack.c.l.b16 %v521
      %v1584 = vunpack.c.h.b16 %v521
      %v1585 = vunpack.c.l.b16 %v522
      %v1586 = vunpack.c.h.b16 %v522
      %v1587 = vunpack.c.l.b16 %v523
      %v1588 = vunpack.c.h.b16 %v523
      %v1589 = vunpack.c.l.b16 %v524
      %v1590 = vunpack.c.h.b16 %v524
      %v1591 = vunpack.c.l.b16 %v525
      %v1592 = vunpack.c.h.b16 %v525
      %v1593 = vunpack.c.l.b16 %v526
      %v1594 = vunpack.c.h.b16 %v526
      %v1595 = vunpack.c.l.b16 %v527
      %v1596 = vunpack.c.h.b16 %v527
      %v1597 = vunpack.c.l.b16 %v528
      %v1598 = vunpack.c.h.b16 %v528
      %v1599 = vunpack.c.l.b16 %v529
      %v1600 = vunpack.c.h.b16 %v529
      %v1601 = vunpack.c.l.b16 %v530
      %v1602 = vunpack.c.h.b16 %v530
      %v1603 = vunpack.c.l.b16 %v531
      %v1604 = vunpack.c.h.b16 %v531
      %v1605 = vunpack.c.l.b16 %v532
      %v1606 = vunpack.c.h.b16 %v532
      %v1607 = vunpack.c.l.b16 %v533
      %v1608 = vunpack.c.h.b16 %v533
      %v1609 = vunpack.c.l.b16 %v534
      %v1610 = vunpack.c.h.b16 %v534
      %v1611 = vunpack.c.l.b16 %v535
      %v1612 = vunpack.c.h.b16 %v535
      %v1613 = vunpack.c.l.b16 %v536
      %v1614 = vunpack.c.h.b16 %v536
      %v1615 = vunpack.c.l.b16 %v537
      %v1616 = vunpack.c.h.b16 %v537
      %v1617 = vunpack.c.l.b16 %v538
      %v1618 = vunpack.c.h.b16 %v538
      %v1619 = vunpack.c.l.b16 %v539
      %v1620 = vunpack.c.h.b16 %v539
      %v1621 = vunpack.c.l.b16 %v540
      %v1622 = vunpack.c.h.b16 %v540
      %v1623 = vunpack.c.l.b16 %v541
      %v1624 = vunpack.c.h.b16 %v541
      %v1625 = vunpack.c.l.b16 %v542
      %v1626 = vunpack.c.h.b16 %v542
      %v1627 = vunpack.c.l.b16 %v543
      %v1628 = vunpack.c.h.b16 %v543
      %v1629 = vunpack.c.l.b16 %v544
      %v1630 = vunpack.c.h.b16 %v544
      %v1631 = vunpack.c.l.b16 %v545
      %v1632 = vunpack.c.h.b16 %v545
      %v1633 = vunpack.c.l.b16 %v546
      %v1634 = vunpack.c.h.b16 %v546
      %v1635 = vpack.c.b16 %v1125, %v1123
      %v1636 = vpack.c.b16 %v1126, %v1124
      %v1637 = vpack.c.b16 %v1129, %v1127
      %v1638 = vpack.c.b16 %v1130, %v1128
      %v1639 = vpack.c.b16 %v1133, %v1131
      %v1640 = vpack.c.b16 %v1134, %v1132
      %v1641 = vpack.c.b16 %v1137, %v1135
      %v1642 = vpack.c.b16 %v1138, %v1136
      %v1643 = vpack.c.b16 %v1141, %v1139
      %v1644 = vpack.c.b16 %v1142, %v1140
      %v1645 = vpack.c.b16 %v1145, %v1143
      %v1646 = vpack.c.b16 %v1146, %v1144
      %v1647 = vpack.c.b16 %v1149, %v1147
      %v1648 = vpack.c.b16 %v1150, %v1148
      %v1649 = vpack.c.b16 %v1153, %v1151
      %v1650 = vpack.c.b16 %v1154, %v1152
      %v1651 = vpack.c.b16 %v1157, %v1155
      %v1652 = vpack.c.b16 %v1158, %v1156
      %v1653 = vpack.c.b16 %v1161, %v1159
      %v1654 = vpack.c.b16 %v1162, %v1160
      %v1655 = vpack.c.b16 %v1165, %v1163
      %v1656 = vpack.c.b16 %v1166, %v1164
      %v1657 = vpack.c.b16 %v1169, %v1167
      %v1658 = vpack.c.b16 %v1170, %v1168
      %v1659 = vpack.c.b16 %v1173, %v1171
      %v1660 = vpack.c.b16 %v1174, %v1172
      %v1661 = vpack.c.b16 %v1177, %v1175
      %v1662 = vpack.c.b16 %v1178, %v1176
      %v1663 = vpack.c.b16 %v1181, %v1179
      %v1664 = vpack.c.b16 %v1182, %v1180
      %v1665 = vpack.c.b16 %v1185, %v1183
      %v1666 = vpack.c.b16 %v1186, %v1184
      %v1667 = vpack.c.b16 %v1189, %v1187
      %v1668 = vpack.c.b16 %v1190, %v1188
      %v1669 = vpack.c.b16 %v1193, %v1191
      %v1670 = vpack.c.b16 %v1194, %v1192
      %v1671 = vpack.c.b16 %v1197, %v1195
      %v1672 = vpack.c.b16 %v1198, %v1196
      %v1673 = vpack.c.b16 %v1201, %v1199
      %v1674 = vpack.c.b16 %v1202, %v1200
      %v1675 = vpack.c.b16 %v1205, %v1203
      %v1676 = vpack.c.b16 %v1206, %v1204
      %v1677 = vpack.c.b16 %v1209, %v1207
      %v1678 = vpack.c.b16 %v1210, %v1208
      %v1679 = vpack.c.b16 %v1213, %v1211
      %v1680 = vpack.c.b16 %v1214, %v1212
      %v1681 = vpack.c.b16 %v1217, %v1215
      %v1682 = vpack.c.b16 %v1218, %v1216
      %v1683 = vpack.c.b16 %v1221, %v1219
      %v1684 = vpack.c.b16 %v1222, %v1220
      %v1685 = vpack.c.b16 %v1225, %v1223
      %v1686 = vpack.c.b16 %v1226, %v1224
      %v1687 = vpack.c.b16 %v1229, %v1227
      %v1688 = vpack.c.b16 %v1230, %v1228
      %v1689 = vpack.c.b16 %v1233, %v1231
      %v1690 = vpack.c.b16 %v1234, %v1232
      %v1691 = vpack.c.b16 %v1237, %v1235
      %v1692 = vpack.c.b16 %v1238, %v1236
      %v1693 = vpack.c.b16 %v1241, %v1239
      %v1694 = vpack.c.b16 %v1242, %v1240
      %v1695 = vpack.c.b16 %v1245, %v1243
      %v1696 = vpack.c.b16 %v1246, %v1244
      %v1697 = vpack.c.b16 %v1249, %v1247
      %v1698 = vpack.c.b16 %v1250, %v1248
      %v1699 = vpack.c.b16 %v1253, %v1251
      %v1700 = vpack.c.b16 %v1254, %v1252
      %v1701 = vpack.c.b16 %v1257, %v1255
      %v1702 = vpack.c.b16 %v1258, %v1256
      %v1703 = vpack.c.b16 %v1261, %v1259
      %v1704 = vpack.c.b16 %v1262, %v1260
      %v1705 = vpack.c.b16 %v1265, %v1263
      %v1706 = vpack.c.b16 %v1266, %v1264
      %v1707 = vpack.c.b16 %v1269, %v1267
      %v1708 = vpack.c.b16 %v1270, %v1268
      %v1709 = vpack.c.b16 %v1273, %v1271
      %v1710 = vpack.c.b16 %v1274, %v1272
      %v1711 = vpack.c.b16 %v1277, %v1275
      %v1712 = vpack.c.b16 %v1278, %v1276
      %v1713 = vpack.c.b16 %v1281, %v1279
      %v1714 = vpack.c.b16 %v1282, %v1280
      %v1715 = vpack.c.b16 %v1285, %v1283
      %v1716 = vpack.c.b16 %v1286, %v1284
      %v1717 = vpack.c.b16 %v1289, %v1287
      %v1718 = vpack.c.b16 %v1290, %v1288
      %v1719 = vpack.c.b16 %v1293, %v1291
      %v1720 = vpack.c.b16 %v1294, %v1292
      %v1721 = vpack.c.b16 %v1297, %v1295
      %v1722 = vpack.c.b16 %v1298, %v1296
      %v1723 = vpack.c.b16 %v1301, %v1299
      %v1724 = vpack.c.b16 %v1302, %v1300
      %v1725 = vpack.c.b16 %v1305, %v1303
      %v1726 = vpack.c.b16 %v1306, %v1304
      %v1727 = vpack.c.b16 %v1309, %v1307
      %v1728 = vpack.c.b16 %v1310, %v1308
      %v1729 = vpack.c.b16 %v1313, %v1311
      %v1730 = vpack.c.b16 %v1314, %v1312
      %v1731 = vpack.c.b16 %v1317, %v1315
      %v1732 = vpack.c.b16 %v1318, %v1316
      %v1733 = vpack.c.b16 %v1321, %v1319
      %v1734 = vpack.c.b16 %v1322, %v1320
      %v1735 = vpack.c.b16 %v1325, %v1323
      %v1736 = vpack.c.b16 %v1326, %v1324
      %v1737 = vpack.c.b16 %v1329, %v1327
      %v1738 = vpack.c.b16 %v1330, %v1328
      %v1739 = vpack.c.b16 %v1333, %v1331
      %v1740 = vpack.c.b16 %v1334, %v1332
      %v1741 = vpack.c.b16 %v1337, %v1335
      %v1742 = vpack.c.b16 %v1338, %v1336
      %v1743 = vpack.c.b16 %v1341, %v1339
      %v1744 = vpack.c.b16 %v1342, %v1340
      %v1745 = vpack.c.b16 %v1345, %v1343
      %v1746 = vpack.c.b16 %v1346, %v1344
      %v1747 = vpack.c.b16 %v1349, %v1347
      %v1748 = vpack.c.b16 %v1350, %v1348
      %v1749 = vpack.c.b16 %v1353, %v1351
      %v1750 = vpack.c.b16 %v1354, %v1352
      %v1751 = vpack.c.b16 %v1357, %v1355
      %v1752 = vpack.c.b16 %v1358, %v1356
      %v1753 = vpack.c.b16 %v1361, %v1359
      %v1754 = vpack.c.b16 %v1362, %v1360
      %v1755 = vpack.c.b16 %v1365, %v1363
      %v1756 = vpack.c.b16 %v1366, %v1364
      %v1757 = vpack.c.b16 %v1369, %v1367
      %v1758 = vpack.c.b16 %v1370, %v1368
      %v1759 = vpack.c.b16 %v1373, %v1371
      %v1760 = vpack.c.b16 %v1374, %v1372
      %v1761 = vpack.c.b16 %v1377, %v1375
      %v1762 = vpack.c.b16 %v1378, %v1376
      %v1763 = vpack.c.b16 %v1381, %v1379
      %v1764 = vpack.c.b16 %v1382, %v1380
      %v1765 = vpack.c.b16 %v1385, %v1383
      %v1766 = vpack.c.b16 %v1386, %v1384
      %v1767 = vpack.c.b16 %v1389, %v1387
      %v1768 = vpack.c.b16 %v1390, %v1388
      %v1769 = vpack.c.b16 %v1393, %v1391
      %v1770 = vpack.c.b16 %v1394, %v1392
      %v1771 = vpack.c.b16 %v1397, %v1395
      %v1772 = vpack.c.b16 %v1398, %v1396
      %v1773 = vpack.c.b16 %v1401, %v1399
      %v1774 = vpack.c.b16 %v1402, %v1400
      %v1775 = vpack.c.b16 %v1405, %v1403
      %v1776 = vpack.c.b16 %v1406, %v1404
      %v1777 = vpack.c.b16 %v1409, %v1407
      %v1778 = vpack.c.b16 %v1410, %v1408
      %v1779 = vpack.c.b16 %v1413, %v1411
      %v1780 = vpack.c.b16 %v1414, %v1412
      %v1781 = vpack.c.b16 %v1417, %v1415
      %v1782 = vpack.c.b16 %v1418, %v1416
      %v1783 = vpack.c.b16 %v1421, %v1419
      %v1784 = vpack.c.b16 %v1422, %v1420
      %v1785 = vpack.c.b16 %v1425, %v1423
      %v1786 = vpack.c.b16 %v1426, %v1424
      %v1787 = vpack.c.b16 %v1429, %v1427
      %v1788 = vpack.c.b16 %v1430, %v1428
      %v1789 = vpack.c.b16 %v1433, %v1431
      %v1790 = vpack.c.b16 %v1434, %v1432
      %v1791 = vpack.c.b16 %v1437, %v1435
      %v1792 = vpack.c.b16 %v1438, %v1436
      %v1793 = vpack.c.b16 %v1441, %v1439
      %v1794 = vpack.c.b16 %v1442, %v1440
      %v1795 = vpack.c.b16 %v1445, %v1443
      %v1796 = vpack.c.b16 %v1446, %v1444
      %v1797 = vpack.c.b16 %v1449, %v1447
      %v1798 = vpack.c.b16 %v1450, %v1448
      %v1799 = vpack.c.b16 %v1453, %v1451
      %v1800 = vpack.c.b16 %v1454, %v1452
      %v1801 = vpack.c.b16 %v1457, %v1455
      %v1802 = vpack.c.b16 %v1458, %v1456
      %v1803 = vpack.c.b16 %v1461, %v1459
      %v1804 = vpack.c.b16 %v1462, %v1460
      %v1805 = vpack.c.b16 %v1465, %v1463
      %v1806 = vpack.c.b16 %v1466, %v1464
      %v1807 = vpack.c.b16 %v1469, %v1467
      %v1808 = vpack.c.b16 %v1470, %v1468
      %v1809 = vpack.c.b16 %v1473, %v1471
      %v1810 = vpack.c.b16 %v1474, %v1472
      %v1811 = vpack.c.b16 %v1477, %v1475
      %v1812 = vpack.c.b16 %v1478, %v1476
      %v1813 = vpack.c.b16 %v1481, %v1479
      %v1814 = vpack.c.b16 %v1482, %v1480
      %v1815 = vpack.c.b16 %v1485, %v1483
      %v1816 = vpack.c.b16 %v1486, %v1484
      %v1817 = vpack.c.b16 %v1489, %v1487
      %v1818 = vpack.c.b16 %v1490, %v1488
      %v1819 = vpack.c.b16 %v1493, %v1491
      %v1820 = vpack.c.b16 %v1494, %v1492
      %v1821 = vpack.c.b16 %v1497, %v1495
      %v1822 = vpack.c.b16 %v1498, %v1496
      %v1823 = vpack.c.b16 %v1501, %v1499
      %v1824 = vpack.c.b16 %v1502, %v1500
      %v1825 = vpack.c.b16 %v1505, %v1503
      %v1826 = vpack.c.b16 %v1506, %v1504
      %v1827 = vpack.c.b16 %v1509, %v1507
      %v1828 = vpack.c.b16 %v1510, %v1508
      %v1829 = vpack.c.b16 %v1513, %v1511
      %v1830 = vpack.c.b16 %v1514, %v1512
      %v1831 = vpack.c.b16 %v1517, %v1515
      %v1832 = vpack.c.b16 %v1518, %v1516
      %v1833 = vpack.c.b16 %v1521, %v1519
      %v1834 = vpack.c.b16 %v1522, %v1520
      %v1835 = vpack.c.b16 %v1525, %v1523
      %v1836 = vpack.c.b16 %v1526, %v1524
      %v1837 = vpack.c.b16 %v1529, %v1527
      %v1838 = vpack.c.b16 %v1530, %v1528
      %v1839 = vpack.c.b16 %v1533, %v1531
      %v1840 = vpack.c.b16 %v1534, %v1532
      %v1841 = vpack.c.b16 %v1537, %v1535
      %v1842 = vpack.c.b16 %v1538, %v1536
      %v1843 = vpack.c.b16 %v1541, %v1539
      %v1844 = vpack.c.b16 %v1542, %v1540
      %v1845 = vpack.c.b16 %v1545, %v1543
      %v1846 = vpack.c.b16 %v1546, %v1544
      %v1847 = vpack.c.b16 %v1549, %v1547
      %v1848 = vpack.c.b16 %v1550, %v1548
      %v1849 = vpack.c.b16 %v1553, %v1551
      %v1850 = vpack.c.b16 %v1554, %v1552
      %v1851 = vpack.c.b16 %v1557, %v1555
      %v1852 = vpack.c.b16 %v1558, %v1556
      %v1853 = vpack.c.b16 %v1561, %v1559
      %v1854 = vpack.c.b16 %v1562, %v1560
      %v1855 = vpack.c.b16 %v1565, %v1563
      %v1856 = vpack.c.b16 %v1566, %v1564
      %v1857 = vpack.c.b16 %v1569, %v1567
      %v1858 = vpack.c.b16 %v1570, %v1568
      %v1859 = vpack.c.b16 %v1573, %v1571
      %v1860 = vpack.c.b16 %v1574, %v1572
      %v1861 = vpack.c.b16 %v1577, %v1575
      %v1862 = vpack.c.b16 %v1578, %v1576
      %v1863 = vpack.c.b16 %v1581, %v1579
      %v1864 = vpack.c.b16 %v1582, %v1580
      %v1865 = vpack.c.b16 %v1585, %v1583
      %v1866 = vpack.c.b16 %v1586, %v1584
      %v1867 = vpack.c.b16 %v1589, %v1587
      %v1868 = vpack.c.b16 %v1590, %v1588
      %v1869 = vpack.c.b16 %v1593, %v1591
      %v1870 = vpack.c.b16 %v1594, %v1592
      %v1871 = vpack.c.b16 %v1597, %v1595
      %v1872 = vpack.c.b16 %v1598, %v1596
      %v1873 = vpack.c.b16 %v1601, %v1599
      %v1874 = vpack.c.b16 %v1602, %v1600
      %v1875 = vpack.c.b16 %v1605, %v1603
      %v1876 = vpack.c.b16 %v1606, %v1604
      %v1877 = vpack.c.b16 %v1609, %v1607
      %v1878 = vpack.c.b16 %v1610, %v1608
      %v1879 = vpack.c.b16 %v1613, %v1611
      %v1880 = vpack.c.b16 %v1614, %v1612
      %v1881 = vpack.c.b16 %v1617, %v1615
      %v1882 = vpack.c.b16 %v1618, %v1616
      %v1883 = vpack.c.b16 %v1621, %v1619
      %v1884 = vpack.c.b16 %v1622, %v1620
      %v1885 = vpack.c.b16 %v1625, %v1623
      %v1886 = vpack.c.b16 %v1626, %v1624
      %v1887 = vpack.c.b16 %v1629, %v1627
      %v1888 = vpack.c.b16 %v1630, %v1628
      %v1889 = vpack.c.b16 %v1633, %v1631
      %v1890 = vpack.c.b16 %v1634, %v1632
      %2147 = vmatprep.subr.bf16.mxu0 %v1636
      %2148 = vmatpush1.bf16.msra.mxu0 %v1635
      %2149 = vmatprep.subr.bf16.mxu0 %v1638
      %2150 = vmatpush1.bf16.msra.mxu0 %v1637
      %2151 = vmatprep.subr.bf16.mxu0 %v1640
      %2152 = vmatpush1.bf16.msra.mxu0 %v1639
      %2153 = vmatprep.subr.bf16.mxu0 %v1642
      %2154 = vmatpush1.bf16.msra.mxu0 %v1641
      %2155 = vmatprep.subr.bf16.mxu0 %v1644
      %2156 = vmatpush1.bf16.msra.mxu0 %v1643
      %2157 = vmatprep.subr.bf16.mxu0 %v1646
      %2158 = vmatpush1.bf16.msra.mxu0 %v1645
      %2159 = vmatprep.subr.bf16.mxu0 %v1648
      %2160 = vmatpush1.bf16.msra.mxu0 %v1647
      %2161 = vmatprep.subr.bf16.mxu0 %v1650
      %2162 = vmatpush1.bf16.msra.mxu0 %v1649
      %2163 = vmatprep.subr.bf16.mxu0 %v1652
      %2164 = vmatpush1.bf16.msra.mxu0 %v1651
      %2165 = vmatprep.subr.bf16.mxu0 %v1654
      %2166 = vmatpush1.bf16.msra.mxu0 %v1653
      %2167 = vmatprep.subr.bf16.mxu0 %v1656
      %2168 = vmatpush1.bf16.msra.mxu0 %v1655
      %2169 = vmatprep.subr.bf16.mxu0 %v1658
      %2170 = vmatpush1.bf16.msra.mxu0 %v1657
      %2171 = vmatprep.subr.bf16.mxu0 %v1660
      %2172 = vmatpush1.bf16.msra.mxu0 %v1659
      %2173 = vmatprep.subr.bf16.mxu0 %v1662
      %2174 = vmatpush1.bf16.msra.mxu0 %v1661
      %2175 = vmatprep.subr.bf16.mxu0 %v1664
      %2176 = vmatpush1.bf16.msra.mxu0 %v1663
      %2177 = vmatprep.subr.bf16.mxu0 %v1666
      %2178 = vmatpush1.bf16.msra.mxu0 %v1665
      %2179 = vmatprep.mubr.bf16.mxu0 %v740
      %2180 = vmatmul.mubr.bf16.gmra.mrb[0].mxu0 %v739
      %v2181 = vpop.f32.mrb[0].mxu0
      %v2182 = vadd.f32 0.0, %v2181
      %v2183 = vpop.f32.mrb[0].mxu0
      %v2184 = vadd.f32 0.0, %v2183
      %v2185 = vpop.f32.mrb[0].mxu0
      %v2186 = vadd.f32 0.0, %v2185
      %v2187 = vpop.f32.mrb[0].mxu0
      %v2188 = vadd.f32 0.0, %v2187
      %2189 = vmatprep.mubr.bf16.mxu0 %v756
      %2190 = vmatmul.mubr.bf16.gmra.mrb[0].mxu0 %v755
      %v2191 = vpop.f32.mrb[0].mxu0
      %v2192 = vadd.f32 0.0, %v2191
      %v2193 = vpop.f32.mrb[0].mxu0
      %v2194 = vadd.f32 0.0, %v2193
      %v2195 = vpop.f32.mrb[0].mxu0
      %v2196 = vadd.f32 0.0, %v2195
      %v2197 = vpop.f32.mrb[0].mxu0
      %v2198 = vadd.f32 0.0, %v2197
      %2199 = vmatprep.mubr.bf16.mxu0 %v772
      %2200 = vmatmul.mubr.bf16.gmra.mrb[0].mxu0 %v771
      %v2201 = vpop.f32.mrb[0].mxu0
      %v2202 = vadd.f32 0.0, %v2201
      %v2203 = vpop.f32.mrb[0].mxu0
      %v2204 = vadd.f32 0.0, %v2203
      %v2205 = vpop.f32.mrb[0].mxu0
      %v2206 = vadd.f32 0.0, %v2205
      %v2207 = vpop.f32.mrb[0].mxu0
      %v2208 = vadd.f32 0.0, %v2207
      %2209 = vmatprep.mubr.bf16.mxu0 %v788
      %2210 = vmatmul.mubr.bf16.gmra.mrb[0].mxu0 %v787
      %v2211 = vpop.f32.mrb[0].mxu0
      %v2212 = vadd.f32 0.0, %v2211
      %v2213 = vpop.f32.mrb[0].mxu0
      %v2214 = vadd.f32 0.0, %v2213
      %v2215 = vpop.f32.mrb[0].mxu0
      %v2216 = vadd.f32 0.0, %v2215
      %v2217 = vpop.f32.mrb[0].mxu0
      %v2218 = vadd.f32 0.0, %v2217
      %2219 = vdwg.mxu0
      %2220 = vmatprep.subr.bf16.mxu0 %v1668
      %2221 = vmatpush1.bf16.msra.mxu0 %v1667
      %2222 = vmatprep.subr.bf16.mxu0 %v1670
      %2223 = vmatpush1.bf16.msra.mxu0 %v1669
      %2224 = vmatprep.subr.bf16.mxu0 %v1672
      %2225 = vmatpush1.bf16.msra.mxu0 %v1671
      %2226 = vmatprep.subr.bf16.mxu0 %v1674
      %2227 = vmatpush1.bf16.msra.mxu0 %v1673
      %2228 = vmatprep.subr.bf16.mxu0 %v1676
      %2229 = vmatpush1.bf16.msra.mxu0 %v1675
      %2230 = vmatprep.subr.bf16.mxu0 %v1678
      %2231 = vmatpush1.bf16.msra.mxu0 %v1677
      %2232 = vmatprep.subr.bf16.mxu0 %v1680
      %2233 = vmatpush1.bf16.msra.mxu0 %v1679
      %2234 = vmatprep.subr.bf16.mxu0 %v1682
      %2235 = vmatpush1.bf16.msra.mxu0 %v1681
      %2236 = vmatprep.subr.bf16.mxu0 %v1684
      %2237 = vmatpush1.bf16.msra.mxu0 %v1683
      %2238 = vmatprep.subr.bf16.mxu0 %v1686
      %2239 = vmatpush1.bf16.msra.mxu0 %v1685
      %2240 = vmatprep.subr.bf16.mxu0 %v1688
      %2241 = vmatpush1.bf16.msra.mxu0 %v1687
      %2242 = vmatprep.subr.bf16.mxu0 %v1690
      %2243 = vmatpush1.bf16.msra.mxu0 %v1689
      %2244 = vmatprep.subr.bf16.mxu0 %v1692
      %2245 = vmatpush1.bf16.msra.mxu0 %v1691
      %2246 = vmatprep.subr.bf16.mxu0 %v1694
      %2247 = vmatpush1.bf16.msra.mxu0 %v1693
      %2248 = vmatprep.subr.bf16.mxu0 %v1696
      %2249 = vmatpush1.bf16.msra.mxu0 %v1695
      %2250 = vmatprep.subr.bf16.mxu0 %v1698
      %2251 = vmatpush1.bf16.msra.mxu0 %v1697
      %2252 = vmatprep.mubr.bf16.mxu0 %v742
      %2253 = vmatmul.mubr.bf16.gmra.mrb[0].mxu0 %v741
      %v2254 = vpop.f32.mrb[0].mxu0
      %v2255 = vadd.f32 %v2182, %v2254
      %v2256 = vpop.f32.mrb[0].mxu0
      %v2257 = vadd.f32 %v2184, %v2256
      %v2258 = vpop.f32.mrb[0].mxu0
      %v2259 = vadd.f32 %v2186, %v2258
      %v2260 = vpop.f32.mrb[0].mxu0
      %v2261 = vadd.f32 %v2188, %v2260
      %2262 = vmatprep.mubr.bf16.mxu0 %v758
      %2263 = vmatmul.mubr.bf16.gmra.mrb[0].mxu0 %v757
      %v2264 = vpop.f32.mrb[0].mxu0
      %v2265 = vadd.f32 %v2192, %v2264
      %v2266 = vpop.f32.mrb[0].mxu0
      %v2267 = vadd.f32 %v2194, %v2266
      %v2268 = vpop.f32.mrb[0].mxu0
      %v2269 = vadd.f32 %v2196, %v2268
      %v2270 = vpop.f32.mrb[0].mxu0
      %v2271 = vadd.f32 %v2198, %v2270
      %2272 = vmatprep.mubr.bf16.mxu0 %v774
      %2273 = vmatmul.mubr.bf16.gmra.mrb[0].mxu0 %v773
      %v2274 = vpop.f32.mrb[0].mxu0
      %v2275 = vadd.f32 %v2202, %v2274
      %v2276 = vpop.f32.mrb[0].mxu0
      %v2277 = vadd.f32 %v2204, %v2276
      %v2278 = vpop.f32.mrb[0].mxu0
      %v2279 = vadd.f32 %v2206, %v2278
      %v2280 = vpop.f32.mrb[0].mxu0
      %v2281 = vadd.f32 %v2208, %v2280
      %2282 = vmatprep.mubr.bf16.mxu0 %v790
      %2283 = vmatmul.mubr.bf16.gmra.mrb[0].mxu0 %v789
      %v2284 = vpop.f32.mrb[0].mxu0
      %v2285 = vadd.f32 %v2212, %v2284
      %v2286 = vpop.f32.mrb[0].mxu0
      %v2287 = vadd.f32 %v2214, %v2286
      %v2288 = vpop.f32.mrb[0].mxu0
      %v2289 = vadd.f32 %v2216, %v2288
      %v2290 = vpop.f32.mrb[0].mxu0
      %v2291 = vadd.f32 %v2218, %v2290
      %2292 = vdwg.mxu0
      %2293 = vmatprep.subr.bf16.mxu0 %v1700
      %2294 = vmatpush1.bf16.msra.mxu0 %v1699
      %2295 = vmatprep.subr.bf16.mxu0 %v1702
      %2296 = vmatpush1.bf16.msra.mxu0 %v1701
      %2297 = vmatprep.subr.bf16.mxu0 %v1704
      %2298 = vmatpush1.bf16.msra.mxu0 %v1703
      %2299 = vmatprep.subr.bf16.mxu0 %v1706
      %2300 = vmatpush1.bf16.msra.mxu0 %v1705
      %2301 = vmatprep.subr.bf16.mxu0 %v1708
      %2302 = vmatpush1.bf16.msra.mxu0 %v1707
      %2303 = vmatprep.subr.bf16.mxu0 %v1710
      %2304 = vmatpush1.bf16.msra.mxu0 %v1709
      %2305 = vmatprep.subr.bf16.mxu0 %v1712
      %2306 = vmatpush1.bf16.msra.mxu0 %v1711
      %2307 = vmatprep.subr.bf16.mxu0 %v1714
      %2308 = vmatpush1.bf16.msra.mxu0 %v1713
      %2309 = vmatprep.subr.bf16.mxu0 %v1716
      %2310 = vmatpush1.bf16.msra.mxu0 %v1715
      %2311 = vmatprep.subr.bf16.mxu0 %v1718
      %2312 = vmatpush1.bf16.msra.mxu0 %v1717
      %2313 = vmatprep.subr.bf16.mxu0 %v1720
      %2314 = vmatpush1.bf16.msra.mxu0 %v1719
      %2315 = vmatprep.subr.bf16.mxu0 %v1722
      %2316 = vmatpush1.bf16.msra.mxu0 %v1721
      %2317 = vmatprep.subr.bf16.mxu0 %v1724
      %2318 = vmatpush1.bf16.msra.mxu0 %v1723
      %2319 = vmatprep.subr.bf16.mxu0 %v1726
      %2320 = vmatpush1.bf16.msra.mxu0 %v1725
      %2321 = vmatprep.subr.bf16.mxu0 %v1728
      %2322 = vmatpush1.bf16.msra.mxu0 %v1727
      %2323 = vmatprep.subr.bf16.mxu0 %v1730
      %2324 = vmatpush1.bf16.msra.mxu0 %v1729
      %2325 = vmatprep.mubr.bf16.mxu0 %v744
      %2326 = vmatmul.mubr.bf16.gmra.mrb[0].mxu0 %v743
      %v2327 = vpop.f32.mrb[0].mxu0
      %v2328 = vadd.f32 %v2255, %v2327
      %v2329 = vpop.f32.mrb[0].mxu0
      %v2330 = vadd.f32 %v2257, %v2329
      %v2331 = vpop.f32.mrb[0].mxu0
      %v2332 = vadd.f32 %v2259, %v2331
      %v2333 = vpop.f32.mrb[0].mxu0
      %v2334 = vadd.f32 %v2261, %v2333
      %2335 = vmatprep.mubr.bf16.mxu0 %v760
      %2336 = vmatmul.mubr.bf16.gmra.mrb[0].mxu0 %v759
      %v2337 = vpop.f32.mrb[0].mxu0
      %v2338 = vadd.f32 %v2265, %v2337
      %v2339 = vpop.f32.mrb[0].mxu0
      %v2340 = vadd.f32 %v2267, %v2339
      %v2341 = vpop.f32.mrb[0].mxu0
      %v2342 = vadd.f32 %v2269, %v2341
      %v2343 = vpop.f32.mrb[0].mxu0
      %v2344 = vadd.f32 %v2271, %v2343
      %2345 = vmatprep.mubr.bf16.mxu0 %v776
      %2346 = vmatmul.mubr.bf16.gmra.mrb[0].mxu0 %v775
      %v2347 = vpop.f32.mrb[0].mxu0
      %v2348 = vadd.f32 %v2275, %v2347
      %v2349 = vpop.f32.mrb[0].mxu0
      %v2350 = vadd.f32 %v2277, %v2349
      %v2351 = vpop.f32.mrb[0].mxu0
      %v2352 = vadd.f32 %v2279, %v2351
      %v2353 = vpop.f32.mrb[0].mxu0
      %v2354 = vadd.f32 %v2281, %v2353
      %2355 = vmatprep.mubr.bf16.mxu0 %v792
      %2356 = vmatmul.mubr.bf16.gmra.mrb[0].mxu0 %v791
      %v2357 = vpop.f32.mrb[0].mxu0
      %v2358 = vadd.f32 %v2285, %v2357
      %v2359 = vpop.f32.mrb[0].mxu0
      %v2360 = vadd.f32 %v2287, %v2359
      %v2361 = vpop.f32.mrb[0].mxu0
      %v2362 = vadd.f32 %v2289, %v2361
      %v2363 = vpop.f32.mrb[0].mxu0
      %v2364 = vadd.f32 %v2291, %v2363
      %2365 = vdwg.mxu0
      %2366 = vmatprep.subr.bf16.mxu0 %v1732
      %2367 = vmatpush1.bf16.msra.mxu0 %v1731
      %2368 = vmatprep.subr.bf16.mxu0 %v1734
      %2369 = vmatpush1.bf16.msra.mxu0 %v1733
      %2370 = vmatprep.subr.bf16.mxu0 %v1736
      %2371 = vmatpush1.bf16.msra.mxu0 %v1735
      %2372 = vmatprep.subr.bf16.mxu0 %v1738
      %2373 = vmatpush1.bf16.msra.mxu0 %v1737
      %2374 = vmatprep.subr.bf16.mxu0 %v1740
      %2375 = vmatpush1.bf16.msra.mxu0 %v1739
      %2376 = vmatprep.subr.bf16.mxu0 %v1742
      %2377 = vmatpush1.bf16.msra.mxu0 %v1741
      %2378 = vmatprep.subr.bf16.mxu0 %v1744
      %2379 = vmatpush1.bf16.msra.mxu0 %v1743
      %2380 = vmatprep.subr.bf16.mxu0 %v1746
      %2381 = vmatpush1.bf16.msra.mxu0 %v1745
      %2382 = vmatprep.subr.bf16.mxu0 %v1748
      %2383 = vmatpush1.bf16.msra.mxu0 %v1747
      %2384 = vmatprep.subr.bf16.mxu0 %v1750
      %2385 = vmatpush1.bf16.msra.mxu0 %v1749
      %2386 = vmatprep.subr.bf16.mxu0 %v1752
      %2387 = vmatpush1.bf16.msra.mxu0 %v1751
      %2388 = vmatprep.subr.bf16.mxu0 %v1754
      %2389 = vmatpush1.bf16.msra.mxu0 %v1753
      %2390 = vmatprep.subr.bf16.mxu0 %v1756
      %2391 = vmatpush1.bf16.msra.mxu0 %v1755
      %2392 = vmatprep.subr.bf16.mxu0 %v1758
      %2393 = vmatpush1.bf16.msra.mxu0 %v1757
      %2394 = vmatprep.subr.bf16.mxu0 %v1760
      %2395 = vmatpush1.bf16.msra.mxu0 %v1759
      %2396 = vmatprep.subr.bf16.mxu0 %v1762
      %2397 = vmatpush1.bf16.msra.mxu0 %v1761
      %2398 = vmatprep.mubr.bf16.mxu0 %v746
      %2399 = vmatmul.mubr.bf16.gmra.mrb[0].mxu0 %v745
      %v2400 = vpop.f32.mrb[0].mxu0
      %v2401 = vadd.f32 %v2328, %v2400
      %v2402 = vpop.f32.mrb[0].mxu0
      %v2403 = vadd.f32 %v2330, %v2402
      %v2404 = vpop.f32.mrb[0].mxu0
      %v2405 = vadd.f32 %v2332, %v2404
      %v2406 = vpop.f32.mrb[0].mxu0
      %v2407 = vadd.f32 %v2334, %v2406
      %2408 = vmatprep.mubr.bf16.mxu0 %v762
      %2409 = vmatmul.mubr.bf16.gmra.mrb[0].mxu0 %v761
      %v2410 = vpop.f32.mrb[0].mxu0
      %v2411 = vadd.f32 %v2338, %v2410
      %v2412 = vpop.f32.mrb[0].mxu0
      %v2413 = vadd.f32 %v2340, %v2412
      %v2414 = vpop.f32.mrb[0].mxu0
      %v2415 = vadd.f32 %v2342, %v2414
      %v2416 = vpop.f32.mrb[0].mxu0
      %v2417 = vadd.f32 %v2344, %v2416
      %2418 = vmatprep.mubr.bf16.mxu0 %v778
      %2419 = vmatmul.mubr.bf16.gmra.mrb[0].mxu0 %v777
      %v2420 = vpop.f32.mrb[0].mxu0
      %v2421 = vadd.f32 %v2348, %v2420
      %v2422 = vpop.f32.mrb[0].mxu0
      %v2423 = vadd.f32 %v2350, %v2422
      %v2424 = vpop.f32.mrb[0].mxu0
      %v2425 = vadd.f32 %v2352, %v2424
      %v2426 = vpop.f32.mrb[0].mxu0
      %v2427 = vadd.f32 %v2354, %v2426
      %2428 = vmatprep.mubr.bf16.mxu0 %v794
      %2429 = vmatmul.mubr.bf16.gmra.mrb[0].mxu0 %v793
      %v2430 = vpop.f32.mrb[0].mxu0
      %v2431 = vadd.f32 %v2358, %v2430
      %v2432 = vpop.f32.mrb[0].mxu0
      %v2433 = vadd.f32 %v2360, %v2432
      %v2434 = vpop.f32.mrb[0].mxu0
      %v2435 = vadd.f32 %v2362, %v2434
      %v2436 = vpop.f32.mrb[0].mxu0
      %v2437 = vadd.f32 %v2364, %v2436
      %2438 = vdwg.mxu0
      %2439 = vmatprep.subr.bf16.mxu0 %v1764
      %2440 = vmatpush1.bf16.msra.mxu0 %v1763
      %2441 = vmatprep.subr.bf16.mxu0 %v1766
      %2442 = vmatpush1.bf16.msra.mxu0 %v1765
      %2443 = vmatprep.subr.bf16.mxu0 %v1768
      %2444 = vmatpush1.bf16.msra.mxu0 %v1767
      %2445 = vmatprep.subr.bf16.mxu0 %v1770
      %2446 = vmatpush1.bf16.msra.mxu0 %v1769
      %2447 = vmatprep.subr.bf16.mxu0 %v1772
      %2448 = vmatpush1.bf16.msra.mxu0 %v1771
      %2449 = vmatprep.subr.bf16.mxu0 %v1774
      %2450 = vmatpush1.bf16.msra.mxu0 %v1773
      %2451 = vmatprep.subr.bf16.mxu0 %v1776
      %2452 = vmatpush1.bf16.msra.mxu0 %v1775
      %2453 = vmatprep.subr.bf16.mxu0 %v1778
      %2454 = vmatpush1.bf16.msra.mxu0 %v1777
      %2455 = vmatprep.subr.bf16.mxu0 %v1780
      %2456 = vmatpush1.bf16.msra.mxu0 %v1779
      %2457 = vmatprep.subr.bf16.mxu0 %v1782
      %2458 = vmatpush1.bf16.msra.mxu0 %v1781
      %2459 = vmatprep.subr.bf16.mxu0 %v1784
      %2460 = vmatpush1.bf16.msra.mxu0 %v1783
      %2461 = vmatprep.subr.bf16.mxu0 %v1786
      %2462 = vmatpush1.bf16.msra.mxu0 %v1785
      %2463 = vmatprep.subr.bf16.mxu0 %v1788
      %2464 = vmatpush1.bf16.msra.mxu0 %v1787
      %2465 = vmatprep.subr.bf16.mxu0 %v1790
      %2466 = vmatpush1.bf16.msra.mxu0 %v1789
      %2467 = vmatprep.subr.bf16.mxu0 %v1792
      %2468 = vmatpush1.bf16.msra.mxu0 %v1791
      %2469 = vmatprep.subr.bf16.mxu0 %v1794
      %2470 = vmatpush1.bf16.msra.mxu0 %v1793
      %2471 = vmatprep.mubr.bf16.mxu0 %v748
      %2472 = vmatmul.mubr.bf16.gmra.mrb[0].mxu0 %v747
      %v2473 = vpop.f32.mrb[0].mxu0
      %v2474 = vadd.f32 %v2401, %v2473
      %v2475 = vpop.f32.mrb[0].mxu0
      %v2476 = vadd.f32 %v2403, %v2475
      %v2477 = vpop.f32.mrb[0].mxu0
      %v2478 = vadd.f32 %v2405, %v2477
      %v2479 = vpop.f32.mrb[0].mxu0
      %v2480 = vadd.f32 %v2407, %v2479
      %2481 = vmatprep.mubr.bf16.mxu0 %v764
      %2482 = vmatmul.mubr.bf16.gmra.mrb[0].mxu0 %v763
      %v2483 = vpop.f32.mrb[0].mxu0
      %v2484 = vadd.f32 %v2411, %v2483
      %v2485 = vpop.f32.mrb[0].mxu0
      %v2486 = vadd.f32 %v2413, %v2485
      %v2487 = vpop.f32.mrb[0].mxu0
      %v2488 = vadd.f32 %v2415, %v2487
      %v2489 = vpop.f32.mrb[0].mxu0
      %v2490 = vadd.f32 %v2417, %v2489
      %2491 = vmatprep.mubr.bf16.mxu0 %v780
      %2492 = vmatmul.mubr.bf16.gmra.mrb[0].mxu0 %v779
      %v2493 = vpop.f32.mrb[0].mxu0
      %v2494 = vadd.f32 %v2421, %v2493
      %v2495 = vpop.f32.mrb[0].mxu0
      %v2496 = vadd.f32 %v2423, %v2495
      %v2497 = vpop.f32.mrb[0].mxu0
      %v2498 = vadd.f32 %v2425, %v2497
      %v2499 = vpop.f32.mrb[0].mxu0
      %v2500 = vadd.f32 %v2427, %v2499
      %2501 = vmatprep.mubr.bf16.mxu0 %v796
      %2502 = vmatmul.mubr.bf16.gmra.mrb[0].mxu0 %v795
      %v2503 = vpop.f32.mrb[0].mxu0
      %v2504 = vadd.f32 %v2431, %v2503
      %v2505 = vpop.f32.mrb[0].mxu0
      %v2506 = vadd.f32 %v2433, %v2505
      %v2507 = vpop.f32.mrb[0].mxu0
      %v2508 = vadd.f32 %v2435, %v2507
      %v2509 = vpop.f32.mrb[0].mxu0
      %v2510 = vadd.f32 %v2437, %v2509
      %2511 = vdwg.mxu0
      %2512 = vmatprep.subr.bf16.mxu0 %v1796
      %2513 = vmatpush1.bf16.msra.mxu0 %v1795
      %2514 = vmatprep.subr.bf16.mxu0 %v1798
      %2515 = vmatpush1.bf16.msra.mxu0 %v1797
      %2516 = vmatprep.subr.bf16.mxu0 %v1800
      %2517 = vmatpush1.bf16.msra.mxu0 %v1799
      %2518 = vmatprep.subr.bf16.mxu0 %v1802
      %2519 = vmatpush1.bf16.msra.mxu0 %v1801
      %2520 = vmatprep.subr.bf16.mxu0 %v1804
      %2521 = vmatpush1.bf16.msra.mxu0 %v1803
      %2522 = vmatprep.subr.bf16.mxu0 %v1806
      %2523 = vmatpush1.bf16.msra.mxu0 %v1805
      %2524 = vmatprep.subr.bf16.mxu0 %v1808
      %2525 = vmatpush1.bf16.msra.mxu0 %v1807
      %2526 = vmatprep.subr.bf16.mxu0 %v1810
      %2527 = vmatpush1.bf16.msra.mxu0 %v1809
      %2528 = vmatprep.subr.bf16.mxu0 %v1812
      %2529 = vmatpush1.bf16.msra.mxu0 %v1811
      %2530 = vmatprep.subr.bf16.mxu0 %v1814
      %2531 = vmatpush1.bf16.msra.mxu0 %v1813
      %2532 = vmatprep.subr.bf16.mxu0 %v1816
      %2533 = vmatpush1.bf16.msra.mxu0 %v1815
      %2534 = vmatprep.subr.bf16.mxu0 %v1818
      %2535 = vmatpush1.bf16.msra.mxu0 %v1817
      %2536 = vmatprep.subr.bf16.mxu0 %v1820
      %2537 = vmatpush1.bf16.msra.mxu0 %v1819
      %2538 = vmatprep.subr.bf16.mxu0 %v1822
      %2539 = vmatpush1.bf16.msra.mxu0 %v1821
      %2540 = vmatprep.subr.bf16.mxu0 %v1824
      %2541 = vmatpush1.bf16.msra.mxu0 %v1823
      %2542 = vmatprep.subr.bf16.mxu0 %v1826
      %2543 = vmatpush1.bf16.msra.mxu0 %v1825
      %2544 = vmatprep.mubr.bf16.mxu0 %v750
      %2545 = vmatmul.mubr.bf16.gmra.mrb[0].mxu0 %v749
      %v2546 = vpop.f32.mrb[0].mxu0
      %v2547 = vadd.f32 %v2474, %v2546
      %v2548 = vpop.f32.mrb[0].mxu0
      %v2549 = vadd.f32 %v2476, %v2548
      %v2550 = vpop.f32.mrb[0].mxu0
      %v2551 = vadd.f32 %v2478, %v2550
      %v2552 = vpop.f32.mrb[0].mxu0
      %v2553 = vadd.f32 %v2480, %v2552
      %2554 = vmatprep.mubr.bf16.mxu0 %v766
      %2555 = vmatmul.mubr.bf16.gmra.mrb[0].mxu0 %v765
      %v2556 = vpop.f32.mrb[0].mxu0
      %v2557 = vadd.f32 %v2484, %v2556
      %v2558 = vpop.f32.mrb[0].mxu0
      %v2559 = vadd.f32 %v2486, %v2558
      %v2560 = vpop.f32.mrb[0].mxu0
      %v2561 = vadd.f32 %v2488, %v2560
      %v2562 = vpop.f32.mrb[0].mxu0
      %v2563 = vadd.f32 %v2490, %v2562
      %2564 = vmatprep.mubr.bf16.mxu0 %v782
      %2565 = vmatmul.mubr.bf16.gmra.mrb[0].mxu0 %v781
      %v2566 = vpop.f32.mrb[0].mxu0
      %v2567 = vadd.f32 %v2494, %v2566
      %v2568 = vpop.f32.mrb[0].mxu0
      %v2569 = vadd.f32 %v2496, %v2568
      %v2570 = vpop.f32.mrb[0].mxu0
      %v2571 = vadd.f32 %v2498, %v2570
      %v2572 = vpop.f32.mrb[0].mxu0
      %v2573 = vadd.f32 %v2500, %v2572
      %2574 = vmatprep.mubr.bf16.mxu0 %v798
      %2575 = vmatmul.mubr.bf16.gmra.mrb[0].mxu0 %v797
      %v2576 = vpop.f32.mrb[0].mxu0
      %v2577 = vadd.f32 %v2504, %v2576
      %v2578 = vpop.f32.mrb[0].mxu0
      %v2579 = vadd.f32 %v2506, %v2578
      %v2580 = vpop.f32.mrb[0].mxu0
      %v2581 = vadd.f32 %v2508, %v2580
      %v2582 = vpop.f32.mrb[0].mxu0
      %v2583 = vadd.f32 %v2510, %v2582
      %2584 = vdwg.mxu0
      %2585 = vmatprep.subr.bf16.mxu0 %v1828
      %2586 = vmatpush1.bf16.msra.mxu0 %v1827
      %2587 = vmatprep.subr.bf16.mxu0 %v1830
      %2588 = vmatpush1.bf16.msra.mxu0 %v1829
      %2589 = vmatprep.subr.bf16.mxu0 %v1832
      %2590 = vmatpush1.bf16.msra.mxu0 %v1831
      %2591 = vmatprep.subr.bf16.mxu0 %v1834
      %2592 = vmatpush1.bf16.msra.mxu0 %v1833
      %2593 = vmatprep.subr.bf16.mxu0 %v1836
      %2594 = vmatpush1.bf16.msra.mxu0 %v1835
      %2595 = vmatprep.subr.bf16.mxu0 %v1838
      %2596 = vmatpush1.bf16.msra.mxu0 %v1837
      %2597 = vmatprep.subr.bf16.mxu0 %v1840
      %2598 = vmatpush1.bf16.msra.mxu0 %v1839
      %2599 = vmatprep.subr.bf16.mxu0 %v1842
      %2600 = vmatpush1.bf16.msra.mxu0 %v1841
      %2601 = vmatprep.subr.bf16.mxu0 %v1844
      %2602 = vmatpush1.bf16.msra.mxu0 %v1843
      %2603 = vmatprep.subr.bf16.mxu0 %v1846
      %2604 = vmatpush1.bf16.msra.mxu0 %v1845
      %2605 = vmatprep.subr.bf16.mxu0 %v1848
      %2606 = vmatpush1.bf16.msra.mxu0 %v1847
      %2607 = vmatprep.subr.bf16.mxu0 %v1850
      %2608 = vmatpush1.bf16.msra.mxu0 %v1849
      %2609 = vmatprep.subr.bf16.mxu0 %v1852
      %2610 = vmatpush1.bf16.msra.mxu0 %v1851
      %2611 = vmatprep.subr.bf16.mxu0 %v1854
      %2612 = vmatpush1.bf16.msra.mxu0 %v1853
      %2613 = vmatprep.subr.bf16.mxu0 %v1856
      %2614 = vmatpush1.bf16.msra.mxu0 %v1855
      %2615 = vmatprep.subr.bf16.mxu0 %v1858
      %2616 = vmatpush1.bf16.msra.mxu0 %v1857
      %2617 = vmatprep.mubr.bf16.mxu0 %v752
      %2618 = vmatmul.mubr.bf16.gmra.mrb[0].mxu0 %v751
      %v2619 = vpop.f32.mrb[0].mxu0
      %v2620 = vadd.f32 %v2547, %v2619
      %v2621 = vpop.f32.mrb[0].mxu0
      %v2622 = vadd.f32 %v2549, %v2621
      %v2623 = vpop.f32.mrb[0].mxu0
      %v2624 = vadd.f32 %v2551, %v2623
      %v2625 = vpop.f32.mrb[0].mxu0
      %v2626 = vadd.f32 %v2553, %v2625
      %2627 = vmatprep.mubr.bf16.mxu0 %v768
      %2628 = vmatmul.mubr.bf16.gmra.mrb[0].mxu0 %v767
      %v2629 = vpop.f32.mrb[0].mxu0
      %v2630 = vadd.f32 %v2557, %v2629
      %v2631 = vpop.f32.mrb[0].mxu0
      %v2632 = vadd.f32 %v2559, %v2631
      %v2633 = vpop.f32.mrb[0].mxu0
      %v2634 = vadd.f32 %v2561, %v2633
      %v2635 = vpop.f32.mrb[0].mxu0
      %v2636 = vadd.f32 %v2563, %v2635
      %2637 = vmatprep.mubr.bf16.mxu0 %v784
      %2638 = vmatmul.mubr.bf16.gmra.mrb[0].mxu0 %v783
      %v2639 = vpop.f32.mrb[0].mxu0
      %v2640 = vadd.f32 %v2567, %v2639
      %v2641 = vpop.f32.mrb[0].mxu0
      %v2642 = vadd.f32 %v2569, %v2641
      %v2643 = vpop.f32.mrb[0].mxu0
      %v2644 = vadd.f32 %v2571, %v2643
      %v2645 = vpop.f32.mrb[0].mxu0
      %v2646 = vadd.f32 %v2573, %v2645
      %2647 = vmatprep.mubr.bf16.mxu0 %v800
      %2648 = vmatmul.mubr.bf16.gmra.mrb[0].mxu0 %v799
      %v2649 = vpop.f32.mrb[0].mxu0
      %v2650 = vadd.f32 %v2577, %v2649
      %v2651 = vpop.f32.mrb[0].mxu0
      %v2652 = vadd.f32 %v2579, %v2651
      %v2653 = vpop.f32.mrb[0].mxu0
      %v2654 = vadd.f32 %v2581, %v2653
      %v2655 = vpop.f32.mrb[0].mxu0
      %v2656 = vadd.f32 %v2583, %v2655
      %2657 = vdwg.mxu0
      %2658 = vmatprep.subr.bf16.mxu0 %v1860
      %2659 = vmatpush1.bf16.msra.mxu0 %v1859
      %2660 = vmatprep.subr.bf16.mxu0 %v1862
      %2661 = vmatpush1.bf16.msra.mxu0 %v1861
      %2662 = vmatprep.subr.bf16.mxu0 %v1864
      %2663 = vmatpush1.bf16.msra.mxu0 %v1863
      %2664 = vmatprep.subr.bf16.mxu0 %v1866
      %2665 = vmatpush1.bf16.msra.mxu0 %v1865
      %2666 = vmatprep.subr.bf16.mxu0 %v1868
      %2667 = vmatpush1.bf16.msra.mxu0 %v1867
      %2668 = vmatprep.subr.bf16.mxu0 %v1870
      %2669 = vmatpush1.bf16.msra.mxu0 %v1869
      %2670 = vmatprep.subr.bf16.mxu0 %v1872
      %2671 = vmatpush1.bf16.msra.mxu0 %v1871
      %2672 = vmatprep.subr.bf16.mxu0 %v1874
      %2673 = vmatpush1.bf16.msra.mxu0 %v1873
      %2674 = vmatprep.subr.bf16.mxu0 %v1876
      %2675 = vmatpush1.bf16.msra.mxu0 %v1875
      %2676 = vmatprep.subr.bf16.mxu0 %v1878
      %2677 = vmatpush1.bf16.msra.mxu0 %v1877
      %2678 = vmatprep.subr.bf16.mxu0 %v1880
      %2679 = vmatpush1.bf16.msra.mxu0 %v1879
      %2680 = vmatprep.subr.bf16.mxu0 %v1882
      %2681 = vmatpush1.bf16.msra.mxu0 %v1881
      %2682 = vmatprep.subr.bf16.mxu0 %v1884
      %2683 = vmatpush1.bf16.msra.mxu0 %v1883
      %2684 = vmatprep.subr.bf16.mxu0 %v1886
      %2685 = vmatpush1.bf16.msra.mxu0 %v1885
      %2686 = vmatprep.subr.bf16.mxu0 %v1888
      %2687 = vmatpush1.bf16.msra.mxu0 %v1887
      %2688 = vmatprep.subr.bf16.mxu0 %v1890
      %2689 = vmatpush1.bf16.msra.mxu0 %v1889
      %2690 = vmatprep.mubr.bf16.mxu0 %v754
      %2691 = vmatmul.mubr.bf16.gmra.mrb[0].mxu0 %v753
      %v2692 = vpop.f32.mrb[0].mxu0
      %v2693 = vadd.f32 %v2620, %v2692
      %v2694 = vpop.f32.mrb[0].mxu0
      %v2695 = vadd.f32 %v2622, %v2694
      %v2696 = vpop.f32.mrb[0].mxu0
      %v2697 = vadd.f32 %v2624, %v2696
      %v2698 = vpop.f32.mrb[0].mxu0
      %v2699 = vadd.f32 %v2626, %v2698
      %2700 = vmatprep.mubr.bf16.mxu0 %v770
      %2701 = vmatmul.mubr.bf16.gmra.mrb[0].mxu0 %v769
      %v2702 = vpop.f32.mrb[0].mxu0
      %v2703 = vadd.f32 %v2630, %v2702
      %v2704 = vpop.f32.mrb[0].mxu0
      %v2705 = vadd.f32 %v2632, %v2704
      %v2706 = vpop.f32.mrb[0].mxu0
      %v2707 = vadd.f32 %v2634, %v2706
      %v2708 = vpop.f32.mrb[0].mxu0
      %v2709 = vadd.f32 %v2636, %v2708
      %2710 = vmatprep.mubr.bf16.mxu0 %v786
      %2711 = vmatmul.mubr.bf16.gmra.mrb[0].mxu0 %v785
      %v2712 = vpop.f32.mrb[0].mxu0
      %v2713 = vadd.f32 %v2640, %v2712
      %v2714 = vpop.f32.mrb[0].mxu0
      %v2715 = vadd.f32 %v2642, %v2714
      %v2716 = vpop.f32.mrb[0].mxu0
      %v2717 = vadd.f32 %v2644, %v2716
      %v2718 = vpop.f32.mrb[0].mxu0
      %v2719 = vadd.f32 %v2646, %v2718
      %2720 = vmatprep.mubr.bf16.mxu0 %v802
      %2721 = vmatmul.mubr.bf16.gmra.mrb[0].mxu0 %v801
      %v2722 = vpop.f32.mrb[0].mxu0
      %v2723 = vadd.f32 %v2650, %v2722
      %v2724 = vpop.f32.mrb[0].mxu0
      %v2725 = vadd.f32 %v2652, %v2724
      %v2726 = vpop.f32.mrb[0].mxu0
      %v2727 = vadd.f32 %v2654, %v2726
      %v2728 = vpop.f32.mrb[0].mxu0
      %v2729 = vadd.f32 %v2656, %v2728
      %2730 = vdwg.mxu0
      %2731 = vst [vmem:[%s217] sm:$0xff] %v2693
      %2732 = vst [vmem:[%s217 + $0x8] sm:$0xff] %v2695
      %2733 = vst [vmem:[%s217 + $0x10] sm:$0xff] %v2697
      %2734 = vst [vmem:[%s217 + $0x18] sm:$0xff] %v2699
      %2735 = vst [vmem:[%s217 + $0x20] sm:$0xff] %v2703
      %2736 = vst [vmem:[%s217 + $0x28] sm:$0xff] %v2705
      %2737 = vst [vmem:[%s217 + $0x30] sm:$0xff] %v2707
      %2738 = vst [vmem:[%s217 + $0x38] sm:$0xff] %v2709
      %2739 = vst [vmem:[%s217 + $0x40] sm:$0xff] %v2713
      %2740 = vst [vmem:[%s217 + $0x48] sm:$0xff] %v2715
      %2741 = vst [vmem:[%s217 + $0x50] sm:$0xff] %v2717
      %2742 = vst [vmem:[%s217 + $0x58] sm:$0xff] %v2719
      %2743 = vst [vmem:[%s217 + $0x60] sm:$0xff] %v2723
      %2744 = vst [vmem:[%s217 + $0x68] sm:$0xff] %v2725
      %2745 = vst [vmem:[%s217 + $0x70] sm:$0xff] %v2727
      %2746 = vst [vmem:[%s217 + $0x78] sm:$0xff] %v2729
      %v2747 = vadd.f32 %v2693, %v2697
      %v2748 = vadd.f32 %v2747, %v2703
      %v2749 = vadd.f32 %v2748, %v2707
      %v2750 = vadd.f32 %v2749, %v2713
      %v2751 = vadd.f32 %v2750, %v2717
      %v2752 = vadd.f32 %v2751, %v2723
      %v2753 = vadd.f32 %v2752, %v2727
      %v2754 = vrot.slane %v2753, 4
      %v2755 = vadd.f32 %v2753, %v2754
      %v2756 = vrot.slane %v2755, 2
      %v2757 = vadd.f32 %v2755, %v2756
      %v2758 = vrot.slane %v2757, 1
      %v2759 = vadd.f32 %v2757, %v2758
      %v2760 = vadd.f32 %v2695, %v2699
      %v2761 = vadd.f32 %v2760, %v2705
      %v2762 = vadd.f32 %v2761, %v2709
      %v2763 = vadd.f32 %v2762, %v2715
      %v2764 = vadd.f32 %v2763, %v2719
      %v2765 = vadd.f32 %v2764, %v2725
      %v2766 = vadd.f32 %v2765, %v2729
      %v2767 = vrot.slane %v2766, 4
      %v2768 = vadd.f32 %v2766, %v2767
      %v2769 = vrot.slane %v2768, 2
      %v2770 = vadd.f32 %v2768, %v2769
      %v2771 = vrot.slane %v2770, 1
      %v2772 = vadd.f32 %v2770, %v2771
      %v2775 = vcombine.low %v2759, %v2772
      %v2777 = vunpack.c.l.s4 1966171168
      %v2778 = vunpack.c.0.s8 %v2777
      %v2779 = vlaneseq
      %v2780 = vshrl.u32 %v2779, 7
      %v2781 = vsub.s32 %v2778, %v2780
      %v2782 = vrot.slane %v2775, %v2781
      %v2784 = vunpack.c.l.s4 1966171168
      %v2785 = vunpack.c.0.s8 %v2784
      %v2786 = vlaneseq
      %v2787 = vshrl.u32 %v2786, 7
      %v2788 = vsub.s32 %v2785, %v2787
      %v2789 = vrot.slane %v2782, %v2788
      %v2791 = vlaneseq
      %vm2792 = vcmp.ge.s32.totalorder %v2791, 0
      %vm2793 = vcmp.lt.s32.totalorder %v2791, 256
      %vm2794 = vmand %vm2792, %vm2793
      %2795 = vst.msk [vmem:[%s222] sm:$0x3] %vm2794, %v2789
      %v2796 = vmul.f32 %v2693, %v2693
      %v2797 = vmul.f32 %v2695, %v2695
      %v2798 = vmul.f32 %v2697, %v2697
      %v2799 = vmul.f32 %v2699, %v2699
      %v2800 = vmul.f32 %v2703, %v2703
      %v2801 = vmul.f32 %v2705, %v2705
      %v2802 = vmul.f32 %v2707, %v2707
      %v2803 = vmul.f32 %v2709, %v2709
      %v2804 = vmul.f32 %v2713, %v2713
      %v2805 = vmul.f32 %v2715, %v2715
      %v2806 = vmul.f32 %v2717, %v2717
      %v2807 = vmul.f32 %v2719, %v2719
      %v2808 = vmul.f32 %v2723, %v2723
      %v2809 = vmul.f32 %v2725, %v2725
      %v2810 = vmul.f32 %v2727, %v2727
      %v2811 = vmul.f32 %v2729, %v2729
      %v2812 = vadd.f32 %v2796, %v2798
      %v2813 = vadd.f32 %v2812, %v2800
      %v2814 = vadd.f32 %v2813, %v2802
      %v2815 = vadd.f32 %v2814, %v2804
      %v2816 = vadd.f32 %v2815, %v2806
      %v2817 = vadd.f32 %v2816, %v2808
      %v2818 = vadd.f32 %v2817, %v2810
      %v2819 = vrot.slane %v2818, 4
      %v2820 = vadd.f32 %v2818, %v2819
      %v2821 = vrot.slane %v2820, 2
      %v2822 = vadd.f32 %v2820, %v2821
      %v2823 = vrot.slane %v2822, 1
      %v2824 = vadd.f32 %v2822, %v2823
      %v2825 = vadd.f32 %v2797, %v2799
      %v2826 = vadd.f32 %v2825, %v2801
      %v2827 = vadd.f32 %v2826, %v2803
      %v2828 = vadd.f32 %v2827, %v2805
      %v2829 = vadd.f32 %v2828, %v2807
      %v2830 = vadd.f32 %v2829, %v2809
      %v2831 = vadd.f32 %v2830, %v2811
      %v2832 = vrot.slane %v2831, 4
      %v2833 = vadd.f32 %v2831, %v2832
      %v2834 = vrot.slane %v2833, 2
      %v2835 = vadd.f32 %v2833, %v2834
      %v2836 = vrot.slane %v2835, 1
      %v2837 = vadd.f32 %v2835, %v2836
      %v2840 = vcombine.low %v2824, %v2837
      %v2842 = vunpack.c.l.s4 1966171168
      %v2843 = vunpack.c.0.s8 %v2842
      %v2844 = vlaneseq
      %v2845 = vshrl.u32 %v2844, 7
      %v2846 = vsub.s32 %v2843, %v2845
      %v2847 = vrot.slane %v2840, %v2846
      %v2849 = vunpack.c.l.s4 1966171168
      %v2850 = vunpack.c.0.s8 %v2849
      %v2851 = vlaneseq
      %v2852 = vshrl.u32 %v2851, 7
      %v2853 = vsub.s32 %v2850, %v2852
      %v2854 = vrot.slane %v2847, %v2853
      %2856 = vst.msk [vmem:[%s226] sm:$0x3] %vm2794, %v2854
      %s2857 = smul.u32 8, %s16
      %p2858 = scmp.lt.s32.totalorder %s2857, 15
      %s2859 = scalar_select %p2858, %s2857, 15
      %s2860 = smul.addr %s2859, 2
      %s2861 = smul.addr %s2860, 8
      %s2862 = scalar_lea.vmem %s2, %s2861
      %p2863 = scmp.lt.s32.totalorder %s16, 1
      %s2864 = scalar_select %p2863, %s16, 1
      %s2865 = smul.addr %s2864, 2
      %s2866 = scalar_lea.vmem %s3, %s2865
      %p2867 = scmp.lt.s32.totalorder %s16, 1
      %s2868 = scalar_select %p2867, %s16, 1
      %s2869 = smul.addr %s2868, 2
      %s2870 = scalar_lea.vmem %s4, %s2869
      // Predicated region
      $region29: #{discriminator_forward.6} parent=27 // pred_check
        %p2871 = pneg %p81
      $region30: #{discriminator_forward.6} parent=27 // pred_check_branch
        %2873 = sbr.rel (%p2871) target = $region32
      $region31: #{discriminator_forward.6} parent=27 // pred_region
        %s2874 = smul.u32 8, %s16
      $region32: #{discriminator_forward.6} parent=27 // pred_fallthru
        _
      // Predicated region
      $region33: #{discriminator_forward.6} parent=27 // pred_check
        %p2875 = pneg %p107
      $region34: #{discriminator_forward.6} parent=27 // pred_check_branch
        %2877 = sbr.rel (%p2875) target = $region36
      $region35: #{discriminator_forward.6} parent=27 // pred_region
        _
      $region36: #{discriminator_forward.6} parent=27 // pred_fallthru
        _
      // Predicated region
      $region37: #{discriminator_forward.6} parent=27 // pred_check
        %p2878 = pneg %p133
      $region38: #{discriminator_forward.6} parent=27 // pred_check_branch
        %2880 = sbr.rel (%p2878) target = $region40
      $region39: #{discriminator_forward.6} parent=27 // pred_region
        _
      $region40: #{discriminator_forward.6} parent=27 // pred_fallthru
        _
    $region28: #{discriminator_forward.6} parent=5 // pred_fallthru
      _
    %p2881 = scmp.le.s32.totalorder 2, %s11
    // Predicated region
    $region41: #{discriminator_forward.6} parent=5 // pred_check
      %p2882 = pneg %p2881
    $region42: #{discriminator_forward.6} parent=5 // pred_check_branch
      %2884 = sbr.rel (%p2882) target = $region44
    $region43: #{discriminator_forward.6} parent=5 // pred_region
      %s2885 = ssub.s32 %s11, 2
      // Predicated region
      $region45: #{discriminator_forward.6} parent=43 // pred_check
        %p2886 = pneg %p87
      $region46: #{discriminator_forward.6} parent=43 // pred_check_branch
        %2888 = sbr.rel (%p2886) target = $region48
      $region47: #{discriminator_forward.6} parent=43 // pred_region
        %s2889 = smul.u32 8, %s17
        %p2890 = scmp.lt.s32.totalorder %s2889, 15
        %s2891 = scalar_select %p2890, %s2889, 15
        %s2892 = smul.addr %s2891, 2
        %s2893 = smul.addr %s2892, 8
        %s2894 = scalar_lea.vmem %s2, %s2893
      $region48: #{discriminator_forward.6} parent=43 // pred_fallthru
        _
      // Predicated region
      $region49: #{discriminator_forward.6} parent=43 // pred_check
        %p2895 = pneg %p113
      $region50: #{discriminator_forward.6} parent=43 // pred_check_branch
        %2897 = sbr.rel (%p2895) target = $region52
      $region51: #{discriminator_forward.6} parent=43 // pred_region
        %p2898 = scmp.lt.s32.totalorder %s17, 1
        %s2899 = scalar_select %p2898, %s17, 1
        %s2900 = smul.addr %s2899, 2
        %s2901 = scalar_lea.vmem %s3, %s2900
      $region52: #{discriminator_forward.6} parent=43 // pred_fallthru
        _
      // Predicated region
      $region53: #{discriminator_forward.6} parent=43 // pred_check
        %p2902 = pneg %p139
      $region54: #{discriminator_forward.6} parent=43 // pred_check_branch
        %2904 = sbr.rel (%p2902) target = $region56
      $region55: #{discriminator_forward.6} parent=43 // pred_region
        %p2905 = scmp.lt.s32.totalorder %s17, 1
        %s2906 = scalar_select %p2905, %s17, 1
        %s2907 = smul.addr %s2906, 2
        %s2908 = scalar_lea.vmem %s4, %s2907
      $region56: #{discriminator_forward.6} parent=43 // pred_fallthru
        _
    $region44: #{discriminator_forward.6} parent=5 // pred_fallthru
      _
  $region6: #{discriminator_forward.6} parent=0 // loop_footer
    %s15 = sadd.s32 1, %s11
  $region7: #{discriminator_forward.6} parent=0 // loop_footer_branch
    %10 = sbr.rel target = $region3
  $region8: #{discriminator_forward.6} parent=0 // loop_exit
    _

// kernel: discriminator_forward.9
$region0: #{discriminator_forward.9}
  #allocation0 [shape = 'u32[]', space=smem, size = 0x4, offset = 0x4, fixed_abs, tag = 'smem constant byte address 0x4 - core index']
  #allocation1 [shape = 'u32[144,128]{1,0:T(1,128)}', space=vmem, size = 0x12000, scoped, tag = 'internal scratch']
  %s0 = inlined_call_operand.vmem [shape: f32[32,512], index: 0, kind: input, shape index: {}]
  %s1 = inlined_call_operand.vmem [shape: f32[2,1,512], index: 1, kind: input, shape index: {}]
  %s2 = inlined_call_operand.vmem [shape: f32[2,1,512], index: 2, kind: input, shape index: {}]
  %s3 = inlined_call_operand.vmem [shape: f32[1,512], index: 3, kind: input, shape index: {}]
  %s4 = inlined_call_operand.vmem [shape: f32[1,512], index: 4, kind: input, shape index: {}]
  %s5 = inlined_call_operand.vmem [shape: f32[16,512], index: 5, kind: input, shape index: {}]
  %s6 = inlined_call_operand.vmem [shape: f32[2,1], index: 6, kind: output, shape index: {}]
  %s7 = sld [smem:[#allocation0]]
  $region34: #{discriminator_forward.9} parent=0
    _
  %s9 = ssub.s32 1, %s7
  %s10 = scalar_select 0, %s9, %s7
  // Predicated region
  $region2: #{discriminator_forward.9} parent=0 // pred_check
    _
  $region3: #{discriminator_forward.9} parent=0 // pred_check_branch
    %12 = sbr.rel (0) target = $region5
  $region4: #{discriminator_forward.9} parent=0 // pred_region
    _
  $region5: #{discriminator_forward.9} parent=0 // pred_fallthru
    _
  // Predicated region
  $region6: #{discriminator_forward.9} parent=0 // pred_check
    _
  $region7: #{discriminator_forward.9} parent=0 // pred_check_branch
    %14 = sbr.rel (0) target = $region9
  $region8: #{discriminator_forward.9} parent=0 // pred_region
    _
  $region9: #{discriminator_forward.9} parent=0 // pred_fallthru
    _
  // Predicated region
  $region10: #{discriminator_forward.9} parent=0 // pred_check
    _
  $region11: #{discriminator_forward.9} parent=0 // pred_check_branch
    %16 = sbr.rel (0) target = $region13
  $region12: #{discriminator_forward.9} parent=0 // pred_region
    _
  $region13: #{discriminator_forward.9} parent=0 // pred_fallthru
    _
  // Predicated region
  $region14: #{discriminator_forward.9} parent=0 // pred_check
    _
  $region15: #{discriminator_forward.9} parent=0 // pred_check_branch
    %18 = sbr.rel (0) target = $region17
  $region16: #{discriminator_forward.9} parent=0 // pred_region
    _
  $region17: #{discriminator_forward.9} parent=0 // pred_fallthru
    _
  // Predicated region
  $region18: #{discriminator_forward.9} parent=0 // pred_check
    _
  $region19: #{discriminator_forward.9} parent=0 // pred_check_branch
    %20 = sbr.rel (0) target = $region21
  $region20: #{discriminator_forward.9} parent=0 // pred_region
    _
  $region21: #{discriminator_forward.9} parent=0 // pred_fallthru
    _
  // Predicated region
  $region22: #{discriminator_forward.9} parent=0 // pred_check
    _
  $region23: #{discriminator_forward.9} parent=0 // pred_check_branch
    %22 = sbr.rel (0) target = $region25
  $region24: #{discriminator_forward.9} parent=0 // pred_region
    _
  $region25: #{discriminator_forward.9} parent=0 // pred_fallthru
    _
  %v23 = vld [vmem:[%s1] sm:$0xf]
  %v24 = vld [vmem:[%s1 + $0x4] sm:$0xf]
  %v27 = vlaneseq
  %v28 = vshrl.u32 %v27, 7
  %v29 = vsub.s32 0, %v28
  %v30 = vrot.slane %v23, %v29
  %v31 = vlaneseq
  %v32 = vshrl.u32 %v31, 7
  %v33 = vsub.s32 1, %v32
  %v34 = vrot.slane %v23, %v33
  %v35 = vlaneseq
  %v36 = vshrl.u32 %v35, 7
  %v37 = vsub.s32 2, %v36
  %v38 = vrot.slane %v23, %v37
  %v39 = vlaneseq
  %v40 = vshrl.u32 %v39, 7
  %v41 = vsub.s32 3, %v40
  %v42 = vrot.slane %v23, %v41
  %v43 = vlaneseq
  %v44 = vshrl.u32 %v43, 7
  %v45 = vsub.s32 0, %v44
  %v46 = vrot.slane %v24, %v45
  %v47 = vlaneseq
  %v48 = vshrl.u32 %v47, 7
  %v49 = vsub.s32 1, %v48
  %v50 = vrot.slane %v24, %v49
  %v51 = vlaneseq
  %v52 = vshrl.u32 %v51, 7
  %v53 = vsub.s32 2, %v52
  %v54 = vrot.slane %v24, %v53
  %v55 = vlaneseq
  %v56 = vshrl.u32 %v55, 7
  %v57 = vsub.s32 3, %v56
  %v58 = vrot.slane %v24, %v57
  %vm67 = vcmask 1040384
  %v68 = vsel %vm67, %v30, 0.0
  %v69 = vsel %vm67, %v46, 0.0
  %v70 = vadd.f32 %v68, %v69
  %v71 = vsel %vm67, %v34, 0.0
  %v72 = vsel %vm67, %v50, 0.0
  %v73 = vadd.f32 %v71, %v72
  %v74 = vsel %vm67, %v38, 0.0
  %v75 = vsel %vm67, %v54, 0.0
  %v76 = vadd.f32 %v74, %v75
  %v77 = vsel %vm67, %v42, 0.0
  %v78 = vsel %vm67, %v58, 0.0
  %v79 = vadd.f32 %v77, %v78
  %v80 = vld [vmem:[%s2] sm:$0xf]
  %v81 = vld [vmem:[%s2 + $0x4] sm:$0xf]
  %v84 = vlaneseq
  %v85 = vshrl.u32 %v84, 7
  %v86 = vsub.s32 0, %v85
  %v87 = vrot.slane %v80, %v86
  %v88 = vlaneseq
  %v89 = vshrl.u32 %v88, 7
  %v90 = vsub.s32 1, %v89
  %v91 = vrot.slane %v80, %v90
  %v92 = vlaneseq
  %v93 = vshrl.u32 %v92, 7
  %v94 = vsub.s32 2, %v93
  %v95 = vrot.slane %v80, %v94
  %v96 = vlaneseq
  %v97 = vshrl.u32 %v96, 7
  %v98 = vsub.s32 3, %v97
  %v99 = vrot.slane %v80, %v98
  %v100 = vlaneseq
  %v101 = vshrl.u32 %v100, 7
  %v102 = vsub.s32 0, %v101
  %v103 = vrot.slane %v81, %v102
  %v104 = vlaneseq
  %v105 = vshrl.u32 %v104, 7
  %v106 = vsub.s32 1, %v105
  %v107 = vrot.slane %v81, %v106
  %v108 = vlaneseq
  %v109 = vshrl.u32 %v108, 7
  %v110 = vsub.s32 2, %v109
  %v111 = vrot.slane %v81, %v110
  %v112 = vlaneseq
  %v113 = vshrl.u32 %v112, 7
  %v114 = vsub.s32 3, %v113
  %v115 = vrot.slane %v81, %v114
  %v124 = vsel %vm67, %v87, 0.0
  %v125 = vsel %vm67, %v103, 0.0
  %v126 = vadd.f32 %v124, %v125
  %v127 = vsel %vm67, %v91, 0.0
  %v128 = vsel %vm67, %v107, 0.0
  %v129 = vadd.f32 %v127, %v128
  %v130 = vsel %vm67, %v95, 0.0
  %v131 = vsel %vm67, %v111, 0.0
  %v132 = vadd.f32 %v130, %v131
  %v133 = vsel %vm67, %v99, 0.0
  %v134 = vsel %vm67, %v115, 0.0
  %v135 = vadd.f32 %v133, %v134
  %v136 = vmul.f32 %v70, 0.03125
  %v137 = vmul.f32 %v73, 0.03125
  %v138 = vmul.f32 %v76, 0.03125
  %v139 = vmul.f32 %v79, 0.03125
  %v140 = vmul.f32 %v126, 0.03125
  %v141 = vmul.f32 %v129, 0.03125
  %v142 = vmul.f32 %v132, 0.03125
  %v143 = vmul.f32 %v135, 0.03125
  %v144 = vmul.f32 %v136, %v136
  %v145 = vmul.f32 %v137, %v137
  %v146 = vmul.f32 %v138, %v138
  %v147 = vmul.f32 %v139, %v139
  %v148 = vsub.f32 %v140, %v144
  %v149 = vsub.f32 %v141, %v145
  %v150 = vsub.f32 %v142, %v146
  %v151 = vsub.f32 %v143, %v147
  %v152 = vmax.f32 %v148, 0.0
  %v153 = vmax.f32 %v149, 0.0
  %v154 = vmax.f32 %v150, 0.0
  %v155 = vmax.f32 %v151, 0.0
  %v156 = vld [vmem:[%s3] sm:$0xf]
  %v157 = vadd.f32 %v152, 1e-05
  %v158 = vadd.f32 %v153, 1e-05
  %v159 = vadd.f32 %v154, 1e-05
  %v160 = vadd.f32 %v155, 1e-05
  %v161 = vrsqrt.pop %v157
  %v162 = vrsqrt.pop %v158
  %v163 = vrsqrt.pop %v159
  %v164 = vrsqrt.pop %v160
  %v169 = vcombine.low %v161, %v162
  %v170 = vcombine.low %v163, %v164
  %v172 = vunpack.c.l.s4 1966171168
  %v173 = vunpack.c.0.s8 %v172
  %v174 = vlaneseq
  %v175 = vshrl.u32 %v174, 7
  %v176 = vsub.s32 %v173, %v175
  %v177 = vrot.slane %v169, %v176
  %v179 = vunpack.c.l.s4 1966171168
  %v180 = vunpack.c.0.s8 %v179
  %v181 = vlaneseq
  %v182 = vshrl.u32 %v181, 7
  %v183 = vsub.s32 %v180, %v182
  %v184 = vrot.slane %v170, %v183
  %v185 = vcombine.low %v177, %v184
  %v187 = vunpack.c.l.s4 1966171168
  %v188 = vunpack.c.0.s8 %v187
  %v189 = vlaneseq
  %v190 = vshrl.u32 %v189, 7
  %v191 = vsub.s32 %v188, %v190
  %v192 = vrot.slane %v185, %v191
  %v194 = vmul.f32 %v156, %v192
  %v195 = vld [vmem:[%s4] sm:$0xf]
  %v197 = vlaneseq
  %v198 = vshrl.u32 %v197, 7
  %v199 = vsub.s32 0, %v198
  %v200 = vrot.slane %v194, %v199
  %v201 = vlaneseq
  %v202 = vshrl.u32 %v201, 7
  %v203 = vsub.s32 1, %v202
  %v204 = vrot.slane %v194, %v203
  %v205 = vlaneseq
  %v206 = vshrl.u32 %v205, 7
  %v207 = vsub.s32 2, %v206
  %v208 = vrot.slane %v194, %v207
  %v209 = vlaneseq
  %v210 = vshrl.u32 %v209, 7
  %v211 = vsub.s32 3, %v210
  %v212 = vrot.slane %v194, %v211
  %v217 = vmul.f32 %v136, %v200
  %v218 = vmul.f32 %v137, %v204
  %v219 = vmul.f32 %v138, %v208
  %v220 = vmul.f32 %v139, %v212
  %v225 = vcombine.low %v217, %v218
  %v226 = vcombine.low %v219, %v220
  %v228 = vunpack.c.l.s4 1966171168
  %v229 = vunpack.c.0.s8 %v228
  %v230 = vlaneseq
  %v231 = vshrl.u32 %v230, 7
  %v232 = vsub.s32 %v229, %v231
  %v233 = vrot.slane %v225, %v232
  %v235 = vunpack.c.l.s4 1966171168
  %v236 = vunpack.c.0.s8 %v235
  %v237 = vlaneseq
  %v238 = vshrl.u32 %v237, 7
  %v239 = vsub.s32 %v236, %v238
  %v240 = vrot.slane %v226, %v239
  %v241 = vcombine.low %v233, %v240
  %v243 = vunpack.c.l.s4 1966171168
  %v244 = vunpack.c.0.s8 %v243
  %v245 = vlaneseq
  %v246 = vshrl.u32 %v245, 7
  %v247 = vsub.s32 %v244, %v246
  %v248 = vrot.slane %v241, %v247
  %v250 = vsub.f32 %v195, %v248
  %v251 = vld [vmem:[%s0] sm:$0xff]
  %v252 = vld [vmem:[%s0 + $0x8] sm:$0xff]
  %v253 = vld [vmem:[%s0 + $0x10] sm:$0xff]
  %v254 = vld [vmem:[%s0 + $0x18] sm:$0xff]
  %v255 = vld [vmem:[%s0 + $0x20] sm:$0xff]
  %v256 = vld [vmem:[%s0 + $0x28] sm:$0xff]
  %v257 = vld [vmem:[%s0 + $0x30] sm:$0xff]
  %v258 = vld [vmem:[%s0 + $0x38] sm:$0xff]
  %v259 = vld [vmem:[%s0 + $0x40] sm:$0xff]
  %v260 = vld [vmem:[%s0 + $0x48] sm:$0xff]
  %v261 = vld [vmem:[%s0 + $0x50] sm:$0xff]
  %v262 = vld [vmem:[%s0 + $0x58] sm:$0xff]
  %v263 = vld [vmem:[%s0 + $0x60] sm:$0xff]
  %v264 = vld [vmem:[%s0 + $0x68] sm:$0xff]
  %v265 = vld [vmem:[%s0 + $0x70] sm:$0xff]
  %v266 = vld [vmem:[%s0 + $0x78] sm:$0xff]
  %v267 = vmul.f32 %v251, %v200
  %v268 = vmul.f32 %v252, %v204
  %v269 = vmul.f32 %v253, %v208
  %v270 = vmul.f32 %v254, %v212
  %v271 = vmul.f32 %v255, %v200
  %v272 = vmul.f32 %v256, %v204
  %v273 = vmul.f32 %v257, %v208
  %v274 = vmul.f32 %v258, %v212
  %v275 = vmul.f32 %v259, %v200
  %v276 = vmul.f32 %v260, %v204
  %v277 = vmul.f32 %v261, %v208
  %v278 = vmul.f32 %v262, %v212
  %v279 = vmul.f32 %v263, %v200
  %v280 = vmul.f32 %v264, %v204
  %v281 = vmul.f32 %v265, %v208
  %v282 = vmul.f32 %v266, %v212
  %v284 = vlaneseq
  %v285 = vshrl.u32 %v284, 7
  %v286 = vsub.s32 0, %v285
  %v287 = vrot.slane %v250, %v286
  %v288 = vlaneseq
  %v289 = vshrl.u32 %v288, 7
  %v290 = vsub.s32 1, %v289
  %v291 = vrot.slane %v250, %v290
  %v292 = vlaneseq
  %v293 = vshrl.u32 %v292, 7
  %v294 = vsub.s32 2, %v293
  %v295 = vrot.slane %v250, %v294
  %v296 = vlaneseq
  %v297 = vshrl.u32 %v296, 7
  %v298 = vsub.s32 3, %v297
  %v299 = vrot.slane %v250, %v298
  %v304 = vadd.f32 %v267, %v287
  %v305 = vadd.f32 %v268, %v291
  %v306 = vadd.f32 %v269, %v295
  %v307 = vadd.f32 %v270, %v299
  %v308 = vadd.f32 %v271, %v287
  %v309 = vadd.f32 %v272, %v291
  %v310 = vadd.f32 %v273, %v295
  %v311 = vadd.f32 %v274, %v299
  %v312 = vadd.f32 %v275, %v287
  %v313 = vadd.f32 %v276, %v291
  %v314 = vadd.f32 %v277, %v295
  %v315 = vadd.f32 %v278, %v299
  %v316 = vadd.f32 %v279, %v287
  %v317 = vadd.f32 %v280, %v291
  %v318 = vadd.f32 %v281, %v295
  %v319 = vadd.f32 %v282, %v299
  %vm320 = vcmp.gt.f32.partialorder %v304, 0.0
  %vm321 = vcmp.gt.f32.partialorder %v305, 0.0
  %vm322 = vcmp.gt.f32.partialorder %v306, 0.0
  %vm323 = vcmp.gt.f32.partialorder %v307, 0.0
  %vm324 = vcmp.gt.f32.partialorder %v308, 0.0
  %vm325 = vcmp.gt.f32.partialorder %v309, 0.0
  %vm326 = vcmp.gt.f32.partialorder %v310, 0.0
  %vm327 = vcmp.gt.f32.partialorder %v311, 0.0
  %vm328 = vcmp.gt.f32.partialorder %v312, 0.0
  %vm329 = vcmp.gt.f32.partialorder %v313, 0.0
  %vm330 = vcmp.gt.f32.partialorder %v314, 0.0
  %vm331 = vcmp.gt.f32.partialorder %v315, 0.0
  %vm332 = vcmp.gt.f32.partialorder %v316, 0.0
  %vm333 = vcmp.gt.f32.partialorder %v317, 0.0
  %vm334 = vcmp.gt.f32.partialorder %v318, 0.0
  %vm335 = vcmp.gt.f32.partialorder %v319, 0.0
  %v336 = vmul.f32 %v304, 0.2
  %v337 = vmul.f32 %v305, 0.2
  %v338 = vmul.f32 %v306, 0.2
  %v339 = vmul.f32 %v307, 0.2
  %v340 = vmul.f32 %v308, 0.2
  %v341 = vmul.f32 %v309, 0.2
  %v342 = vmul.f32 %v310, 0.2
  %v343 = vmul.f32 %v311, 0.2
  %v344 = vmul.f32 %v312, 0.2
  %v345 = vmul.f32 %v313, 0.2
  %v346 = vmul.f32 %v314, 0.2
  %v347 = vmul.f32 %v315, 0.2
  %v348 = vmul.f32 %v316, 0.2
  %v349 = vmul.f32 %v317, 0.2
  %v350 = vmul.f32 %v318, 0.2
  %v351 = vmul.f32 %v319, 0.2
  %v352 = vsel %vm320, %v304, %v336
  %v353 = vsel %vm321, %v305, %v337
  %v354 = vsel %vm322, %v306, %v338
  %v355 = vsel %vm323, %v307, %v339
  %v356 = vsel %vm324, %v308, %v340
  %v357 = vsel %vm325, %v309, %v341
  %v358 = vsel %vm326, %v310, %v342
  %v359 = vsel %vm327, %v311, %v343
  %v360 = vsel %vm328, %v312, %v344
  %v361 = vsel %vm329, %v313, %v345
  %v362 = vsel %vm330, %v314, %v346
  %v363 = vsel %vm331, %v315, %v347
  %v364 = vsel %vm332, %v316, %v348
  %v365 = vsel %vm333, %v317, %v349
  %v366 = vsel %vm334, %v318, %v350
  %v367 = vsel %vm335, %v319, %v351
  %v368 = vld [vmem:[%s5] sm:$0xff]
  %v369 = vld [vmem:[%s5 + $0x8] sm:$0xff]
  %v370 = vld [vmem:[%s5 + $0x10] sm:$0xff]
  %v371 = vld [vmem:[%s5 + $0x18] sm:$0xff]
  %v372 = vld [vmem:[%s5 + $0x20] sm:$0xff]
  %v373 = vld [vmem:[%s5 + $0x28] sm:$0xff]
  %v374 = vld [vmem:[%s5 + $0x30] sm:$0xff]
  %v375 = vld [vmem:[%s5 + $0x38] sm:$0xff]
  %v376 = vmul.f32 %v352, %v368
  %v377 = vmul.f32 %v353, %v369
  %v378 = vmul.f32 %v354, %v370
  %v379 = vmul.f32 %v355, %v371
  %v380 = vmul.f32 %v356, %v372
  %v381 = vmul.f32 %v357, %v373
  %v382 = vmul.f32 %v358, %v374
  %v383 = vmul.f32 %v359, %v375
  %v384 = vmul.f32 %v360, %v368
  %v385 = vmul.f32 %v361, %v369
  %v386 = vmul.f32 %v362, %v370
  %v387 = vmul.f32 %v363, %v371
  %v388 = vmul.f32 %v364, %v372
  %v389 = vmul.f32 %v365, %v373
  %v390 = vmul.f32 %v366, %v374
  %v391 = vmul.f32 %v367, %v375
  %v392 = vadd.f32 %v376, %v377
  %v393 = vadd.f32 %v392, %v378
  %v394 = vadd.f32 %v393, %v379
  %395 = vadd.xlane.f32.xlu0 %v394
  %v396 = vpop.xlane.xlu0 %395
  %v397 = vadd.f32 %v380, %v381
  %v398 = vadd.f32 %v397, %v382
  %v399 = vadd.f32 %v398, %v383
  %400 = vadd.xlane.f32.xlu0 %v399
  %v401 = vpop.xlane.xlu0 %400
  %v402 = vadd.f32 %v384, %v385
  %v403 = vadd.f32 %v402, %v386
  %v404 = vadd.f32 %v403, %v387
  %405 = vadd.xlane.f32.xlu0 %v404
  %v406 = vpop.xlane.xlu0 %405
  %v407 = vadd.f32 %v388, %v389
  %v408 = vadd.f32 %v407, %v390
  %v409 = vadd.f32 %v408, %v391
  %410 = vadd.xlane.f32.xlu0 %v409
  %v411 = vpop.xlane.xlu0 %410
  %v416 = vlaneseq
  %v417 = vand.u32 %v416, 127
  %v418 = vlaneseq
  %v419 = vshrl.u32 %v418, 7
  %v420 = vsub.s32 %v417, %v419
  %v421 = vrot.slane %v396, %v420
  %v422 = vadd.s32 %v417, 4294967288
  %v423 = vlaneseq
  %v424 = vshrl.u32 %v423, 7
  %v425 = vsub.s32 %v422, %v424
  %v426 = vrot.slane %v401, %v425
  %vm427 = vcmask 130112
  %v428 = vsel %vm427, %v426, %v421
  %v429 = vlaneseq
  %v430 = vshrl.u32 %v429, 7
  %v431 = vsub.s32 %v417, %v430
  %v432 = vrot.slane %v406, %v431
  %v433 = vlaneseq
  %v434 = vshrl.u32 %v433, 7
  %v435 = vsub.s32 %v422, %v434
  %v436 = vrot.slane %v411, %v435
  %v437 = vsel %vm427, %v436, %v432
  %vm438 = vcmask 1041409
  %v439 = vsel %vm438, %v437, %v428
  %vm441 = vcmask 123904
  %v442 = vsel %vm441, %v439, 0.0
  %443 = vadd.xlane.f32.xlu0 %v442
  %v444 = vpop.xlane.xlu0 %443
  %v445 = vand.u32 2147483647, %v444
  %v446 = vsub.f32 0.0, %v445
  %v447 = vmul.f32 %v446, 1.442695
  %v448 = vpow.pop %v447
  %v449 = vadd.f32 %v448, 1.0
  %v450 = vrcp.pop %v449
  %v451 = vmul.f32 1.0, %v450
  %vm452 = vcmp.ge.f32.partialorder %v444, 0.0
  %v453 = vsub.f32 1.0, %v451
  %v454 = vsel %vm452, %v451, %v453
  %vm455 = vcmask 1024
  %456 = vst.msk [vmem:[%s6] sm:$0x3] %vm455, %v454
  // Predicated region
  $region26: #{discriminator_forward.9} parent=0 // pred_check
    _
  $region27: #{discriminator_forward.9} parent=0 // pred_check_branch
    %458 = sbr.rel (0) target = $region29
  $region28: #{discriminator_forward.9} parent=0 // pred_region
    _
  $region29: #{discriminator_forward.9} parent=0 // pred_fallthru
    _
  // Predicated region
  $region30: #{discriminator_forward.9} parent=0 // pred_check
    _
  $region31: #{discriminator_forward.9} parent=0 // pred_check_branch
    %460 = sbr.rel (0) target = $region33
  $region32: #{discriminator_forward.9} parent=0 // pred_region
    _
  $region33: #{discriminator_forward.9} parent=0 // pred_fallthru
    _

// kernel: discriminator_forward.8
$region0: #{discriminator_forward.8}
  #allocation0 [shape = 'u32[]', space=smem, size = 0x4, offset = 0x4, fixed_abs, tag = 'smem constant byte address 0x4 - core index']
  #allocation1 [shape = 'u32[144,128]{1,0:T(1,128)}', space=vmem, size = 0x12000, scoped, tag = 'internal scratch']
  %s0 = inlined_call_operand.vmem [shape: bf16[32,4096], index: 0, kind: input, shape index: {}]
  %s1 = inlined_call_operand.vmem [shape: bf16[4096,512], index: 1, kind: input, shape index: {}]
  %s2 = inlined_call_operand.vmem [shape: f32[32,512], index: 2, kind: output, shape index: {0}]
  %s3 = inlined_call_operand.vmem [shape: f32[2,1,512], index: 3, kind: output, shape index: {1}]
  %s4 = inlined_call_operand.vmem [shape: f32[2,1,512], index: 4, kind: output, shape index: {2}]
  %5 = xla_tuple %s2, %s3, %s4
  %s6 = sld [smem:[#allocation0]]
  $region57: #{discriminator_forward.8} parent=0
    _
  %s8 = ssub.s32 1, %s6
  %s9 = scalar_select 0, %s8, %s6
  loop: start=0, step=1, limit=4
  $region2: #{discriminator_forward.8} parent=0 // loop_pre_header
    _
  $region3: #{discriminator_forward.8} parent=0 // loop_header
    %s11 = sphi 0, %s15
    %p12 = scmp.ge.s32.totalorder %s11, 4
    %s21 = sphi 0, %s23
    %s24 = sphi 0, %s21
    %s25 = sphi 0, %s24
    %s41 = sphi 0, %s25
    %s45 = sphi 0, %s45
    %s47 = sphi 0, %s45
    %s48 = sphi 0, %s47
    %s62 = sphi 0, %s48
    %s68 = sphi 0, %s70
    %s71 = sphi 0, %s68
    %s72 = sphi 0, %s71
    %s88 = sphi 0, %s72
    %s94 = sphi 0, %s96
    %s97 = sphi 0, %s94
    %s98 = sphi 0, %s97
    %s114 = sphi 0, %s98
    %s120 = sphi 0, %s122
    %s123 = sphi 0, %s120
    %s124 = sphi 0, %s123
    %s140 = sphi 0, %s124
  $region4: #{discriminator_forward.8} parent=0 // loop_header_branch
    %14 = sbr.rel (%p12) target = $region8
  $region5: #{discriminator_forward.8} parent=0 // loop_body
    %s16 = ssub.s32 %s11, 1
    %s17 = ssub.s32 %s11, 2
    %s18 = sadd.s32 %s11, 1
    %s19 = ssub.s32 %s11, %s18
    %p20 = scmp.eq.s32.totalorder %s19, 0
    %s22 = sadd.s32 %s21, 1
    %s23 = scalar_select %p20, %s21, %s22
    %p26 = pneg %p20
    %p27 = scmp.eq.s32.totalorder %s11, 1
    %p28 = por %p26, %p27
    %p29 = scmp.ne.s32.totalorder %s21, %s24
    %p30 = scmp.eq.s32.totalorder %s11, 0
    %p31 = por %p29, %p30
    %p32 = scmp.ne.s32.totalorder %s21, %s24
    %p33 = scmp.eq.s32.totalorder %s16, 1
    %p34 = por %p32, %p33
    %p35 = scmp.ne.s32.totalorder %s24, %s25
    %p36 = scmp.eq.s32.totalorder %s16, 0
    %p37 = por %p35, %p36
    %p38 = scmp.ne.s32.totalorder %s24, %s25
    %p39 = scmp.eq.s32.totalorder %s17, 1
    %p40 = por %p38, %p39
    %p42 = scmp.ne.s32.totalorder %s25, %s41
    %p43 = scmp.eq.s32.totalorder %s17, 0
    %p44 = por %p42, %p43
    %s46 = sadd.s32 %s45, 1
    %p49 = scmp.eq.s32.totalorder %s11, 1
    %p50 = scmp.ne.s32.totalorder %s45, %s47
    %p51 = scmp.eq.s32.totalorder %s11, 0
    %p52 = por %p50, %p51
    %p53 = scmp.ne.s32.totalorder %s45, %s47
    %p54 = scmp.eq.s32.totalorder %s16, 1
    %p55 = por %p53, %p54
    %p56 = scmp.ne.s32.totalorder %s47, %s48
    %p57 = scmp.eq.s32.totalorder %s16, 0
    %p58 = por %p56, %p57
    %p59 = scmp.ne.s32.totalorder %s47, %s48
    %p60 = scmp.eq.s32.totalorder %s17, 1
    %p61 = por %p59, %p60
    %p63 = scmp.ne.s32.totalorder %s48, %s62
    %p64 = scmp.eq.s32.totalorder %s17, 0
    %p65 = por %p63, %p64
    %s66 = ssub.s32 %s11, %s18
    %p67 = scmp.eq.s32.totalorder %s66, 0
    %s69 = sadd.s32 %s68, 1
    %s70 = scalar_select %p67, %s68, %s69
    %p73 = pneg %p67
    %p74 = scmp.eq.s32.totalorder %s11, 1
    %p75 = por %p73, %p74
    %p76 = scmp.ne.s32.totalorder %s68, %s71
    %p77 = scmp.eq.s32.totalorder %s11, 0
    %p78 = por %p76, %p77
    %p79 = scmp.ne.s32.totalorder %s68, %s71
    %p80 = scmp.eq.s32.totalorder %s16, 1
    %p81 = por %p79, %p80
    %p82 = scmp.ne.s32.totalorder %s71, %s72
    %p83 = scmp.eq.s32.totalorder %s16, 0
    %p84 = por %p82, %p83
    %p85 = scmp.ne.s32.totalorder %s71, %s72
    %p86 = scmp.eq.s32.totalorder %s17, 1
    %p87 = por %p85, %p86
    %p89 = scmp.ne.s32.totalorder %s72, %s88
    %p90 = scmp.eq.s32.totalorder %s17, 0
    %p91 = por %p89, %p90
    %s92 = ssub.s32 %s11, %s18
    %p93 = scmp.eq.s32.totalorder %s92, 0
    %s95 = sadd.s32 %s94, 1
    %s96 = scalar_select %p93, %s94, %s95
    %p99 = pneg %p93
    %p100 = scmp.eq.s32.totalorder %s11, 1
    %p101 = por %p99, %p100
    %p102 = scmp.ne.s32.totalorder %s94, %s97
    %p103 = scmp.eq.s32.totalorder %s11, 0
    %p104 = por %p102, %p103
    %p105 = scmp.ne.s32.totalorder %s94, %s97
    %p106 = scmp.eq.s32.totalorder %s16, 1
    %p107 = por %p105, %p106
    %p108 = scmp.ne.s32.totalorder %s97, %s98
    %p109 = scmp.eq.s32.totalorder %s16, 0
    %p110 = por %p108, %p109
    %p111 = scmp.ne.s32.totalorder %s97, %s98
    %p112 = scmp.eq.s32.totalorder %s17, 1
    %p113 = por %p111, %p112
    %p115 = scmp.ne.s32.totalorder %s98, %s114
    %p116 = scmp.eq.s32.totalorder %s17, 0
    %p117 = por %p115, %p116
    %s118 = ssub.s32 %s11, %s18
    %p119 = scmp.eq.s32.totalorder %s118, 0
    %s121 = sadd.s32 %s120, 1
    %s122 = scalar_select %p119, %s120, %s121
    %p125 = pneg %p119
    %p126 = scmp.eq.s32.totalorder %s11, 1
    %p127 = por %p125, %p126
    %p128 = scmp.ne.s32.totalorder %s120, %s123
    %p129 = scmp.eq.s32.totalorder %s11, 0
    %p130 = por %p128, %p129
    %p131 = scmp.ne.s32.totalorder %s120, %s123
    %p132 = scmp.eq.s32.totalorder %s16, 1
    %p133 = por %p131, %p132
    %p134 = scmp.ne.s32.totalorder %s123, %s124
    %p135 = scmp.eq.s32.totalorder %s16, 0
    %p136 = por %p134, %p135
    %p137 = scmp.ne.s32.totalorder %s123, %s124
    %p138 = scmp.eq.s32.totalorder %s17, 1
    %p139 = por %p137, %p138
    %p141 = scmp.ne.s32.totalorder %s124, %s140
    %p142 = scmp.eq.s32.totalorder %s17, 0
    %p143 = por %p141, %p142
    %p144 = scmp.le.s32.totalorder 1, %s11
    %p145 = scmp.lt.s32.totalorder %s11, 3
    %p146 = pnand %p144, %p145
    %p147 = pneg %p146
    // Predicated region
    $region9: #{discriminator_forward.8} parent=5 // pred_check
      _
    $region10: #{discriminator_forward.8} parent=5 // pred_check_branch
      %149 = sbr.rel (%p146) target = $region12
    $region11: #{discriminator_forward.8} parent=5 // pred_region
      %s150 = ssub.s32 %s11, 1
      // Predicated region
      $region13: #{discriminator_forward.8} parent=11 // pred_check
        %p151 = pneg %p58
      $region14: #{discriminator_forward.8} parent=11 // pred_check_branch
        %153 = sbr.rel (%p151) target = $region16
      $region15: #{discriminator_forward.8} parent=11 // pred_region
        _
      $region16: #{discriminator_forward.8} parent=11 // pred_fallthru
        _
    $region12: #{discriminator_forward.8} parent=5 // pred_fallthru
      _
    %p154 = scmp.lt.s32.totalorder %s11, 2
    // Predicated region
    $region17: #{discriminator_forward.8} parent=5 // pred_check
      %p155 = pneg %p154
    $region18: #{discriminator_forward.8} parent=5 // pred_check_branch
      %157 = sbr.rel (%p155) target = $region20
    $region19: #{discriminator_forward.8} parent=5 // pred_region
      // Predicated region
      $region21: #{discriminator_forward.8} parent=19 // pred_check
        %p158 = pneg %p31
      $region22: #{discriminator_forward.8} parent=19 // pred_check_branch
        %160 = sbr.rel (%p158) target = $region24
      $region23: #{discriminator_forward.8} parent=19 // pred_region
        %s161 = smul.u32 2, %s11
        %p162 = scmp.lt.s32.totalorder %s161, 3
        %s163 = scalar_select %p162, %s161, 3
        %s164 = smul.addr %s163, 32
        %s165 = smul.addr %s164, 4
        %s166 = scalar_lea.vmem %s0, %s165
        %s167 = smul.u32 2, %s11
      $region24: #{discriminator_forward.8} parent=19 // pred_fallthru
        _
    $region20: #{discriminator_forward.8} parent=5 // pred_fallthru
      _
    %p168 = scmp.le.s32.totalorder 1, %s11
    %p169 = scmp.lt.s32.totalorder %s11, 3
    %p170 = pnand %p168, %p169
    %p171 = pneg %p170
    // Predicated region
    $region25: #{discriminator_forward.8} parent=5 // pred_check
      _
    $region26: #{discriminator_forward.8} parent=5 // pred_check_branch
      %173 = sbr.rel (%p170) target = $region28
    $region27: #{discriminator_forward.8} parent=5 // pred_region
      %s174 = ssub.s32 %s11, 1
      %s175 = smul.u32 2, %s16
      %p176 = scmp.lt.s32.totalorder %s175, 3
      %s177 = scalar_select %p176, %s175, 3
      %s178 = smul.addr %s177, 32
      %s179 = smul.addr %s178, 4
      %s180 = scalar_lea.vmem %s0, %s179
      %p181 = pneg %p37
      %p182 = pneg %p34
      %p183 = pneg %p58
      %p184 = pneg %p55
      %p185 = pneg %p84
      %p186 = pneg %p81
      %s187 = smul.u32 2, %s16
      %p188 = scmp.lt.s32.totalorder %s187, 3
      %s189 = scalar_select %p188, %s187, 3
      %s190 = smul.addr %s189, 4
      %s191 = smul.addr %s190, 8
      %s192 = scalar_lea.vmem %s2, %s191
      %p193 = pneg %p110
      %p194 = pneg %p107
      %p195 = scmp.lt.s32.totalorder %s16, 1
      %s196 = scalar_select %p195, %s16, 1
      %s197 = smul.addr %s196, 4
      %s198 = scalar_lea.vmem %s3, %s197
      %p199 = pneg %p136
      %p200 = pneg %p133
      %p201 = scmp.lt.s32.totalorder %s16, 1
      %s202 = scalar_select %p201, %s16, 1
      %s203 = smul.addr %s202, 4
      %s204 = scalar_lea.vmem %s4, %s203
      %s205 = smul.u32 2, %s16
      %p206 = scmp.lt.s32.totalorder %s205, 3
      %s207 = scalar_select %p206, %s205, 3
      %s208 = smul.addr %s207, 32
      %s209 = smul.addr %s208, 4
      %s210 = scalar_lea.vmem %s0, %s209
      %s211 = smul.u32 2, %s16
      %s212 = smul.u32 2, %s16
      %p213 = scmp.lt.s32.totalorder %s212, 3
      %s214 = scalar_select %p213, %s212, 3
      %s215 = smul.addr %s214, 4
      %s216 = smul.addr %s215, 8
      %s217 = scalar_lea.vmem %s2, %s216
      %s218 = smul.u32 2, %s16
      %p219 = scmp.lt.s32.totalorder %s16, 1
      %s220 = scalar_select %p219, %s16, 1
      %s221 = smul.addr %s220, 4
      %s222 = scalar_lea.vmem %s3, %s221
      %p223 = scmp.lt.s32.totalorder %s16, 1
      %s224 = scalar_select %p223, %s16, 1
      %s225 = smul.addr %s224, 4
      %s226 = scalar_lea.vmem %s4, %s225
      %v227 = vld [vmem:[%s210] sm:$0xff]
      %v228 = vld [vmem:[%s210 + $0x8] sm:$0xff]
      %v229 = vld [vmem:[%s210 + $0x10] sm:$0xff]
      %v230 = vld [vmem:[%s210 + $0x18] sm:$0xff]
      %v231 = vld [vmem:[%s210 + $0x20] sm:$0xff]
      %v232 = vld [vmem:[%s210 + $0x28] sm:$0xff]
      %v233 = vld [vmem:[%s210 + $0x30] sm:$0xff]
      %v234 = vld [vmem:[%s210 + $0x38] sm:$0xff]
      %v235 = vld [vmem:[%s210 + $0x40] sm:$0xff]
      %v236 = vld [vmem:[%s210 + $0x48] sm:$0xff]
      %v237 = vld [vmem:[%s210 + $0x50] sm:$0xff]
      %v238 = vld [vmem:[%s210 + $0x58] sm:$0xff]
      %v239 = vld [vmem:[%s210 + $0x60] sm:$0xff]
      %v240 = vld [vmem:[%s210 + $0x68] sm:$0xff]
      %v241 = vld [vmem:[%s210 + $0x70] sm:$0xff]
      %v242 = vld [vmem:[%s210 + $0x78] sm:$0xff]
      %v243 = vld [vmem:[%s210 + $0x80] sm:$0xff]
      %v244 = vld [vmem:[%s210 + $0x88] sm:$0xff]
      %v245 = vld [vmem:[%s210 + $0x90] sm:$0xff]
      %v246 = vld [vmem:[%s210 + $0x98] sm:$0xff]
      %v247 = vld [vmem:[%s210 + $0xa0] sm:$0xff]
      %v248 = vld [vmem:[%s210 + $0xa8] sm:$0xff]
      %v249 = vld [vmem:[%s210 + $0xb0] sm:$0xff]
      %v250 = vld [vmem:[%s210 + $0xb8] sm:$0xff]
      %v251 = vld [vmem:[%s210 + $0xc0] sm:$0xff]
      %v252 = vld [vmem:[%s210 + $0xc8] sm:$0xff]
      %v253 = vld [vmem:[%s210 + $0xd0] sm:$0xff]
      %v254 = vld [vmem:[%s210 + $0xd8] sm:$0xff]
      %v255 = vld [vmem:[%s210 + $0xe0] sm:$0xff]
      %v256 = vld [vmem:[%s210 + $0xe8] sm:$0xff]
      %v257 = vld [vmem:[%s210 + $0xf0] sm:$0xff]
      %v258 = vld [vmem:[%s210 + $0xf8] sm:$0xff]
      %v259 = vld [vmem:[%s1] sm:$0xff]
      %v260 = vld [vmem:[%s1 + $0x8] sm:$0xff]
      %v261 = vld [vmem:[%s1 + $0x10] sm:$0xff]
      %v262 = vld [vmem:[%s1 + $0x18] sm:$0xff]
      %v263 = vld [vmem:[%s1 + $0x20] sm:$0xff]
      %v264 = vld [vmem:[%s1 + $0x28] sm:$0xff]
      %v265 = vld [vmem:[%s1 + $0x30] sm:$0xff]
      %v266 = vld [vmem:[%s1 + $0x38] sm:$0xff]
      %v267 = vld [vmem:[%s1 + $0x40] sm:$0xff]
      %v268 = vld [vmem:[%s1 + $0x48] sm:$0xff]
      %v269 = vld [vmem:[%s1 + $0x50] sm:$0xff]
      %v270 = vld [vmem:[%s1 + $0x58] sm:$0xff]
      %v271 = vld [vmem:[%s1 + $0x60] sm:$0xff]
      %v272 = vld [vmem:[%s1 + $0x68] sm:$0xff]
      %v273 = vld [vmem:[%s1 + $0x70] sm:$0xff]
      %v274 = vld [vmem:[%s1 + $0x78] sm:$0xff]
      %v275 = vld [vmem:[%s1 + $0x80] sm:$0xff]
      %v276 = vld [vmem:[%s1 + $0x88] sm:$0xff]
      %v277 = vld [vmem:[%s1 + $0x90] sm:$0xff]
      %v278 = vld [vmem:[%s1 + $0x98] sm:$0xff]
      %v279 = vld [vmem:[%s1 + $0xa0] sm:$0xff]
      %v280 = vld [vmem:[%s1 + $0xa8] sm:$0xff]
      %v281 = vld [vmem:[%s1 + $0xb0] sm:$0xff]
      %v282 = vld [vmem:[%s1 + $0xb8] sm:$0xff]
      %v283 = vld [vmem:[%s1 + $0xc0] sm:$0xff]
      %v284 = vld [vmem:[%s1 + $0xc8] sm:$0xff]
      %v285 = vld [vmem:[%s1 + $0xd0] sm:$0xff]
      %v286 = vld [vmem:[%s1 + $0xd8] sm:$0xff]
      %v287 = vld [vmem:[%s1 + $0xe0] sm:$0xff]
      %v288 = vld [vmem:[%s1 + $0xe8] sm:$0xff]
      %v289 = vld [vmem:[%s1 + $0xf0] sm:$0xff]
      %v290 = vld [vmem:[%s1 + $0xf8] sm:$0xff]
      %v291 = vld [vmem:[%s1 + $0x100] sm:$0xff]
      %v292 = vld [vmem:[%s1 + $0x108] sm:$0xff]
      %v293 = vld [vmem:[%s1 + $0x110] sm:$0xff]
      %v294 = vld [vmem:[%s1 + $0x118] sm:$0xff]
      %v295 = vld [vmem:[%s1 + $0x120] sm:$0xff]
      %v296 = vld [vmem:[%s1 + $0x128] sm:$0xff]
      %v297 = vld [vmem:[%s1 + $0x130] sm:$0xff]
      %v298 = vld [vmem:[%s1 + $0x138] sm:$0xff]
      %v299 = vld [vmem:[%s1 + $0x140] sm:$0xff]
      %v300 = vld [vmem:[%s1 + $0x148] sm:$0xff]
      %v301 = vld [vmem:[%s1 + $0x150] sm:$0xff]
      %v302 = vld [vmem:[%s1 + $0x158] sm:$0xff]
      %v303 = vld [vmem:[%s1 + $0x160] sm:$0xff]
      %v304 = vld [vmem:[%s1 + $0x168] sm:$0xff]
      %v305 = vld [vmem:[%s1 + $0x170] sm:$0xff]
      %v306 = vld [vmem:[%s1 + $0x178] sm:$0xff]
      %v307 = vld [vmem:[%s1 + $0x180] sm:$0xff]
      %v308 = vld [vmem:[%s1 + $0x188] sm:$0xff]
      %v309 = vld [vmem:[%s1 + $0x190] sm:$0xff]
      %v310 = vld [vmem:[%s1 + $0x198] sm:$0xff]
      %v311 = vld [vmem:[%s1 + $0x1a0] sm:$0xff]
      %v312 = vld [vmem:[%s1 + $0x1a8] sm:$0xff]
      %v313 = vld [vmem:[%s1 + $0x1b0] sm:$0xff]
      %v314 = vld [vmem:[%s1 + $0x1b8] sm:$0xff]
      %v315 = vld [vmem:[%s1 + $0x1c0] sm:$0xff]
      %v316 = vld [vmem:[%s1 + $0x1c8] sm:$0xff]
      %v317 = vld [vmem:[%s1 + $0x1d0] sm:$0xff]
      %v318 = vld [vmem:[%s1 + $0x1d8] sm:$0xff]
      %v319 = vld [vmem:[%s1 + $0x1e0] sm:$0xff]
      %v320 = vld [vmem:[%s1 + $0x1e8] sm:$0xff]
      %v321 = vld [vmem:[%s1 + $0x1f0] sm:$0xff]
      %v322 = vld [vmem:[%s1 + $0x1f8] sm:$0xff]
      %v323 = vld [vmem:[%s1 + $0x200] sm:$0xff]
      %v324 = vld [vmem:[%s1 + $0x208] sm:$0xff]
      %v325 = vld [vmem:[%s1 + $0x210] sm:$0xff]
      %v326 = vld [vmem:[%s1 + $0x218] sm:$0xff]
      %v327 = vld [vmem:[%s1 + $0x220] sm:$0xff]
      %v328 = vld [vmem:[%s1 + $0x228] sm:$0xff]
      %v329 = vld [vmem:[%s1 + $0x230] sm:$0xff]
      %v330 = vld [vmem:[%s1 + $0x238] sm:$0xff]
      %v331 = vld [vmem:[%s1 + $0x240] sm:$0xff]
      %v332 = vld [vmem:[%s1 + $0x248] sm:$0xff]
      %v333 = vld [vmem:[%s1 + $0x250] sm:$0xff]
      %v334 = vld [vmem:[%s1 + $0x258] sm:$0xff]
      %v335 = vld [vmem:[%s1 + $0x260] sm:$0xff]
      %v336 = vld [vmem:[%s1 + $0x268] sm:$0xff]
      %v337 = vld [vmem:[%s1 + $0x270] sm:$0xff]
      %v338 = vld [vmem:[%s1 + $0x278] sm:$0xff]
      %v339 = vld [vmem:[%s1 + $0x280] sm:$0xff]
      %v340 = vld [vmem:[%s1 + $0x288] sm:$0xff]
      %v341 = vld [vmem:[%s1 + $0x290] sm:$0xff]
      %v342 = vld [vmem:[%s1 + $0x298] sm:$0xff]
      %v343 = vld [vmem:[%s1 + $0x2a0] sm:$0xff]
      %v344 = vld [vmem:[%s1 + $0x2a8] sm:$0xff]
      %v345 = vld [vmem:[%s1 + $0x2b0] sm:$0xff]
      %v346 = vld [vmem:[%s1 + $0x2b8] sm:$0xff]
      %v347 = vld [vmem:[%s1 + $0x2c0] sm:$0xff]
      %v348 = vld [vmem:[%s1 + $0x2c8] sm:$0xff]
      %v349 = vld [vmem:[%s1 + $0x2d0] sm:$0xff]
      %v350 = vld [vmem:[%s1 + $0x2d8] sm:$0xff]
      %v351 = vld [vmem:[%s1 + $0x2e0] sm:$0xff]
      %v352 = vld [vmem:[%s1 + $0x2e8] sm:$0xff]
      %v353 = vld [vmem:[%s1 + $0x2f0] sm:$0xff]
      %v354 = vld [vmem:[%s1 + $0x2f8] sm:$0xff]
      %v355 = vld [vmem:[%s1 + $0x300] sm:$0xff]
      %v356 = vld [vmem:[%s1 + $0x308] sm:$0xff]
      %v357 = vld [vmem:[%s1 + $0x310] sm:$0xff]
      %v358 = vld [vmem:[%s1 + $0x318] sm:$0xff]
      %v359 = vld [vmem:[%s1 + $0x320] sm:$0xff]
      %v360 = vld [vmem:[%s1 + $0x328] sm:$0xff]
      %v361 = vld [vmem:[%s1 + $0x330] sm:$0xff]
      %v362 = vld [vmem:[%s1 + $0x338] sm:$0xff]
      %v363 = vld [vmem:[%s1 + $0x340] sm:$0xff]
      %v364 = vld [vmem:[%s1 + $0x348] sm:$0xff]
      %v365 = vld [vmem:[%s1 + $0x350] sm:$0xff]
      %v366 = vld [vmem:[%s1 + $0x358] sm:$0xff]
      %v367 = vld [vmem:[%s1 + $0x360] sm:$0xff]
      %v368 = vld [vmem:[%s1 + $0x368] sm:$0xff]
      %v369 = vld [vmem:[%s1 + $0x370] sm:$0xff]
      %v370 = vld [vmem:[%s1 + $0x378] sm:$0xff]
      %v371 = vld [vmem:[%s1 + $0x380] sm:$0xff]
      %v372 = vld [vmem:[%s1 + $0x388] sm:$0xff]
      %v373 = vld [vmem:[%s1 + $0x390] sm:$0xff]
      %v374 = vld [vmem:[%s1 + $0x398] sm:$0xff]
      %v375 = vld [vmem:[%s1 + $0x3a0] sm:$0xff]
      %v376 = vld [vmem:[%s1 + $0x3a8] sm:$0xff]
      %v377 = vld [vmem:[%s1 + $0x3b0] sm:$0xff]
      %v378 = vld [vmem:[%s1 + $0x3b8] sm:$0xff]
      %v379 = vld [vmem:[%s1 + $0x3c0] sm:$0xff]
      %v380 = vld [vmem:[%s1 + $0x3c8] sm:$0xff]
      %v381 = vld [vmem:[%s1 + $0x3d0] sm:$0xff]
      %v382 = vld [vmem:[%s1 + $0x3d8] sm:$0xff]
      %v383 = vld [vmem:[%s1 + $0x3e0] sm:$0xff]
      %v384 = vld [vmem:[%s1 + $0x3e8] sm:$0xff]
      %v385 = vld [vmem:[%s1 + $0x3f0] sm:$0xff]
      %v386 = vld [vmem:[%s1 + $0x3f8] sm:$0xff]
      %v387 = vld [vmem:[%s1 + $0x400] sm:$0xff]
      %v388 = vld [vmem:[%s1 + $0x408] sm:$0xff]
      %v389 = vld [vmem:[%s1 + $0x410] sm:$0xff]
      %v390 = vld [vmem:[%s1 + $0x418] sm:$0xff]
      %v391 = vld [vmem:[%s1 + $0x420] sm:$0xff]
      %v392 = vld [vmem:[%s1 + $0x428] sm:$0xff]
      %v393 = vld [vmem:[%s1 + $0x430] sm:$0xff]
      %v394 = vld [vmem:[%s1 + $0x438] sm:$0xff]
      %v395 = vld [vmem:[%s1 + $0x440] sm:$0xff]
      %v396 = vld [vmem:[%s1 + $0x448] sm:$0xff]
      %v397 = vld [vmem:[%s1 + $0x450] sm:$0xff]
      %v398 = vld [vmem:[%s1 + $0x458] sm:$0xff]
      %v399 = vld [vmem:[%s1 + $0x460] sm:$0xff]
      %v400 = vld [vmem:[%s1 + $0x468] sm:$0xff]
      %v401 = vld [vmem:[%s1 + $0x470] sm:$0xff]
      %v402 = vld [vmem:[%s1 + $0x478] sm:$0xff]
      %v403 = vld [vmem:[%s1 + $0x480] sm:$0xff]
      %v404 = vld [vmem:[%s1 + $0x488] sm:$0xff]
      %v405 = vld [vmem:[%s1 + $0x490] sm:$0xff]
      %v406 = vld [vmem:[%s1 + $0x498] sm:$0xff]
      %v407 = vld [vmem:[%s1 + $0x4a0] sm:$0xff]
      %v408 = vld [vmem:[%s1 + $0x4a8] sm:$0xff]
      %v409 = vld [vmem:[%s1 + $0x4b0] sm:$0xff]
      %v410 = vld [vmem:[%s1 + $0x4b8] sm:$0xff]
      %v411 = vld [vmem:[%s1 + $0x4c0] sm:$0xff]
      %v412 = vld [vmem:[%s1 + $0x4c8] sm:$0xff]
      %v413 = vld [vmem:[%s1 + $0x4d0] sm:$0xff]
      %v414 = vld [vmem:[%s1 + $0x4d8] sm:$0xff]
      %v415 = vld [vmem:[%s1 + $0x4e0] sm:$0xff]
      %v416 = vld [vmem:[%s1 + $0x4e8] sm:$0xff]
      %v417 = vld [vmem:[%s1 + $0x4f0] sm:$0xff]
      %v418 = vld [vmem:[%s1 + $0x4f8] sm:$0xff]
      %v419 = vld [vmem:[%s1 + $0x500] sm:$0xff]
      %v420 = vld [vmem:[%s1 + $0x508] sm:$0xff]
      %v421 = vld [vmem:[%s1 + $0x510] sm:$0xff]
      %v422 = vld [vmem:[%s1 + $0x518] sm:$0xff]
      %v423 = vld [vmem:[%s1 + $0x520] sm:$0xff]
      %v424 = vld [vmem:[%s1 + $0x528] sm:$0xff]
      %v425 = vld [vmem:[%s1 + $0x530] sm:$0xff]
      %v426 = vld [vmem:[%s1 + $0x538] sm:$0xff]
      %v427 = vld [vmem:[%s1 + $0x540] sm:$0xff]
      %v428 = vld [vmem:[%s1 + $0x548] sm:$0xff]
      %v429 = vld [vmem:[%s1 + $0x550] sm:$0xff]
      %v430 = vld [vmem:[%s1 + $0x558] sm:$0xff]
      %v431 = vld [vmem:[%s1 + $0x560] sm:$0xff]
      %v432 = vld [vmem:[%s1 + $0x568] sm:$0xff]
      %v433 = vld [vmem:[%s1 + $0x570] sm:$0xff]
      %v434 = vld [vmem:[%s1 + $0x578] sm:$0xff]
      %v435 = vld [vmem:[%s1 + $0x580] sm:$0xff]
      %v436 = vld [vmem:[%s1 + $0x588] sm:$0xff]
      %v437 = vld [vmem:[%s1 + $0x590] sm:$0xff]
      %v438 = vld [vmem:[%s1 + $0x598] sm:$0xff]
      %v439 = vld [vmem:[%s1 + $0x5a0] sm:$0xff]
      %v440 = vld [vmem:[%s1 + $0x5a8] sm:$0xff]
      %v441 = vld [vmem:[%s1 + $0x5b0] sm:$0xff]
      %v442 = vld [vmem:[%s1 + $0x5b8] sm:$0xff]
      %v443 = vld [vmem:[%s1 + $0x5c0] sm:$0xff]
      %v444 = vld [vmem:[%s1 + $0x5c8] sm:$0xff]
      %v445 = vld [vmem:[%s1 + $0x5d0] sm:$0xff]
      %v446 = vld [vmem:[%s1 + $0x5d8] sm:$0xff]
      %v447 = vld [vmem:[%s1 + $0x5e0] sm:$0xff]
      %v448 = vld [vmem:[%s1 + $0x5e8] sm:$0xff]
      %v449 = vld [vmem:[%s1 + $0x5f0] sm:$0xff]
      %v450 = vld [vmem:[%s1 + $0x5f8] sm:$0xff]
      %v451 = vld [vmem:[%s1 + $0x600] sm:$0xff]
      %v452 = vld [vmem:[%s1 + $0x608] sm:$0xff]
      %v453 = vld [vmem:[%s1 + $0x610] sm:$0xff]
      %v454 = vld [vmem:[%s1 + $0x618] sm:$0xff]
      %v455 = vld [vmem:[%s1 + $0x620] sm:$0xff]
      %v456 = vld [vmem:[%s1 + $0x628] sm:$0xff]
      %v457 = vld [vmem:[%s1 + $0x630] sm:$0xff]
      %v458 = vld [vmem:[%s1 + $0x638] sm:$0xff]
      %v459 = vld [vmem:[%s1 + $0x640] sm:$0xff]
      %v460 = vld [vmem:[%s1 + $0x648] sm:$0xff]
      %v461 = vld [vmem:[%s1 + $0x650] sm:$0xff]
      %v462 = vld [vmem:[%s1 + $0x658] sm:$0xff]
      %v463 = vld [vmem:[%s1 + $0x660] sm:$0xff]
      %v464 = vld [vmem:[%s1 + $0x668] sm:$0xff]
      %v465 = vld [vmem:[%s1 + $0x670] sm:$0xff]
      %v466 = vld [vmem:[%s1 + $0x678] sm:$0xff]
      %v467 = vld [vmem:[%s1 + $0x680] sm:$0xff]
      %v468 = vld [vmem:[%s1 + $0x688] sm:$0xff]
      %v469 = vld [vmem:[%s1 + $0x690] sm:$0xff]
      %v470 = vld [vmem:[%s1 + $0x698] sm:$0xff]
      %v471 = vld [vmem:[%s1 + $0x6a0] sm:$0xff]
      %v472 = vld [vmem:[%s1 + $0x6a8] sm:$0xff]
      %v473 = vld [vmem:[%s1 + $0x6b0] sm:$0xff]
      %v474 = vld [vmem:[%s1 + $0x6b8] sm:$0xff]
      %v475 = vld [vmem:[%s1 + $0x6c0] sm:$0xff]
      %v476 = vld [vmem:[%s1 + $0x6c8] sm:$0xff]
      %v477 = vld [vmem:[%s1 + $0x6d0] sm:$0xff]
      %v478 = vld [vmem:[%s1 + $0x6d8] sm:$0xff]
      %v479 = vld [vmem:[%s1 + $0x6e0] sm:$0xff]
      %v480 = vld [vmem:[%s1 + $0x6e8] sm:$0xff]
      %v481 = vld [vmem:[%s1 + $0x6f0] sm:$0xff]
      %v482 = vld [vmem:[%s1 + $0x6f8] sm:$0xff]
      %v483 = vld [vmem:[%s1 + $0x700] sm:$0xff]
      %v484 = vld [vmem:[%s1 + $0x708] sm:$0xff]
      %v485 = vld [vmem:[%s1 + $0x710] sm:$0xff]
      %v486 = vld [vmem:[%s1 + $0x718] sm:$0xff]
      %v487 = vld [vmem:[%s1 + $0x720] sm:$0xff]
      %v488 = vld [vmem:[%s1 + $0x728] sm:$0xff]
      %v489 = vld [vmem:[%s1 + $0x730] sm:$0xff]
      %v490 = vld [vmem:[%s1 + $0x738] sm:$0xff]
      %v491 = vld [vmem:[%s1 + $0x740] sm:$0xff]
      %v492 = vld [vmem:[%s1 + $0x748] sm:$0xff]
      %v493 = vld [vmem:[%s1 + $0x750] sm:$0xff]
      %v494 = vld [vmem:[%s1 + $0x758] sm:$0xff]
      %v495 = vld [vmem:[%s1 + $0x760] sm:$0xff]
      %v496 = vld [vmem:[%s1 + $0x768] sm:$0xff]
      %v497 = vld [vmem:[%s1 + $0x770] sm:$0xff]
      %v498 = vld [vmem:[%s1 + $0x778] sm:$0xff]
      %v499 = vld [vmem:[%s1 + $0x780] sm:$0xff]
      %v500 = vld [vmem:[%s1 + $0x788] sm:$0xff]
      %v501 = vld [vmem:[%s1 + $0x790] sm:$0xff]
      %v502 = vld [vmem:[%s1 + $0x798] sm:$0xff]
      %v503 = vld [vmem:[%s1 + $0x7a0] sm:$0xff]
      %v504 = vld [vmem:[%s1 + $0x7a8] sm:$0xff]
      %v505 = vld [vmem:[%s1 + $0x7b0] sm:$0xff]
      %v506 = vld [vmem:[%s1 + $0x7b8] sm:$0xff]
      %v507 = vld [vmem:[%s1 + $0x7c0] sm:$0xff]
      %v508 = vld [vmem:[%s1 + $0x7c8] sm:$0xff]
      %v509 = vld [vmem:[%s1 + $0x7d0] sm:$0xff]
      %v510 = vld [vmem:[%s1 + $0x7d8] sm:$0xff]
      %v511 = vld [vmem:[%s1 + $0x7e0] sm:$0xff]
      %v512 = vld [vmem:[%s1 + $0x7e8] sm:$0xff]
      %v513 = vld [vmem:[%s1 + $0x7f0] sm:$0xff]
      %v514 = vld [vmem:[%s1 + $0x7f8] sm:$0xff]
      %v515 = vld [vmem:[%s1 + $0x800] sm:$0xff]
      %v516 = vld [vmem:[%s1 + $0x808] sm:$0xff]
      %v517 = vld [vmem:[%s1 + $0x810] sm:$0xff]
      %v518 = vld [vmem:[%s1 + $0x818] sm:$0xff]
      %v519 = vld [vmem:[%s1 + $0x820] sm:$0xff]
      %v520 = vld [vmem:[%s1 + $0x828] sm:$0xff]
      %v521 = vld [vmem:[%s1 + $0x830] sm:$0xff]
      %v522 = vld [vmem:[%s1 + $0x838] sm:$0xff]
      %v523 = vld [vmem:[%s1 + $0x840] sm:$0xff]
      %v524 = vld [vmem:[%s1 + $0x848] sm:$0xff]
      %v525 = vld [vmem:[%s1 + $0x850] sm:$0xff]
      %v526 = vld [vmem:[%s1 + $0x858] sm:$0xff]
      %v527 = vld [vmem:[%s1 + $0x860] sm:$0xff]
      %v528 = vld [vmem:[%s1 + $0x868] sm:$0xff]
      %v529 = vld [vmem:[%s1 + $0x870] sm:$0xff]
      %v530 = vld [vmem:[%s1 + $0x878] sm:$0xff]
      %v531 = vld [vmem:[%s1 + $0x880] sm:$0xff]
      %v532 = vld [vmem:[%s1 + $0x888] sm:$0xff]
      %v533 = vld [vmem:[%s1 + $0x890] sm:$0xff]
      %v534 = vld [vmem:[%s1 + $0x898] sm:$0xff]
      %v535 = vld [vmem:[%s1 + $0x8a0] sm:$0xff]
      %v536 = vld [vmem:[%s1 + $0x8a8] sm:$0xff]
      %v537 = vld [vmem:[%s1 + $0x8b0] sm:$0xff]
      %v538 = vld [vmem:[%s1 + $0x8b8] sm:$0xff]
      %v539 = vld [vmem:[%s1 + $0x8c0] sm:$0xff]
      %v540 = vld [vmem:[%s1 + $0x8c8] sm:$0xff]
      %v541 = vld [vmem:[%s1 + $0x8d0] sm:$0xff]
      %v542 = vld [vmem:[%s1 + $0x8d8] sm:$0xff]
      %v543 = vld [vmem:[%s1 + $0x8e0] sm:$0xff]
      %v544 = vld [vmem:[%s1 + $0x8e8] sm:$0xff]
      %v545 = vld [vmem:[%s1 + $0x8f0] sm:$0xff]
      %v546 = vld [vmem:[%s1 + $0x8f8] sm:$0xff]
      %v547 = vld [vmem:[%s1 + $0x900] sm:$0xff]
      %v548 = vld [vmem:[%s1 + $0x908] sm:$0xff]
      %v549 = vld [vmem:[%s1 + $0x910] sm:$0xff]
      %v550 = vld [vmem:[%s1 + $0x918] sm:$0xff]
      %v551 = vld [vmem:[%s1 + $0x920] sm:$0xff]
      %v552 = vld [vmem:[%s1 + $0x928] sm:$0xff]
      %v553 = vld [vmem:[%s1 + $0x930] sm:$0xff]
      %v554 = vld [vmem:[%s1 + $0x938] sm:$0xff]
      %v555 = vld [vmem:[%s1 + $0x940] sm:$0xff]
      %v556 = vld [vmem:[%s1 + $0x948] sm:$0xff]
      %v557 = vld [vmem:[%s1 + $0x950] sm:$0xff]
      %v558 = vld [vmem:[%s1 + $0x958] sm:$0xff]
      %v559 = vld [vmem:[%s1 + $0x960] sm:$0xff]
      %v560 = vld [vmem:[%s1 + $0x968] sm:$0xff]
      %v561 = vld [vmem:[%s1 + $0x970] sm:$0xff]
      %v562 = vld [vmem:[%s1 + $0x978] sm:$0xff]
      %v563 = vld [vmem:[%s1 + $0x980] sm:$0xff]
      %v564 = vld [vmem:[%s1 + $0x988] sm:$0xff]
      %v565 = vld [vmem:[%s1 + $0x990] sm:$0xff]
      %v566 = vld [vmem:[%s1 + $0x998] sm:$0xff]
      %v567 = vld [vmem:[%s1 + $0x9a0] sm:$0xff]
      %v568 = vld [vmem:[%s1 + $0x9a8] sm:$0xff]
      %v569 = vld [vmem:[%s1 + $0x9b0] sm:$0xff]
      %v570 = vld [vmem:[%s1 + $0x9b8] sm:$0xff]
      %v571 = vld [vmem:[%s1 + $0x9c0] sm:$0xff]
      %v572 = vld [vmem:[%s1 + $0x9c8] sm:$0xff]
      %v573 = vld [vmem:[%s1 + $0x9d0] sm:$0xff]
      %v574 = vld [vmem:[%s1 + $0x9d8] sm:$0xff]
      %v575 = vld [vmem:[%s1 + $0x9e0] sm:$0xff]
      %v576 = vld [vmem:[%s1 + $0x9e8] sm:$0xff]
      %v577 = vld [vmem:[%s1 + $0x9f0] sm:$0xff]
      %v578 = vld [vmem:[%s1 + $0x9f8] sm:$0xff]
      %v579 = vld [vmem:[%s1 + $0xa00] sm:$0xff]
      %v580 = vld [vmem:[%s1 + $0xa08] sm:$0xff]
      %v581 = vld [vmem:[%s1 + $0xa10] sm:$0xff]
      %v582 = vld [vmem:[%s1 + $0xa18] sm:$0xff]
      %v583 = vld [vmem:[%s1 + $0xa20] sm:$0xff]
      %v584 = vld [vmem:[%s1 + $0xa28] sm:$0xff]
      %v585 = vld [vmem:[%s1 + $0xa30] sm:$0xff]
      %v586 = vld [vmem:[%s1 + $0xa38] sm:$0xff]
      %v587 = vld [vmem:[%s1 + $0xa40] sm:$0xff]
      %v588 = vld [vmem:[%s1 + $0xa48] sm:$0xff]
      %v589 = vld [vmem:[%s1 + $0xa50] sm:$0xff]
      %v590 = vld [vmem:[%s1 + $0xa58] sm:$0xff]
      %v591 = vld [vmem:[%s1 + $0xa60] sm:$0xff]
      %v592 = vld [vmem:[%s1 + $0xa68] sm:$0xff]
      %v593 = vld [vmem:[%s1 + $0xa70] sm:$0xff]
      %v594 = vld [vmem:[%s1 + $0xa78] sm:$0xff]
      %v595 = vld [vmem:[%s1 + $0xa80] sm:$0xff]
      %v596 = vld [vmem:[%s1 + $0xa88] sm:$0xff]
      %v597 = vld [vmem:[%s1 + $0xa90] sm:$0xff]
      %v598 = vld [vmem:[%s1 + $0xa98] sm:$0xff]
      %v599 = vld [vmem:[%s1 + $0xaa0] sm:$0xff]
      %v600 = vld [vmem:[%s1 + $0xaa8] sm:$0xff]
      %v601 = vld [vmem:[%s1 + $0xab0] sm:$0xff]
      %v602 = vld [vmem:[%s1 + $0xab8] sm:$0xff]
      %v603 = vld [vmem:[%s1 + $0xac0] sm:$0xff]
      %v604 = vld [vmem:[%s1 + $0xac8] sm:$0xff]
      %v605 = vld [vmem:[%s1 + $0xad0] sm:$0xff]
      %v606 = vld [vmem:[%s1 + $0xad8] sm:$0xff]
      %v607 = vld [vmem:[%s1 + $0xae0] sm:$0xff]
      %v608 = vld [vmem:[%s1 + $0xae8] sm:$0xff]
      %v609 = vld [vmem:[%s1 + $0xaf0] sm:$0xff]
      %v610 = vld [vmem:[%s1 + $0xaf8] sm:$0xff]
      %v611 = vld [vmem:[%s1 + $0xb00] sm:$0xff]
      %v612 = vld [vmem:[%s1 + $0xb08] sm:$0xff]
      %v613 = vld [vmem:[%s1 + $0xb10] sm:$0xff]
      %v614 = vld [vmem:[%s1 + $0xb18] sm:$0xff]
      %v615 = vld [vmem:[%s1 + $0xb20] sm:$0xff]
      %v616 = vld [vmem:[%s1 + $0xb28] sm:$0xff]
      %v617 = vld [vmem:[%s1 + $0xb30] sm:$0xff]
      %v618 = vld [vmem:[%s1 + $0xb38] sm:$0xff]
      %v619 = vld [vmem:[%s1 + $0xb40] sm:$0xff]
      %v620 = vld [vmem:[%s1 + $0xb48] sm:$0xff]
      %v621 = vld [vmem:[%s1 + $0xb50] sm:$0xff]
      %v622 = vld [vmem:[%s1 + $0xb58] sm:$0xff]
      %v623 = vld [vmem:[%s1 + $0xb60] sm:$0xff]
      %v624 = vld [vmem:[%s1 + $0xb68] sm:$0xff]
      %v625 = vld [vmem:[%s1 + $0xb70] sm:$0xff]
      %v626 = vld [vmem:[%s1 + $0xb78] sm:$0xff]
      %v627 = vld [vmem:[%s1 + $0xb80] sm:$0xff]
      %v628 = vld [vmem:[%s1 + $0xb88] sm:$0xff]
      %v629 = vld [vmem:[%s1 + $0xb90] sm:$0xff]
      %v630 = vld [vmem:[%s1 + $0xb98] sm:$0xff]
      %v631 = vld [vmem:[%s1 + $0xba0] sm:$0xff]
      %v632 = vld [vmem:[%s1 + $0xba8] sm:$0xff]
      %v633 = vld [vmem:[%s1 + $0xbb0] sm:$0xff]
      %v634 = vld [vmem:[%s1 + $0xbb8] sm:$0xff]
      %v635 = vld [vmem:[%s1 + $0xbc0] sm:$0xff]
      %v636 = vld [vmem:[%s1 + $0xbc8] sm:$0xff]
      %v637 = vld [vmem:[%s1 + $0xbd0] sm:$0xff]
      %v638 = vld [vmem:[%s1 + $0xbd8] sm:$0xff]
      %v639 = vld [vmem:[%s1 + $0xbe0] sm:$0xff]
      %v640 = vld [vmem:[%s1 + $0xbe8] sm:$0xff]
      %v641 = vld [vmem:[%s1 + $0xbf0] sm:$0xff]
      %v642 = vld [vmem:[%s1 + $0xbf8] sm:$0xff]
      %v643 = vld [vmem:[%s1 + $0xc00] sm:$0xff]
      %v644 = vld [vmem:[%s1 + $0xc08] sm:$0xff]
      %v645 = vld [vmem:[%s1 + $0xc10] sm:$0xff]
      %v646 = vld [vmem:[%s1 + $0xc18] sm:$0xff]
      %v647 = vld [vmem:[%s1 + $0xc20] sm:$0xff]
      %v648 = vld [vmem:[%s1 + $0xc28] sm:$0xff]
      %v649 = vld [vmem:[%s1 + $0xc30] sm:$0xff]
      %v650 = vld [vmem:[%s1 + $0xc38] sm:$0xff]
      %v651 = vld [vmem:[%s1 + $0xc40] sm:$0xff]
      %v652 = vld [vmem:[%s1 + $0xc48] sm:$0xff]
      %v653 = vld [vmem:[%s1 + $0xc50] sm:$0xff]
      %v654 = vld [vmem:[%s1 + $0xc58] sm:$0xff]
      %v655 = vld [vmem:[%s1 + $0xc60] sm:$0xff]
      %v656 = vld [vmem:[%s1 + $0xc68] sm:$0xff]
      %v657 = vld [vmem:[%s1 + $0xc70] sm:$0xff]
      %v658 = vld [vmem:[%s1 + $0xc78] sm:$0xff]
      %v659 = vld [vmem:[%s1 + $0xc80] sm:$0xff]
      %v660 = vld [vmem:[%s1 + $0xc88] sm:$0xff]
      %v661 = vld [vmem:[%s1 + $0xc90] sm:$0xff]
      %v662 = vld [vmem:[%s1 + $0xc98] sm:$0xff]
      %v663 = vld [vmem:[%s1 + $0xca0] sm:$0xff]
      %v664 = vld [vmem:[%s1 + $0xca8] sm:$0xff]
      %v665 = vld [vmem:[%s1 + $0xcb0] sm:$0xff]
      %v666 = vld [vmem:[%s1 + $0xcb8] sm:$0xff]
      %v667 = vld [vmem:[%s1 + $0xcc0] sm:$0xff]
      %v668 = vld [vmem:[%s1 + $0xcc8] sm:$0xff]
      %v669 = vld [vmem:[%s1 + $0xcd0] sm:$0xff]
      %v670 = vld [vmem:[%s1 + $0xcd8] sm:$0xff]
      %v671 = vld [vmem:[%s1 + $0xce0] sm:$0xff]
      %v672 = vld [vmem:[%s1 + $0xce8] sm:$0xff]
      %v673 = vld [vmem:[%s1 + $0xcf0] sm:$0xff]
      %v674 = vld [vmem:[%s1 + $0xcf8] sm:$0xff]
      %v675 = vld [vmem:[%s1 + $0xd00] sm:$0xff]
      %v676 = vld [vmem:[%s1 + $0xd08] sm:$0xff]
      %v677 = vld [vmem:[%s1 + $0xd10] sm:$0xff]
      %v678 = vld [vmem:[%s1 + $0xd18] sm:$0xff]
      %v679 = vld [vmem:[%s1 + $0xd20] sm:$0xff]
      %v680 = vld [vmem:[%s1 + $0xd28] sm:$0xff]
      %v681 = vld [vmem:[%s1 + $0xd30] sm:$0xff]
      %v682 = vld [vmem:[%s1 + $0xd38] sm:$0xff]
      %v683 = vld [vmem:[%s1 + $0xd40] sm:$0xff]
      %v684 = vld [vmem:[%s1 + $0xd48] sm:$0xff]
      %v685 = vld [vmem:[%s1 + $0xd50] sm:$0xff]
      %v686 = vld [vmem:[%s1 + $0xd58] sm:$0xff]
      %v687 = vld [vmem:[%s1 + $0xd60] sm:$0xff]
      %v688 = vld [vmem:[%s1 + $0xd68] sm:$0xff]
      %v689 = vld [vmem:[%s1 + $0xd70] sm:$0xff]
      %v690 = vld [vmem:[%s1 + $0xd78] sm:$0xff]
      %v691 = vld [vmem:[%s1 + $0xd80] sm:$0xff]
      %v692 = vld [vmem:[%s1 + $0xd88] sm:$0xff]
      %v693 = vld [vmem:[%s1 + $0xd90] sm:$0xff]
      %v694 = vld [vmem:[%s1 + $0xd98] sm:$0xff]
      %v695 = vld [vmem:[%s1 + $0xda0] sm:$0xff]
      %v696 = vld [vmem:[%s1 + $0xda8] sm:$0xff]
      %v697 = vld [vmem:[%s1 + $0xdb0] sm:$0xff]
      %v698 = vld [vmem:[%s1 + $0xdb8] sm:$0xff]
      %v699 = vld [vmem:[%s1 + $0xdc0] sm:$0xff]
      %v700 = vld [vmem:[%s1 + $0xdc8] sm:$0xff]
      %v701 = vld [vmem:[%s1 + $0xdd0] sm:$0xff]
      %v702 = vld [vmem:[%s1 + $0xdd8] sm:$0xff]
      %v703 = vld [vmem:[%s1 + $0xde0] sm:$0xff]
      %v704 = vld [vmem:[%s1 + $0xde8] sm:$0xff]
      %v705 = vld [vmem:[%s1 + $0xdf0] sm:$0xff]
      %v706 = vld [vmem:[%s1 + $0xdf8] sm:$0xff]
      %v707 = vld [vmem:[%s1 + $0xe00] sm:$0xff]
      %v708 = vld [vmem:[%s1 + $0xe08] sm:$0xff]
      %v709 = vld [vmem:[%s1 + $0xe10] sm:$0xff]
      %v710 = vld [vmem:[%s1 + $0xe18] sm:$0xff]
      %v711 = vld [vmem:[%s1 + $0xe20] sm:$0xff]
      %v712 = vld [vmem:[%s1 + $0xe28] sm:$0xff]
      %v713 = vld [vmem:[%s1 + $0xe30] sm:$0xff]
      %v714 = vld [vmem:[%s1 + $0xe38] sm:$0xff]
      %v715 = vld [vmem:[%s1 + $0xe40] sm:$0xff]
      %v716 = vld [vmem:[%s1 + $0xe48] sm:$0xff]
      %v717 = vld [vmem:[%s1 + $0xe50] sm:$0xff]
      %v718 = vld [vmem:[%s1 + $0xe58] sm:$0xff]
      %v719 = vld [vmem:[%s1 + $0xe60] sm:$0xff]
      %v720 = vld [vmem:[%s1 + $0xe68] sm:$0xff]
      %v721 = vld [vmem:[%s1 + $0xe70] sm:$0xff]
      %v722 = vld [vmem:[%s1 + $0xe78] sm:$0xff]
      %v723 = vld [vmem:[%s1 + $0xe80] sm:$0xff]
      %v724 = vld [vmem:[%s1 + $0xe88] sm:$0xff]
      %v725 = vld [vmem:[%s1 + $0xe90] sm:$0xff]
      %v726 = vld [vmem:[%s1 + $0xe98] sm:$0xff]
      %v727 = vld [vmem:[%s1 + $0xea0] sm:$0xff]
      %v728 = vld [vmem:[%s1 + $0xea8] sm:$0xff]
      %v729 = vld [vmem:[%s1 + $0xeb0] sm:$0xff]
      %v730 = vld [vmem:[%s1 + $0xeb8] sm:$0xff]
      %v731 = vld [vmem:[%s1 + $0xec0] sm:$0xff]
      %v732 = vld [vmem:[%s1 + $0xec8] sm:$0xff]
      %v733 = vld [vmem:[%s1 + $0xed0] sm:$0xff]
      %v734 = vld [vmem:[%s1 + $0xed8] sm:$0xff]
      %v735 = vld [vmem:[%s1 + $0xee0] sm:$0xff]
      %v736 = vld [vmem:[%s1 + $0xee8] sm:$0xff]
      %v737 = vld [vmem:[%s1 + $0xef0] sm:$0xff]
      %v738 = vld [vmem:[%s1 + $0xef8] sm:$0xff]
      %v739 = vld [vmem:[%s1 + $0xf00] sm:$0xff]
      %v740 = vld [vmem:[%s1 + $0xf08] sm:$0xff]
      %v741 = vld [vmem:[%s1 + $0xf10] sm:$0xff]
      %v742 = vld [vmem:[%s1 + $0xf18] sm:$0xff]
      %v743 = vld [vmem:[%s1 + $0xf20] sm:$0xff]
      %v744 = vld [vmem:[%s1 + $0xf28] sm:$0xff]
      %v745 = vld [vmem:[%s1 + $0xf30] sm:$0xff]
      %v746 = vld [vmem:[%s1 + $0xf38] sm:$0xff]
      %v747 = vld [vmem:[%s1 + $0xf40] sm:$0xff]
      %v748 = vld [vmem:[%s1 + $0xf48] sm:$0xff]
      %v749 = vld [vmem:[%s1 + $0xf50] sm:$0xff]
      %v750 = vld [vmem:[%s1 + $0xf58] sm:$0xff]
      %v751 = vld [vmem:[%s1 + $0xf60] sm:$0xff]
      %v752 = vld [vmem:[%s1 + $0xf68] sm:$0xff]
      %v753 = vld [vmem:[%s1 + $0xf70] sm:$0xff]
      %v754 = vld [vmem:[%s1 + $0xf78] sm:$0xff]
      %v755 = vld [vmem:[%s1 + $0xf80] sm:$0xff]
      %v756 = vld [vmem:[%s1 + $0xf88] sm:$0xff]
      %v757 = vld [vmem:[%s1 + $0xf90] sm:$0xff]
      %v758 = vld [vmem:[%s1 + $0xf98] sm:$0xff]
      %v759 = vld [vmem:[%s1 + $0xfa0] sm:$0xff]
      %v760 = vld [vmem:[%s1 + $0xfa8] sm:$0xff]
      %v761 = vld [vmem:[%s1 + $0xfb0] sm:$0xff]
      %v762 = vld [vmem:[%s1 + $0xfb8] sm:$0xff]
      %v763 = vld [vmem:[%s1 + $0xfc0] sm:$0xff]
      %v764 = vld [vmem:[%s1 + $0xfc8] sm:$0xff]
      %v765 = vld [vmem:[%s1 + $0xfd0] sm:$0xff]
      %v766 = vld [vmem:[%s1 + $0xfd8] sm:$0xff]
      %v767 = vld [vmem:[%s1 + $0xfe0] sm:$0xff]
      %v768 = vld [vmem:[%s1 + $0xfe8] sm:$0xff]
      %v769 = vld [vmem:[%s1 + $0xff0] sm:$0xff]
      %v770 = vld [vmem:[%s1 + $0xff8] sm:$0xff]
      %v771 = vld [vmem:[%s1 + $0x1000] sm:$0xff]
      %v772 = vld [vmem:[%s1 + $0x1008] sm:$0xff]
      %v773 = vld [vmem:[%s1 + $0x1010] sm:$0xff]
      %v774 = vld [vmem:[%s1 + $0x1018] sm:$0xff]
      %v775 = vld [vmem:[%s1 + $0x1020] sm:$0xff]
      %v776 = vld [vmem:[%s1 + $0x1028] sm:$0xff]
      %v777 = vld [vmem:[%s1 + $0x1030] sm:$0xff]
      %v778 = vld [vmem:[%s1 + $0x1038] sm:$0xff]
      %v779 = vld [vmem:[%s1 + $0x1040] sm:$0xff]
      %v780 = vld [vmem:[%s1 + $0x1048] sm:$0xff]
      %v781 = vld [vmem:[%s1 + $0x1050] sm:$0xff]
      %v782 = vld [vmem:[%s1 + $0x1058] sm:$0xff]
      %v783 = vld [vmem:[%s1 + $0x1060] sm:$0xff]
      %v784 = vld [vmem:[%s1 + $0x1068] sm:$0xff]
      %v785 = vld [vmem:[%s1 + $0x1070] sm:$0xff]
      %v786 = vld [vmem:[%s1 + $0x1078] sm:$0xff]
      %v787 = vld [vmem:[%s1 + $0x1080] sm:$0xff]
      %v788 = vld [vmem:[%s1 + $0x1088] sm:$0xff]
      %v789 = vld [vmem:[%s1 + $0x1090] sm:$0xff]
      %v790 = vld [vmem:[%s1 + $0x1098] sm:$0xff]
      %v791 = vld [vmem:[%s1 + $0x10a0] sm:$0xff]
      %v792 = vld [vmem:[%s1 + $0x10a8] sm:$0xff]
      %v793 = vld [vmem:[%s1 + $0x10b0] sm:$0xff]
      %v794 = vld [vmem:[%s1 + $0x10b8] sm:$0xff]
      %v795 = vld [vmem:[%s1 + $0x10c0] sm:$0xff]
      %v796 = vld [vmem:[%s1 + $0x10c8] sm:$0xff]
      %v797 = vld [vmem:[%s1 + $0x10d0] sm:$0xff]
      %v798 = vld [vmem:[%s1 + $0x10d8] sm:$0xff]
      %v799 = vld [vmem:[%s1 + $0x10e0] sm:$0xff]
      %v800 = vld [vmem:[%s1 + $0x10e8] sm:$0xff]
      %v801 = vld [vmem:[%s1 + $0x10f0] sm:$0xff]
      %v802 = vld [vmem:[%s1 + $0x10f8] sm:$0xff]
      %v803 = vld [vmem:[%s1 + $0x1100] sm:$0xff]
      %v804 = vld [vmem:[%s1 + $0x1108] sm:$0xff]
      %v805 = vld [vmem:[%s1 + $0x1110] sm:$0xff]
      %v806 = vld [vmem:[%s1 + $0x1118] sm:$0xff]
      %v807 = vld [vmem:[%s1 + $0x1120] sm:$0xff]
      %v808 = vld [vmem:[%s1 + $0x1128] sm:$0xff]
      %v809 = vld [vmem:[%s1 + $0x1130] sm:$0xff]
      %v810 = vld [vmem:[%s1 + $0x1138] sm:$0xff]
      %v811 = vld [vmem:[%s1 + $0x1140] sm:$0xff]
      %v812 = vld [vmem:[%s1 + $0x1148] sm:$0xff]
      %v813 = vld [vmem:[%s1 + $0x1150] sm:$0xff]
      %v814 = vld [vmem:[%s1 + $0x1158] sm:$0xff]
      %v815 = vld [vmem:[%s1 + $0x1160] sm:$0xff]
      %v816 = vld [vmem:[%s1 + $0x1168] sm:$0xff]
      %v817 = vld [vmem:[%s1 + $0x1170] sm:$0xff]
      %v818 = vld [vmem:[%s1 + $0x1178] sm:$0xff]
      %v819 = vld [vmem:[%s1 + $0x1180] sm:$0xff]
      %v820 = vld [vmem:[%s1 + $0x1188] sm:$0xff]
      %v821 = vld [vmem:[%s1 + $0x1190] sm:$0xff]
      %v822 = vld [vmem:[%s1 + $0x1198] sm:$0xff]
      %v823 = vld [vmem:[%s1 + $0x11a0] sm:$0xff]
      %v824 = vld [vmem:[%s1 + $0x11a8] sm:$0xff]
      %v825 = vld [vmem:[%s1 + $0x11b0] sm:$0xff]
      %v826 = vld [vmem:[%s1 + $0x11b8] sm:$0xff]
      %v827 = vld [vmem:[%s1 + $0x11c0] sm:$0xff]
      %v828 = vld [vmem:[%s1 + $0x11c8] sm:$0xff]
      %v829 = vld [vmem:[%s1 + $0x11d0] sm:$0xff]
      %v830 = vld [vmem:[%s1 + $0x11d8] sm:$0xff]
      %v831 = vld [vmem:[%s1 + $0x11e0] sm:$0xff]
      %v832 = vld [vmem:[%s1 + $0x11e8] sm:$0xff]
      %v833 = vld [vmem:[%s1 + $0x11f0] sm:$0xff]
      %v834 = vld [vmem:[%s1 + $0x11f8] sm:$0xff]
      %v835 = vld [vmem:[%s1 + $0x1200] sm:$0xff]
      %v836 = vld [vmem:[%s1 + $0x1208] sm:$0xff]
      %v837 = vld [vmem:[%s1 + $0x1210] sm:$0xff]
      %v838 = vld [vmem:[%s1 + $0x1218] sm:$0xff]
      %v839 = vld [vmem:[%s1 + $0x1220] sm:$0xff]
      %v840 = vld [vmem:[%s1 + $0x1228] sm:$0xff]
      %v841 = vld [vmem:[%s1 + $0x1230] sm:$0xff]
      %v842 = vld [vmem:[%s1 + $0x1238] sm:$0xff]
      %v843 = vld [vmem:[%s1 + $0x1240] sm:$0xff]
      %v844 = vld [vmem:[%s1 + $0x1248] sm:$0xff]
      %v845 = vld [vmem:[%s1 + $0x1250] sm:$0xff]
      %v846 = vld [vmem:[%s1 + $0x1258] sm:$0xff]
      %v847 = vld [vmem:[%s1 + $0x1260] sm:$0xff]
      %v848 = vld [vmem:[%s1 + $0x1268] sm:$0xff]
      %v849 = vld [vmem:[%s1 + $0x1270] sm:$0xff]
      %v850 = vld [vmem:[%s1 + $0x1278] sm:$0xff]
      %v851 = vld [vmem:[%s1 + $0x1280] sm:$0xff]
      %v852 = vld [vmem:[%s1 + $0x1288] sm:$0xff]
      %v853 = vld [vmem:[%s1 + $0x1290] sm:$0xff]
      %v854 = vld [vmem:[%s1 + $0x1298] sm:$0xff]
      %v855 = vld [vmem:[%s1 + $0x12a0] sm:$0xff]
      %v856 = vld [vmem:[%s1 + $0x12a8] sm:$0xff]
      %v857 = vld [vmem:[%s1 + $0x12b0] sm:$0xff]
      %v858 = vld [vmem:[%s1 + $0x12b8] sm:$0xff]
      %v859 = vld [vmem:[%s1 + $0x12c0] sm:$0xff]
      %v860 = vld [vmem:[%s1 + $0x12c8] sm:$0xff]
      %v861 = vld [vmem:[%s1 + $0x12d0] sm:$0xff]
      %v862 = vld [vmem:[%s1 + $0x12d8] sm:$0xff]
      %v863 = vld [vmem:[%s1 + $0x12e0] sm:$0xff]
      %v864 = vld [vmem:[%s1 + $0x12e8] sm:$0xff]
      %v865 = vld [vmem:[%s1 + $0x12f0] sm:$0xff]
      %v866 = vld [vmem:[%s1 + $0x12f8] sm:$0xff]
      %v867 = vld [vmem:[%s1 + $0x1300] sm:$0xff]
      %v868 = vld [vmem:[%s1 + $0x1308] sm:$0xff]
      %v869 = vld [vmem:[%s1 + $0x1310] sm:$0xff]
      %v870 = vld [vmem:[%s1 + $0x1318] sm:$0xff]
      %v871 = vld [vmem:[%s1 + $0x1320] sm:$0xff]
      %v872 = vld [vmem:[%s1 + $0x1328] sm:$0xff]
      %v873 = vld [vmem:[%s1 + $0x1330] sm:$0xff]
      %v874 = vld [vmem:[%s1 + $0x1338] sm:$0xff]
      %v875 = vld [vmem:[%s1 + $0x1340] sm:$0xff]
      %v876 = vld [vmem:[%s1 + $0x1348] sm:$0xff]
      %v877 = vld [vmem:[%s1 + $0x1350] sm:$0xff]
      %v878 = vld [vmem:[%s1 + $0x1358] sm:$0xff]
      %v879 = vld [vmem:[%s1 + $0x1360] sm:$0xff]
      %v880 = vld [vmem:[%s1 + $0x1368] sm:$0xff]
      %v881 = vld [vmem:[%s1 + $0x1370] sm:$0xff]
      %v882 = vld [vmem:[%s1 + $0x1378] sm:$0xff]
      %v883 = vld [vmem:[%s1 + $0x1380] sm:$0xff]
      %v884 = vld [vmem:[%s1 + $0x1388] sm:$0xff]
      %v885 = vld [vmem:[%s1 + $0x1390] sm:$0xff]
      %v886 = vld [vmem:[%s1 + $0x1398] sm:$0xff]
      %v887 = vld [vmem:[%s1 + $0x13a0] sm:$0xff]
      %v888 = vld [vmem:[%s1 + $0x13a8] sm:$0xff]
      %v889 = vld [vmem:[%s1 + $0x13b0] sm:$0xff]
      %v890 = vld [vmem:[%s1 + $0x13b8] sm:$0xff]
      %v891 = vld [vmem:[%s1 + $0x13c0] sm:$0xff]
      %v892 = vld [vmem:[%s1 + $0x13c8] sm:$0xff]
      %v893 = vld [vmem:[%s1 + $0x13d0] sm:$0xff]
      %v894 = vld [vmem:[%s1 + $0x13d8] sm:$0xff]
      %v895 = vld [vmem:[%s1 + $0x13e0] sm:$0xff]
      %v896 = vld [vmem:[%s1 + $0x13e8] sm:$0xff]
      %v897 = vld [vmem:[%s1 + $0x13f0] sm:$0xff]
      %v898 = vld [vmem:[%s1 + $0x13f8] sm:$0xff]
      %v899 = vld [vmem:[%s1 + $0x1400] sm:$0xff]
      %v900 = vld [vmem:[%s1 + $0x1408] sm:$0xff]
      %v901 = vld [vmem:[%s1 + $0x1410] sm:$0xff]
      %v902 = vld [vmem:[%s1 + $0x1418] sm:$0xff]
      %v903 = vld [vmem:[%s1 + $0x1420] sm:$0xff]
      %v904 = vld [vmem:[%s1 + $0x1428] sm:$0xff]
      %v905 = vld [vmem:[%s1 + $0x1430] sm:$0xff]
      %v906 = vld [vmem:[%s1 + $0x1438] sm:$0xff]
      %v907 = vld [vmem:[%s1 + $0x1440] sm:$0xff]
      %v908 = vld [vmem:[%s1 + $0x1448] sm:$0xff]
      %v909 = vld [vmem:[%s1 + $0x1450] sm:$0xff]
      %v910 = vld [vmem:[%s1 + $0x1458] sm:$0xff]
      %v911 = vld [vmem:[%s1 + $0x1460] sm:$0xff]
      %v912 = vld [vmem:[%s1 + $0x1468] sm:$0xff]
      %v913 = vld [vmem:[%s1 + $0x1470] sm:$0xff]
      %v914 = vld [vmem:[%s1 + $0x1478] sm:$0xff]
      %v915 = vld [vmem:[%s1 + $0x1480] sm:$0xff]
      %v916 = vld [vmem:[%s1 + $0x1488] sm:$0xff]
      %v917 = vld [vmem:[%s1 + $0x1490] sm:$0xff]
      %v918 = vld [vmem:[%s1 + $0x1498] sm:$0xff]
      %v919 = vld [vmem:[%s1 + $0x14a0] sm:$0xff]
      %v920 = vld [vmem:[%s1 + $0x14a8] sm:$0xff]
      %v921 = vld [vmem:[%s1 + $0x14b0] sm:$0xff]
      %v922 = vld [vmem:[%s1 + $0x14b8] sm:$0xff]
      %v923 = vld [vmem:[%s1 + $0x14c0] sm:$0xff]
      %v924 = vld [vmem:[%s1 + $0x14c8] sm:$0xff]
      %v925 = vld [vmem:[%s1 + $0x14d0] sm:$0xff]
      %v926 = vld [vmem:[%s1 + $0x14d8] sm:$0xff]
      %v927 = vld [vmem:[%s1 + $0x14e0] sm:$0xff]
      %v928 = vld [vmem:[%s1 + $0x14e8] sm:$0xff]
      %v929 = vld [vmem:[%s1 + $0x14f0] sm:$0xff]
      %v930 = vld [vmem:[%s1 + $0x14f8] sm:$0xff]
      %v931 = vld [vmem:[%s1 + $0x1500] sm:$0xff]
      %v932 = vld [vmem:[%s1 + $0x1508] sm:$0xff]
      %v933 = vld [vmem:[%s1 + $0x1510] sm:$0xff]
      %v934 = vld [vmem:[%s1 + $0x1518] sm:$0xff]
      %v935 = vld [vmem:[%s1 + $0x1520] sm:$0xff]
      %v936 = vld [vmem:[%s1 + $0x1528] sm:$0xff]
      %v937 = vld [vmem:[%s1 + $0x1530] sm:$0xff]
      %v938 = vld [vmem:[%s1 + $0x1538] sm:$0xff]
      %v939 = vld [vmem:[%s1 + $0x1540] sm:$0xff]
      %v940 = vld [vmem:[%s1 + $0x1548] sm:$0xff]
      %v941 = vld [vmem:[%s1 + $0x1550] sm:$0xff]
      %v942 = vld [vmem:[%s1 + $0x1558] sm:$0xff]
      %v943 = vld [vmem:[%s1 + $0x1560] sm:$0xff]
      %v944 = vld [vmem:[%s1 + $0x1568] sm:$0xff]
      %v945 = vld [vmem:[%s1 + $0x1570] sm:$0xff]
      %v946 = vld [vmem:[%s1 + $0x1578] sm:$0xff]
      %v947 = vld [vmem:[%s1 + $0x1580] sm:$0xff]
      %v948 = vld [vmem:[%s1 + $0x1588] sm:$0xff]
      %v949 = vld [vmem:[%s1 + $0x1590] sm:$0xff]
      %v950 = vld [vmem:[%s1 + $0x1598] sm:$0xff]
      %v951 = vld [vmem:[%s1 + $0x15a0] sm:$0xff]
      %v952 = vld [vmem:[%s1 + $0x15a8] sm:$0xff]
      %v953 = vld [vmem:[%s1 + $0x15b0] sm:$0xff]
      %v954 = vld [vmem:[%s1 + $0x15b8] sm:$0xff]
      %v955 = vld [vmem:[%s1 + $0x15c0] sm:$0xff]
      %v956 = vld [vmem:[%s1 + $0x15c8] sm:$0xff]
      %v957 = vld [vmem:[%s1 + $0x15d0] sm:$0xff]
      %v958 = vld [vmem:[%s1 + $0x15d8] sm:$0xff]
      %v959 = vld [vmem:[%s1 + $0x15e0] sm:$0xff]
      %v960 = vld [vmem:[%s1 + $0x15e8] sm:$0xff]
      %v961 = vld [vmem:[%s1 + $0x15f0] sm:$0xff]
      %v962 = vld [vmem:[%s1 + $0x15f8] sm:$0xff]
      %v963 = vld [vmem:[%s1 + $0x1600] sm:$0xff]
      %v964 = vld [vmem:[%s1 + $0x1608] sm:$0xff]
      %v965 = vld [vmem:[%s1 + $0x1610] sm:$0xff]
      %v966 = vld [vmem:[%s1 + $0x1618] sm:$0xff]
      %v967 = vld [vmem:[%s1 + $0x1620] sm:$0xff]
      %v968 = vld [vmem:[%s1 + $0x1628] sm:$0xff]
      %v969 = vld [vmem:[%s1 + $0x1630] sm:$0xff]
      %v970 = vld [vmem:[%s1 + $0x1638] sm:$0xff]
      %v971 = vld [vmem:[%s1 + $0x1640] sm:$0xff]
      %v972 = vld [vmem:[%s1 + $0x1648] sm:$0xff]
      %v973 = vld [vmem:[%s1 + $0x1650] sm:$0xff]
      %v974 = vld [vmem:[%s1 + $0x1658] sm:$0xff]
      %v975 = vld [vmem:[%s1 + $0x1660] sm:$0xff]
      %v976 = vld [vmem:[%s1 + $0x1668] sm:$0xff]
      %v977 = vld [vmem:[%s1 + $0x1670] sm:$0xff]
      %v978 = vld [vmem:[%s1 + $0x1678] sm:$0xff]
      %v979 = vld [vmem:[%s1 + $0x1680] sm:$0xff]
      %v980 = vld [vmem:[%s1 + $0x1688] sm:$0xff]
      %v981 = vld [vmem:[%s1 + $0x1690] sm:$0xff]
      %v982 = vld [vmem:[%s1 + $0x1698] sm:$0xff]
      %v983 = vld [vmem:[%s1 + $0x16a0] sm:$0xff]
      %v984 = vld [vmem:[%s1 + $0x16a8] sm:$0xff]
      %v985 = vld [vmem:[%s1 + $0x16b0] sm:$0xff]
      %v986 = vld [vmem:[%s1 + $0x16b8] sm:$0xff]
      %v987 = vld [vmem:[%s1 + $0x16c0] sm:$0xff]
      %v988 = vld [vmem:[%s1 + $0x16c8] sm:$0xff]
      %v989 = vld [vmem:[%s1 + $0x16d0] sm:$0xff]
      %v990 = vld [vmem:[%s1 + $0x16d8] sm:$0xff]
      %v991 = vld [vmem:[%s1 + $0x16e0] sm:$0xff]
      %v992 = vld [vmem:[%s1 + $0x16e8] sm:$0xff]
      %v993 = vld [vmem:[%s1 + $0x16f0] sm:$0xff]
      %v994 = vld [vmem:[%s1 + $0x16f8] sm:$0xff]
      %v995 = vld [vmem:[%s1 + $0x1700] sm:$0xff]
      %v996 = vld [vmem:[%s1 + $0x1708] sm:$0xff]
      %v997 = vld [vmem:[%s1 + $0x1710] sm:$0xff]
      %v998 = vld [vmem:[%s1 + $0x1718] sm:$0xff]
      %v999 = vld [vmem:[%s1 + $0x1720] sm:$0xff]
      %v1000 = vld [vmem:[%s1 + $0x1728] sm:$0xff]
      %v1001 = vld [vmem:[%s1 + $0x1730] sm:$0xff]
      %v1002 = vld [vmem:[%s1 + $0x1738] sm:$0xff]
      %v1003 = vld [vmem:[%s1 + $0x1740] sm:$0xff]
      %v1004 = vld [vmem:[%s1 + $0x1748] sm:$0xff]
      %v1005 = vld [vmem:[%s1 + $0x1750] sm:$0xff]
      %v1006 = vld [vmem:[%s1 + $0x1758] sm:$0xff]
      %v1007 = vld [vmem:[%s1 + $0x1760] sm:$0xff]
      %v1008 = vld [vmem:[%s1 + $0x1768] sm:$0xff]
      %v1009 = vld [vmem:[%s1 + $0x1770] sm:$0xff]
      %v1010 = vld [vmem:[%s1 + $0x1778] sm:$0xff]
      %v1011 = vld [vmem:[%s1 + $0x1780] sm:$0xff]
      %v1012 = vld [vmem:[%s1 + $0x1788] sm:$0xff]
      %v1013 = vld [vmem:[%s1 + $0x1790] sm:$0xff]
      %v1014 = vld [vmem:[%s1 + $0x1798] sm:$0xff]
      %v1015 = vld [vmem:[%s1 + $0x17a0] sm:$0xff]
      %v1016 = vld [vmem:[%s1 + $0x17a8] sm:$0xff]
      %v1017 = vld [vmem:[%s1 + $0x17b0] sm:$0xff]
      %v1018 = vld [vmem:[%s1 + $0x17b8] sm:$0xff]
      %v1019 = vld [vmem:[%s1 + $0x17c0] sm:$0xff]
      %v1020 = vld [vmem:[%s1 + $0x17c8] sm:$0xff]
      %v1021 = vld [vmem:[%s1 + $0x17d0] sm:$0xff]
      %v1022 = vld [vmem:[%s1 + $0x17d8] sm:$0xff]
      %v1023 = vld [vmem:[%s1 + $0x17e0] sm:$0xff]
      %v1024 = vld [vmem:[%s1 + $0x17e8] sm:$0xff]
      %v1025 = vld [vmem:[%s1 + $0x17f0] sm:$0xff]
      %v1026 = vld [vmem:[%s1 + $0x17f8] sm:$0xff]
      %v1027 = vld [vmem:[%s1 + $0x1800] sm:$0xff]
      %v1028 = vld [vmem:[%s1 + $0x1808] sm:$0xff]
      %v1029 = vld [vmem:[%s1 + $0x1810] sm:$0xff]
      %v1030 = vld [vmem:[%s1 + $0x1818] sm:$0xff]
      %v1031 = vld [vmem:[%s1 + $0x1820] sm:$0xff]
      %v1032 = vld [vmem:[%s1 + $0x1828] sm:$0xff]
      %v1033 = vld [vmem:[%s1 + $0x1830] sm:$0xff]
      %v1034 = vld [vmem:[%s1 + $0x1838] sm:$0xff]
      %v1035 = vld [vmem:[%s1 + $0x1840] sm:$0xff]
      %v1036 = vld [vmem:[%s1 + $0x1848] sm:$0xff]
      %v1037 = vld [vmem:[%s1 + $0x1850] sm:$0xff]
      %v1038 = vld [vmem:[%s1 + $0x1858] sm:$0xff]
      %v1039 = vld [vmem:[%s1 + $0x1860] sm:$0xff]
      %v1040 = vld [vmem:[%s1 + $0x1868] sm:$0xff]
      %v1041 = vld [vmem:[%s1 + $0x1870] sm:$0xff]
      %v1042 = vld [vmem:[%s1 + $0x1878] sm:$0xff]
      %v1043 = vld [vmem:[%s1 + $0x1880] sm:$0xff]
      %v1044 = vld [vmem:[%s1 + $0x1888] sm:$0xff]
      %v1045 = vld [vmem:[%s1 + $0x1890] sm:$0xff]
      %v1046 = vld [vmem:[%s1 + $0x1898] sm:$0xff]
      %v1047 = vld [vmem:[%s1 + $0x18a0] sm:$0xff]
      %v1048 = vld [vmem:[%s1 + $0x18a8] sm:$0xff]
      %v1049 = vld [vmem:[%s1 + $0x18b0] sm:$0xff]
      %v1050 = vld [vmem:[%s1 + $0x18b8] sm:$0xff]
      %v1051 = vld [vmem:[%s1 + $0x18c0] sm:$0xff]
      %v1052 = vld [vmem:[%s1 + $0x18c8] sm:$0xff]
      %v1053 = vld [vmem:[%s1 + $0x18d0] sm:$0xff]
      %v1054 = vld [vmem:[%s1 + $0x18d8] sm:$0xff]
      %v1055 = vld [vmem:[%s1 + $0x18e0] sm:$0xff]
      %v1056 = vld [vmem:[%s1 + $0x18e8] sm:$0xff]
      %v1057 = vld [vmem:[%s1 + $0x18f0] sm:$0xff]
      %v1058 = vld [vmem:[%s1 + $0x18f8] sm:$0xff]
      %v1059 = vld [vmem:[%s1 + $0x1900] sm:$0xff]
      %v1060 = vld [vmem:[%s1 + $0x1908] sm:$0xff]
      %v1061 = vld [vmem:[%s1 + $0x1910] sm:$0xff]
      %v1062 = vld [vmem:[%s1 + $0x1918] sm:$0xff]
      %v1063 = vld [vmem:[%s1 + $0x1920] sm:$0xff]
      %v1064 = vld [vmem:[%s1 + $0x1928] sm:$0xff]
      %v1065 = vld [vmem:[%s1 + $0x1930] sm:$0xff]
      %v1066 = vld [vmem:[%s1 + $0x1938] sm:$0xff]
      %v1067 = vld [vmem:[%s1 + $0x1940] sm:$0xff]
      %v1068 = vld [vmem:[%s1 + $0x1948] sm:$0xff]
      %v1069 = vld [vmem:[%s1 + $0x1950] sm:$0xff]
      %v1070 = vld [vmem:[%s1 + $0x1958] sm:$0xff]
      %v1071 = vld [vmem:[%s1 + $0x1960] sm:$0xff]
      %v1072 = vld [vmem:[%s1 + $0x1968] sm:$0xff]
      %v1073 = vld [vmem:[%s1 + $0x1970] sm:$0xff]
      %v1074 = vld [vmem:[%s1 + $0x1978] sm:$0xff]
      %v1075 = vld [vmem:[%s1 + $0x1980] sm:$0xff]
      %v1076 = vld [vmem:[%s1 + $0x1988] sm:$0xff]
      %v1077 = vld [vmem:[%s1 + $0x1990] sm:$0xff]
      %v1078 = vld [vmem:[%s1 + $0x1998] sm:$0xff]
      %v1079 = vld [vmem:[%s1 + $0x19a0] sm:$0xff]
      %v1080 = vld [vmem:[%s1 + $0x19a8] sm:$0xff]
      %v1081 = vld [vmem:[%s1 + $0x19b0] sm:$0xff]
      %v1082 = vld [vmem:[%s1 + $0x19b8] sm:$0xff]
      %v1083 = vld [vmem:[%s1 + $0x19c0] sm:$0xff]
      %v1084 = vld [vmem:[%s1 + $0x19c8] sm:$0xff]
      %v1085 = vld [vmem:[%s1 + $0x19d0] sm:$0xff]
      %v1086 = vld [vmem:[%s1 + $0x19d8] sm:$0xff]
      %v1087 = vld [vmem:[%s1 + $0x19e0] sm:$0xff]
      %v1088 = vld [vmem:[%s1 + $0x19e8] sm:$0xff]
      %v1089 = vld [vmem:[%s1 + $0x19f0] sm:$0xff]
      %v1090 = vld [vmem:[%s1 + $0x19f8] sm:$0xff]
      %v1091 = vld [vmem:[%s1 + $0x1a00] sm:$0xff]
      %v1092 = vld [vmem:[%s1 + $0x1a08] sm:$0xff]
      %v1093 = vld [vmem:[%s1 + $0x1a10] sm:$0xff]
      %v1094 = vld [vmem:[%s1 + $0x1a18] sm:$0xff]
      %v1095 = vld [vmem:[%s1 + $0x1a20] sm:$0xff]
      %v1096 = vld [vmem:[%s1 + $0x1a28] sm:$0xff]
      %v1097 = vld [vmem:[%s1 + $0x1a30] sm:$0xff]
      %v1098 = vld [vmem:[%s1 + $0x1a38] sm:$0xff]
      %v1099 = vld [vmem:[%s1 + $0x1a40] sm:$0xff]
      %v1100 = vld [vmem:[%s1 + $0x1a48] sm:$0xff]
      %v1101 = vld [vmem:[%s1 + $0x1a50] sm:$0xff]
      %v1102 = vld [vmem:[%s1 + $0x1a58] sm:$0xff]
      %v1103 = vld [vmem:[%s1 + $0x1a60] sm:$0xff]
      %v1104 = vld [vmem:[%s1 + $0x1a68] sm:$0xff]
      %v1105 = vld [vmem:[%s1 + $0x1a70] sm:$0xff]
      %v1106 = vld [vmem:[%s1 + $0x1a78] sm:$0xff]
      %v1107 = vld [vmem:[%s1 + $0x1a80] sm:$0xff]
      %v1108 = vld [vmem:[%s1 + $0x1a88] sm:$0xff]
      %v1109 = vld [vmem:[%s1 + $0x1a90] sm:$0xff]
      %v1110 = vld [vmem:[%s1 + $0x1a98] sm:$0xff]
      %v1111 = vld [vmem:[%s1 + $0x1aa0] sm:$0xff]
      %v1112 = vld [vmem:[%s1 + $0x1aa8] sm:$0xff]
      %v1113 = vld [vmem:[%s1 + $0x1ab0] sm:$0xff]
      %v1114 = vld [vmem:[%s1 + $0x1ab8] sm:$0xff]
      %v1115 = vld [vmem:[%s1 + $0x1ac0] sm:$0xff]
      %v1116 = vld [vmem:[%s1 + $0x1ac8] sm:$0xff]
      %v1117 = vld [vmem:[%s1 + $0x1ad0] sm:$0xff]
      %v1118 = vld [vmem:[%s1 + $0x1ad8] sm:$0xff]
      %v1119 = vld [vmem:[%s1 + $0x1ae0] sm:$0xff]
      %v1120 = vld [vmem:[%s1 + $0x1ae8] sm:$0xff]
      %v1121 = vld [vmem:[%s1 + $0x1af0] sm:$0xff]
      %v1122 = vld [vmem:[%s1 + $0x1af8] sm:$0xff]
      %v1123 = vld [vmem:[%s1 + $0x1b00] sm:$0xff]
      %v1124 = vld [vmem:[%s1 + $0x1b08] sm:$0xff]
      %v1125 = vld [vmem:[%s1 + $0x1b10] sm:$0xff]
      %v1126 = vld [vmem:[%s1 + $0x1b18] sm:$0xff]
      %v1127 = vld [vmem:[%s1 + $0x1b20] sm:$0xff]
      %v1128 = vld [vmem:[%s1 + $0x1b28] sm:$0xff]
      %v1129 = vld [vmem:[%s1 + $0x1b30] sm:$0xff]
      %v1130 = vld [vmem:[%s1 + $0x1b38] sm:$0xff]
      %v1131 = vld [vmem:[%s1 + $0x1b40] sm:$0xff]
      %v1132 = vld [vmem:[%s1 + $0x1b48] sm:$0xff]
      %v1133 = vld [vmem:[%s1 + $0x1b50] sm:$0xff]
      %v1134 = vld [vmem:[%s1 + $0x1b58] sm:$0xff]
      %v1135 = vld [vmem:[%s1 + $0x1b60] sm:$0xff]
      %v1136 = vld [vmem:[%s1 + $0x1b68] sm:$0xff]
      %v1137 = vld [vmem:[%s1 + $0x1b70] sm:$0xff]
      %v1138 = vld [vmem:[%s1 + $0x1b78] sm:$0xff]
      %v1139 = vld [vmem:[%s1 + $0x1b80] sm:$0xff]
      %v1140 = vld [vmem:[%s1 + $0x1b88] sm:$0xff]
      %v1141 = vld [vmem:[%s1 + $0x1b90] sm:$0xff]
      %v1142 = vld [vmem:[%s1 + $0x1b98] sm:$0xff]
      %v1143 = vld [vmem:[%s1 + $0x1ba0] sm:$0xff]
      %v1144 = vld [vmem:[%s1 + $0x1ba8] sm:$0xff]
      %v1145 = vld [vmem:[%s1 + $0x1bb0] sm:$0xff]
      %v1146 = vld [vmem:[%s1 + $0x1bb8] sm:$0xff]
      %v1147 = vld [vmem:[%s1 + $0x1bc0] sm:$0xff]
      %v1148 = vld [vmem:[%s1 + $0x1bc8] sm:$0xff]
      %v1149 = vld [vmem:[%s1 + $0x1bd0] sm:$0xff]
      %v1150 = vld [vmem:[%s1 + $0x1bd8] sm:$0xff]
      %v1151 = vld [vmem:[%s1 + $0x1be0] sm:$0xff]
      %v1152 = vld [vmem:[%s1 + $0x1be8] sm:$0xff]
      %v1153 = vld [vmem:[%s1 + $0x1bf0] sm:$0xff]
      %v1154 = vld [vmem:[%s1 + $0x1bf8] sm:$0xff]
      %v1155 = vld [vmem:[%s1 + $0x1c00] sm:$0xff]
      %v1156 = vld [vmem:[%s1 + $0x1c08] sm:$0xff]
      %v1157 = vld [vmem:[%s1 + $0x1c10] sm:$0xff]
      %v1158 = vld [vmem:[%s1 + $0x1c18] sm:$0xff]
      %v1159 = vld [vmem:[%s1 + $0x1c20] sm:$0xff]
      %v1160 = vld [vmem:[%s1 + $0x1c28] sm:$0xff]
      %v1161 = vld [vmem:[%s1 + $0x1c30] sm:$0xff]
      %v1162 = vld [vmem:[%s1 + $0x1c38] sm:$0xff]
      %v1163 = vld [vmem:[%s1 + $0x1c40] sm:$0xff]
      %v1164 = vld [vmem:[%s1 + $0x1c48] sm:$0xff]
      %v1165 = vld [vmem:[%s1 + $0x1c50] sm:$0xff]
      %v1166 = vld [vmem:[%s1 + $0x1c58] sm:$0xff]
      %v1167 = vld [vmem:[%s1 + $0x1c60] sm:$0xff]
      %v1168 = vld [vmem:[%s1 + $0x1c68] sm:$0xff]
      %v1169 = vld [vmem:[%s1 + $0x1c70] sm:$0xff]
      %v1170 = vld [vmem:[%s1 + $0x1c78] sm:$0xff]
      %v1171 = vld [vmem:[%s1 + $0x1c80] sm:$0xff]
      %v1172 = vld [vmem:[%s1 + $0x1c88] sm:$0xff]
      %v1173 = vld [vmem:[%s1 + $0x1c90] sm:$0xff]
      %v1174 = vld [vmem:[%s1 + $0x1c98] sm:$0xff]
      %v1175 = vld [vmem:[%s1 + $0x1ca0] sm:$0xff]
      %v1176 = vld [vmem:[%s1 + $0x1ca8] sm:$0xff]
      %v1177 = vld [vmem:[%s1 + $0x1cb0] sm:$0xff]
      %v1178 = vld [vmem:[%s1 + $0x1cb8] sm:$0xff]
      %v1179 = vld [vmem:[%s1 + $0x1cc0] sm:$0xff]
      %v1180 = vld [vmem:[%s1 + $0x1cc8] sm:$0xff]
      %v1181 = vld [vmem:[%s1 + $0x1cd0] sm:$0xff]
      %v1182 = vld [vmem:[%s1 + $0x1cd8] sm:$0xff]
      %v1183 = vld [vmem:[%s1 + $0x1ce0] sm:$0xff]
      %v1184 = vld [vmem:[%s1 + $0x1ce8] sm:$0xff]
      %v1185 = vld [vmem:[%s1 + $0x1cf0] sm:$0xff]
      %v1186 = vld [vmem:[%s1 + $0x1cf8] sm:$0xff]
      %v1187 = vld [vmem:[%s1 + $0x1d00] sm:$0xff]
      %v1188 = vld [vmem:[%s1 + $0x1d08] sm:$0xff]
      %v1189 = vld [vmem:[%s1 + $0x1d10] sm:$0xff]
      %v1190 = vld [vmem:[%s1 + $0x1d18] sm:$0xff]
      %v1191 = vld [vmem:[%s1 + $0x1d20] sm:$0xff]
      %v1192 = vld [vmem:[%s1 + $0x1d28] sm:$0xff]
      %v1193 = vld [vmem:[%s1 + $0x1d30] sm:$0xff]
      %v1194 = vld [vmem:[%s1 + $0x1d38] sm:$0xff]
      %v1195 = vld [vmem:[%s1 + $0x1d40] sm:$0xff]
      %v1196 = vld [vmem:[%s1 + $0x1d48] sm:$0xff]
      %v1197 = vld [vmem:[%s1 + $0x1d50] sm:$0xff]
      %v1198 = vld [vmem:[%s1 + $0x1d58] sm:$0xff]
      %v1199 = vld [vmem:[%s1 + $0x1d60] sm:$0xff]
      %v1200 = vld [vmem:[%s1 + $0x1d68] sm:$0xff]
      %v1201 = vld [vmem:[%s1 + $0x1d70] sm:$0xff]
      %v1202 = vld [vmem:[%s1 + $0x1d78] sm:$0xff]
      %v1203 = vld [vmem:[%s1 + $0x1d80] sm:$0xff]
      %v1204 = vld [vmem:[%s1 + $0x1d88] sm:$0xff]
      %v1205 = vld [vmem:[%s1 + $0x1d90] sm:$0xff]
      %v1206 = vld [vmem:[%s1 + $0x1d98] sm:$0xff]
      %v1207 = vld [vmem:[%s1 + $0x1da0] sm:$0xff]
      %v1208 = vld [vmem:[%s1 + $0x1da8] sm:$0xff]
      %v1209 = vld [vmem:[%s1 + $0x1db0] sm:$0xff]
      %v1210 = vld [vmem:[%s1 + $0x1db8] sm:$0xff]
      %v1211 = vld [vmem:[%s1 + $0x1dc0] sm:$0xff]
      %v1212 = vld [vmem:[%s1 + $0x1dc8] sm:$0xff]
      %v1213 = vld [vmem:[%s1 + $0x1dd0] sm:$0xff]
      %v1214 = vld [vmem:[%s1 + $0x1dd8] sm:$0xff]
      %v1215 = vld [vmem:[%s1 + $0x1de0] sm:$0xff]
      %v1216 = vld [vmem:[%s1 + $0x1de8] sm:$0xff]
      %v1217 = vld [vmem:[%s1 + $0x1df0] sm:$0xff]
      %v1218 = vld [vmem:[%s1 + $0x1df8] sm:$0xff]
      %v1219 = vld [vmem:[%s1 + $0x1e00] sm:$0xff]
      %v1220 = vld [vmem:[%s1 + $0x1e08] sm:$0xff]
      %v1221 = vld [vmem:[%s1 + $0x1e10] sm:$0xff]
      %v1222 = vld [vmem:[%s1 + $0x1e18] sm:$0xff]
      %v1223 = vld [vmem:[%s1 + $0x1e20] sm:$0xff]
      %v1224 = vld [vmem:[%s1 + $0x1e28] sm:$0xff]
      %v1225 = vld [vmem:[%s1 + $0x1e30] sm:$0xff]
      %v1226 = vld [vmem:[%s1 + $0x1e38] sm:$0xff]
      %v1227 = vld [vmem:[%s1 + $0x1e40] sm:$0xff]
      %v1228 = vld [vmem:[%s1 + $0x1e48] sm:$0xff]
      %v1229 = vld [vmem:[%s1 + $0x1e50] sm:$0xff]
      %v1230 = vld [vmem:[%s1 + $0x1e58] sm:$0xff]
      %v1231 = vld [vmem:[%s1 + $0x1e60] sm:$0xff]
      %v1232 = vld [vmem:[%s1 + $0x1e68] sm:$0xff]
      %v1233 = vld [vmem:[%s1 + $0x1e70] sm:$0xff]
      %v1234 = vld [vmem:[%s1 + $0x1e78] sm:$0xff]
      %v1235 = vld [vmem:[%s1 + $0x1e80] sm:$0xff]
      %v1236 = vld [vmem:[%s1 + $0x1e88] sm:$0xff]
      %v1237 = vld [vmem:[%s1 + $0x1e90] sm:$0xff]
      %v1238 = vld [vmem:[%s1 + $0x1e98] sm:$0xff]
      %v1239 = vld [vmem:[%s1 + $0x1ea0] sm:$0xff]
      %v1240 = vld [vmem:[%s1 + $0x1ea8] sm:$0xff]
      %v1241 = vld [vmem:[%s1 + $0x1eb0] sm:$0xff]
      %v1242 = vld [vmem:[%s1 + $0x1eb8] sm:$0xff]
      %v1243 = vld [vmem:[%s1 + $0x1ec0] sm:$0xff]
      %v1244 = vld [vmem:[%s1 + $0x1ec8] sm:$0xff]
      %v1245 = vld [vmem:[%s1 + $0x1ed0] sm:$0xff]
      %v1246 = vld [vmem:[%s1 + $0x1ed8] sm:$0xff]
      %v1247 = vld [vmem:[%s1 + $0x1ee0] sm:$0xff]
      %v1248 = vld [vmem:[%s1 + $0x1ee8] sm:$0xff]
      %v1249 = vld [vmem:[%s1 + $0x1ef0] sm:$0xff]
      %v1250 = vld [vmem:[%s1 + $0x1ef8] sm:$0xff]
      %v1251 = vld [vmem:[%s1 + $0x1f00] sm:$0xff]
      %v1252 = vld [vmem:[%s1 + $0x1f08] sm:$0xff]
      %v1253 = vld [vmem:[%s1 + $0x1f10] sm:$0xff]
      %v1254 = vld [vmem:[%s1 + $0x1f18] sm:$0xff]
      %v1255 = vld [vmem:[%s1 + $0x1f20] sm:$0xff]
      %v1256 = vld [vmem:[%s1 + $0x1f28] sm:$0xff]
      %v1257 = vld [vmem:[%s1 + $0x1f30] sm:$0xff]
      %v1258 = vld [vmem:[%s1 + $0x1f38] sm:$0xff]
      %v1259 = vld [vmem:[%s1 + $0x1f40] sm:$0xff]
      %v1260 = vld [vmem:[%s1 + $0x1f48] sm:$0xff]
      %v1261 = vld [vmem:[%s1 + $0x1f50] sm:$0xff]
      %v1262 = vld [vmem:[%s1 + $0x1f58] sm:$0xff]
      %v1263 = vld [vmem:[%s1 + $0x1f60] sm:$0xff]
      %v1264 = vld [vmem:[%s1 + $0x1f68] sm:$0xff]
      %v1265 = vld [vmem:[%s1 + $0x1f70] sm:$0xff]
      %v1266 = vld [vmem:[%s1 + $0x1f78] sm:$0xff]
      %v1267 = vld [vmem:[%s1 + $0x1f80] sm:$0xff]
      %v1268 = vld [vmem:[%s1 + $0x1f88] sm:$0xff]
      %v1269 = vld [vmem:[%s1 + $0x1f90] sm:$0xff]
      %v1270 = vld [vmem:[%s1 + $0x1f98] sm:$0xff]
      %v1271 = vld [vmem:[%s1 + $0x1fa0] sm:$0xff]
      %v1272 = vld [vmem:[%s1 + $0x1fa8] sm:$0xff]
      %v1273 = vld [vmem:[%s1 + $0x1fb0] sm:$0xff]
      %v1274 = vld [vmem:[%s1 + $0x1fb8] sm:$0xff]
      %v1275 = vld [vmem:[%s1 + $0x1fc0] sm:$0xff]
      %v1276 = vld [vmem:[%s1 + $0x1fc8] sm:$0xff]
      %v1277 = vld [vmem:[%s1 + $0x1fd0] sm:$0xff]
      %v1278 = vld [vmem:[%s1 + $0x1fd8] sm:$0xff]
      %v1279 = vld [vmem:[%s1 + $0x1fe0] sm:$0xff]
      %v1280 = vld [vmem:[%s1 + $0x1fe8] sm:$0xff]
      %v1281 = vld [vmem:[%s1 + $0x1ff0] sm:$0xff]
      %v1282 = vld [vmem:[%s1 + $0x1ff8] sm:$0xff]
      %v1315 = vunpack.c.l.b16 %v227
      %v1316 = vunpack.c.h.b16 %v227
      %v1317 = vunpack.c.l.b16 %v228
      %v1318 = vunpack.c.h.b16 %v228
      %v1319 = vunpack.c.l.b16 %v229
      %v1320 = vunpack.c.h.b16 %v229
      %v1321 = vunpack.c.l.b16 %v230
      %v1322 = vunpack.c.h.b16 %v230
      %v1323 = vunpack.c.l.b16 %v231
      %v1324 = vunpack.c.h.b16 %v231
      %v1325 = vunpack.c.l.b16 %v232
      %v1326 = vunpack.c.h.b16 %v232
      %v1327 = vunpack.c.l.b16 %v233
      %v1328 = vunpack.c.h.b16 %v233
      %v1329 = vunpack.c.l.b16 %v234
      %v1330 = vunpack.c.h.b16 %v234
      %v1331 = vunpack.c.l.b16 %v235
      %v1332 = vunpack.c.h.b16 %v235
      %v1333 = vunpack.c.l.b16 %v236
      %v1334 = vunpack.c.h.b16 %v236
      %v1335 = vunpack.c.l.b16 %v237
      %v1336 = vunpack.c.h.b16 %v237
      %v1337 = vunpack.c.l.b16 %v238
      %v1338 = vunpack.c.h.b16 %v238
      %v1339 = vunpack.c.l.b16 %v239
      %v1340 = vunpack.c.h.b16 %v239
      %v1341 = vunpack.c.l.b16 %v240
      %v1342 = vunpack.c.h.b16 %v240
      %v1343 = vunpack.c.l.b16 %v241
      %v1344 = vunpack.c.h.b16 %v241
      %v1345 = vunpack.c.l.b16 %v242
      %v1346 = vunpack.c.h.b16 %v242
      %v1347 = vunpack.c.l.b16 %v243
      %v1348 = vunpack.c.h.b16 %v243
      %v1349 = vunpack.c.l.b16 %v244
      %v1350 = vunpack.c.h.b16 %v244
      %v1351 = vunpack.c.l.b16 %v245
      %v1352 = vunpack.c.h.b16 %v245
      %v1353 = vunpack.c.l.b16 %v246
      %v1354 = vunpack.c.h.b16 %v246
      %v1355 = vunpack.c.l.b16 %v247
      %v1356 = vunpack.c.h.b16 %v247
      %v1357 = vunpack.c.l.b16 %v248
      %v1358 = vunpack.c.h.b16 %v248
      %v1359 = vunpack.c.l.b16 %v249
      %v1360 = vunpack.c.h.b16 %v249
      %v1361 = vunpack.c.l.b16 %v250
      %v1362 = vunpack.c.h.b16 %v250
      %v1363 = vunpack.c.l.b16 %v251
      %v1364 = vunpack.c.h.b16 %v251
      %v1365 = vunpack.c.l.b16 %v252
      %v1366 = vunpack.c.h.b16 %v252
      %v1367 = vunpack.c.l.b16 %v253
      %v1368 = vunpack.c.h.b16 %v253
      %v1369 = vunpack.c.l.b16 %v254
      %v1370 = vunpack.c.h.b16 %v254
      %v1371 = vunpack.c.l.b16 %v255
      %v1372 = vunpack.c.h.b16 %v255
      %v1373 = vunpack.c.l.b16 %v256
      %v1374 = vunpack.c.h.b16 %v256
      %v1375 = vunpack.c.l.b16 %v257
      %v1376 = vunpack.c.h.b16 %v257
      %v1377 = vunpack.c.l.b16 %v258
      %v1378 = vunpack.c.h.b16 %v258
      %v1379 = vpack.c.b16 %v1347, %v1315
      %v1380 = vpack.c.b16 %v1348, %v1316
      %v1381 = vpack.c.b16 %v1349, %v1317
      %v1382 = vpack.c.b16 %v1350, %v1318
      %v1383 = vpack.c.b16 %v1351, %v1319
      %v1384 = vpack.c.b16 %v1352, %v1320
      %v1385 = vpack.c.b16 %v1353, %v1321
      %v1386 = vpack.c.b16 %v1354, %v1322
      %v1387 = vpack.c.b16 %v1355, %v1323
      %v1388 = vpack.c.b16 %v1356, %v1324
      %v1389 = vpack.c.b16 %v1357, %v1325
      %v1390 = vpack.c.b16 %v1358, %v1326
      %v1391 = vpack.c.b16 %v1359, %v1327
      %v1392 = vpack.c.b16 %v1360, %v1328
      %v1393 = vpack.c.b16 %v1361, %v1329
      %v1394 = vpack.c.b16 %v1362, %v1330
      %v1395 = vpack.c.b16 %v1363, %v1331
      %v1396 = vpack.c.b16 %v1364, %v1332
      %v1397 = vpack.c.b16 %v1365, %v1333
      %v1398 = vpack.c.b16 %v1366, %v1334
      %v1399 = vpack.c.b16 %v1367, %v1335
      %v1400 = vpack.c.b16 %v1368, %v1336
      %v1401 = vpack.c.b16 %v1369, %v1337
      %v1402 = vpack.c.b16 %v1370, %v1338
      %v1403 = vpack.c.b16 %v1371, %v1339
      %v1404 = vpack.c.b16 %v1372, %v1340
      %v1405 = vpack.c.b16 %v1373, %v1341
      %v1406 = vpack.c.b16 %v1374, %v1342
      %v1407 = vpack.c.b16 %v1375, %v1343
      %v1408 = vpack.c.b16 %v1376, %v1344
      %v1409 = vpack.c.b16 %v1377, %v1345
      %v1410 = vpack.c.b16 %v1378, %v1346
      %v2467 = vunpack.c.l.b16 %v259
      %v2468 = vunpack.c.h.b16 %v259
      %v2469 = vunpack.c.l.b16 %v260
      %v2470 = vunpack.c.h.b16 %v260
      %v2471 = vunpack.c.l.b16 %v261
      %v2472 = vunpack.c.h.b16 %v261
      %v2473 = vunpack.c.l.b16 %v262
      %v2474 = vunpack.c.h.b16 %v262
      %v2475 = vunpack.c.l.b16 %v263
      %v2476 = vunpack.c.h.b16 %v263
      %v2477 = vunpack.c.l.b16 %v264
      %v2478 = vunpack.c.h.b16 %v264
      %v2479 = vunpack.c.l.b16 %v265
      %v2480 = vunpack.c.h.b16 %v265
      %v2481 = vunpack.c.l.b16 %v266
      %v2482 = vunpack.c.h.b16 %v266
      %v2483 = vunpack.c.l.b16 %v267
      %v2484 = vunpack.c.h.b16 %v267
      %v2485 = vunpack.c.l.b16 %v268
      %v2486 = vunpack.c.h.b16 %v268
      %v2487 = vunpack.c.l.b16 %v269
      %v2488 = vunpack.c.h.b16 %v269
      %v2489 = vunpack.c.l.b16 %v270
      %v2490 = vunpack.c.h.b16 %v270
      %v2491 = vunpack.c.l.b16 %v271
      %v2492 = vunpack.c.h.b16 %v271
      %v2493 = vunpack.c.l.b16 %v272
      %v2494 = vunpack.c.h.b16 %v272
      %v2495 = vunpack.c.l.b16 %v273
      %v2496 = vunpack.c.h.b16 %v273
      %v2497 = vunpack.c.l.b16 %v274
      %v2498 = vunpack.c.h.b16 %v274
      %v2499 = vunpack.c.l.b16 %v275
      %v2500 = vunpack.c.h.b16 %v275
      %v2501 = vunpack.c.l.b16 %v276
      %v2502 = vunpack.c.h.b16 %v276
      %v2503 = vunpack.c.l.b16 %v277
      %v2504 = vunpack.c.h.b16 %v277
      %v2505 = vunpack.c.l.b16 %v278
      %v2506 = vunpack.c.h.b16 %v278
      %v2507 = vunpack.c.l.b16 %v279
      %v2508 = vunpack.c.h.b16 %v279
      %v2509 = vunpack.c.l.b16 %v280
      %v2510 = vunpack.c.h.b16 %v280
      %v2511 = vunpack.c.l.b16 %v281
      %v2512 = vunpack.c.h.b16 %v281
      %v2513 = vunpack.c.l.b16 %v282
      %v2514 = vunpack.c.h.b16 %v282
      %v2515 = vunpack.c.l.b16 %v283
      %v2516 = vunpack.c.h.b16 %v283
      %v2517 = vunpack.c.l.b16 %v284
      %v2518 = vunpack.c.h.b16 %v284
      %v2519 = vunpack.c.l.b16 %v285
      %v2520 = vunpack.c.h.b16 %v285
      %v2521 = vunpack.c.l.b16 %v286
      %v2522 = vunpack.c.h.b16 %v286
      %v2523 = vunpack.c.l.b16 %v287
      %v2524 = vunpack.c.h.b16 %v287
      %v2525 = vunpack.c.l.b16 %v288
      %v2526 = vunpack.c.h.b16 %v288
      %v2527 = vunpack.c.l.b16 %v289
      %v2528 = vunpack.c.h.b16 %v289
      %v2529 = vunpack.c.l.b16 %v290
      %v2530 = vunpack.c.h.b16 %v290
      %v2531 = vunpack.c.l.b16 %v291
      %v2532 = vunpack.c.h.b16 %v291
      %v2533 = vunpack.c.l.b16 %v292
      %v2534 = vunpack.c.h.b16 %v292
      %v2535 = vunpack.c.l.b16 %v293
      %v2536 = vunpack.c.h.b16 %v293
      %v2537 = vunpack.c.l.b16 %v294
      %v2538 = vunpack.c.h.b16 %v294
      %v2539 = vunpack.c.l.b16 %v295
      %v2540 = vunpack.c.h.b16 %v295
      %v2541 = vunpack.c.l.b16 %v296
      %v2542 = vunpack.c.h.b16 %v296
      %v2543 = vunpack.c.l.b16 %v297
      %v2544 = vunpack.c.h.b16 %v297
      %v2545 = vunpack.c.l.b16 %v298
      %v2546 = vunpack.c.h.b16 %v298
      %v2547 = vunpack.c.l.b16 %v299
      %v2548 = vunpack.c.h.b16 %v299
      %v2549 = vunpack.c.l.b16 %v300
      %v2550 = vunpack.c.h.b16 %v300
      %v2551 = vunpack.c.l.b16 %v301
      %v2552 = vunpack.c.h.b16 %v301
      %v2553 = vunpack.c.l.b16 %v302
      %v2554 = vunpack.c.h.b16 %v302
      %v2555 = vunpack.c.l.b16 %v303
      %v2556 = vunpack.c.h.b16 %v303
      %v2557 = vunpack.c.l.b16 %v304
      %v2558 = vunpack.c.h.b16 %v304
      %v2559 = vunpack.c.l.b16 %v305
      %v2560 = vunpack.c.h.b16 %v305
      %v2561 = vunpack.c.l.b16 %v306
      %v2562 = vunpack.c.h.b16 %v306
      %v2563 = vunpack.c.l.b16 %v307
      %v2564 = vunpack.c.h.b16 %v307
      %v2565 = vunpack.c.l.b16 %v308
      %v2566 = vunpack.c.h.b16 %v308
      %v2567 = vunpack.c.l.b16 %v309
      %v2568 = vunpack.c.h.b16 %v309
      %v2569 = vunpack.c.l.b16 %v310
      %v2570 = vunpack.c.h.b16 %v310
      %v2571 = vunpack.c.l.b16 %v311
      %v2572 = vunpack.c.h.b16 %v311
      %v2573 = vunpack.c.l.b16 %v312
      %v2574 = vunpack.c.h.b16 %v312
      %v2575 = vunpack.c.l.b16 %v313
      %v2576 = vunpack.c.h.b16 %v313
      %v2577 = vunpack.c.l.b16 %v314
      %v2578 = vunpack.c.h.b16 %v314
      %v2579 = vunpack.c.l.b16 %v315
      %v2580 = vunpack.c.h.b16 %v315
      %v2581 = vunpack.c.l.b16 %v316
      %v2582 = vunpack.c.h.b16 %v316
      %v2583 = vunpack.c.l.b16 %v317
      %v2584 = vunpack.c.h.b16 %v317
      %v2585 = vunpack.c.l.b16 %v318
      %v2586 = vunpack.c.h.b16 %v318
      %v2587 = vunpack.c.l.b16 %v319
      %v2588 = vunpack.c.h.b16 %v319
      %v2589 = vunpack.c.l.b16 %v320
      %v2590 = vunpack.c.h.b16 %v320
      %v2591 = vunpack.c.l.b16 %v321
      %v2592 = vunpack.c.h.b16 %v321
      %v2593 = vunpack.c.l.b16 %v322
      %v2594 = vunpack.c.h.b16 %v322
      %v2595 = vunpack.c.l.b16 %v323
      %v2596 = vunpack.c.h.b16 %v323
      %v2597 = vunpack.c.l.b16 %v324
      %v2598 = vunpack.c.h.b16 %v324
      %v2599 = vunpack.c.l.b16 %v325
      %v2600 = vunpack.c.h.b16 %v325
      %v2601 = vunpack.c.l.b16 %v326
      %v2602 = vunpack.c.h.b16 %v326
      %v2603 = vunpack.c.l.b16 %v327
      %v2604 = vunpack.c.h.b16 %v327
      %v2605 = vunpack.c.l.b16 %v328
      %v2606 = vunpack.c.h.b16 %v328
      %v2607 = vunpack.c.l.b16 %v329
      %v2608 = vunpack.c.h.b16 %v329
      %v2609 = vunpack.c.l.b16 %v330
      %v2610 = vunpack.c.h.b16 %v330
      %v2611 = vunpack.c.l.b16 %v331
      %v2612 = vunpack.c.h.b16 %v331
      %v2613 = vunpack.c.l.b16 %v332
      %v2614 = vunpack.c.h.b16 %v332
      %v2615 = vunpack.c.l.b16 %v333
      %v2616 = vunpack.c.h.b16 %v333
      %v2617 = vunpack.c.l.b16 %v334
      %v2618 = vunpack.c.h.b16 %v334
      %v2619 = vunpack.c.l.b16 %v335
      %v2620 = vunpack.c.h.b16 %v335
      %v2621 = vunpack.c.l.b16 %v336
      %v2622 = vunpack.c.h.b16 %v336
      %v2623 = vunpack.c.l.b16 %v337
      %v2624 = vunpack.c.h.b16 %v337
      %v2625 = vunpack.c.l.b16 %v338
      %v2626 = vunpack.c.h.b16 %v338
      %v2627 = vunpack.c.l.b16 %v339
      %v2628 = vunpack.c.h.b16 %v339
      %v2629 = vunpack.c.l.b16 %v340
      %v2630 = vunpack.c.h.b16 %v340
      %v2631 = vunpack.c.l.b16 %v341
      %v2632 = vunpack.c.h.b16 %v341
      %v2633 = vunpack.c.l.b16 %v342
      %v2634 = vunpack.c.h.b16 %v342
      %v2635 = vunpack.c.l.b16 %v343
      %v2636 = vunpack.c.h.b16 %v343
      %v2637 = vunpack.c.l.b16 %v344
      %v2638 = vunpack.c.h.b16 %v344
      %v2639 = vunpack.c.l.b16 %v345
      %v2640 = vunpack.c.h.b16 %v345
      %v2641 = vunpack.c.l.b16 %v346
      %v2642 = vunpack.c.h.b16 %v346
      %v2643 = vunpack.c.l.b16 %v347
      %v2644 = vunpack.c.h.b16 %v347
      %v2645 = vunpack.c.l.b16 %v348
      %v2646 = vunpack.c.h.b16 %v348
      %v2647 = vunpack.c.l.b16 %v349
      %v2648 = vunpack.c.h.b16 %v349
      %v2649 = vunpack.c.l.b16 %v350
      %v2650 = vunpack.c.h.b16 %v350
      %v2651 = vunpack.c.l.b16 %v351
      %v2652 = vunpack.c.h.b16 %v351
      %v2653 = vunpack.c.l.b16 %v352
      %v2654 = vunpack.c.h.b16 %v352
      %v2655 = vunpack.c.l.b16 %v353
      %v2656 = vunpack.c.h.b16 %v353
      %v2657 = vunpack.c.l.b16 %v354
      %v2658 = vunpack.c.h.b16 %v354
      %v2659 = vunpack.c.l.b16 %v355
      %v2660 = vunpack.c.h.b16 %v355
      %v2661 = vunpack.c.l.b16 %v356
      %v2662 = vunpack.c.h.b16 %v356
      %v2663 = vunpack.c.l.b16 %v357
      %v2664 = vunpack.c.h.b16 %v357
      %v2665 = vunpack.c.l.b16 %v358
      %v2666 = vunpack.c.h.b16 %v358
      %v2667 = vunpack.c.l.b16 %v359
      %v2668 = vunpack.c.h.b16 %v359
      %v2669 = vunpack.c.l.b16 %v360
      %v2670 = vunpack.c.h.b16 %v360
      %v2671 = vunpack.c.l.b16 %v361
      %v2672 = vunpack.c.h.b16 %v361
      %v2673 = vunpack.c.l.b16 %v362
      %v2674 = vunpack.c.h.b16 %v362
      %v2675 = vunpack.c.l.b16 %v363
      %v2676 = vunpack.c.h.b16 %v363
      %v2677 = vunpack.c.l.b16 %v364
      %v2678 = vunpack.c.h.b16 %v364
      %v2679 = vunpack.c.l.b16 %v365
      %v2680 = vunpack.c.h.b16 %v365
      %v2681 = vunpack.c.l.b16 %v366
      %v2682 = vunpack.c.h.b16 %v366
      %v2683 = vunpack.c.l.b16 %v367
      %v2684 = vunpack.c.h.b16 %v367
      %v2685 = vunpack.c.l.b16 %v368
      %v2686 = vunpack.c.h.b16 %v368
      %v2687 = vunpack.c.l.b16 %v369
      %v2688 = vunpack.c.h.b16 %v369
      %v2689 = vunpack.c.l.b16 %v370
      %v2690 = vunpack.c.h.b16 %v370
      %v2691 = vunpack.c.l.b16 %v371
      %v2692 = vunpack.c.h.b16 %v371
      %v2693 = vunpack.c.l.b16 %v372
      %v2694 = vunpack.c.h.b16 %v372
      %v2695 = vunpack.c.l.b16 %v373
      %v2696 = vunpack.c.h.b16 %v373
      %v2697 = vunpack.c.l.b16 %v374
      %v2698 = vunpack.c.h.b16 %v374
      %v2699 = vunpack.c.l.b16 %v375
      %v2700 = vunpack.c.h.b16 %v375
      %v2701 = vunpack.c.l.b16 %v376
      %v2702 = vunpack.c.h.b16 %v376
      %v2703 = vunpack.c.l.b16 %v377
      %v2704 = vunpack.c.h.b16 %v377
      %v2705 = vunpack.c.l.b16 %v378
      %v2706 = vunpack.c.h.b16 %v378
      %v2707 = vunpack.c.l.b16 %v379
      %v2708 = vunpack.c.h.b16 %v379
      %v2709 = vunpack.c.l.b16 %v380
      %v2710 = vunpack.c.h.b16 %v380
      %v2711 = vunpack.c.l.b16 %v381
      %v2712 = vunpack.c.h.b16 %v381
      %v2713 = vunpack.c.l.b16 %v382
      %v2714 = vunpack.c.h.b16 %v382
      %v2715 = vunpack.c.l.b16 %v383
      %v2716 = vunpack.c.h.b16 %v383
      %v2717 = vunpack.c.l.b16 %v384
      %v2718 = vunpack.c.h.b16 %v384
      %v2719 = vunpack.c.l.b16 %v385
      %v2720 = vunpack.c.h.b16 %v385
      %v2721 = vunpack.c.l.b16 %v386
      %v2722 = vunpack.c.h.b16 %v386
      %v2723 = vunpack.c.l.b16 %v387
      %v2724 = vunpack.c.h.b16 %v387
      %v2725 = vunpack.c.l.b16 %v388
      %v2726 = vunpack.c.h.b16 %v388
      %v2727 = vunpack.c.l.b16 %v389
      %v2728 = vunpack.c.h.b16 %v389
      %v2729 = vunpack.c.l.b16 %v390
      %v2730 = vunpack.c.h.b16 %v390
      %v2731 = vunpack.c.l.b16 %v391
      %v2732 = vunpack.c.h.b16 %v391
      %v2733 = vunpack.c.l.b16 %v392
      %v2734 = vunpack.c.h.b16 %v392
      %v2735 = vunpack.c.l.b16 %v393
      %v2736 = vunpack.c.h.b16 %v393
      %v2737 = vunpack.c.l.b16 %v394
      %v2738 = vunpack.c.h.b16 %v394
      %v2739 = vunpack.c.l.b16 %v395
      %v2740 = vunpack.c.h.b16 %v395
      %v2741 = vunpack.c.l.b16 %v396
      %v2742 = vunpack.c.h.b16 %v396
      %v2743 = vunpack.c.l.b16 %v397
      %v2744 = vunpack.c.h.b16 %v397
      %v2745 = vunpack.c.l.b16 %v398
      %v2746 = vunpack.c.h.b16 %v398
      %v2747 = vunpack.c.l.b16 %v399
      %v2748 = vunpack.c.h.b16 %v399
      %v2749 = vunpack.c.l.b16 %v400
      %v2750 = vunpack.c.h.b16 %v400
      %v2751 = vunpack.c.l.b16 %v401
      %v2752 = vunpack.c.h.b16 %v401
      %v2753 = vunpack.c.l.b16 %v402
      %v2754 = vunpack.c.h.b16 %v402
      %v2755 = vunpack.c.l.b16 %v403
      %v2756 = vunpack.c.h.b16 %v403
      %v2757 = vunpack.c.l.b16 %v404
      %v2758 = vunpack.c.h.b16 %v404
      %v2759 = vunpack.c.l.b16 %v405
      %v2760 = vunpack.c.h.b16 %v405
      %v2761 = vunpack.c.l.b16 %v406
      %v2762 = vunpack.c.h.b16 %v406
      %v2763 = vunpack.c.l.b16 %v407
      %v2764 = vunpack.c.h.b16 %v407
      %v2765 = vunpack.c.l.b16 %v408
      %v2766 = vunpack.c.h.b16 %v408
      %v2767 = vunpack.c.l.b16 %v409
      %v2768 = vunpack.c.h.b16 %v409
      %v2769 = vunpack.c.l.b16 %v410
      %v2770 = vunpack.c.h.b16 %v410
      %v2771 = vunpack.c.l.b16 %v411
      %v2772 = vunpack.c.h.b16 %v411
      %v2773 = vunpack.c.l.b16 %v412
      %v2774 = vunpack.c.h.b16 %v412
      %v2775 = vunpack.c.l.b16 %v413
      %v2776 = vunpack.c.h.b16 %v413
      %v2777 = vunpack.c.l.b16 %v414
      %v2778 = vunpack.c.h.b16 %v414
      %v2779 = vunpack.c.l.b16 %v415
      %v2780 = vunpack.c.h.b16 %v415
      %v2781 = vunpack.c.l.b16 %v416
      %v2782 = vunpack.c.h.b16 %v416
      %v2783 = vunpack.c.l.b16 %v417
      %v2784 = vunpack.c.h.b16 %v417
      %v2785 = vunpack.c.l.b16 %v418
      %v2786 = vunpack.c.h.b16 %v418
      %v2787 = vunpack.c.l.b16 %v419
      %v2788 = vunpack.c.h.b16 %v419
      %v2789 = vunpack.c.l.b16 %v420
      %v2790 = vunpack.c.h.b16 %v420
      %v2791 = vunpack.c.l.b16 %v421
      %v2792 = vunpack.c.h.b16 %v421
      %v2793 = vunpack.c.l.b16 %v422
      %v2794 = vunpack.c.h.b16 %v422
      %v2795 = vunpack.c.l.b16 %v423
      %v2796 = vunpack.c.h.b16 %v423
      %v2797 = vunpack.c.l.b16 %v424
      %v2798 = vunpack.c.h.b16 %v424
      %v2799 = vunpack.c.l.b16 %v425
      %v2800 = vunpack.c.h.b16 %v425
      %v2801 = vunpack.c.l.b16 %v426
      %v2802 = vunpack.c.h.b16 %v426
      %v2803 = vunpack.c.l.b16 %v427
      %v2804 = vunpack.c.h.b16 %v427
      %v2805 = vunpack.c.l.b16 %v428
      %v2806 = vunpack.c.h.b16 %v428
      %v2807 = vunpack.c.l.b16 %v429
      %v2808 = vunpack.c.h.b16 %v429
      %v2809 = vunpack.c.l.b16 %v430
      %v2810 = vunpack.c.h.b16 %v430
      %v2811 = vunpack.c.l.b16 %v431
      %v2812 = vunpack.c.h.b16 %v431
      %v2813 = vunpack.c.l.b16 %v432
      %v2814 = vunpack.c.h.b16 %v432
      %v2815 = vunpack.c.l.b16 %v433
      %v2816 = vunpack.c.h.b16 %v433
      %v2817 = vunpack.c.l.b16 %v434
      %v2818 = vunpack.c.h.b16 %v434
      %v2819 = vunpack.c.l.b16 %v435
      %v2820 = vunpack.c.h.b16 %v435
      %v2821 = vunpack.c.l.b16 %v436
      %v2822 = vunpack.c.h.b16 %v436
      %v2823 = vunpack.c.l.b16 %v437
      %v2824 = vunpack.c.h.b16 %v437
      %v2825 = vunpack.c.l.b16 %v438
      %v2826 = vunpack.c.h.b16 %v438
      %v2827 = vunpack.c.l.b16 %v439
      %v2828 = vunpack.c.h.b16 %v439
      %v2829 = vunpack.c.l.b16 %v440
      %v2830 = vunpack.c.h.b16 %v440
      %v2831 = vunpack.c.l.b16 %v441
      %v2832 = vunpack.c.h.b16 %v441
      %v2833 = vunpack.c.l.b16 %v442
      %v2834 = vunpack.c.h.b16 %v442
      %v2835 = vunpack.c.l.b16 %v443
      %v2836 = vunpack.c.h.b16 %v443
      %v2837 = vunpack.c.l.b16 %v444
      %v2838 = vunpack.c.h.b16 %v444
      %v2839 = vunpack.c.l.b16 %v445
      %v2840 = vunpack.c.h.b16 %v445
      %v2841 = vunpack.c.l.b16 %v446
      %v2842 = vunpack.c.h.b16 %v446
      %v2843 = vunpack.c.l.b16 %v447
      %v2844 = vunpack.c.h.b16 %v447
      %v2845 = vunpack.c.l.b16 %v448
      %v2846 = vunpack.c.h.b16 %v448
      %v2847 = vunpack.c.l.b16 %v449
      %v2848 = vunpack.c.h.b16 %v449
      %v2849 = vunpack.c.l.b16 %v450
      %v2850 = vunpack.c.h.b16 %v450
      %v2851 = vunpack.c.l.b16 %v451
      %v2852 = vunpack.c.h.b16 %v451
      %v2853 = vunpack.c.l.b16 %v452
      %v2854 = vunpack.c.h.b16 %v452
      %v2855 = vunpack.c.l.b16 %v453
      %v2856 = vunpack.c.h.b16 %v453
      %v2857 = vunpack.c.l.b16 %v454
      %v2858 = vunpack.c.h.b16 %v454
      %v2859 = vunpack.c.l.b16 %v455
      %v2860 = vunpack.c.h.b16 %v455
      %v2861 = vunpack.c.l.b16 %v456
      %v2862 = vunpack.c.h.b16 %v456
      %v2863 = vunpack.c.l.b16 %v457
      %v2864 = vunpack.c.h.b16 %v457
      %v2865 = vunpack.c.l.b16 %v458
      %v2866 = vunpack.c.h.b16 %v458
      %v2867 = vunpack.c.l.b16 %v459
      %v2868 = vunpack.c.h.b16 %v459
      %v2869 = vunpack.c.l.b16 %v460
      %v2870 = vunpack.c.h.b16 %v460
      %v2871 = vunpack.c.l.b16 %v461
      %v2872 = vunpack.c.h.b16 %v461
      %v2873 = vunpack.c.l.b16 %v462
      %v2874 = vunpack.c.h.b16 %v462
      %v2875 = vunpack.c.l.b16 %v463
      %v2876 = vunpack.c.h.b16 %v463
      %v2877 = vunpack.c.l.b16 %v464
      %v2878 = vunpack.c.h.b16 %v464
      %v2879 = vunpack.c.l.b16 %v465
      %v2880 = vunpack.c.h.b16 %v465
      %v2881 = vunpack.c.l.b16 %v466
      %v2882 = vunpack.c.h.b16 %v466
      %v2883 = vunpack.c.l.b16 %v467
      %v2884 = vunpack.c.h.b16 %v467
      %v2885 = vunpack.c.l.b16 %v468
      %v2886 = vunpack.c.h.b16 %v468
      %v2887 = vunpack.c.l.b16 %v469
      %v2888 = vunpack.c.h.b16 %v469
      %v2889 = vunpack.c.l.b16 %v470
      %v2890 = vunpack.c.h.b16 %v470
      %v2891 = vunpack.c.l.b16 %v471
      %v2892 = vunpack.c.h.b16 %v471
      %v2893 = vunpack.c.l.b16 %v472
      %v2894 = vunpack.c.h.b16 %v472
      %v2895 = vunpack.c.l.b16 %v473
      %v2896 = vunpack.c.h.b16 %v473
      %v2897 = vunpack.c.l.b16 %v474
      %v2898 = vunpack.c.h.b16 %v474
      %v2899 = vunpack.c.l.b16 %v475
      %v2900 = vunpack.c.h.b16 %v475
      %v2901 = vunpack.c.l.b16 %v476
      %v2902 = vunpack.c.h.b16 %v476
      %v2903 = vunpack.c.l.b16 %v477
      %v2904 = vunpack.c.h.b16 %v477
      %v2905 = vunpack.c.l.b16 %v478
      %v2906 = vunpack.c.h.b16 %v478
      %v2907 = vunpack.c.l.b16 %v479
      %v2908 = vunpack.c.h.b16 %v479
      %v2909 = vunpack.c.l.b16 %v480
      %v2910 = vunpack.c.h.b16 %v480
      %v2911 = vunpack.c.l.b16 %v481
      %v2912 = vunpack.c.h.b16 %v481
      %v2913 = vunpack.c.l.b16 %v482
      %v2914 = vunpack.c.h.b16 %v482
      %v2915 = vunpack.c.l.b16 %v483
      %v2916 = vunpack.c.h.b16 %v483
      %v2917 = vunpack.c.l.b16 %v484
      %v2918 = vunpack.c.h.b16 %v484
      %v2919 = vunpack.c.l.b16 %v485
      %v2920 = vunpack.c.h.b16 %v485
      %v2921 = vunpack.c.l.b16 %v486
      %v2922 = vunpack.c.h.b16 %v486
      %v2923 = vunpack.c.l.b16 %v487
      %v2924 = vunpack.c.h.b16 %v487
      %v2925 = vunpack.c.l.b16 %v488
      %v2926 = vunpack.c.h.b16 %v488
      %v2927 = vunpack.c.l.b16 %v489
      %v2928 = vunpack.c.h.b16 %v489
      %v2929 = vunpack.c.l.b16 %v490
      %v2930 = vunpack.c.h.b16 %v490
      %v2931 = vunpack.c.l.b16 %v491
      %v2932 = vunpack.c.h.b16 %v491
      %v2933 = vunpack.c.l.b16 %v492
      %v2934 = vunpack.c.h.b16 %v492
      %v2935 = vunpack.c.l.b16 %v493
      %v2936 = vunpack.c.h.b16 %v493
      %v2937 = vunpack.c.l.b16 %v494
      %v2938 = vunpack.c.h.b16 %v494
      %v2939 = vunpack.c.l.b16 %v495
      %v2940 = vunpack.c.h.b16 %v495
      %v2941 = vunpack.c.l.b16 %v496
      %v2942 = vunpack.c.h.b16 %v496
      %v2943 = vunpack.c.l.b16 %v497
      %v2944 = vunpack.c.h.b16 %v497
      %v2945 = vunpack.c.l.b16 %v498
      %v2946 = vunpack.c.h.b16 %v498
      %v2947 = vunpack.c.l.b16 %v499
      %v2948 = vunpack.c.h.b16 %v499
      %v2949 = vunpack.c.l.b16 %v500
      %v2950 = vunpack.c.h.b16 %v500
      %v2951 = vunpack.c.l.b16 %v501
      %v2952 = vunpack.c.h.b16 %v501
      %v2953 = vunpack.c.l.b16 %v502
      %v2954 = vunpack.c.h.b16 %v502
      %v2955 = vunpack.c.l.b16 %v503
      %v2956 = vunpack.c.h.b16 %v503
      %v2957 = vunpack.c.l.b16 %v504
      %v2958 = vunpack.c.h.b16 %v504
      %v2959 = vunpack.c.l.b16 %v505
      %v2960 = vunpack.c.h.b16 %v505
      %v2961 = vunpack.c.l.b16 %v506
      %v2962 = vunpack.c.h.b16 %v506
      %v2963 = vunpack.c.l.b16 %v507
      %v2964 = vunpack.c.h.b16 %v507
      %v2965 = vunpack.c.l.b16 %v508
      %v2966 = vunpack.c.h.b16 %v508
      %v2967 = vunpack.c.l.b16 %v509
      %v2968 = vunpack.c.h.b16 %v509
      %v2969 = vunpack.c.l.b16 %v510
      %v2970 = vunpack.c.h.b16 %v510
      %v2971 = vunpack.c.l.b16 %v511
      %v2972 = vunpack.c.h.b16 %v511
      %v2973 = vunpack.c.l.b16 %v512
      %v2974 = vunpack.c.h.b16 %v512
      %v2975 = vunpack.c.l.b16 %v513
      %v2976 = vunpack.c.h.b16 %v513
      %v2977 = vunpack.c.l.b16 %v514
      %v2978 = vunpack.c.h.b16 %v514
      %v2979 = vunpack.c.l.b16 %v515
      %v2980 = vunpack.c.h.b16 %v515
      %v2981 = vunpack.c.l.b16 %v516
      %v2982 = vunpack.c.h.b16 %v516
      %v2983 = vunpack.c.l.b16 %v517
      %v2984 = vunpack.c.h.b16 %v517
      %v2985 = vunpack.c.l.b16 %v518
      %v2986 = vunpack.c.h.b16 %v518
      %v2987 = vunpack.c.l.b16 %v519
      %v2988 = vunpack.c.h.b16 %v519
      %v2989 = vunpack.c.l.b16 %v520
      %v2990 = vunpack.c.h.b16 %v520
      %v2991 = vunpack.c.l.b16 %v521
      %v2992 = vunpack.c.h.b16 %v521
      %v2993 = vunpack.c.l.b16 %v522
      %v2994 = vunpack.c.h.b16 %v522
      %v2995 = vunpack.c.l.b16 %v523
      %v2996 = vunpack.c.h.b16 %v523
      %v2997 = vunpack.c.l.b16 %v524
      %v2998 = vunpack.c.h.b16 %v524
      %v2999 = vunpack.c.l.b16 %v525
      %v3000 = vunpack.c.h.b16 %v525
      %v3001 = vunpack.c.l.b16 %v526
      %v3002 = vunpack.c.h.b16 %v526
      %v3003 = vunpack.c.l.b16 %v527
      %v3004 = vunpack.c.h.b16 %v527
      %v3005 = vunpack.c.l.b16 %v528
      %v3006 = vunpack.c.h.b16 %v528
      %v3007 = vunpack.c.l.b16 %v529
      %v3008 = vunpack.c.h.b16 %v529
      %v3009 = vunpack.c.l.b16 %v530
      %v3010 = vunpack.c.h.b16 %v530
      %v3011 = vunpack.c.l.b16 %v531
      %v3012 = vunpack.c.h.b16 %v531
      %v3013 = vunpack.c.l.b16 %v532
      %v3014 = vunpack.c.h.b16 %v532
      %v3015 = vunpack.c.l.b16 %v533
      %v3016 = vunpack.c.h.b16 %v533
      %v3017 = vunpack.c.l.b16 %v534
      %v3018 = vunpack.c.h.b16 %v534
      %v3019 = vunpack.c.l.b16 %v535
      %v3020 = vunpack.c.h.b16 %v535
      %v3021 = vunpack.c.l.b16 %v536
      %v3022 = vunpack.c.h.b16 %v536
      %v3023 = vunpack.c.l.b16 %v537
      %v3024 = vunpack.c.h.b16 %v537
      %v3025 = vunpack.c.l.b16 %v538
      %v3026 = vunpack.c.h.b16 %v538
      %v3027 = vunpack.c.l.b16 %v539
      %v3028 = vunpack.c.h.b16 %v539
      %v3029 = vunpack.c.l.b16 %v540
      %v3030 = vunpack.c.h.b16 %v540
      %v3031 = vunpack.c.l.b16 %v541
      %v3032 = vunpack.c.h.b16 %v541
      %v3033 = vunpack.c.l.b16 %v542
      %v3034 = vunpack.c.h.b16 %v542
      %v3035 = vunpack.c.l.b16 %v543
      %v3036 = vunpack.c.h.b16 %v543
      %v3037 = vunpack.c.l.b16 %v544
      %v3038 = vunpack.c.h.b16 %v544
      %v3039 = vunpack.c.l.b16 %v545
      %v3040 = vunpack.c.h.b16 %v545
      %v3041 = vunpack.c.l.b16 %v546
      %v3042 = vunpack.c.h.b16 %v546
      %v3043 = vunpack.c.l.b16 %v547
      %v3044 = vunpack.c.h.b16 %v547
      %v3045 = vunpack.c.l.b16 %v548
      %v3046 = vunpack.c.h.b16 %v548
      %v3047 = vunpack.c.l.b16 %v549
      %v3048 = vunpack.c.h.b16 %v549
      %v3049 = vunpack.c.l.b16 %v550
      %v3050 = vunpack.c.h.b16 %v550
      %v3051 = vunpack.c.l.b16 %v551
      %v3052 = vunpack.c.h.b16 %v551
      %v3053 = vunpack.c.l.b16 %v552
      %v3054 = vunpack.c.h.b16 %v552
      %v3055 = vunpack.c.l.b16 %v553
      %v3056 = vunpack.c.h.b16 %v553
      %v3057 = vunpack.c.l.b16 %v554
      %v3058 = vunpack.c.h.b16 %v554
      %v3059 = vunpack.c.l.b16 %v555
      %v3060 = vunpack.c.h.b16 %v555
      %v3061 = vunpack.c.l.b16 %v556
      %v3062 = vunpack.c.h.b16 %v556
      %v3063 = vunpack.c.l.b16 %v557
      %v3064 = vunpack.c.h.b16 %v557
      %v3065 = vunpack.c.l.b16 %v558
      %v3066 = vunpack.c.h.b16 %v558
      %v3067 = vunpack.c.l.b16 %v559
      %v3068 = vunpack.c.h.b16 %v559
      %v3069 = vunpack.c.l.b16 %v560
      %v3070 = vunpack.c.h.b16 %v560
      %v3071 = vunpack.c.l.b16 %v561
      %v3072 = vunpack.c.h.b16 %v561
      %v3073 = vunpack.c.l.b16 %v562
      %v3074 = vunpack.c.h.b16 %v562
      %v3075 = vunpack.c.l.b16 %v563
      %v3076 = vunpack.c.h.b16 %v563
      %v3077 = vunpack.c.l.b16 %v564
      %v3078 = vunpack.c.h.b16 %v564
      %v3079 = vunpack.c.l.b16 %v565
      %v3080 = vunpack.c.h.b16 %v565
      %v3081 = vunpack.c.l.b16 %v566
      %v3082 = vunpack.c.h.b16 %v566
      %v3083 = vunpack.c.l.b16 %v567
      %v3084 = vunpack.c.h.b16 %v567
      %v3085 = vunpack.c.l.b16 %v568
      %v3086 = vunpack.c.h.b16 %v568
      %v3087 = vunpack.c.l.b16 %v569
      %v3088 = vunpack.c.h.b16 %v569
      %v3089 = vunpack.c.l.b16 %v570
      %v3090 = vunpack.c.h.b16 %v570
      %v3091 = vunpack.c.l.b16 %v571
      %v3092 = vunpack.c.h.b16 %v571
      %v3093 = vunpack.c.l.b16 %v572
      %v3094 = vunpack.c.h.b16 %v572
      %v3095 = vunpack.c.l.b16 %v573
      %v3096 = vunpack.c.h.b16 %v573
      %v3097 = vunpack.c.l.b16 %v574
      %v3098 = vunpack.c.h.b16 %v574
      %v3099 = vunpack.c.l.b16 %v575
      %v3100 = vunpack.c.h.b16 %v575
      %v3101 = vunpack.c.l.b16 %v576
      %v3102 = vunpack.c.h.b16 %v576
      %v3103 = vunpack.c.l.b16 %v577
      %v3104 = vunpack.c.h.b16 %v577
      %v3105 = vunpack.c.l.b16 %v578
      %v3106 = vunpack.c.h.b16 %v578
      %v3107 = vunpack.c.l.b16 %v579
      %v3108 = vunpack.c.h.b16 %v579
      %v3109 = vunpack.c.l.b16 %v580
      %v3110 = vunpack.c.h.b16 %v580
      %v3111 = vunpack.c.l.b16 %v581
      %v3112 = vunpack.c.h.b16 %v581
      %v3113 = vunpack.c.l.b16 %v582
      %v3114 = vunpack.c.h.b16 %v582
      %v3115 = vunpack.c.l.b16 %v583
      %v3116 = vunpack.c.h.b16 %v583
      %v3117 = vunpack.c.l.b16 %v584
      %v3118 = vunpack.c.h.b16 %v584
      %v3119 = vunpack.c.l.b16 %v585
      %v3120 = vunpack.c.h.b16 %v585
      %v3121 = vunpack.c.l.b16 %v586
      %v3122 = vunpack.c.h.b16 %v586
      %v3123 = vunpack.c.l.b16 %v587
      %v3124 = vunpack.c.h.b16 %v587
      %v3125 = vunpack.c.l.b16 %v588
      %v3126 = vunpack.c.h.b16 %v588
      %v3127 = vunpack.c.l.b16 %v589
      %v3128 = vunpack.c.h.b16 %v589
      %v3129 = vunpack.c.l.b16 %v590
      %v3130 = vunpack.c.h.b16 %v590
      %v3131 = vunpack.c.l.b16 %v591
      %v3132 = vunpack.c.h.b16 %v591
      %v3133 = vunpack.c.l.b16 %v592
      %v3134 = vunpack.c.h.b16 %v592
      %v3135 = vunpack.c.l.b16 %v593
      %v3136 = vunpack.c.h.b16 %v593
      %v3137 = vunpack.c.l.b16 %v594
      %v3138 = vunpack.c.h.b16 %v594
      %v3139 = vunpack.c.l.b16 %v595
      %v3140 = vunpack.c.h.b16 %v595
      %v3141 = vunpack.c.l.b16 %v596
      %v3142 = vunpack.c.h.b16 %v596
      %v3143 = vunpack.c.l.b16 %v597
      %v3144 = vunpack.c.h.b16 %v597
      %v3145 = vunpack.c.l.b16 %v598
      %v3146 = vunpack.c.h.b16 %v598
      %v3147 = vunpack.c.l.b16 %v599
      %v3148 = vunpack.c.h.b16 %v599
      %v3149 = vunpack.c.l.b16 %v600
      %v3150 = vunpack.c.h.b16 %v600
      %v3151 = vunpack.c.l.b16 %v601
      %v3152 = vunpack.c.h.b16 %v601
      %v3153 = vunpack.c.l.b16 %v602
      %v3154 = vunpack.c.h.b16 %v602
      %v3155 = vunpack.c.l.b16 %v603
      %v3156 = vunpack.c.h.b16 %v603
      %v3157 = vunpack.c.l.b16 %v604
      %v3158 = vunpack.c.h.b16 %v604
      %v3159 = vunpack.c.l.b16 %v605
      %v3160 = vunpack.c.h.b16 %v605
      %v3161 = vunpack.c.l.b16 %v606
      %v3162 = vunpack.c.h.b16 %v606
      %v3163 = vunpack.c.l.b16 %v607
      %v3164 = vunpack.c.h.b16 %v607
      %v3165 = vunpack.c.l.b16 %v608
      %v3166 = vunpack.c.h.b16 %v608
      %v3167 = vunpack.c.l.b16 %v609
      %v3168 = vunpack.c.h.b16 %v609
      %v3169 = vunpack.c.l.b16 %v610
      %v3170 = vunpack.c.h.b16 %v610
      %v3171 = vunpack.c.l.b16 %v611
      %v3172 = vunpack.c.h.b16 %v611
      %v3173 = vunpack.c.l.b16 %v612
      %v3174 = vunpack.c.h.b16 %v612
      %v3175 = vunpack.c.l.b16 %v613
      %v3176 = vunpack.c.h.b16 %v613
      %v3177 = vunpack.c.l.b16 %v614
      %v3178 = vunpack.c.h.b16 %v614
      %v3179 = vunpack.c.l.b16 %v615
      %v3180 = vunpack.c.h.b16 %v615
      %v3181 = vunpack.c.l.b16 %v616
      %v3182 = vunpack.c.h.b16 %v616
      %v3183 = vunpack.c.l.b16 %v617
      %v3184 = vunpack.c.h.b16 %v617
      %v3185 = vunpack.c.l.b16 %v618
      %v3186 = vunpack.c.h.b16 %v618
      %v3187 = vunpack.c.l.b16 %v619
      %v3188 = vunpack.c.h.b16 %v619
      %v3189 = vunpack.c.l.b16 %v620
      %v3190 = vunpack.c.h.b16 %v620
      %v3191 = vunpack.c.l.b16 %v621
      %v3192 = vunpack.c.h.b16 %v621
      %v3193 = vunpack.c.l.b16 %v622
      %v3194 = vunpack.c.h.b16 %v622
      %v3195 = vunpack.c.l.b16 %v623
      %v3196 = vunpack.c.h.b16 %v623
      %v3197 = vunpack.c.l.b16 %v624
      %v3198 = vunpack.c.h.b16 %v624
      %v3199 = vunpack.c.l.b16 %v625
      %v3200 = vunpack.c.h.b16 %v625
      %v3201 = vunpack.c.l.b16 %v626
      %v3202 = vunpack.c.h.b16 %v626
      %v3203 = vunpack.c.l.b16 %v627
      %v3204 = vunpack.c.h.b16 %v627
      %v3205 = vunpack.c.l.b16 %v628
      %v3206 = vunpack.c.h.b16 %v628
      %v3207 = vunpack.c.l.b16 %v629
      %v3208 = vunpack.c.h.b16 %v629
      %v3209 = vunpack.c.l.b16 %v630
      %v3210 = vunpack.c.h.b16 %v630
      %v3211 = vunpack.c.l.b16 %v631
      %v3212 = vunpack.c.h.b16 %v631
      %v3213 = vunpack.c.l.b16 %v632
      %v3214 = vunpack.c.h.b16 %v632
      %v3215 = vunpack.c.l.b16 %v633
      %v3216 = vunpack.c.h.b16 %v633
      %v3217 = vunpack.c.l.b16 %v634
      %v3218 = vunpack.c.h.b16 %v634
      %v3219 = vunpack.c.l.b16 %v635
      %v3220 = vunpack.c.h.b16 %v635
      %v3221 = vunpack.c.l.b16 %v636
      %v3222 = vunpack.c.h.b16 %v636
      %v3223 = vunpack.c.l.b16 %v637
      %v3224 = vunpack.c.h.b16 %v637
      %v3225 = vunpack.c.l.b16 %v638
      %v3226 = vunpack.c.h.b16 %v638
      %v3227 = vunpack.c.l.b16 %v639
      %v3228 = vunpack.c.h.b16 %v639
      %v3229 = vunpack.c.l.b16 %v640
      %v3230 = vunpack.c.h.b16 %v640
      %v3231 = vunpack.c.l.b16 %v641
      %v3232 = vunpack.c.h.b16 %v641
      %v3233 = vunpack.c.l.b16 %v642
      %v3234 = vunpack.c.h.b16 %v642
      %v3235 = vunpack.c.l.b16 %v643
      %v3236 = vunpack.c.h.b16 %v643
      %v3237 = vunpack.c.l.b16 %v644
      %v3238 = vunpack.c.h.b16 %v644
      %v3239 = vunpack.c.l.b16 %v645
      %v3240 = vunpack.c.h.b16 %v645
      %v3241 = vunpack.c.l.b16 %v646
      %v3242 = vunpack.c.h.b16 %v646
      %v3243 = vunpack.c.l.b16 %v647
      %v3244 = vunpack.c.h.b16 %v647
      %v3245 = vunpack.c.l.b16 %v648
      %v3246 = vunpack.c.h.b16 %v648
      %v3247 = vunpack.c.l.b16 %v649
      %v3248 = vunpack.c.h.b16 %v649
      %v3249 = vunpack.c.l.b16 %v650
      %v3250 = vunpack.c.h.b16 %v650
      %v3251 = vunpack.c.l.b16 %v651
      %v3252 = vunpack.c.h.b16 %v651
      %v3253 = vunpack.c.l.b16 %v652
      %v3254 = vunpack.c.h.b16 %v652
      %v3255 = vunpack.c.l.b16 %v653
      %v3256 = vunpack.c.h.b16 %v653
      %v3257 = vunpack.c.l.b16 %v654
      %v3258 = vunpack.c.h.b16 %v654
      %v3259 = vunpack.c.l.b16 %v655
      %v3260 = vunpack.c.h.b16 %v655
      %v3261 = vunpack.c.l.b16 %v656
      %v3262 = vunpack.c.h.b16 %v656
      %v3263 = vunpack.c.l.b16 %v657
      %v3264 = vunpack.c.h.b16 %v657
      %v3265 = vunpack.c.l.b16 %v658
      %v3266 = vunpack.c.h.b16 %v658
      %v3267 = vunpack.c.l.b16 %v659
      %v3268 = vunpack.c.h.b16 %v659
      %v3269 = vunpack.c.l.b16 %v660
      %v3270 = vunpack.c.h.b16 %v660
      %v3271 = vunpack.c.l.b16 %v661
      %v3272 = vunpack.c.h.b16 %v661
      %v3273 = vunpack.c.l.b16 %v662
      %v3274 = vunpack.c.h.b16 %v662
      %v3275 = vunpack.c.l.b16 %v663
      %v3276 = vunpack.c.h.b16 %v663
      %v3277 = vunpack.c.l.b16 %v664
      %v3278 = vunpack.c.h.b16 %v664
      %v3279 = vunpack.c.l.b16 %v665
      %v3280 = vunpack.c.h.b16 %v665
      %v3281 = vunpack.c.l.b16 %v666
      %v3282 = vunpack.c.h.b16 %v666
      %v3283 = vunpack.c.l.b16 %v667
      %v3284 = vunpack.c.h.b16 %v667
      %v3285 = vunpack.c.l.b16 %v668
      %v3286 = vunpack.c.h.b16 %v668
      %v3287 = vunpack.c.l.b16 %v669
      %v3288 = vunpack.c.h.b16 %v669
      %v3289 = vunpack.c.l.b16 %v670
      %v3290 = vunpack.c.h.b16 %v670
      %v3291 = vunpack.c.l.b16 %v671
      %v3292 = vunpack.c.h.b16 %v671
      %v3293 = vunpack.c.l.b16 %v672
      %v3294 = vunpack.c.h.b16 %v672
      %v3295 = vunpack.c.l.b16 %v673
      %v3296 = vunpack.c.h.b16 %v673
      %v3297 = vunpack.c.l.b16 %v674
      %v3298 = vunpack.c.h.b16 %v674
      %v3299 = vunpack.c.l.b16 %v675
      %v3300 = vunpack.c.h.b16 %v675
      %v3301 = vunpack.c.l.b16 %v676
      %v3302 = vunpack.c.h.b16 %v676
      %v3303 = vunpack.c.l.b16 %v677
      %v3304 = vunpack.c.h.b16 %v677
      %v3305 = vunpack.c.l.b16 %v678
      %v3306 = vunpack.c.h.b16 %v678
      %v3307 = vunpack.c.l.b16 %v679
      %v3308 = vunpack.c.h.b16 %v679
      %v3309 = vunpack.c.l.b16 %v680
      %v3310 = vunpack.c.h.b16 %v680
      %v3311 = vunpack.c.l.b16 %v681
      %v3312 = vunpack.c.h.b16 %v681
      %v3313 = vunpack.c.l.b16 %v682
      %v3314 = vunpack.c.h.b16 %v682
      %v3315 = vunpack.c.l.b16 %v683
      %v3316 = vunpack.c.h.b16 %v683
      %v3317 = vunpack.c.l.b16 %v684
      %v3318 = vunpack.c.h.b16 %v684
      %v3319 = vunpack.c.l.b16 %v685
      %v3320 = vunpack.c.h.b16 %v685
      %v3321 = vunpack.c.l.b16 %v686
      %v3322 = vunpack.c.h.b16 %v686
      %v3323 = vunpack.c.l.b16 %v687
      %v3324 = vunpack.c.h.b16 %v687
      %v3325 = vunpack.c.l.b16 %v688
      %v3326 = vunpack.c.h.b16 %v688
      %v3327 = vunpack.c.l.b16 %v689
      %v3328 = vunpack.c.h.b16 %v689
      %v3329 = vunpack.c.l.b16 %v690
      %v3330 = vunpack.c.h.b16 %v690
      %v3331 = vunpack.c.l.b16 %v691
      %v3332 = vunpack.c.h.b16 %v691
      %v3333 = vunpack.c.l.b16 %v692
      %v3334 = vunpack.c.h.b16 %v692
      %v3335 = vunpack.c.l.b16 %v693
      %v3336 = vunpack.c.h.b16 %v693
      %v3337 = vunpack.c.l.b16 %v694
      %v3338 = vunpack.c.h.b16 %v694
      %v3339 = vunpack.c.l.b16 %v695
      %v3340 = vunpack.c.h.b16 %v695
      %v3341 = vunpack.c.l.b16 %v696
      %v3342 = vunpack.c.h.b16 %v696
      %v3343 = vunpack.c.l.b16 %v697
      %v3344 = vunpack.c.h.b16 %v697
      %v3345 = vunpack.c.l.b16 %v698
      %v3346 = vunpack.c.h.b16 %v698
      %v3347 = vunpack.c.l.b16 %v699
      %v3348 = vunpack.c.h.b16 %v699
      %v3349 = vunpack.c.l.b16 %v700
      %v3350 = vunpack.c.h.b16 %v700
      %v3351 = vunpack.c.l.b16 %v701
      %v3352 = vunpack.c.h.b16 %v701
      %v3353 = vunpack.c.l.b16 %v702
      %v3354 = vunpack.c.h.b16 %v702
      %v3355 = vunpack.c.l.b16 %v703
      %v3356 = vunpack.c.h.b16 %v703
      %v3357 = vunpack.c.l.b16 %v704
      %v3358 = vunpack.c.h.b16 %v704
      %v3359 = vunpack.c.l.b16 %v705
      %v3360 = vunpack.c.h.b16 %v705
      %v3361 = vunpack.c.l.b16 %v706
      %v3362 = vunpack.c.h.b16 %v706
      %v3363 = vunpack.c.l.b16 %v707
      %v3364 = vunpack.c.h.b16 %v707
      %v3365 = vunpack.c.l.b16 %v708
      %v3366 = vunpack.c.h.b16 %v708
      %v3367 = vunpack.c.l.b16 %v709
      %v3368 = vunpack.c.h.b16 %v709
      %v3369 = vunpack.c.l.b16 %v710
      %v3370 = vunpack.c.h.b16 %v710
      %v3371 = vunpack.c.l.b16 %v711
      %v3372 = vunpack.c.h.b16 %v711
      %v3373 = vunpack.c.l.b16 %v712
      %v3374 = vunpack.c.h.b16 %v712
      %v3375 = vunpack.c.l.b16 %v713
      %v3376 = vunpack.c.h.b16 %v713
      %v3377 = vunpack.c.l.b16 %v714
      %v3378 = vunpack.c.h.b16 %v714
      %v3379 = vunpack.c.l.b16 %v715
      %v3380 = vunpack.c.h.b16 %v715
      %v3381 = vunpack.c.l.b16 %v716
      %v3382 = vunpack.c.h.b16 %v716
      %v3383 = vunpack.c.l.b16 %v717
      %v3384 = vunpack.c.h.b16 %v717
      %v3385 = vunpack.c.l.b16 %v718
      %v3386 = vunpack.c.h.b16 %v718
      %v3387 = vunpack.c.l.b16 %v719
      %v3388 = vunpack.c.h.b16 %v719
      %v3389 = vunpack.c.l.b16 %v720
      %v3390 = vunpack.c.h.b16 %v720
      %v3391 = vunpack.c.l.b16 %v721
      %v3392 = vunpack.c.h.b16 %v721
      %v3393 = vunpack.c.l.b16 %v722
      %v3394 = vunpack.c.h.b16 %v722
      %v3395 = vunpack.c.l.b16 %v723
      %v3396 = vunpack.c.h.b16 %v723
      %v3397 = vunpack.c.l.b16 %v724
      %v3398 = vunpack.c.h.b16 %v724
      %v3399 = vunpack.c.l.b16 %v725
      %v3400 = vunpack.c.h.b16 %v725
      %v3401 = vunpack.c.l.b16 %v726
      %v3402 = vunpack.c.h.b16 %v726
      %v3403 = vunpack.c.l.b16 %v727
      %v3404 = vunpack.c.h.b16 %v727
      %v3405 = vunpack.c.l.b16 %v728
      %v3406 = vunpack.c.h.b16 %v728
      %v3407 = vunpack.c.l.b16 %v729
      %v3408 = vunpack.c.h.b16 %v729
      %v3409 = vunpack.c.l.b16 %v730
      %v3410 = vunpack.c.h.b16 %v730
      %v3411 = vunpack.c.l.b16 %v731
      %v3412 = vunpack.c.h.b16 %v731
      %v3413 = vunpack.c.l.b16 %v732
      %v3414 = vunpack.c.h.b16 %v732
      %v3415 = vunpack.c.l.b16 %v733
      %v3416 = vunpack.c.h.b16 %v733
      %v3417 = vunpack.c.l.b16 %v734
      %v3418 = vunpack.c.h.b16 %v734
      %v3419 = vunpack.c.l.b16 %v735
      %v3420 = vunpack.c.h.b16 %v735
      %v3421 = vunpack.c.l.b16 %v736
      %v3422 = vunpack.c.h.b16 %v736
      %v3423 = vunpack.c.l.b16 %v737
      %v3424 = vunpack.c.h.b16 %v737
      %v3425 = vunpack.c.l.b16 %v738
      %v3426 = vunpack.c.h.b16 %v738
      %v3427 = vunpack.c.l.b16 %v739
      %v3428 = vunpack.c.h.b16 %v739
      %v3429 = vunpack.c.l.b16 %v740
      %v3430 = vunpack.c.h.b16 %v740
      %v3431 = vunpack.c.l.b16 %v741
      %v3432 = vunpack.c.h.b16 %v741
      %v3433 = vunpack.c.l.b16 %v742
      %v3434 = vunpack.c.h.b16 %v742
      %v3435 = vunpack.c.l.b16 %v743
      %v3436 = vunpack.c.h.b16 %v743
      %v3437 = vunpack.c.l.b16 %v744
      %v3438 = vunpack.c.h.b16 %v744
      %v3439 = vunpack.c.l.b16 %v745
      %v3440 = vunpack.c.h.b16 %v745
      %v3441 = vunpack.c.l.b16 %v746
      %v3442 = vunpack.c.h.b16 %v746
      %v3443 = vunpack.c.l.b16 %v747
      %v3444 = vunpack.c.h.b16 %v747
      %v3445 = vunpack.c.l.b16 %v748
      %v3446 = vunpack.c.h.b16 %v748
      %v3447 = vunpack.c.l.b16 %v749
      %v3448 = vunpack.c.h.b16 %v749
      %v3449 = vunpack.c.l.b16 %v750
      %v3450 = vunpack.c.h.b16 %v750
      %v3451 = vunpack.c.l.b16 %v751
      %v3452 = vunpack.c.h.b16 %v751
      %v3453 = vunpack.c.l.b16 %v752
      %v3454 = vunpack.c.h.b16 %v752
      %v3455 = vunpack.c.l.b16 %v753
      %v3456 = vunpack.c.h.b16 %v753
      %v3457 = vunpack.c.l.b16 %v754
      %v3458 = vunpack.c.h.b16 %v754
      %v3459 = vunpack.c.l.b16 %v755
      %v3460 = vunpack.c.h.b16 %v755
      %v3461 = vunpack.c.l.b16 %v756
      %v3462 = vunpack.c.h.b16 %v756
      %v3463 = vunpack.c.l.b16 %v757
      %v3464 = vunpack.c.h.b16 %v757
      %v3465 = vunpack.c.l.b16 %v758
      %v3466 = vunpack.c.h.b16 %v758
      %v3467 = vunpack.c.l.b16 %v759
      %v3468 = vunpack.c.h.b16 %v759
      %v3469 = vunpack.c.l.b16 %v760
      %v3470 = vunpack.c.h.b16 %v760
      %v3471 = vunpack.c.l.b16 %v761
      %v3472 = vunpack.c.h.b16 %v761
      %v3473 = vunpack.c.l.b16 %v762
      %v3474 = vunpack.c.h.b16 %v762
      %v3475 = vunpack.c.l.b16 %v763
      %v3476 = vunpack.c.h.b16 %v763
      %v3477 = vunpack.c.l.b16 %v764
      %v3478 = vunpack.c.h.b16 %v764
      %v3479 = vunpack.c.l.b16 %v765
      %v3480 = vunpack.c.h.b16 %v765
      %v3481 = vunpack.c.l.b16 %v766
      %v3482 = vunpack.c.h.b16 %v766
      %v3483 = vunpack.c.l.b16 %v767
      %v3484 = vunpack.c.h.b16 %v767
      %v3485 = vunpack.c.l.b16 %v768
      %v3486 = vunpack.c.h.b16 %v768
      %v3487 = vunpack.c.l.b16 %v769
      %v3488 = vunpack.c.h.b16 %v769
      %v3489 = vunpack.c.l.b16 %v770
      %v3490 = vunpack.c.h.b16 %v770
      %v3491 = vunpack.c.l.b16 %v771
      %v3492 = vunpack.c.h.b16 %v771
      %v3493 = vunpack.c.l.b16 %v772
      %v3494 = vunpack.c.h.b16 %v772
      %v3495 = vunpack.c.l.b16 %v773
      %v3496 = vunpack.c.h.b16 %v773
      %v3497 = vunpack.c.l.b16 %v774
      %v3498 = vunpack.c.h.b16 %v774
      %v3499 = vunpack.c.l.b16 %v775
      %v3500 = vunpack.c.h.b16 %v775
      %v3501 = vunpack.c.l.b16 %v776
      %v3502 = vunpack.c.h.b16 %v776
      %v3503 = vunpack.c.l.b16 %v777
      %v3504 = vunpack.c.h.b16 %v777
      %v3505 = vunpack.c.l.b16 %v778
      %v3506 = vunpack.c.h.b16 %v778
      %v3507 = vunpack.c.l.b16 %v779
      %v3508 = vunpack.c.h.b16 %v779
      %v3509 = vunpack.c.l.b16 %v780
      %v3510 = vunpack.c.h.b16 %v780
      %v3511 = vunpack.c.l.b16 %v781
      %v3512 = vunpack.c.h.b16 %v781
      %v3513 = vunpack.c.l.b16 %v782
      %v3514 = vunpack.c.h.b16 %v782
      %v3515 = vunpack.c.l.b16 %v783
      %v3516 = vunpack.c.h.b16 %v783
      %v3517 = vunpack.c.l.b16 %v784
      %v3518 = vunpack.c.h.b16 %v784
      %v3519 = vunpack.c.l.b16 %v785
      %v3520 = vunpack.c.h.b16 %v785
      %v3521 = vunpack.c.l.b16 %v786
      %v3522 = vunpack.c.h.b16 %v786
      %v3523 = vunpack.c.l.b16 %v787
      %v3524 = vunpack.c.h.b16 %v787
      %v3525 = vunpack.c.l.b16 %v788
      %v3526 = vunpack.c.h.b16 %v788
      %v3527 = vunpack.c.l.b16 %v789
      %v3528 = vunpack.c.h.b16 %v789
      %v3529 = vunpack.c.l.b16 %v790
      %v3530 = vunpack.c.h.b16 %v790
      %v3531 = vunpack.c.l.b16 %v791
      %v3532 = vunpack.c.h.b16 %v791
      %v3533 = vunpack.c.l.b16 %v792
      %v3534 = vunpack.c.h.b16 %v792
      %v3535 = vunpack.c.l.b16 %v793
      %v3536 = vunpack.c.h.b16 %v793
      %v3537 = vunpack.c.l.b16 %v794
      %v3538 = vunpack.c.h.b16 %v794
      %v3539 = vunpack.c.l.b16 %v795
      %v3540 = vunpack.c.h.b16 %v795
      %v3541 = vunpack.c.l.b16 %v796
      %v3542 = vunpack.c.h.b16 %v796
      %v3543 = vunpack.c.l.b16 %v797
      %v3544 = vunpack.c.h.b16 %v797
      %v3545 = vunpack.c.l.b16 %v798
      %v3546 = vunpack.c.h.b16 %v798
      %v3547 = vunpack.c.l.b16 %v799
      %v3548 = vunpack.c.h.b16 %v799
      %v3549 = vunpack.c.l.b16 %v800
      %v3550 = vunpack.c.h.b16 %v800
      %v3551 = vunpack.c.l.b16 %v801
      %v3552 = vunpack.c.h.b16 %v801
      %v3553 = vunpack.c.l.b16 %v802
      %v3554 = vunpack.c.h.b16 %v802
      %v3555 = vunpack.c.l.b16 %v803
      %v3556 = vunpack.c.h.b16 %v803
      %v3557 = vunpack.c.l.b16 %v804
      %v3558 = vunpack.c.h.b16 %v804
      %v3559 = vunpack.c.l.b16 %v805
      %v3560 = vunpack.c.h.b16 %v805
      %v3561 = vunpack.c.l.b16 %v806
      %v3562 = vunpack.c.h.b16 %v806
      %v3563 = vunpack.c.l.b16 %v807
      %v3564 = vunpack.c.h.b16 %v807
      %v3565 = vunpack.c.l.b16 %v808
      %v3566 = vunpack.c.h.b16 %v808
      %v3567 = vunpack.c.l.b16 %v809
      %v3568 = vunpack.c.h.b16 %v809
      %v3569 = vunpack.c.l.b16 %v810
      %v3570 = vunpack.c.h.b16 %v810
      %v3571 = vunpack.c.l.b16 %v811
      %v3572 = vunpack.c.h.b16 %v811
      %v3573 = vunpack.c.l.b16 %v812
      %v3574 = vunpack.c.h.b16 %v812
      %v3575 = vunpack.c.l.b16 %v813
      %v3576 = vunpack.c.h.b16 %v813
      %v3577 = vunpack.c.l.b16 %v814
      %v3578 = vunpack.c.h.b16 %v814
      %v3579 = vunpack.c.l.b16 %v815
      %v3580 = vunpack.c.h.b16 %v815
      %v3581 = vunpack.c.l.b16 %v816
      %v3582 = vunpack.c.h.b16 %v816
      %v3583 = vunpack.c.l.b16 %v817
      %v3584 = vunpack.c.h.b16 %v817
      %v3585 = vunpack.c.l.b16 %v818
      %v3586 = vunpack.c.h.b16 %v818
      %v3587 = vunpack.c.l.b16 %v819
      %v3588 = vunpack.c.h.b16 %v819
      %v3589 = vunpack.c.l.b16 %v820
      %v3590 = vunpack.c.h.b16 %v820
      %v3591 = vunpack.c.l.b16 %v821
      %v3592 = vunpack.c.h.b16 %v821
      %v3593 = vunpack.c.l.b16 %v822
      %v3594 = vunpack.c.h.b16 %v822
      %v3595 = vunpack.c.l.b16 %v823
      %v3596 = vunpack.c.h.b16 %v823
      %v3597 = vunpack.c.l.b16 %v824
      %v3598 = vunpack.c.h.b16 %v824
      %v3599 = vunpack.c.l.b16 %v825
      %v3600 = vunpack.c.h.b16 %v825
      %v3601 = vunpack.c.l.b16 %v826
      %v3602 = vunpack.c.h.b16 %v826
      %v3603 = vunpack.c.l.b16 %v827
      %v3604 = vunpack.c.h.b16 %v827
      %v3605 = vunpack.c.l.b16 %v828
      %v3606 = vunpack.c.h.b16 %v828
      %v3607 = vunpack.c.l.b16 %v829
      %v3608 = vunpack.c.h.b16 %v829
      %v3609 = vunpack.c.l.b16 %v830
      %v3610 = vunpack.c.h.b16 %v830
      %v3611 = vunpack.c.l.b16 %v831
      %v3612 = vunpack.c.h.b16 %v831
      %v3613 = vunpack.c.l.b16 %v832
      %v3614 = vunpack.c.h.b16 %v832
      %v3615 = vunpack.c.l.b16 %v833
      %v3616 = vunpack.c.h.b16 %v833
      %v3617 = vunpack.c.l.b16 %v834
      %v3618 = vunpack.c.h.b16 %v834
      %v3619 = vunpack.c.l.b16 %v835
      %v3620 = vunpack.c.h.b16 %v835
      %v3621 = vunpack.c.l.b16 %v836
      %v3622 = vunpack.c.h.b16 %v836
      %v3623 = vunpack.c.l.b16 %v837
      %v3624 = vunpack.c.h.b16 %v837
      %v3625 = vunpack.c.l.b16 %v838
      %v3626 = vunpack.c.h.b16 %v838
      %v3627 = vunpack.c.l.b16 %v839
      %v3628 = vunpack.c.h.b16 %v839
      %v3629 = vunpack.c.l.b16 %v840
      %v3630 = vunpack.c.h.b16 %v840
      %v3631 = vunpack.c.l.b16 %v841
      %v3632 = vunpack.c.h.b16 %v841
      %v3633 = vunpack.c.l.b16 %v842
      %v3634 = vunpack.c.h.b16 %v842
      %v3635 = vunpack.c.l.b16 %v843
      %v3636 = vunpack.c.h.b16 %v843
      %v3637 = vunpack.c.l.b16 %v844
      %v3638 = vunpack.c.h.b16 %v844
      %v3639 = vunpack.c.l.b16 %v845
      %v3640 = vunpack.c.h.b16 %v845
      %v3641 = vunpack.c.l.b16 %v846
      %v3642 = vunpack.c.h.b16 %v846
      %v3643 = vunpack.c.l.b16 %v847
      %v3644 = vunpack.c.h.b16 %v847
      %v3645 = vunpack.c.l.b16 %v848
      %v3646 = vunpack.c.h.b16 %v848
      %v3647 = vunpack.c.l.b16 %v849
      %v3648 = vunpack.c.h.b16 %v849
      %v3649 = vunpack.c.l.b16 %v850
      %v3650 = vunpack.c.h.b16 %v850
      %v3651 = vunpack.c.l.b16 %v851
      %v3652 = vunpack.c.h.b16 %v851
      %v3653 = vunpack.c.l.b16 %v852
      %v3654 = vunpack.c.h.b16 %v852
      %v3655 = vunpack.c.l.b16 %v853
      %v3656 = vunpack.c.h.b16 %v853
      %v3657 = vunpack.c.l.b16 %v854
      %v3658 = vunpack.c.h.b16 %v854
      %v3659 = vunpack.c.l.b16 %v855
      %v3660 = vunpack.c.h.b16 %v855
      %v3661 = vunpack.c.l.b16 %v856
      %v3662 = vunpack.c.h.b16 %v856
      %v3663 = vunpack.c.l.b16 %v857
      %v3664 = vunpack.c.h.b16 %v857
      %v3665 = vunpack.c.l.b16 %v858
      %v3666 = vunpack.c.h.b16 %v858
      %v3667 = vunpack.c.l.b16 %v859
      %v3668 = vunpack.c.h.b16 %v859
      %v3669 = vunpack.c.l.b16 %v860
      %v3670 = vunpack.c.h.b16 %v860
      %v3671 = vunpack.c.l.b16 %v861
      %v3672 = vunpack.c.h.b16 %v861
      %v3673 = vunpack.c.l.b16 %v862
      %v3674 = vunpack.c.h.b16 %v862
      %v3675 = vunpack.c.l.b16 %v863
      %v3676 = vunpack.c.h.b16 %v863
      %v3677 = vunpack.c.l.b16 %v864
      %v3678 = vunpack.c.h.b16 %v864
      %v3679 = vunpack.c.l.b16 %v865
      %v3680 = vunpack.c.h.b16 %v865
      %v3681 = vunpack.c.l.b16 %v866
      %v3682 = vunpack.c.h.b16 %v866
      %v3683 = vunpack.c.l.b16 %v867
      %v3684 = vunpack.c.h.b16 %v867
      %v3685 = vunpack.c.l.b16 %v868
      %v3686 = vunpack.c.h.b16 %v868
      %v3687 = vunpack.c.l.b16 %v869
      %v3688 = vunpack.c.h.b16 %v869
      %v3689 = vunpack.c.l.b16 %v870
      %v3690 = vunpack.c.h.b16 %v870
      %v3691 = vunpack.c.l.b16 %v871
      %v3692 = vunpack.c.h.b16 %v871
      %v3693 = vunpack.c.l.b16 %v872
      %v3694 = vunpack.c.h.b16 %v872
      %v3695 = vunpack.c.l.b16 %v873
      %v3696 = vunpack.c.h.b16 %v873
      %v3697 = vunpack.c.l.b16 %v874
      %v3698 = vunpack.c.h.b16 %v874
      %v3699 = vunpack.c.l.b16 %v875
      %v3700 = vunpack.c.h.b16 %v875
      %v3701 = vunpack.c.l.b16 %v876
      %v3702 = vunpack.c.h.b16 %v876
      %v3703 = vunpack.c.l.b16 %v877
      %v3704 = vunpack.c.h.b16 %v877
      %v3705 = vunpack.c.l.b16 %v878
      %v3706 = vunpack.c.h.b16 %v878
      %v3707 = vunpack.c.l.b16 %v879
      %v3708 = vunpack.c.h.b16 %v879
      %v3709 = vunpack.c.l.b16 %v880
      %v3710 = vunpack.c.h.b16 %v880
      %v3711 = vunpack.c.l.b16 %v881
      %v3712 = vunpack.c.h.b16 %v881
      %v3713 = vunpack.c.l.b16 %v882
      %v3714 = vunpack.c.h.b16 %v882
      %v3715 = vunpack.c.l.b16 %v883
      %v3716 = vunpack.c.h.b16 %v883
      %v3717 = vunpack.c.l.b16 %v884
      %v3718 = vunpack.c.h.b16 %v884
      %v3719 = vunpack.c.l.b16 %v885
      %v3720 = vunpack.c.h.b16 %v885
      %v3721 = vunpack.c.l.b16 %v886
      %v3722 = vunpack.c.h.b16 %v886
      %v3723 = vunpack.c.l.b16 %v887
      %v3724 = vunpack.c.h.b16 %v887
      %v3725 = vunpack.c.l.b16 %v888
      %v3726 = vunpack.c.h.b16 %v888
      %v3727 = vunpack.c.l.b16 %v889
      %v3728 = vunpack.c.h.b16 %v889
      %v3729 = vunpack.c.l.b16 %v890
      %v3730 = vunpack.c.h.b16 %v890
      %v3731 = vunpack.c.l.b16 %v891
      %v3732 = vunpack.c.h.b16 %v891
      %v3733 = vunpack.c.l.b16 %v892
      %v3734 = vunpack.c.h.b16 %v892
      %v3735 = vunpack.c.l.b16 %v893
      %v3736 = vunpack.c.h.b16 %v893
      %v3737 = vunpack.c.l.b16 %v894
      %v3738 = vunpack.c.h.b16 %v894
      %v3739 = vunpack.c.l.b16 %v895
      %v3740 = vunpack.c.h.b16 %v895
      %v3741 = vunpack.c.l.b16 %v896
      %v3742 = vunpack.c.h.b16 %v896
      %v3743 = vunpack.c.l.b16 %v897
      %v3744 = vunpack.c.h.b16 %v897
      %v3745 = vunpack.c.l.b16 %v898
      %v3746 = vunpack.c.h.b16 %v898
      %v3747 = vunpack.c.l.b16 %v899
      %v3748 = vunpack.c.h.b16 %v899
      %v3749 = vunpack.c.l.b16 %v900
      %v3750 = vunpack.c.h.b16 %v900
      %v3751 = vunpack.c.l.b16 %v901
      %v3752 = vunpack.c.h.b16 %v901
      %v3753 = vunpack.c.l.b16 %v902
      %v3754 = vunpack.c.h.b16 %v902
      %v3755 = vunpack.c.l.b16 %v903
      %v3756 = vunpack.c.h.b16 %v903
      %v3757 = vunpack.c.l.b16 %v904
      %v3758 = vunpack.c.h.b16 %v904
      %v3759 = vunpack.c.l.b16 %v905
      %v3760 = vunpack.c.h.b16 %v905
      %v3761 = vunpack.c.l.b16 %v906
      %v3762 = vunpack.c.h.b16 %v906
      %v3763 = vunpack.c.l.b16 %v907
      %v3764 = vunpack.c.h.b16 %v907
      %v3765 = vunpack.c.l.b16 %v908
      %v3766 = vunpack.c.h.b16 %v908
      %v3767 = vunpack.c.l.b16 %v909
      %v3768 = vunpack.c.h.b16 %v909
      %v3769 = vunpack.c.l.b16 %v910
      %v3770 = vunpack.c.h.b16 %v910
      %v3771 = vunpack.c.l.b16 %v911
      %v3772 = vunpack.c.h.b16 %v911
      %v3773 = vunpack.c.l.b16 %v912
      %v3774 = vunpack.c.h.b16 %v912
      %v3775 = vunpack.c.l.b16 %v913
      %v3776 = vunpack.c.h.b16 %v913
      %v3777 = vunpack.c.l.b16 %v914
      %v3778 = vunpack.c.h.b16 %v914
      %v3779 = vunpack.c.l.b16 %v915
      %v3780 = vunpack.c.h.b16 %v915
      %v3781 = vunpack.c.l.b16 %v916
      %v3782 = vunpack.c.h.b16 %v916
      %v3783 = vunpack.c.l.b16 %v917
      %v3784 = vunpack.c.h.b16 %v917
      %v3785 = vunpack.c.l.b16 %v918
      %v3786 = vunpack.c.h.b16 %v918
      %v3787 = vunpack.c.l.b16 %v919
      %v3788 = vunpack.c.h.b16 %v919
      %v3789 = vunpack.c.l.b16 %v920
      %v3790 = vunpack.c.h.b16 %v920
      %v3791 = vunpack.c.l.b16 %v921
      %v3792 = vunpack.c.h.b16 %v921
      %v3793 = vunpack.c.l.b16 %v922
      %v3794 = vunpack.c.h.b16 %v922
      %v3795 = vunpack.c.l.b16 %v923
      %v3796 = vunpack.c.h.b16 %v923
      %v3797 = vunpack.c.l.b16 %v924
      %v3798 = vunpack.c.h.b16 %v924
      %v3799 = vunpack.c.l.b16 %v925
      %v3800 = vunpack.c.h.b16 %v925
      %v3801 = vunpack.c.l.b16 %v926
      %v3802 = vunpack.c.h.b16 %v926
      %v3803 = vunpack.c.l.b16 %v927
      %v3804 = vunpack.c.h.b16 %v927
      %v3805 = vunpack.c.l.b16 %v928
      %v3806 = vunpack.c.h.b16 %v928
      %v3807 = vunpack.c.l.b16 %v929
      %v3808 = vunpack.c.h.b16 %v929
      %v3809 = vunpack.c.l.b16 %v930
      %v3810 = vunpack.c.h.b16 %v930
      %v3811 = vunpack.c.l.b16 %v931
      %v3812 = vunpack.c.h.b16 %v931
      %v3813 = vunpack.c.l.b16 %v932
      %v3814 = vunpack.c.h.b16 %v932
      %v3815 = vunpack.c.l.b16 %v933
      %v3816 = vunpack.c.h.b16 %v933
      %v3817 = vunpack.c.l.b16 %v934
      %v3818 = vunpack.c.h.b16 %v934
      %v3819 = vunpack.c.l.b16 %v935
      %v3820 = vunpack.c.h.b16 %v935
      %v3821 = vunpack.c.l.b16 %v936
      %v3822 = vunpack.c.h.b16 %v936
      %v3823 = vunpack.c.l.b16 %v937
      %v3824 = vunpack.c.h.b16 %v937
      %v3825 = vunpack.c.l.b16 %v938
      %v3826 = vunpack.c.h.b16 %v938
      %v3827 = vunpack.c.l.b16 %v939
      %v3828 = vunpack.c.h.b16 %v939
      %v3829 = vunpack.c.l.b16 %v940
      %v3830 = vunpack.c.h.b16 %v940
      %v3831 = vunpack.c.l.b16 %v941
      %v3832 = vunpack.c.h.b16 %v941
      %v3833 = vunpack.c.l.b16 %v942
      %v3834 = vunpack.c.h.b16 %v942
      %v3835 = vunpack.c.l.b16 %v943
      %v3836 = vunpack.c.h.b16 %v943
      %v3837 = vunpack.c.l.b16 %v944
      %v3838 = vunpack.c.h.b16 %v944
      %v3839 = vunpack.c.l.b16 %v945
      %v3840 = vunpack.c.h.b16 %v945
      %v3841 = vunpack.c.l.b16 %v946
      %v3842 = vunpack.c.h.b16 %v946
      %v3843 = vunpack.c.l.b16 %v947
      %v3844 = vunpack.c.h.b16 %v947
      %v3845 = vunpack.c.l.b16 %v948
      %v3846 = vunpack.c.h.b16 %v948
      %v3847 = vunpack.c.l.b16 %v949
      %v3848 = vunpack.c.h.b16 %v949
      %v3849 = vunpack.c.l.b16 %v950
      %v3850 = vunpack.c.h.b16 %v950
      %v3851 = vunpack.c.l.b16 %v951
      %v3852 = vunpack.c.h.b16 %v951
      %v3853 = vunpack.c.l.b16 %v952
      %v3854 = vunpack.c.h.b16 %v952
      %v3855 = vunpack.c.l.b16 %v953
      %v3856 = vunpack.c.h.b16 %v953
      %v3857 = vunpack.c.l.b16 %v954
      %v3858 = vunpack.c.h.b16 %v954
      %v3859 = vunpack.c.l.b16 %v955
      %v3860 = vunpack.c.h.b16 %v955
      %v3861 = vunpack.c.l.b16 %v956
      %v3862 = vunpack.c.h.b16 %v956
      %v3863 = vunpack.c.l.b16 %v957
      %v3864 = vunpack.c.h.b16 %v957
      %v3865 = vunpack.c.l.b16 %v958
      %v3866 = vunpack.c.h.b16 %v958
      %v3867 = vunpack.c.l.b16 %v959
      %v3868 = vunpack.c.h.b16 %v959
      %v3869 = vunpack.c.l.b16 %v960
      %v3870 = vunpack.c.h.b16 %v960
      %v3871 = vunpack.c.l.b16 %v961
      %v3872 = vunpack.c.h.b16 %v961
      %v3873 = vunpack.c.l.b16 %v962
      %v3874 = vunpack.c.h.b16 %v962
      %v3875 = vunpack.c.l.b16 %v963
      %v3876 = vunpack.c.h.b16 %v963
      %v3877 = vunpack.c.l.b16 %v964
      %v3878 = vunpack.c.h.b16 %v964
      %v3879 = vunpack.c.l.b16 %v965
      %v3880 = vunpack.c.h.b16 %v965
      %v3881 = vunpack.c.l.b16 %v966
      %v3882 = vunpack.c.h.b16 %v966
      %v3883 = vunpack.c.l.b16 %v967
      %v3884 = vunpack.c.h.b16 %v967
      %v3885 = vunpack.c.l.b16 %v968
      %v3886 = vunpack.c.h.b16 %v968
      %v3887 = vunpack.c.l.b16 %v969
      %v3888 = vunpack.c.h.b16 %v969
      %v3889 = vunpack.c.l.b16 %v970
      %v3890 = vunpack.c.h.b16 %v970
      %v3891 = vunpack.c.l.b16 %v971
      %v3892 = vunpack.c.h.b16 %v971
      %v3893 = vunpack.c.l.b16 %v972
      %v3894 = vunpack.c.h.b16 %v972
      %v3895 = vunpack.c.l.b16 %v973
      %v3896 = vunpack.c.h.b16 %v973
      %v3897 = vunpack.c.l.b16 %v974
      %v3898 = vunpack.c.h.b16 %v974
      %v3899 = vunpack.c.l.b16 %v975
      %v3900 = vunpack.c.h.b16 %v975
      %v3901 = vunpack.c.l.b16 %v976
      %v3902 = vunpack.c.h.b16 %v976
      %v3903 = vunpack.c.l.b16 %v977
      %v3904 = vunpack.c.h.b16 %v977
      %v3905 = vunpack.c.l.b16 %v978
      %v3906 = vunpack.c.h.b16 %v978
      %v3907 = vunpack.c.l.b16 %v979
      %v3908 = vunpack.c.h.b16 %v979
      %v3909 = vunpack.c.l.b16 %v980
      %v3910 = vunpack.c.h.b16 %v980
      %v3911 = vunpack.c.l.b16 %v981
      %v3912 = vunpack.c.h.b16 %v981
      %v3913 = vunpack.c.l.b16 %v982
      %v3914 = vunpack.c.h.b16 %v982
      %v3915 = vunpack.c.l.b16 %v983
      %v3916 = vunpack.c.h.b16 %v983
      %v3917 = vunpack.c.l.b16 %v984
      %v3918 = vunpack.c.h.b16 %v984
      %v3919 = vunpack.c.l.b16 %v985
      %v3920 = vunpack.c.h.b16 %v985
      %v3921 = vunpack.c.l.b16 %v986
      %v3922 = vunpack.c.h.b16 %v986
      %v3923 = vunpack.c.l.b16 %v987
      %v3924 = vunpack.c.h.b16 %v987
      %v3925 = vunpack.c.l.b16 %v988
      %v3926 = vunpack.c.h.b16 %v988
      %v3927 = vunpack.c.l.b16 %v989
      %v3928 = vunpack.c.h.b16 %v989
      %v3929 = vunpack.c.l.b16 %v990
      %v3930 = vunpack.c.h.b16 %v990
      %v3931 = vunpack.c.l.b16 %v991
      %v3932 = vunpack.c.h.b16 %v991
      %v3933 = vunpack.c.l.b16 %v992
      %v3934 = vunpack.c.h.b16 %v992
      %v3935 = vunpack.c.l.b16 %v993
      %v3936 = vunpack.c.h.b16 %v993
      %v3937 = vunpack.c.l.b16 %v994
      %v3938 = vunpack.c.h.b16 %v994
      %v3939 = vunpack.c.l.b16 %v995
      %v3940 = vunpack.c.h.b16 %v995
      %v3941 = vunpack.c.l.b16 %v996
      %v3942 = vunpack.c.h.b16 %v996
      %v3943 = vunpack.c.l.b16 %v997
      %v3944 = vunpack.c.h.b16 %v997
      %v3945 = vunpack.c.l.b16 %v998
      %v3946 = vunpack.c.h.b16 %v998
      %v3947 = vunpack.c.l.b16 %v999
      %v3948 = vunpack.c.h.b16 %v999
      %v3949 = vunpack.c.l.b16 %v1000
      %v3950 = vunpack.c.h.b16 %v1000
      %v3951 = vunpack.c.l.b16 %v1001
      %v3952 = vunpack.c.h.b16 %v1001
      %v3953 = vunpack.c.l.b16 %v1002
      %v3954 = vunpack.c.h.b16 %v1002
      %v3955 = vunpack.c.l.b16 %v1003
      %v3956 = vunpack.c.h.b16 %v1003
      %v3957 = vunpack.c.l.b16 %v1004
      %v3958 = vunpack.c.h.b16 %v1004
      %v3959 = vunpack.c.l.b16 %v1005
      %v3960 = vunpack.c.h.b16 %v1005
      %v3961 = vunpack.c.l.b16 %v1006
      %v3962 = vunpack.c.h.b16 %v1006
      %v3963 = vunpack.c.l.b16 %v1007
      %v3964 = vunpack.c.h.b16 %v1007
      %v3965 = vunpack.c.l.b16 %v1008
      %v3966 = vunpack.c.h.b16 %v1008
      %v3967 = vunpack.c.l.b16 %v1009
      %v3968 = vunpack.c.h.b16 %v1009
      %v3969 = vunpack.c.l.b16 %v1010
      %v3970 = vunpack.c.h.b16 %v1010
      %v3971 = vunpack.c.l.b16 %v1011
      %v3972 = vunpack.c.h.b16 %v1011
      %v3973 = vunpack.c.l.b16 %v1012
      %v3974 = vunpack.c.h.b16 %v1012
      %v3975 = vunpack.c.l.b16 %v1013
      %v3976 = vunpack.c.h.b16 %v1013
      %v3977 = vunpack.c.l.b16 %v1014
      %v3978 = vunpack.c.h.b16 %v1014
      %v3979 = vunpack.c.l.b16 %v1015
      %v3980 = vunpack.c.h.b16 %v1015
      %v3981 = vunpack.c.l.b16 %v1016
      %v3982 = vunpack.c.h.b16 %v1016
      %v3983 = vunpack.c.l.b16 %v1017
      %v3984 = vunpack.c.h.b16 %v1017
      %v3985 = vunpack.c.l.b16 %v1018
      %v3986 = vunpack.c.h.b16 %v1018
      %v3987 = vunpack.c.l.b16 %v1019
      %v3988 = vunpack.c.h.b16 %v1019
      %v3989 = vunpack.c.l.b16 %v1020
      %v3990 = vunpack.c.h.b16 %v1020
      %v3991 = vunpack.c.l.b16 %v1021
      %v3992 = vunpack.c.h.b16 %v1021
      %v3993 = vunpack.c.l.b16 %v1022
      %v3994 = vunpack.c.h.b16 %v1022
      %v3995 = vunpack.c.l.b16 %v1023
      %v3996 = vunpack.c.h.b16 %v1023
      %v3997 = vunpack.c.l.b16 %v1024
      %v3998 = vunpack.c.h.b16 %v1024
      %v3999 = vunpack.c.l.b16 %v1025
      %v4000 = vunpack.c.h.b16 %v1025
      %v4001 = vunpack.c.l.b16 %v1026
      %v4002 = vunpack.c.h.b16 %v1026
      %v4003 = vunpack.c.l.b16 %v1027
      %v4004 = vunpack.c.h.b16 %v1027
      %v4005 = vunpack.c.l.b16 %v1028
      %v4006 = vunpack.c.h.b16 %v1028
      %v4007 = vunpack.c.l.b16 %v1029
      %v4008 = vunpack.c.h.b16 %v1029
      %v4009 = vunpack.c.l.b16 %v1030
      %v4010 = vunpack.c.h.b16 %v1030
      %v4011 = vunpack.c.l.b16 %v1031
      %v4012 = vunpack.c.h.b16 %v1031
      %v4013 = vunpack.c.l.b16 %v1032
      %v4014 = vunpack.c.h.b16 %v1032
      %v4015 = vunpack.c.l.b16 %v1033
      %v4016 = vunpack.c.h.b16 %v1033
      %v4017 = vunpack.c.l.b16 %v1034
      %v4018 = vunpack.c.h.b16 %v1034
      %v4019 = vunpack.c.l.b16 %v1035
      %v4020 = vunpack.c.h.b16 %v1035
      %v4021 = vunpack.c.l.b16 %v1036
      %v4022 = vunpack.c.h.b16 %v1036
      %v4023 = vunpack.c.l.b16 %v1037
      %v4024 = vunpack.c.h.b16 %v1037
      %v4025 = vunpack.c.l.b16 %v1038
      %v4026 = vunpack.c.h.b16 %v1038
      %v4027 = vunpack.c.l.b16 %v1039
      %v4028 = vunpack.c.h.b16 %v1039
      %v4029 = vunpack.c.l.b16 %v1040
      %v4030 = vunpack.c.h.b16 %v1040
      %v4031 = vunpack.c.l.b16 %v1041
      %v4032 = vunpack.c.h.b16 %v1041
      %v4033 = vunpack.c.l.b16 %v1042
      %v4034 = vunpack.c.h.b16 %v1042
      %v4035 = vunpack.c.l.b16 %v1043
      %v4036 = vunpack.c.h.b16 %v1043
      %v4037 = vunpack.c.l.b16 %v1044
      %v4038 = vunpack.c.h.b16 %v1044
      %v4039 = vunpack.c.l.b16 %v1045
      %v4040 = vunpack.c.h.b16 %v1045
      %v4041 = vunpack.c.l.b16 %v1046
      %v4042 = vunpack.c.h.b16 %v1046
      %v4043 = vunpack.c.l.b16 %v1047
      %v4044 = vunpack.c.h.b16 %v1047
      %v4045 = vunpack.c.l.b16 %v1048
      %v4046 = vunpack.c.h.b16 %v1048
      %v4047 = vunpack.c.l.b16 %v1049
      %v4048 = vunpack.c.h.b16 %v1049
      %v4049 = vunpack.c.l.b16 %v1050
      %v4050 = vunpack.c.h.b16 %v1050
      %v4051 = vunpack.c.l.b16 %v1051
      %v4052 = vunpack.c.h.b16 %v1051
      %v4053 = vunpack.c.l.b16 %v1052
      %v4054 = vunpack.c.h.b16 %v1052
      %v4055 = vunpack.c.l.b16 %v1053
      %v4056 = vunpack.c.h.b16 %v1053
      %v4057 = vunpack.c.l.b16 %v1054
      %v4058 = vunpack.c.h.b16 %v1054
      %v4059 = vunpack.c.l.b16 %v1055
      %v4060 = vunpack.c.h.b16 %v1055
      %v4061 = vunpack.c.l.b16 %v1056
      %v4062 = vunpack.c.h.b16 %v1056
      %v4063 = vunpack.c.l.b16 %v1057
      %v4064 = vunpack.c.h.b16 %v1057
      %v4065 = vunpack.c.l.b16 %v1058
      %v4066 = vunpack.c.h.b16 %v1058
      %v4067 = vunpack.c.l.b16 %v1059
      %v4068 = vunpack.c.h.b16 %v1059
      %v4069 = vunpack.c.l.b16 %v1060
      %v4070 = vunpack.c.h.b16 %v1060
      %v4071 = vunpack.c.l.b16 %v1061
      %v4072 = vunpack.c.h.b16 %v1061
      %v4073 = vunpack.c.l.b16 %v1062
      %v4074 = vunpack.c.h.b16 %v1062
      %v4075 = vunpack.c.l.b16 %v1063
      %v4076 = vunpack.c.h.b16 %v1063
      %v4077 = vunpack.c.l.b16 %v1064
      %v4078 = vunpack.c.h.b16 %v1064
      %v4079 = vunpack.c.l.b16 %v1065
      %v4080 = vunpack.c.h.b16 %v1065
      %v4081 = vunpack.c.l.b16 %v1066
      %v4082 = vunpack.c.h.b16 %v1066
      %v4083 = vunpack.c.l.b16 %v1067
      %v4084 = vunpack.c.h.b16 %v1067
      %v4085 = vunpack.c.l.b16 %v1068
      %v4086 = vunpack.c.h.b16 %v1068
      %v4087 = vunpack.c.l.b16 %v1069
      %v4088 = vunpack.c.h.b16 %v1069
      %v4089 = vunpack.c.l.b16 %v1070
      %v4090 = vunpack.c.h.b16 %v1070
      %v4091 = vunpack.c.l.b16 %v1071
      %v4092 = vunpack.c.h.b16 %v1071
      %v4093 = vunpack.c.l.b16 %v1072
      %v4094 = vunpack.c.h.b16 %v1072
      %v4095 = vunpack.c.l.b16 %v1073
      %v4096 = vunpack.c.h.b16 %v1073
      %v4097 = vunpack.c.l.b16 %v1074
      %v4098 = vunpack.c.h.b16 %v1074
      %v4099 = vunpack.c.l.b16 %v1075
      %v4100 = vunpack.c.h.b16 %v1075
      %v4101 = vunpack.c.l.b16 %v1076
      %v4102 = vunpack.c.h.b16 %v1076
      %v4103 = vunpack.c.l.b16 %v1077
      %v4104 = vunpack.c.h.b16 %v1077
      %v4105 = vunpack.c.l.b16 %v1078
      %v4106 = vunpack.c.h.b16 %v1078
      %v4107 = vunpack.c.l.b16 %v1079
      %v4108 = vunpack.c.h.b16 %v1079
      %v4109 = vunpack.c.l.b16 %v1080
      %v4110 = vunpack.c.h.b16 %v1080
      %v4111 = vunpack.c.l.b16 %v1081
      %v4112 = vunpack.c.h.b16 %v1081
      %v4113 = vunpack.c.l.b16 %v1082
      %v4114 = vunpack.c.h.b16 %v1082
      %v4115 = vunpack.c.l.b16 %v1083
      %v4116 = vunpack.c.h.b16 %v1083
      %v4117 = vunpack.c.l.b16 %v1084
      %v4118 = vunpack.c.h.b16 %v1084
      %v4119 = vunpack.c.l.b16 %v1085
      %v4120 = vunpack.c.h.b16 %v1085
      %v4121 = vunpack.c.l.b16 %v1086
      %v4122 = vunpack.c.h.b16 %v1086
      %v4123 = vunpack.c.l.b16 %v1087
      %v4124 = vunpack.c.h.b16 %v1087
      %v4125 = vunpack.c.l.b16 %v1088
      %v4126 = vunpack.c.h.b16 %v1088
      %v4127 = vunpack.c.l.b16 %v1089
      %v4128 = vunpack.c.h.b16 %v1089
      %v4129 = vunpack.c.l.b16 %v1090
      %v4130 = vunpack.c.h.b16 %v1090
      %v4131 = vunpack.c.l.b16 %v1091
      %v4132 = vunpack.c.h.b16 %v1091
      %v4133 = vunpack.c.l.b16 %v1092
      %v4134 = vunpack.c.h.b16 %v1092
      %v4135 = vunpack.c.l.b16 %v1093
      %v4136 = vunpack.c.h.b16 %v1093
      %v4137 = vunpack.c.l.b16 %v1094
      %v4138 = vunpack.c.h.b16 %v1094
      %v4139 = vunpack.c.l.b16 %v1095
      %v4140 = vunpack.c.h.b16 %v1095
      %v4141 = vunpack.c.l.b16 %v1096
      %v4142 = vunpack.c.h.b16 %v1096
      %v4143 = vunpack.c.l.b16 %v1097
      %v4144 = vunpack.c.h.b16 %v1097
      %v4145 = vunpack.c.l.b16 %v1098
      %v4146 = vunpack.c.h.b16 %v1098
      %v4147 = vunpack.c.l.b16 %v1099
      %v4148 = vunpack.c.h.b16 %v1099
      %v4149 = vunpack.c.l.b16 %v1100
      %v4150 = vunpack.c.h.b16 %v1100
      %v4151 = vunpack.c.l.b16 %v1101
      %v4152 = vunpack.c.h.b16 %v1101
      %v4153 = vunpack.c.l.b16 %v1102
      %v4154 = vunpack.c.h.b16 %v1102
      %v4155 = vunpack.c.l.b16 %v1103
      %v4156 = vunpack.c.h.b16 %v1103
      %v4157 = vunpack.c.l.b16 %v1104
      %v4158 = vunpack.c.h.b16 %v1104
      %v4159 = vunpack.c.l.b16 %v1105
      %v4160 = vunpack.c.h.b16 %v1105
      %v4161 = vunpack.c.l.b16 %v1106
      %v4162 = vunpack.c.h.b16 %v1106
      %v4163 = vunpack.c.l.b16 %v1107
      %v4164 = vunpack.c.h.b16 %v1107
      %v4165 = vunpack.c.l.b16 %v1108
      %v4166 = vunpack.c.h.b16 %v1108
      %v4167 = vunpack.c.l.b16 %v1109
      %v4168 = vunpack.c.h.b16 %v1109
      %v4169 = vunpack.c.l.b16 %v1110
      %v4170 = vunpack.c.h.b16 %v1110
      %v4171 = vunpack.c.l.b16 %v1111
      %v4172 = vunpack.c.h.b16 %v1111
      %v4173 = vunpack.c.l.b16 %v1112
      %v4174 = vunpack.c.h.b16 %v1112
      %v4175 = vunpack.c.l.b16 %v1113
      %v4176 = vunpack.c.h.b16 %v1113
      %v4177 = vunpack.c.l.b16 %v1114
      %v4178 = vunpack.c.h.b16 %v1114
      %v4179 = vunpack.c.l.b16 %v1115
      %v4180 = vunpack.c.h.b16 %v1115
      %v4181 = vunpack.c.l.b16 %v1116
      %v4182 = vunpack.c.h.b16 %v1116
      %v4183 = vunpack.c.l.b16 %v1117
      %v4184 = vunpack.c.h.b16 %v1117
      %v4185 = vunpack.c.l.b16 %v1118
      %v4186 = vunpack.c.h.b16 %v1118
      %v4187 = vunpack.c.l.b16 %v1119
      %v4188 = vunpack.c.h.b16 %v1119
      %v4189 = vunpack.c.l.b16 %v1120
      %v4190 = vunpack.c.h.b16 %v1120
      %v4191 = vunpack.c.l.b16 %v1121
      %v4192 = vunpack.c.h.b16 %v1121
      %v4193 = vunpack.c.l.b16 %v1122
      %v4194 = vunpack.c.h.b16 %v1122
      %v4195 = vunpack.c.l.b16 %v1123
      %v4196 = vunpack.c.h.b16 %v1123
      %v4197 = vunpack.c.l.b16 %v1124
      %v4198 = vunpack.c.h.b16 %v1124
      %v4199 = vunpack.c.l.b16 %v1125
      %v4200 = vunpack.c.h.b16 %v1125
      %v4201 = vunpack.c.l.b16 %v1126
      %v4202 = vunpack.c.h.b16 %v1126
      %v4203 = vunpack.c.l.b16 %v1127
      %v4204 = vunpack.c.h.b16 %v1127
      %v4205 = vunpack.c.l.b16 %v1128
      %v4206 = vunpack.c.h.b16 %v1128
      %v4207 = vunpack.c.l.b16 %v1129
      %v4208 = vunpack.c.h.b16 %v1129
      %v4209 = vunpack.c.l.b16 %v1130
      %v4210 = vunpack.c.h.b16 %v1130
      %v4211 = vunpack.c.l.b16 %v1131
      %v4212 = vunpack.c.h.b16 %v1131
      %v4213 = vunpack.c.l.b16 %v1132
      %v4214 = vunpack.c.h.b16 %v1132
      %v4215 = vunpack.c.l.b16 %v1133
      %v4216 = vunpack.c.h.b16 %v1133
      %v4217 = vunpack.c.l.b16 %v1134
      %v4218 = vunpack.c.h.b16 %v1134
      %v4219 = vunpack.c.l.b16 %v1135
      %v4220 = vunpack.c.h.b16 %v1135
      %v4221 = vunpack.c.l.b16 %v1136
      %v4222 = vunpack.c.h.b16 %v1136
      %v4223 = vunpack.c.l.b16 %v1137
      %v4224 = vunpack.c.h.b16 %v1137
      %v4225 = vunpack.c.l.b16 %v1138
      %v4226 = vunpack.c.h.b16 %v1138
      %v4227 = vunpack.c.l.b16 %v1139
      %v4228 = vunpack.c.h.b16 %v1139
      %v4229 = vunpack.c.l.b16 %v1140
      %v4230 = vunpack.c.h.b16 %v1140
      %v4231 = vunpack.c.l.b16 %v1141
      %v4232 = vunpack.c.h.b16 %v1141
      %v4233 = vunpack.c.l.b16 %v1142
      %v4234 = vunpack.c.h.b16 %v1142
      %v4235 = vunpack.c.l.b16 %v1143
      %v4236 = vunpack.c.h.b16 %v1143
      %v4237 = vunpack.c.l.b16 %v1144
      %v4238 = vunpack.c.h.b16 %v1144
      %v4239 = vunpack.c.l.b16 %v1145
      %v4240 = vunpack.c.h.b16 %v1145
      %v4241 = vunpack.c.l.b16 %v1146
      %v4242 = vunpack.c.h.b16 %v1146
      %v4243 = vunpack.c.l.b16 %v1147
      %v4244 = vunpack.c.h.b16 %v1147
      %v4245 = vunpack.c.l.b16 %v1148
      %v4246 = vunpack.c.h.b16 %v1148
      %v4247 = vunpack.c.l.b16 %v1149
      %v4248 = vunpack.c.h.b16 %v1149
      %v4249 = vunpack.c.l.b16 %v1150
      %v4250 = vunpack.c.h.b16 %v1150
      %v4251 = vunpack.c.l.b16 %v1151
      %v4252 = vunpack.c.h.b16 %v1151
      %v4253 = vunpack.c.l.b16 %v1152
      %v4254 = vunpack.c.h.b16 %v1152
      %v4255 = vunpack.c.l.b16 %v1153
      %v4256 = vunpack.c.h.b16 %v1153
      %v4257 = vunpack.c.l.b16 %v1154
      %v4258 = vunpack.c.h.b16 %v1154
      %v4259 = vunpack.c.l.b16 %v1155
      %v4260 = vunpack.c.h.b16 %v1155
      %v4261 = vunpack.c.l.b16 %v1156
      %v4262 = vunpack.c.h.b16 %v1156
      %v4263 = vunpack.c.l.b16 %v1157
      %v4264 = vunpack.c.h.b16 %v1157
      %v4265 = vunpack.c.l.b16 %v1158
      %v4266 = vunpack.c.h.b16 %v1158
      %v4267 = vunpack.c.l.b16 %v1159
      %v4268 = vunpack.c.h.b16 %v1159
      %v4269 = vunpack.c.l.b16 %v1160
      %v4270 = vunpack.c.h.b16 %v1160
      %v4271 = vunpack.c.l.b16 %v1161
      %v4272 = vunpack.c.h.b16 %v1161
      %v4273 = vunpack.c.l.b16 %v1162
      %v4274 = vunpack.c.h.b16 %v1162
      %v4275 = vunpack.c.l.b16 %v1163
      %v4276 = vunpack.c.h.b16 %v1163
      %v4277 = vunpack.c.l.b16 %v1164
      %v4278 = vunpack.c.h.b16 %v1164
      %v4279 = vunpack.c.l.b16 %v1165
      %v4280 = vunpack.c.h.b16 %v1165
      %v4281 = vunpack.c.l.b16 %v1166
      %v4282 = vunpack.c.h.b16 %v1166
      %v4283 = vunpack.c.l.b16 %v1167
      %v4284 = vunpack.c.h.b16 %v1167
      %v4285 = vunpack.c.l.b16 %v1168
      %v4286 = vunpack.c.h.b16 %v1168
      %v4287 = vunpack.c.l.b16 %v1169
      %v4288 = vunpack.c.h.b16 %v1169
      %v4289 = vunpack.c.l.b16 %v1170
      %v4290 = vunpack.c.h.b16 %v1170
      %v4291 = vunpack.c.l.b16 %v1171
      %v4292 = vunpack.c.h.b16 %v1171
      %v4293 = vunpack.c.l.b16 %v1172
      %v4294 = vunpack.c.h.b16 %v1172
      %v4295 = vunpack.c.l.b16 %v1173
      %v4296 = vunpack.c.h.b16 %v1173
      %v4297 = vunpack.c.l.b16 %v1174
      %v4298 = vunpack.c.h.b16 %v1174
      %v4299 = vunpack.c.l.b16 %v1175
      %v4300 = vunpack.c.h.b16 %v1175
      %v4301 = vunpack.c.l.b16 %v1176
      %v4302 = vunpack.c.h.b16 %v1176
      %v4303 = vunpack.c.l.b16 %v1177
      %v4304 = vunpack.c.h.b16 %v1177
      %v4305 = vunpack.c.l.b16 %v1178
      %v4306 = vunpack.c.h.b16 %v1178
      %v4307 = vunpack.c.l.b16 %v1179
      %v4308 = vunpack.c.h.b16 %v1179
      %v4309 = vunpack.c.l.b16 %v1180
      %v4310 = vunpack.c.h.b16 %v1180
      %v4311 = vunpack.c.l.b16 %v1181
      %v4312 = vunpack.c.h.b16 %v1181
      %v4313 = vunpack.c.l.b16 %v1182
      %v4314 = vunpack.c.h.b16 %v1182
      %v4315 = vunpack.c.l.b16 %v1183
      %v4316 = vunpack.c.h.b16 %v1183
      %v4317 = vunpack.c.l.b16 %v1184
      %v4318 = vunpack.c.h.b16 %v1184
      %v4319 = vunpack.c.l.b16 %v1185
      %v4320 = vunpack.c.h.b16 %v1185
      %v4321 = vunpack.c.l.b16 %v1186
      %v4322 = vunpack.c.h.b16 %v1186
      %v4323 = vunpack.c.l.b16 %v1187
      %v4324 = vunpack.c.h.b16 %v1187
      %v4325 = vunpack.c.l.b16 %v1188
      %v4326 = vunpack.c.h.b16 %v1188
      %v4327 = vunpack.c.l.b16 %v1189
      %v4328 = vunpack.c.h.b16 %v1189
      %v4329 = vunpack.c.l.b16 %v1190
      %v4330 = vunpack.c.h.b16 %v1190
      %v4331 = vunpack.c.l.b16 %v1191
      %v4332 = vunpack.c.h.b16 %v1191
      %v4333 = vunpack.c.l.b16 %v1192
      %v4334 = vunpack.c.h.b16 %v1192
      %v4335 = vunpack.c.l.b16 %v1193
      %v4336 = vunpack.c.h.b16 %v1193
      %v4337 = vunpack.c.l.b16 %v1194
      %v4338 = vunpack.c.h.b16 %v1194
      %v4339 = vunpack.c.l.b16 %v1195
      %v4340 = vunpack.c.h.b16 %v1195
      %v4341 = vunpack.c.l.b16 %v1196
      %v4342 = vunpack.c.h.b16 %v1196
      %v4343 = vunpack.c.l.b16 %v1197
      %v4344 = vunpack.c.h.b16 %v1197
      %v4345 = vunpack.c.l.b16 %v1198
      %v4346 = vunpack.c.h.b16 %v1198
      %v4347 = vunpack.c.l.b16 %v1199
      %v4348 = vunpack.c.h.b16 %v1199
      %v4349 = vunpack.c.l.b16 %v1200
      %v4350 = vunpack.c.h.b16 %v1200
      %v4351 = vunpack.c.l.b16 %v1201
      %v4352 = vunpack.c.h.b16 %v1201
      %v4353 = vunpack.c.l.b16 %v1202
      %v4354 = vunpack.c.h.b16 %v1202
      %v4355 = vunpack.c.l.b16 %v1203
      %v4356 = vunpack.c.h.b16 %v1203
      %v4357 = vunpack.c.l.b16 %v1204
      %v4358 = vunpack.c.h.b16 %v1204
      %v4359 = vunpack.c.l.b16 %v1205
      %v4360 = vunpack.c.h.b16 %v1205
      %v4361 = vunpack.c.l.b16 %v1206
      %v4362 = vunpack.c.h.b16 %v1206
      %v4363 = vunpack.c.l.b16 %v1207
      %v4364 = vunpack.c.h.b16 %v1207
      %v4365 = vunpack.c.l.b16 %v1208
      %v4366 = vunpack.c.h.b16 %v1208
      %v4367 = vunpack.c.l.b16 %v1209
      %v4368 = vunpack.c.h.b16 %v1209
      %v4369 = vunpack.c.l.b16 %v1210
      %v4370 = vunpack.c.h.b16 %v1210
      %v4371 = vunpack.c.l.b16 %v1211
      %v4372 = vunpack.c.h.b16 %v1211
      %v4373 = vunpack.c.l.b16 %v1212
      %v4374 = vunpack.c.h.b16 %v1212
      %v4375 = vunpack.c.l.b16 %v1213
      %v4376 = vunpack.c.h.b16 %v1213
      %v4377 = vunpack.c.l.b16 %v1214
      %v4378 = vunpack.c.h.b16 %v1214
      %v4379 = vunpack.c.l.b16 %v1215
      %v4380 = vunpack.c.h.b16 %v1215
      %v4381 = vunpack.c.l.b16 %v1216
      %v4382 = vunpack.c.h.b16 %v1216
      %v4383 = vunpack.c.l.b16 %v1217
      %v4384 = vunpack.c.h.b16 %v1217
      %v4385 = vunpack.c.l.b16 %v1218
      %v4386 = vunpack.c.h.b16 %v1218
      %v4387 = vunpack.c.l.b16 %v1219
      %v4388 = vunpack.c.h.b16 %v1219
      %v4389 = vunpack.c.l.b16 %v1220
      %v4390 = vunpack.c.h.b16 %v1220
      %v4391 = vunpack.c.l.b16 %v1221
      %v4392 = vunpack.c.h.b16 %v1221
      %v4393 = vunpack.c.l.b16 %v1222
      %v4394 = vunpack.c.h.b16 %v1222
      %v4395 = vunpack.c.l.b16 %v1223
      %v4396 = vunpack.c.h.b16 %v1223
      %v4397 = vunpack.c.l.b16 %v1224
      %v4398 = vunpack.c.h.b16 %v1224
      %v4399 = vunpack.c.l.b16 %v1225
      %v4400 = vunpack.c.h.b16 %v1225
      %v4401 = vunpack.c.l.b16 %v1226
      %v4402 = vunpack.c.h.b16 %v1226
      %v4403 = vunpack.c.l.b16 %v1227
      %v4404 = vunpack.c.h.b16 %v1227
      %v4405 = vunpack.c.l.b16 %v1228
      %v4406 = vunpack.c.h.b16 %v1228
      %v4407 = vunpack.c.l.b16 %v1229
      %v4408 = vunpack.c.h.b16 %v1229
      %v4409 = vunpack.c.l.b16 %v1230
      %v4410 = vunpack.c.h.b16 %v1230
      %v4411 = vunpack.c.l.b16 %v1231
      %v4412 = vunpack.c.h.b16 %v1231
      %v4413 = vunpack.c.l.b16 %v1232
      %v4414 = vunpack.c.h.b16 %v1232
      %v4415 = vunpack.c.l.b16 %v1233
      %v4416 = vunpack.c.h.b16 %v1233
      %v4417 = vunpack.c.l.b16 %v1234
      %v4418 = vunpack.c.h.b16 %v1234
      %v4419 = vunpack.c.l.b16 %v1235
      %v4420 = vunpack.c.h.b16 %v1235
      %v4421 = vunpack.c.l.b16 %v1236
      %v4422 = vunpack.c.h.b16 %v1236
      %v4423 = vunpack.c.l.b16 %v1237
      %v4424 = vunpack.c.h.b16 %v1237
      %v4425 = vunpack.c.l.b16 %v1238
      %v4426 = vunpack.c.h.b16 %v1238
      %v4427 = vunpack.c.l.b16 %v1239
      %v4428 = vunpack.c.h.b16 %v1239
      %v4429 = vunpack.c.l.b16 %v1240
      %v4430 = vunpack.c.h.b16 %v1240
      %v4431 = vunpack.c.l.b16 %v1241
      %v4432 = vunpack.c.h.b16 %v1241
      %v4433 = vunpack.c.l.b16 %v1242
      %v4434 = vunpack.c.h.b16 %v1242
      %v4435 = vunpack.c.l.b16 %v1243
      %v4436 = vunpack.c.h.b16 %v1243
      %v4437 = vunpack.c.l.b16 %v1244
      %v4438 = vunpack.c.h.b16 %v1244
      %v4439 = vunpack.c.l.b16 %v1245
      %v4440 = vunpack.c.h.b16 %v1245
      %v4441 = vunpack.c.l.b16 %v1246
      %v4442 = vunpack.c.h.b16 %v1246
      %v4443 = vunpack.c.l.b16 %v1247
      %v4444 = vunpack.c.h.b16 %v1247
      %v4445 = vunpack.c.l.b16 %v1248
      %v4446 = vunpack.c.h.b16 %v1248
      %v4447 = vunpack.c.l.b16 %v1249
      %v4448 = vunpack.c.h.b16 %v1249
      %v4449 = vunpack.c.l.b16 %v1250
      %v4450 = vunpack.c.h.b16 %v1250
      %v4451 = vunpack.c.l.b16 %v1251
      %v4452 = vunpack.c.h.b16 %v1251
      %v4453 = vunpack.c.l.b16 %v1252
      %v4454 = vunpack.c.h.b16 %v1252
      %v4455 = vunpack.c.l.b16 %v1253
      %v4456 = vunpack.c.h.b16 %v1253
      %v4457 = vunpack.c.l.b16 %v1254
      %v4458 = vunpack.c.h.b16 %v1254
      %v4459 = vunpack.c.l.b16 %v1255
      %v4460 = vunpack.c.h.b16 %v1255
      %v4461 = vunpack.c.l.b16 %v1256
      %v4462 = vunpack.c.h.b16 %v1256
      %v4463 = vunpack.c.l.b16 %v1257
      %v4464 = vunpack.c.h.b16 %v1257
      %v4465 = vunpack.c.l.b16 %v1258
      %v4466 = vunpack.c.h.b16 %v1258
      %v4467 = vunpack.c.l.b16 %v1259
      %v4468 = vunpack.c.h.b16 %v1259
      %v4469 = vunpack.c.l.b16 %v1260
      %v4470 = vunpack.c.h.b16 %v1260
      %v4471 = vunpack.c.l.b16 %v1261
      %v4472 = vunpack.c.h.b16 %v1261
      %v4473 = vunpack.c.l.b16 %v1262
      %v4474 = vunpack.c.h.b16 %v1262
      %v4475 = vunpack.c.l.b16 %v1263
      %v4476 = vunpack.c.h.b16 %v1263
      %v4477 = vunpack.c.l.b16 %v1264
      %v4478 = vunpack.c.h.b16 %v1264
      %v4479 = vunpack.c.l.b16 %v1265
      %v4480 = vunpack.c.h.b16 %v1265
      %v4481 = vunpack.c.l.b16 %v1266
      %v4482 = vunpack.c.h.b16 %v1266
      %v4483 = vunpack.c.l.b16 %v1267
      %v4484 = vunpack.c.h.b16 %v1267
      %v4485 = vunpack.c.l.b16 %v1268
      %v4486 = vunpack.c.h.b16 %v1268
      %v4487 = vunpack.c.l.b16 %v1269
      %v4488 = vunpack.c.h.b16 %v1269
      %v4489 = vunpack.c.l.b16 %v1270
      %v4490 = vunpack.c.h.b16 %v1270
      %v4491 = vunpack.c.l.b16 %v1271
      %v4492 = vunpack.c.h.b16 %v1271
      %v4493 = vunpack.c.l.b16 %v1272
      %v4494 = vunpack.c.h.b16 %v1272
      %v4495 = vunpack.c.l.b16 %v1273
      %v4496 = vunpack.c.h.b16 %v1273
      %v4497 = vunpack.c.l.b16 %v1274
      %v4498 = vunpack.c.h.b16 %v1274
      %v4499 = vunpack.c.l.b16 %v1275
      %v4500 = vunpack.c.h.b16 %v1275
      %v4501 = vunpack.c.l.b16 %v1276
      %v4502 = vunpack.c.h.b16 %v1276
      %v4503 = vunpack.c.l.b16 %v1277
      %v4504 = vunpack.c.h.b16 %v1277
      %v4505 = vunpack.c.l.b16 %v1278
      %v4506 = vunpack.c.h.b16 %v1278
      %v4507 = vunpack.c.l.b16 %v1279
      %v4508 = vunpack.c.h.b16 %v1279
      %v4509 = vunpack.c.l.b16 %v1280
      %v4510 = vunpack.c.h.b16 %v1280
      %v4511 = vunpack.c.l.b16 %v1281
      %v4512 = vunpack.c.h.b16 %v1281
      %v4513 = vunpack.c.l.b16 %v1282
      %v4514 = vunpack.c.h.b16 %v1282
      %v4515 = vpack.c.b16 %v2471, %v2467
      %v4516 = vpack.c.b16 %v2472, %v2468
      %v4517 = vpack.c.b16 %v2473, %v2469
      %v4518 = vpack.c.b16 %v2474, %v2470
      %v4519 = vpack.c.b16 %v2479, %v2475
      %v4520 = vpack.c.b16 %v2480, %v2476
      %v4521 = vpack.c.b16 %v2481, %v2477
      %v4522 = vpack.c.b16 %v2482, %v2478
      %v4523 = vpack.c.b16 %v2487, %v2483
      %v4524 = vpack.c.b16 %v2488, %v2484
      %v4525 = vpack.c.b16 %v2489, %v2485
      %v4526 = vpack.c.b16 %v2490, %v2486
      %v4527 = vpack.c.b16 %v2495, %v2491
      %v4528 = vpack.c.b16 %v2496, %v2492
      %v4529 = vpack.c.b16 %v2497, %v2493
      %v4530 = vpack.c.b16 %v2498, %v2494
      %v4531 = vpack.c.b16 %v2503, %v2499
      %v4532 = vpack.c.b16 %v2504, %v2500
      %v4533 = vpack.c.b16 %v2505, %v2501
      %v4534 = vpack.c.b16 %v2506, %v2502
      %v4535 = vpack.c.b16 %v2511, %v2507
      %v4536 = vpack.c.b16 %v2512, %v2508
      %v4537 = vpack.c.b16 %v2513, %v2509
      %v4538 = vpack.c.b16 %v2514, %v2510
      %v4539 = vpack.c.b16 %v2519, %v2515
      %v4540 = vpack.c.b16 %v2520, %v2516
      %v4541 = vpack.c.b16 %v2521, %v2517
      %v4542 = vpack.c.b16 %v2522, %v2518
      %v4543 = vpack.c.b16 %v2527, %v2523
      %v4544 = vpack.c.b16 %v2528, %v2524
      %v4545 = vpack.c.b16 %v2529, %v2525
      %v4546 = vpack.c.b16 %v2530, %v2526
      %v4547 = vpack.c.b16 %v2535, %v2531
      %v4548 = vpack.c.b16 %v2536, %v2532
      %v4549 = vpack.c.b16 %v2537, %v2533
      %v4550 = vpack.c.b16 %v2538, %v2534
      %v4551 = vpack.c.b16 %v2543, %v2539
      %v4552 = vpack.c.b16 %v2544, %v2540
      %v4553 = vpack.c.b16 %v2545, %v2541
      %v4554 = vpack.c.b16 %v2546, %v2542
      %v4555 = vpack.c.b16 %v2551, %v2547
      %v4556 = vpack.c.b16 %v2552, %v2548
      %v4557 = vpack.c.b16 %v2553, %v2549
      %v4558 = vpack.c.b16 %v2554, %v2550
      %v4559 = vpack.c.b16 %v2559, %v2555
      %v4560 = vpack.c.b16 %v2560, %v2556
      %v4561 = vpack.c.b16 %v2561, %v2557
      %v4562 = vpack.c.b16 %v2562, %v2558
      %v4563 = vpack.c.b16 %v2567, %v2563
      %v4564 = vpack.c.b16 %v2568, %v2564
      %v4565 = vpack.c.b16 %v2569, %v2565
      %v4566 = vpack.c.b16 %v2570, %v2566
      %v4567 = vpack.c.b16 %v2575, %v2571
      %v4568 = vpack.c.b16 %v2576, %v2572
      %v4569 = vpack.c.b16 %v2577, %v2573
      %v4570 = vpack.c.b16 %v2578, %v2574
      %v4571 = vpack.c.b16 %v2583, %v2579
      %v4572 = vpack.c.b16 %v2584, %v2580
      %v4573 = vpack.c.b16 %v2585, %v2581
      %v4574 = vpack.c.b16 %v2586, %v2582
      %v4575 = vpack.c.b16 %v2591, %v2587
      %v4576 = vpack.c.b16 %v2592, %v2588
      %v4577 = vpack.c.b16 %v2593, %v2589
      %v4578 = vpack.c.b16 %v2594, %v2590
      %v4579 = vpack.c.b16 %v2599, %v2595
      %v4580 = vpack.c.b16 %v2600, %v2596
      %v4581 = vpack.c.b16 %v2601, %v2597
      %v4582 = vpack.c.b16 %v2602, %v2598
      %v4583 = vpack.c.b16 %v2607, %v2603
      %v4584 = vpack.c.b16 %v2608, %v2604
      %v4585 = vpack.c.b16 %v2609, %v2605
      %v4586 = vpack.c.b16 %v2610, %v2606
      %v4587 = vpack.c.b16 %v2615, %v2611
      %v4588 = vpack.c.b16 %v2616, %v2612
      %v4589 = vpack.c.b16 %v2617, %v2613
      %v4590 = vpack.c.b16 %v2618, %v2614
      %v4591 = vpack.c.b16 %v2623, %v2619
      %v4592 = vpack.c.b16 %v2624, %v2620
      %v4593 = vpack.c.b16 %v2625, %v2621
      %v4594 = vpack.c.b16 %v2626, %v2622
      %v4595 = vpack.c.b16 %v2631, %v2627
      %v4596 = vpack.c.b16 %v2632, %v2628
      %v4597 = vpack.c.b16 %v2633, %v2629
      %v4598 = vpack.c.b16 %v2634, %v2630
      %v4599 = vpack.c.b16 %v2639, %v2635
      %v4600 = vpack.c.b16 %v2640, %v2636
      %v4601 = vpack.c.b16 %v2641, %v2637
      %v4602 = vpack.c.b16 %v2642, %v2638
      %v4603 = vpack.c.b16 %v2647, %v2643
      %v4604 = vpack.c.b16 %v2648, %v2644
      %v4605 = vpack.c.b16 %v2649, %v2645
      %v4606 = vpack.c.b16 %v2650, %v2646
      %v4607 = vpack.c.b16 %v2655, %v2651
      %v4608 = vpack.c.b16 %v2656, %v2652
      %v4609 = vpack.c.b16 %v2657, %v2653
      %v4610 = vpack.c.b16 %v2658, %v2654
      %v4611 = vpack.c.b16 %v2663, %v2659
      %v4612 = vpack.c.b16 %v2664, %v2660
      %v4613 = vpack.c.b16 %v2665, %v2661
      %v4614 = vpack.c.b16 %v2666, %v2662
      %v4615 = vpack.c.b16 %v2671, %v2667
      %v4616 = vpack.c.b16 %v2672, %v2668
      %v4617 = vpack.c.b16 %v2673, %v2669
      %v4618 = vpack.c.b16 %v2674, %v2670
      %v4619 = vpack.c.b16 %v2679, %v2675
      %v4620 = vpack.c.b16 %v2680, %v2676
      %v4621 = vpack.c.b16 %v2681, %v2677
      %v4622 = vpack.c.b16 %v2682, %v2678
      %v4623 = vpack.c.b16 %v2687, %v2683
      %v4624 = vpack.c.b16 %v2688, %v2684
      %v4625 = vpack.c.b16 %v2689, %v2685
      %v4626 = vpack.c.b16 %v2690, %v2686
      %v4627 = vpack.c.b16 %v2695, %v2691
      %v4628 = vpack.c.b16 %v2696, %v2692
      %v4629 = vpack.c.b16 %v2697, %v2693
      %v4630 = vpack.c.b16 %v2698, %v2694
      %v4631 = vpack.c.b16 %v2703, %v2699
      %v4632 = vpack.c.b16 %v2704, %v2700
      %v4633 = vpack.c.b16 %v2705, %v2701
      %v4634 = vpack.c.b16 %v2706, %v2702
      %v4635 = vpack.c.b16 %v2711, %v2707
      %v4636 = vpack.c.b16 %v2712, %v2708
      %v4637 = vpack.c.b16 %v2713, %v2709
      %v4638 = vpack.c.b16 %v2714, %v2710
      %v4639 = vpack.c.b16 %v2719, %v2715
      %v4640 = vpack.c.b16 %v2720, %v2716
      %v4641 = vpack.c.b16 %v2721, %v2717
      %v4642 = vpack.c.b16 %v2722, %v2718
      %v4643 = vpack.c.b16 %v2727, %v2723
      %v4644 = vpack.c.b16 %v2728, %v2724
      %v4645 = vpack.c.b16 %v2729, %v2725
      %v4646 = vpack.c.b16 %v2730, %v2726
      %v4647 = vpack.c.b16 %v2735, %v2731
      %v4648 = vpack.c.b16 %v2736, %v2732
      %v4649 = vpack.c.b16 %v2737, %v2733
      %v4650 = vpack.c.b16 %v2738, %v2734
      %v4651 = vpack.c.b16 %v2743, %v2739
      %v4652 = vpack.c.b16 %v2744, %v2740
      %v4653 = vpack.c.b16 %v2745, %v2741
      %v4654 = vpack.c.b16 %v2746, %v2742
      %v4655 = vpack.c.b16 %v2751, %v2747
      %v4656 = vpack.c.b16 %v2752, %v2748
      %v4657 = vpack.c.b16 %v2753, %v2749
      %v4658 = vpack.c.b16 %v2754, %v2750
      %v4659 = vpack.c.b16 %v2759, %v2755
      %v4660 = vpack.c.b16 %v2760, %v2756
      %v4661 = vpack.c.b16 %v2761, %v2757
      %v4662 = vpack.c.b16 %v2762, %v2758
      %v4663 = vpack.c.b16 %v2767, %v2763
      %v4664 = vpack.c.b16 %v2768, %v2764
      %v4665 = vpack.c.b16 %v2769, %v2765
      %v4666 = vpack.c.b16 %v2770, %v2766
      %v4667 = vpack.c.b16 %v2775, %v2771
      %v4668 = vpack.c.b16 %v2776, %v2772
      %v4669 = vpack.c.b16 %v2777, %v2773
      %v4670 = vpack.c.b16 %v2778, %v2774
      %v4671 = vpack.c.b16 %v2783, %v2779
      %v4672 = vpack.c.b16 %v2784, %v2780
      %v4673 = vpack.c.b16 %v2785, %v2781
      %v4674 = vpack.c.b16 %v2786, %v2782
      %v4675 = vpack.c.b16 %v2791, %v2787
      %v4676 = vpack.c.b16 %v2792, %v2788
      %v4677 = vpack.c.b16 %v2793, %v2789
      %v4678 = vpack.c.b16 %v2794, %v2790
      %v4679 = vpack.c.b16 %v2799, %v2795
      %v4680 = vpack.c.b16 %v2800, %v2796
      %v4681 = vpack.c.b16 %v2801, %v2797
      %v4682 = vpack.c.b16 %v2802, %v2798
      %v4683 = vpack.c.b16 %v2807, %v2803
      %v4684 = vpack.c.b16 %v2808, %v2804
      %v4685 = vpack.c.b16 %v2809, %v2805
      %v4686 = vpack.c.b16 %v2810, %v2806
      %v4687 = vpack.c.b16 %v2815, %v2811
      %v4688 = vpack.c.b16 %v2816, %v2812
      %v4689 = vpack.c.b16 %v2817, %v2813
      %v4690 = vpack.c.b16 %v2818, %v2814
      %v4691 = vpack.c.b16 %v2823, %v2819
      %v4692 = vpack.c.b16 %v2824, %v2820
      %v4693 = vpack.c.b16 %v2825, %v2821
      %v4694 = vpack.c.b16 %v2826, %v2822
      %v4695 = vpack.c.b16 %v2831, %v2827
      %v4696 = vpack.c.b16 %v2832, %v2828
      %v4697 = vpack.c.b16 %v2833, %v2829
      %v4698 = vpack.c.b16 %v2834, %v2830
      %v4699 = vpack.c.b16 %v2839, %v2835
      %v4700 = vpack.c.b16 %v2840, %v2836
      %v4701 = vpack.c.b16 %v2841, %v2837
      %v4702 = vpack.c.b16 %v2842, %v2838
      %v4703 = vpack.c.b16 %v2847, %v2843
      %v4704 = vpack.c.b16 %v2848, %v2844
      %v4705 = vpack.c.b16 %v2849, %v2845
      %v4706 = vpack.c.b16 %v2850, %v2846
      %v4707 = vpack.c.b16 %v2855, %v2851
      %v4708 = vpack.c.b16 %v2856, %v2852
      %v4709 = vpack.c.b16 %v2857, %v2853
      %v4710 = vpack.c.b16 %v2858, %v2854
      %v4711 = vpack.c.b16 %v2863, %v2859
      %v4712 = vpack.c.b16 %v2864, %v2860
      %v4713 = vpack.c.b16 %v2865, %v2861
      %v4714 = vpack.c.b16 %v2866, %v2862
      %v4715 = vpack.c.b16 %v2871, %v2867
      %v4716 = vpack.c.b16 %v2872, %v2868
      %v4717 = vpack.c.b16 %v2873, %v2869
      %v4718 = vpack.c.b16 %v2874, %v2870
      %v4719 = vpack.c.b16 %v2879, %v2875
      %v4720 = vpack.c.b16 %v2880, %v2876
      %v4721 = vpack.c.b16 %v2881, %v2877
      %v4722 = vpack.c.b16 %v2882, %v2878
      %v4723 = vpack.c.b16 %v2887, %v2883
      %v4724 = vpack.c.b16 %v2888, %v2884
      %v4725 = vpack.c.b16 %v2889, %v2885
      %v4726 = vpack.c.b16 %v2890, %v2886
      %v4727 = vpack.c.b16 %v2895, %v2891
      %v4728 = vpack.c.b16 %v2896, %v2892
      %v4729 = vpack.c.b16 %v2897, %v2893
      %v4730 = vpack.c.b16 %v2898, %v2894
      %v4731 = vpack.c.b16 %v2903, %v2899
      %v4732 = vpack.c.b16 %v2904, %v2900
      %v4733 = vpack.c.b16 %v2905, %v2901
      %v4734 = vpack.c.b16 %v2906, %v2902
      %v4735 = vpack.c.b16 %v2911, %v2907
      %v4736 = vpack.c.b16 %v2912, %v2908
      %v4737 = vpack.c.b16 %v2913, %v2909
      %v4738 = vpack.c.b16 %v2914, %v2910
      %v4739 = vpack.c.b16 %v2919, %v2915
      %v4740 = vpack.c.b16 %v2920, %v2916
      %v4741 = vpack.c.b16 %v2921, %v2917
      %v4742 = vpack.c.b16 %v2922, %v2918
      %v4743 = vpack.c.b16 %v2927, %v2923
      %v4744 = vpack.c.b16 %v2928, %v2924
      %v4745 = vpack.c.b16 %v2929, %v2925
      %v4746 = vpack.c.b16 %v2930, %v2926
      %v4747 = vpack.c.b16 %v2935, %v2931
      %v4748 = vpack.c.b16 %v2936, %v2932
      %v4749 = vpack.c.b16 %v2937, %v2933
      %v4750 = vpack.c.b16 %v2938, %v2934
      %v4751 = vpack.c.b16 %v2943, %v2939
      %v4752 = vpack.c.b16 %v2944, %v2940
      %v4753 = vpack.c.b16 %v2945, %v2941
      %v4754 = vpack.c.b16 %v2946, %v2942
      %v4755 = vpack.c.b16 %v2951, %v2947
      %v4756 = vpack.c.b16 %v2952, %v2948
      %v4757 = vpack.c.b16 %v2953, %v2949
      %v4758 = vpack.c.b16 %v2954, %v2950
      %v4759 = vpack.c.b16 %v2959, %v2955
      %v4760 = vpack.c.b16 %v2960, %v2956
      %v4761 = vpack.c.b16 %v2961, %v2957
      %v4762 = vpack.c.b16 %v2962, %v2958
      %v4763 = vpack.c.b16 %v2967, %v2963
      %v4764 = vpack.c.b16 %v2968, %v2964
      %v4765 = vpack.c.b16 %v2969, %v2965
      %v4766 = vpack.c.b16 %v2970, %v2966
      %v4767 = vpack.c.b16 %v2975, %v2971
      %v4768 = vpack.c.b16 %v2976, %v2972
      %v4769 = vpack.c.b16 %v2977, %v2973
      %v4770 = vpack.c.b16 %v2978, %v2974
      %v4771 = vpack.c.b16 %v2983, %v2979
      %v4772 = vpack.c.b16 %v2984, %v2980
      %v4773 = vpack.c.b16 %v2985, %v2981
      %v4774 = vpack.c.b16 %v2986, %v2982
      %v4775 = vpack.c.b16 %v2991, %v2987
      %v4776 = vpack.c.b16 %v2992, %v2988
      %v4777 = vpack.c.b16 %v2993, %v2989
      %v4778 = vpack.c.b16 %v2994, %v2990
      %v4779 = vpack.c.b16 %v2999, %v2995
      %v4780 = vpack.c.b16 %v3000, %v2996
      %v4781 = vpack.c.b16 %v3001, %v2997
      %v4782 = vpack.c.b16 %v3002, %v2998
      %v4783 = vpack.c.b16 %v3007, %v3003
      %v4784 = vpack.c.b16 %v3008, %v3004
      %v4785 = vpack.c.b16 %v3009, %v3005
      %v4786 = vpack.c.b16 %v3010, %v3006
      %v4787 = vpack.c.b16 %v3015, %v3011
      %v4788 = vpack.c.b16 %v3016, %v3012
      %v4789 = vpack.c.b16 %v3017, %v3013
      %v4790 = vpack.c.b16 %v3018, %v3014
      %v4791 = vpack.c.b16 %v3023, %v3019
      %v4792 = vpack.c.b16 %v3024, %v3020
      %v4793 = vpack.c.b16 %v3025, %v3021
      %v4794 = vpack.c.b16 %v3026, %v3022
      %v4795 = vpack.c.b16 %v3031, %v3027
      %v4796 = vpack.c.b16 %v3032, %v3028
      %v4797 = vpack.c.b16 %v3033, %v3029
      %v4798 = vpack.c.b16 %v3034, %v3030
      %v4799 = vpack.c.b16 %v3039, %v3035
      %v4800 = vpack.c.b16 %v3040, %v3036
      %v4801 = vpack.c.b16 %v3041, %v3037
      %v4802 = vpack.c.b16 %v3042, %v3038
      %v4803 = vpack.c.b16 %v3047, %v3043
      %v4804 = vpack.c.b16 %v3048, %v3044
      %v4805 = vpack.c.b16 %v3049, %v3045
      %v4806 = vpack.c.b16 %v3050, %v3046
      %v4807 = vpack.c.b16 %v3055, %v3051
      %v4808 = vpack.c.b16 %v3056, %v3052
      %v4809 = vpack.c.b16 %v3057, %v3053
      %v4810 = vpack.c.b16 %v3058, %v3054
      %v4811 = vpack.c.b16 %v3063, %v3059
      %v4812 = vpack.c.b16 %v3064, %v3060
      %v4813 = vpack.c.b16 %v3065, %v3061
      %v4814 = vpack.c.b16 %v3066, %v3062
      %v4815 = vpack.c.b16 %v3071, %v3067
      %v4816 = vpack.c.b16 %v3072, %v3068
      %v4817 = vpack.c.b16 %v3073, %v3069
      %v4818 = vpack.c.b16 %v3074, %v3070
      %v4819 = vpack.c.b16 %v3079, %v3075
      %v4820 = vpack.c.b16 %v3080, %v3076
      %v4821 = vpack.c.b16 %v3081, %v3077
      %v4822 = vpack.c.b16 %v3082, %v3078
      %v4823 = vpack.c.b16 %v3087, %v3083
      %v4824 = vpack.c.b16 %v3088, %v3084
      %v4825 = vpack.c.b16 %v3089, %v3085
      %v4826 = vpack.c.b16 %v3090, %v3086
      %v4827 = vpack.c.b16 %v3095, %v3091
      %v4828 = vpack.c.b16 %v3096, %v3092
      %v4829 = vpack.c.b16 %v3097, %v3093
      %v4830 = vpack.c.b16 %v3098, %v3094
      %v4831 = vpack.c.b16 %v3103, %v3099
      %v4832 = vpack.c.b16 %v3104, %v3100
      %v4833 = vpack.c.b16 %v3105, %v3101
      %v4834 = vpack.c.b16 %v3106, %v3102
      %v4835 = vpack.c.b16 %v3111, %v3107
      %v4836 = vpack.c.b16 %v3112, %v3108
      %v4837 = vpack.c.b16 %v3113, %v3109
      %v4838 = vpack.c.b16 %v3114, %v3110
      %v4839 = vpack.c.b16 %v3119, %v3115
      %v4840 = vpack.c.b16 %v3120, %v3116
      %v4841 = vpack.c.b16 %v3121, %v3117
      %v4842 = vpack.c.b16 %v3122, %v3118
      %v4843 = vpack.c.b16 %v3127, %v3123
      %v4844 = vpack.c.b16 %v3128, %v3124
      %v4845 = vpack.c.b16 %v3129, %v3125
      %v4846 = vpack.c.b16 %v3130, %v3126
      %v4847 = vpack.c.b16 %v3135, %v3131
      %v4848 = vpack.c.b16 %v3136, %v3132
      %v4849 = vpack.c.b16 %v3137, %v3133
      %v4850 = vpack.c.b16 %v3138, %v3134
      %v4851 = vpack.c.b16 %v3143, %v3139
      %v4852 = vpack.c.b16 %v3144, %v3140
      %v4853 = vpack.c.b16 %v3145, %v3141
      %v4854 = vpack.c.b16 %v3146, %v3142
      %v4855 = vpack.c.b16 %v3151, %v3147
      %v4856 = vpack.c.b16 %v3152, %v3148
      %v4857 = vpack.c.b16 %v3153, %v3149
      %v4858 = vpack.c.b16 %v3154, %v3150
      %v4859 = vpack.c.b16 %v3159, %v3155
      %v4860 = vpack.c.b16 %v3160, %v3156
      %v4861 = vpack.c.b16 %v3161, %v3157
      %v4862 = vpack.c.b16 %v3162, %v3158
      %v4863 = vpack.c.b16 %v3167, %v3163
      %v4864 = vpack.c.b16 %v3168, %v3164
      %v4865 = vpack.c.b16 %v3169, %v3165
      %v4866 = vpack.c.b16 %v3170, %v3166
      %v4867 = vpack.c.b16 %v3175, %v3171
      %v4868 = vpack.c.b16 %v3176, %v3172
      %v4869 = vpack.c.b16 %v3177, %v3173
      %v4870 = vpack.c.b16 %v3178, %v3174
      %v4871 = vpack.c.b16 %v3183, %v3179
      %v4872 = vpack.c.b16 %v3184, %v3180
      %v4873 = vpack.c.b16 %v3185, %v3181
      %v4874 = vpack.c.b16 %v3186, %v3182
      %v4875 = vpack.c.b16 %v3191, %v3187
      %v4876 = vpack.c.b16 %v3192, %v3188
      %v4877 = vpack.c.b16 %v3193, %v3189
      %v4878 = vpack.c.b16 %v3194, %v3190
      %v4879 = vpack.c.b16 %v3199, %v3195
      %v4880 = vpack.c.b16 %v3200, %v3196
      %v4881 = vpack.c.b16 %v3201, %v3197
      %v4882 = vpack.c.b16 %v3202, %v3198
      %v4883 = vpack.c.b16 %v3207, %v3203
      %v4884 = vpack.c.b16 %v3208, %v3204
      %v4885 = vpack.c.b16 %v3209, %v3205
      %v4886 = vpack.c.b16 %v3210, %v3206
      %v4887 = vpack.c.b16 %v3215, %v3211
      %v4888 = vpack.c.b16 %v3216, %v3212
      %v4889 = vpack.c.b16 %v3217, %v3213
      %v4890 = vpack.c.b16 %v3218, %v3214
      %v4891 = vpack.c.b16 %v3223, %v3219
      %v4892 = vpack.c.b16 %v3224, %v3220
      %v4893 = vpack.c.b16 %v3225, %v3221
      %v4894 = vpack.c.b16 %v3226, %v3222
      %v4895 = vpack.c.b16 %v3231, %v3227
      %v4896 = vpack.c.b16 %v3232, %v3228
      %v4897 = vpack.c.b16 %v3233, %v3229
      %v4898 = vpack.c.b16 %v3234, %v3230
      %v4899 = vpack.c.b16 %v3239, %v3235
      %v4900 = vpack.c.b16 %v3240, %v3236
      %v4901 = vpack.c.b16 %v3241, %v3237
      %v4902 = vpack.c.b16 %v3242, %v3238
      %v4903 = vpack.c.b16 %v3247, %v3243
      %v4904 = vpack.c.b16 %v3248, %v3244
      %v4905 = vpack.c.b16 %v3249, %v3245
      %v4906 = vpack.c.b16 %v3250, %v3246
      %v4907 = vpack.c.b16 %v3255, %v3251
      %v4908 = vpack.c.b16 %v3256, %v3252
      %v4909 = vpack.c.b16 %v3257, %v3253
      %v4910 = vpack.c.b16 %v3258, %v3254
      %v4911 = vpack.c.b16 %v3263, %v3259
      %v4912 = vpack.c.b16 %v3264, %v3260
      %v4913 = vpack.c.b16 %v3265, %v3261
      %v4914 = vpack.c.b16 %v3266, %v3262
      %v4915 = vpack.c.b16 %v3271, %v3267
      %v4916 = vpack.c.b16 %v3272, %v3268
      %v4917 = vpack.c.b16 %v3273, %v3269
      %v4918 = vpack.c.b16 %v3274, %v3270
      %v4919 = vpack.c.b16 %v3279, %v3275
      %v4920 = vpack.c.b16 %v3280, %v3276
      %v4921 = vpack.c.b16 %v3281, %v3277
      %v4922 = vpack.c.b16 %v3282, %v3278
      %v4923 = vpack.c.b16 %v3287, %v3283
      %v4924 = vpack.c.b16 %v3288, %v3284
      %v4925 = vpack.c.b16 %v3289, %v3285
      %v4926 = vpack.c.b16 %v3290, %v3286
      %v4927 = vpack.c.b16 %v3295, %v3291
      %v4928 = vpack.c.b16 %v3296, %v3292
      %v4929 = vpack.c.b16 %v3297, %v3293
      %v4930 = vpack.c.b16 %v3298, %v3294
      %v4931 = vpack.c.b16 %v3303, %v3299
      %v4932 = vpack.c.b16 %v3304, %v3300
      %v4933 = vpack.c.b16 %v3305, %v3301
      %v4934 = vpack.c.b16 %v3306, %v3302
      %v4935 = vpack.c.b16 %v3311, %v3307
      %v4936 = vpack.c.b16 %v3312, %v3308
      %v4937 = vpack.c.b16 %v3313, %v3309
      %v4938 = vpack.c.b16 %v3314, %v3310
      %v4939 = vpack.c.b16 %v3319, %v3315
      %v4940 = vpack.c.b16 %v3320, %v3316
      %v4941 = vpack.c.b16 %v3321, %v3317
      %v4942 = vpack.c.b16 %v3322, %v3318
      %v4943 = vpack.c.b16 %v3327, %v3323
      %v4944 = vpack.c.b16 %v3328, %v3324
      %v4945 = vpack.c.b16 %v3329, %v3325
      %v4946 = vpack.c.b16 %v3330, %v3326
      %v4947 = vpack.c.b16 %v3335, %v3331
      %v4948 = vpack.c.b16 %v3336, %v3332
      %v4949 = vpack.c.b16 %v3337, %v3333
      %v4950 = vpack.c.b16 %v3338, %v3334
      %v4951 = vpack.c.b16 %v3343, %v3339
      %v4952 = vpack.c.b16 %v3344, %v3340
      %v4953 = vpack.c.b16 %v3345, %v3341
      %v4954 = vpack.c.b16 %v3346, %v3342
      %v4955 = vpack.c.b16 %v3351, %v3347
      %v4956 = vpack.c.b16 %v3352, %v3348
      %v4957 = vpack.c.b16 %v3353, %v3349
      %v4958 = vpack.c.b16 %v3354, %v3350
      %v4959 = vpack.c.b16 %v3359, %v3355
      %v4960 = vpack.c.b16 %v3360, %v3356
      %v4961 = vpack.c.b16 %v3361, %v3357
      %v4962 = vpack.c.b16 %v3362, %v3358
      %v4963 = vpack.c.b16 %v3367, %v3363
      %v4964 = vpack.c.b16 %v3368, %v3364
      %v4965 = vpack.c.b16 %v3369, %v3365
      %v4966 = vpack.c.b16 %v3370, %v3366
      %v4967 = vpack.c.b16 %v3375, %v3371
      %v4968 = vpack.c.b16 %v3376, %v3372
      %v4969 = vpack.c.b16 %v3377, %v3373
      %v4970 = vpack.c.b16 %v3378, %v3374
      %v4971 = vpack.c.b16 %v3383, %v3379
      %v4972 = vpack.c.b16 %v3384, %v3380
      %v4973 = vpack.c.b16 %v3385, %v3381
      %v4974 = vpack.c.b16 %v3386, %v3382
      %v4975 = vpack.c.b16 %v3391, %v3387
      %v4976 = vpack.c.b16 %v3392, %v3388
      %v4977 = vpack.c.b16 %v3393, %v3389
      %v4978 = vpack.c.b16 %v3394, %v3390
      %v4979 = vpack.c.b16 %v3399, %v3395
      %v4980 = vpack.c.b16 %v3400, %v3396
      %v4981 = vpack.c.b16 %v3401, %v3397
      %v4982 = vpack.c.b16 %v3402, %v3398
      %v4983 = vpack.c.b16 %v3407, %v3403
      %v4984 = vpack.c.b16 %v3408, %v3404
      %v4985 = vpack.c.b16 %v3409, %v3405
      %v4986 = vpack.c.b16 %v3410, %v3406
      %v4987 = vpack.c.b16 %v3415, %v3411
      %v4988 = vpack.c.b16 %v3416, %v3412
      %v4989 = vpack.c.b16 %v3417, %v3413
      %v4990 = vpack.c.b16 %v3418, %v3414
      %v4991 = vpack.c.b16 %v3423, %v3419
      %v4992 = vpack.c.b16 %v3424, %v3420
      %v4993 = vpack.c.b16 %v3425, %v3421
      %v4994 = vpack.c.b16 %v3426, %v3422
      %v4995 = vpack.c.b16 %v3431, %v3427
      %v4996 = vpack.c.b16 %v3432, %v3428
      %v4997 = vpack.c.b16 %v3433, %v3429
      %v4998 = vpack.c.b16 %v3434, %v3430
      %v4999 = vpack.c.b16 %v3439, %v3435
      %v5000 = vpack.c.b16 %v3440, %v3436
      %v5001 = vpack.c.b16 %v3441, %v3437
      %v5002 = vpack.c.b16 %v3442, %v3438
      %v5003 = vpack.c.b16 %v3447, %v3443
      %v5004 = vpack.c.b16 %v3448, %v3444
      %v5005 = vpack.c.b16 %v3449, %v3445
      %v5006 = vpack.c.b16 %v3450, %v3446
      %v5007 = vpack.c.b16 %v3455, %v3451
      %v5008 = vpack.c.b16 %v3456, %v3452
      %v5009 = vpack.c.b16 %v3457, %v3453
      %v5010 = vpack.c.b16 %v3458, %v3454
      %v5011 = vpack.c.b16 %v3463, %v3459
      %v5012 = vpack.c.b16 %v3464, %v3460
      %v5013 = vpack.c.b16 %v3465, %v3461
      %v5014 = vpack.c.b16 %v3466, %v3462
      %v5015 = vpack.c.b16 %v3471, %v3467
      %v5016 = vpack.c.b16 %v3472, %v3468
      %v5017 = vpack.c.b16 %v3473, %v3469
      %v5018 = vpack.c.b16 %v3474, %v3470
      %v5019 = vpack.c.b16 %v3479, %v3475
      %v5020 = vpack.c.b16 %v3480, %v3476
      %v5021 = vpack.c.b16 %v3481, %v3477
      %v5022 = vpack.c.b16 %v3482, %v3478
      %v5023 = vpack.c.b16 %v3487, %v3483
      %v5024 = vpack.c.b16 %v3488, %v3484
      %v5025 = vpack.c.b16 %v3489, %v3485
      %v5026 = vpack.c.b16 %v3490, %v3486
      %v5027 = vpack.c.b16 %v3495, %v3491
      %v5028 = vpack.c.b16 %v3496, %v3492
      %v5029 = vpack.c.b16 %v3497, %v3493
      %v5030 = vpack.c.b16 %v3498, %v3494
      %v5031 = vpack.c.b16 %v3503, %v3499
      %v5032 = vpack.c.b16 %v3504, %v3500
      %v5033 = vpack.c.b16 %v3505, %v3501
      %v5034 = vpack.c.b16 %v3506, %v3502
      %v5035 = vpack.c.b16 %v3511, %v3507
      %v5036 = vpack.c.b16 %v3512, %v3508
      %v5037 = vpack.c.b16 %v3513, %v3509
      %v5038 = vpack.c.b16 %v3514, %v3510
      %v5039 = vpack.c.b16 %v3519, %v3515
      %v5040 = vpack.c.b16 %v3520, %v3516
      %v5041 = vpack.c.b16 %v3521, %v3517
      %v5042 = vpack.c.b16 %v3522, %v3518
      %v5043 = vpack.c.b16 %v3527, %v3523
      %v5044 = vpack.c.b16 %v3528, %v3524
      %v5045 = vpack.c.b16 %v3529, %v3525
      %v5046 = vpack.c.b16 %v3530, %v3526
      %v5047 = vpack.c.b16 %v3535, %v3531
      %v5048 = vpack.c.b16 %v3536, %v3532
      %v5049 = vpack.c.b16 %v3537, %v3533
      %v5050 = vpack.c.b16 %v3538, %v3534
      %v5051 = vpack.c.b16 %v3543, %v3539
      %v5052 = vpack.c.b16 %v3544, %v3540
      %v5053 = vpack.c.b16 %v3545, %v3541
      %v5054 = vpack.c.b16 %v3546, %v3542
      %v5055 = vpack.c.b16 %v3551, %v3547
      %v5056 = vpack.c.b16 %v3552, %v3548
      %v5057 = vpack.c.b16 %v3553, %v3549
      %v5058 = vpack.c.b16 %v3554, %v3550
      %v5059 = vpack.c.b16 %v3559, %v3555
      %v5060 = vpack.c.b16 %v3560, %v3556
      %v5061 = vpack.c.b16 %v3561, %v3557
      %v5062 = vpack.c.b16 %v3562, %v3558
      %v5063 = vpack.c.b16 %v3567, %v3563
      %v5064 = vpack.c.b16 %v3568, %v3564
      %v5065 = vpack.c.b16 %v3569, %v3565
      %v5066 = vpack.c.b16 %v3570, %v3566
      %v5067 = vpack.c.b16 %v3575, %v3571
      %v5068 = vpack.c.b16 %v3576, %v3572
      %v5069 = vpack.c.b16 %v3577, %v3573
      %v5070 = vpack.c.b16 %v3578, %v3574
      %v5071 = vpack.c.b16 %v3583, %v3579
      %v5072 = vpack.c.b16 %v3584, %v3580
      %v5073 = vpack.c.b16 %v3585, %v3581
      %v5074 = vpack.c.b16 %v3586, %v3582
      %v5075 = vpack.c.b16 %v3591, %v3587
      %v5076 = vpack.c.b16 %v3592, %v3588
      %v5077 = vpack.c.b16 %v3593, %v3589
      %v5078 = vpack.c.b16 %v3594, %v3590
      %v5079 = vpack.c.b16 %v3599, %v3595
      %v5080 = vpack.c.b16 %v3600, %v3596
      %v5081 = vpack.c.b16 %v3601, %v3597
      %v5082 = vpack.c.b16 %v3602, %v3598
      %v5083 = vpack.c.b16 %v3607, %v3603
      %v5084 = vpack.c.b16 %v3608, %v3604
      %v5085 = vpack.c.b16 %v3609, %v3605
      %v5086 = vpack.c.b16 %v3610, %v3606
      %v5087 = vpack.c.b16 %v3615, %v3611
      %v5088 = vpack.c.b16 %v3616, %v3612
      %v5089 = vpack.c.b16 %v3617, %v3613
      %v5090 = vpack.c.b16 %v3618, %v3614
      %v5091 = vpack.c.b16 %v3623, %v3619
      %v5092 = vpack.c.b16 %v3624, %v3620
      %v5093 = vpack.c.b16 %v3625, %v3621
      %v5094 = vpack.c.b16 %v3626, %v3622
      %v5095 = vpack.c.b16 %v3631, %v3627
      %v5096 = vpack.c.b16 %v3632, %v3628
      %v5097 = vpack.c.b16 %v3633, %v3629
      %v5098 = vpack.c.b16 %v3634, %v3630
      %v5099 = vpack.c.b16 %v3639, %v3635
      %v5100 = vpack.c.b16 %v3640, %v3636
      %v5101 = vpack.c.b16 %v3641, %v3637
      %v5102 = vpack.c.b16 %v3642, %v3638
      %v5103 = vpack.c.b16 %v3647, %v3643
      %v5104 = vpack.c.b16 %v3648, %v3644
      %v5105 = vpack.c.b16 %v3649, %v3645
      %v5106 = vpack.c.b16 %v3650, %v3646
      %v5107 = vpack.c.b16 %v3655, %v3651
      %v5108 = vpack.c.b16 %v3656, %v3652
      %v5109 = vpack.c.b16 %v3657, %v3653
      %v5110 = vpack.c.b16 %v3658, %v3654
      %v5111 = vpack.c.b16 %v3663, %v3659
      %v5112 = vpack.c.b16 %v3664, %v3660
      %v5113 = vpack.c.b16 %v3665, %v3661
      %v5114 = vpack.c.b16 %v3666, %v3662
      %v5115 = vpack.c.b16 %v3671, %v3667
      %v5116 = vpack.c.b16 %v3672, %v3668
      %v5117 = vpack.c.b16 %v3673, %v3669
      %v5118 = vpack.c.b16 %v3674, %v3670
      %v5119 = vpack.c.b16 %v3679, %v3675
      %v5120 = vpack.c.b16 %v3680, %v3676
      %v5121 = vpack.c.b16 %v3681, %v3677
      %v5122 = vpack.c.b16 %v3682, %v3678
      %v5123 = vpack.c.b16 %v3687, %v3683
      %v5124 = vpack.c.b16 %v3688, %v3684
      %v5125 = vpack.c.b16 %v3689, %v3685
      %v5126 = vpack.c.b16 %v3690, %v3686
      %v5127 = vpack.c.b16 %v3695, %v3691
      %v5128 = vpack.c.b16 %v3696, %v3692
      %v5129 = vpack.c.b16 %v3697, %v3693
      %v5130 = vpack.c.b16 %v3698, %v3694
      %v5131 = vpack.c.b16 %v3703, %v3699
      %v5132 = vpack.c.b16 %v3704, %v3700
      %v5133 = vpack.c.b16 %v3705, %v3701
      %v5134 = vpack.c.b16 %v3706, %v3702
      %v5135 = vpack.c.b16 %v3711, %v3707
      %v5136 = vpack.c.b16 %v3712, %v3708
      %v5137 = vpack.c.b16 %v3713, %v3709
      %v5138 = vpack.c.b16 %v3714, %v3710
      %v5139 = vpack.c.b16 %v3719, %v3715
      %v5140 = vpack.c.b16 %v3720, %v3716
      %v5141 = vpack.c.b16 %v3721, %v3717
      %v5142 = vpack.c.b16 %v3722, %v3718
      %v5143 = vpack.c.b16 %v3727, %v3723
      %v5144 = vpack.c.b16 %v3728, %v3724
      %v5145 = vpack.c.b16 %v3729, %v3725
      %v5146 = vpack.c.b16 %v3730, %v3726
      %v5147 = vpack.c.b16 %v3735, %v3731
      %v5148 = vpack.c.b16 %v3736, %v3732
      %v5149 = vpack.c.b16 %v3737, %v3733
      %v5150 = vpack.c.b16 %v3738, %v3734
      %v5151 = vpack.c.b16 %v3743, %v3739
      %v5152 = vpack.c.b16 %v3744, %v3740
      %v5153 = vpack.c.b16 %v3745, %v3741
      %v5154 = vpack.c.b16 %v3746, %v3742
      %v5155 = vpack.c.b16 %v3751, %v3747
      %v5156 = vpack.c.b16 %v3752, %v3748
      %v5157 = vpack.c.b16 %v3753, %v3749
      %v5158 = vpack.c.b16 %v3754, %v3750
      %v5159 = vpack.c.b16 %v3759, %v3755
      %v5160 = vpack.c.b16 %v3760, %v3756
      %v5161 = vpack.c.b16 %v3761, %v3757
      %v5162 = vpack.c.b16 %v3762, %v3758
      %v5163 = vpack.c.b16 %v3767, %v3763
      %v5164 = vpack.c.b16 %v3768, %v3764
      %v5165 = vpack.c.b16 %v3769, %v3765
      %v5166 = vpack.c.b16 %v3770, %v3766
      %v5167 = vpack.c.b16 %v3775, %v3771
      %v5168 = vpack.c.b16 %v3776, %v3772
      %v5169 = vpack.c.b16 %v3777, %v3773
      %v5170 = vpack.c.b16 %v3778, %v3774
      %v5171 = vpack.c.b16 %v3783, %v3779
      %v5172 = vpack.c.b16 %v3784, %v3780
      %v5173 = vpack.c.b16 %v3785, %v3781
      %v5174 = vpack.c.b16 %v3786, %v3782
      %v5175 = vpack.c.b16 %v3791, %v3787
      %v5176 = vpack.c.b16 %v3792, %v3788
      %v5177 = vpack.c.b16 %v3793, %v3789
      %v5178 = vpack.c.b16 %v3794, %v3790
      %v5179 = vpack.c.b16 %v3799, %v3795
      %v5180 = vpack.c.b16 %v3800, %v3796
      %v5181 = vpack.c.b16 %v3801, %v3797
      %v5182 = vpack.c.b16 %v3802, %v3798
      %v5183 = vpack.c.b16 %v3807, %v3803
      %v5184 = vpack.c.b16 %v3808, %v3804
      %v5185 = vpack.c.b16 %v3809, %v3805
      %v5186 = vpack.c.b16 %v3810, %v3806
      %v5187 = vpack.c.b16 %v3815, %v3811
      %v5188 = vpack.c.b16 %v3816, %v3812
      %v5189 = vpack.c.b16 %v3817, %v3813
      %v5190 = vpack.c.b16 %v3818, %v3814
      %v5191 = vpack.c.b16 %v3823, %v3819
      %v5192 = vpack.c.b16 %v3824, %v3820
      %v5193 = vpack.c.b16 %v3825, %v3821
      %v5194 = vpack.c.b16 %v3826, %v3822
      %v5195 = vpack.c.b16 %v3831, %v3827
      %v5196 = vpack.c.b16 %v3832, %v3828
      %v5197 = vpack.c.b16 %v3833, %v3829
      %v5198 = vpack.c.b16 %v3834, %v3830
      %v5199 = vpack.c.b16 %v3839, %v3835
      %v5200 = vpack.c.b16 %v3840, %v3836
      %v5201 = vpack.c.b16 %v3841, %v3837
      %v5202 = vpack.c.b16 %v3842, %v3838
      %v5203 = vpack.c.b16 %v3847, %v3843
      %v5204 = vpack.c.b16 %v3848, %v3844
      %v5205 = vpack.c.b16 %v3849, %v3845
      %v5206 = vpack.c.b16 %v3850, %v3846
      %v5207 = vpack.c.b16 %v3855, %v3851
      %v5208 = vpack.c.b16 %v3856, %v3852
      %v5209 = vpack.c.b16 %v3857, %v3853
      %v5210 = vpack.c.b16 %v3858, %v3854
      %v5211 = vpack.c.b16 %v3863, %v3859
      %v5212 = vpack.c.b16 %v3864, %v3860
      %v5213 = vpack.c.b16 %v3865, %v3861
      %v5214 = vpack.c.b16 %v3866, %v3862
      %v5215 = vpack.c.b16 %v3871, %v3867
      %v5216 = vpack.c.b16 %v3872, %v3868
      %v5217 = vpack.c.b16 %v3873, %v3869
      %v5218 = vpack.c.b16 %v3874, %v3870
      %v5219 = vpack.c.b16 %v3879, %v3875
      %v5220 = vpack.c.b16 %v3880, %v3876
      %v5221 = vpack.c.b16 %v3881, %v3877
      %v5222 = vpack.c.b16 %v3882, %v3878
      %v5223 = vpack.c.b16 %v3887, %v3883
      %v5224 = vpack.c.b16 %v3888, %v3884
      %v5225 = vpack.c.b16 %v3889, %v3885
      %v5226 = vpack.c.b16 %v3890, %v3886
      %v5227 = vpack.c.b16 %v3895, %v3891
      %v5228 = vpack.c.b16 %v3896, %v3892
      %v5229 = vpack.c.b16 %v3897, %v3893
      %v5230 = vpack.c.b16 %v3898, %v3894
      %v5231 = vpack.c.b16 %v3903, %v3899
      %v5232 = vpack.c.b16 %v3904, %v3900
      %v5233 = vpack.c.b16 %v3905, %v3901
      %v5234 = vpack.c.b16 %v3906, %v3902
      %v5235 = vpack.c.b16 %v3911, %v3907
      %v5236 = vpack.c.b16 %v3912, %v3908
      %v5237 = vpack.c.b16 %v3913, %v3909
      %v5238 = vpack.c.b16 %v3914, %v3910
      %v5239 = vpack.c.b16 %v3919, %v3915
      %v5240 = vpack.c.b16 %v3920, %v3916
      %v5241 = vpack.c.b16 %v3921, %v3917
      %v5242 = vpack.c.b16 %v3922, %v3918
      %v5243 = vpack.c.b16 %v3927, %v3923
      %v5244 = vpack.c.b16 %v3928, %v3924
      %v5245 = vpack.c.b16 %v3929, %v3925
      %v5246 = vpack.c.b16 %v3930, %v3926
      %v5247 = vpack.c.b16 %v3935, %v3931
      %v5248 = vpack.c.b16 %v3936, %v3932
      %v5249 = vpack.c.b16 %v3937, %v3933
      %v5250 = vpack.c.b16 %v3938, %v3934
      %v5251 = vpack.c.b16 %v3943, %v3939
      %v5252 = vpack.c.b16 %v3944, %v3940
      %v5253 = vpack.c.b16 %v3945, %v3941
      %v5254 = vpack.c.b16 %v3946, %v3942
      %v5255 = vpack.c.b16 %v3951, %v3947
      %v5256 = vpack.c.b16 %v3952, %v3948
      %v5257 = vpack.c.b16 %v3953, %v3949
      %v5258 = vpack.c.b16 %v3954, %v3950
      %v5259 = vpack.c.b16 %v3959, %v3955
      %v5260 = vpack.c.b16 %v3960, %v3956
      %v5261 = vpack.c.b16 %v3961, %v3957
      %v5262 = vpack.c.b16 %v3962, %v3958
      %v5263 = vpack.c.b16 %v3967, %v3963
      %v5264 = vpack.c.b16 %v3968, %v3964
      %v5265 = vpack.c.b16 %v3969, %v3965
      %v5266 = vpack.c.b16 %v3970, %v3966
      %v5267 = vpack.c.b16 %v3975, %v3971
      %v5268 = vpack.c.b16 %v3976, %v3972
      %v5269 = vpack.c.b16 %v3977, %v3973
      %v5270 = vpack.c.b16 %v3978, %v3974
      %v5271 = vpack.c.b16 %v3983, %v3979
      %v5272 = vpack.c.b16 %v3984, %v3980
      %v5273 = vpack.c.b16 %v3985, %v3981
      %v5274 = vpack.c.b16 %v3986, %v3982
      %v5275 = vpack.c.b16 %v3991, %v3987
      %v5276 = vpack.c.b16 %v3992, %v3988
      %v5277 = vpack.c.b16 %v3993, %v3989
      %v5278 = vpack.c.b16 %v3994, %v3990
      %v5279 = vpack.c.b16 %v3999, %v3995
      %v5280 = vpack.c.b16 %v4000, %v3996
      %v5281 = vpack.c.b16 %v4001, %v3997
      %v5282 = vpack.c.b16 %v4002, %v3998
      %v5283 = vpack.c.b16 %v4007, %v4003
      %v5284 = vpack.c.b16 %v4008, %v4004
      %v5285 = vpack.c.b16 %v4009, %v4005
      %v5286 = vpack.c.b16 %v4010, %v4006
      %v5287 = vpack.c.b16 %v4015, %v4011
      %v5288 = vpack.c.b16 %v4016, %v4012
      %v5289 = vpack.c.b16 %v4017, %v4013
      %v5290 = vpack.c.b16 %v4018, %v4014
      %v5291 = vpack.c.b16 %v4023, %v4019
      %v5292 = vpack.c.b16 %v4024, %v4020
      %v5293 = vpack.c.b16 %v4025, %v4021
      %v5294 = vpack.c.b16 %v4026, %v4022
      %v5295 = vpack.c.b16 %v4031, %v4027
      %v5296 = vpack.c.b16 %v4032, %v4028
      %v5297 = vpack.c.b16 %v4033, %v4029
      %v5298 = vpack.c.b16 %v4034, %v4030
      %v5299 = vpack.c.b16 %v4039, %v4035
      %v5300 = vpack.c.b16 %v4040, %v4036
      %v5301 = vpack.c.b16 %v4041, %v4037
      %v5302 = vpack.c.b16 %v4042, %v4038
      %v5303 = vpack.c.b16 %v4047, %v4043
      %v5304 = vpack.c.b16 %v4048, %v4044
      %v5305 = vpack.c.b16 %v4049, %v4045
      %v5306 = vpack.c.b16 %v4050, %v4046
      %v5307 = vpack.c.b16 %v4055, %v4051
      %v5308 = vpack.c.b16 %v4056, %v4052
      %v5309 = vpack.c.b16 %v4057, %v4053
      %v5310 = vpack.c.b16 %v4058, %v4054
      %v5311 = vpack.c.b16 %v4063, %v4059
      %v5312 = vpack.c.b16 %v4064, %v4060
      %v5313 = vpack.c.b16 %v4065, %v4061
      %v5314 = vpack.c.b16 %v4066, %v4062
      %v5315 = vpack.c.b16 %v4071, %v4067
      %v5316 = vpack.c.b16 %v4072, %v4068
      %v5317 = vpack.c.b16 %v4073, %v4069
      %v5318 = vpack.c.b16 %v4074, %v4070
      %v5319 = vpack.c.b16 %v4079, %v4075
      %v5320 = vpack.c.b16 %v4080, %v4076
      %v5321 = vpack.c.b16 %v4081, %v4077
      %v5322 = vpack.c.b16 %v4082, %v4078
      %v5323 = vpack.c.b16 %v4087, %v4083
      %v5324 = vpack.c.b16 %v4088, %v4084
      %v5325 = vpack.c.b16 %v4089, %v4085
      %v5326 = vpack.c.b16 %v4090, %v4086
      %v5327 = vpack.c.b16 %v4095, %v4091
      %v5328 = vpack.c.b16 %v4096, %v4092
      %v5329 = vpack.c.b16 %v4097, %v4093
      %v5330 = vpack.c.b16 %v4098, %v4094
      %v5331 = vpack.c.b16 %v4103, %v4099
      %v5332 = vpack.c.b16 %v4104, %v4100
      %v5333 = vpack.c.b16 %v4105, %v4101
      %v5334 = vpack.c.b16 %v4106, %v4102
      %v5335 = vpack.c.b16 %v4111, %v4107
      %v5336 = vpack.c.b16 %v4112, %v4108
      %v5337 = vpack.c.b16 %v4113, %v4109
      %v5338 = vpack.c.b16 %v4114, %v4110
      %v5339 = vpack.c.b16 %v4119, %v4115
      %v5340 = vpack.c.b16 %v4120, %v4116
      %v5341 = vpack.c.b16 %v4121, %v4117
      %v5342 = vpack.c.b16 %v4122, %v4118
      %v5343 = vpack.c.b16 %v4127, %v4123
      %v5344 = vpack.c.b16 %v4128, %v4124
      %v5345 = vpack.c.b16 %v4129, %v4125
      %v5346 = vpack.c.b16 %v4130, %v4126
      %v5347 = vpack.c.b16 %v4135, %v4131
      %v5348 = vpack.c.b16 %v4136, %v4132
      %v5349 = vpack.c.b16 %v4137, %v4133
      %v5350 = vpack.c.b16 %v4138, %v4134
      %v5351 = vpack.c.b16 %v4143, %v4139
      %v5352 = vpack.c.b16 %v4144, %v4140
      %v5353 = vpack.c.b16 %v4145, %v4141
      %v5354 = vpack.c.b16 %v4146, %v4142
      %v5355 = vpack.c.b16 %v4151, %v4147
      %v5356 = vpack.c.b16 %v4152, %v4148
      %v5357 = vpack.c.b16 %v4153, %v4149
      %v5358 = vpack.c.b16 %v4154, %v4150
      %v5359 = vpack.c.b16 %v4159, %v4155
      %v5360 = vpack.c.b16 %v4160, %v4156
      %v5361 = vpack.c.b16 %v4161, %v4157
      %v5362 = vpack.c.b16 %v4162, %v4158
      %v5363 = vpack.c.b16 %v4167, %v4163
      %v5364 = vpack.c.b16 %v4168, %v4164
      %v5365 = vpack.c.b16 %v4169, %v4165
      %v5366 = vpack.c.b16 %v4170, %v4166
      %v5367 = vpack.c.b16 %v4175, %v4171
      %v5368 = vpack.c.b16 %v4176, %v4172
      %v5369 = vpack.c.b16 %v4177, %v4173
      %v5370 = vpack.c.b16 %v4178, %v4174
      %v5371 = vpack.c.b16 %v4183, %v4179
      %v5372 = vpack.c.b16 %v4184, %v4180
      %v5373 = vpack.c.b16 %v4185, %v4181
      %v5374 = vpack.c.b16 %v4186, %v4182
      %v5375 = vpack.c.b16 %v4191, %v4187
      %v5376 = vpack.c.b16 %v4192, %v4188
      %v5377 = vpack.c.b16 %v4193, %v4189
      %v5378 = vpack.c.b16 %v4194, %v4190
      %v5379 = vpack.c.b16 %v4199, %v4195
      %v5380 = vpack.c.b16 %v4200, %v4196
      %v5381 = vpack.c.b16 %v4201, %v4197
      %v5382 = vpack.c.b16 %v4202, %v4198
      %v5383 = vpack.c.b16 %v4207, %v4203
      %v5384 = vpack.c.b16 %v4208, %v4204
      %v5385 = vpack.c.b16 %v4209, %v4205
      %v5386 = vpack.c.b16 %v4210, %v4206
      %v5387 = vpack.c.b16 %v4215, %v4211
      %v5388 = vpack.c.b16 %v4216, %v4212
      %v5389 = vpack.c.b16 %v4217, %v4213
      %v5390 = vpack.c.b16 %v4218, %v4214
      %v5391 = vpack.c.b16 %v4223, %v4219
      %v5392 = vpack.c.b16 %v4224, %v4220
      %v5393 = vpack.c.b16 %v4225, %v4221
      %v5394 = vpack.c.b16 %v4226, %v4222
      %v5395 = vpack.c.b16 %v4231, %v4227
      %v5396 = vpack.c.b16 %v4232, %v4228
      %v5397 = vpack.c.b16 %v4233, %v4229
      %v5398 = vpack.c.b16 %v4234, %v4230
      %v5399 = vpack.c.b16 %v4239, %v4235
      %v5400 = vpack.c.b16 %v4240, %v4236
      %v5401 = vpack.c.b16 %v4241, %v4237
      %v5402 = vpack.c.b16 %v4242, %v4238
      %v5403 = vpack.c.b16 %v4247, %v4243
      %v5404 = vpack.c.b16 %v4248, %v4244
      %v5405 = vpack.c.b16 %v4249, %v4245
      %v5406 = vpack.c.b16 %v4250, %v4246
      %v5407 = vpack.c.b16 %v4255, %v4251
      %v5408 = vpack.c.b16 %v4256, %v4252
      %v5409 = vpack.c.b16 %v4257, %v4253
      %v5410 = vpack.c.b16 %v4258, %v4254
      %v5411 = vpack.c.b16 %v4263, %v4259
      %v5412 = vpack.c.b16 %v4264, %v4260
      %v5413 = vpack.c.b16 %v4265, %v4261
      %v5414 = vpack.c.b16 %v4266, %v4262
      %v5415 = vpack.c.b16 %v4271, %v4267
      %v5416 = vpack.c.b16 %v4272, %v4268
      %v5417 = vpack.c.b16 %v4273, %v4269
      %v5418 = vpack.c.b16 %v4274, %v4270
      %v5419 = vpack.c.b16 %v4279, %v4275
      %v5420 = vpack.c.b16 %v4280, %v4276
      %v5421 = vpack.c.b16 %v4281, %v4277
      %v5422 = vpack.c.b16 %v4282, %v4278
      %v5423 = vpack.c.b16 %v4287, %v4283
      %v5424 = vpack.c.b16 %v4288, %v4284
      %v5425 = vpack.c.b16 %v4289, %v4285
      %v5426 = vpack.c.b16 %v4290, %v4286
      %v5427 = vpack.c.b16 %v4295, %v4291
      %v5428 = vpack.c.b16 %v4296, %v4292
      %v5429 = vpack.c.b16 %v4297, %v4293
      %v5430 = vpack.c.b16 %v4298, %v4294
      %v5431 = vpack.c.b16 %v4303, %v4299
      %v5432 = vpack.c.b16 %v4304, %v4300
      %v5433 = vpack.c.b16 %v4305, %v4301
      %v5434 = vpack.c.b16 %v4306, %v4302
      %v5435 = vpack.c.b16 %v4311, %v4307
      %v5436 = vpack.c.b16 %v4312, %v4308
      %v5437 = vpack.c.b16 %v4313, %v4309
      %v5438 = vpack.c.b16 %v4314, %v4310
      %v5439 = vpack.c.b16 %v4319, %v4315
      %v5440 = vpack.c.b16 %v4320, %v4316
      %v5441 = vpack.c.b16 %v4321, %v4317
      %v5442 = vpack.c.b16 %v4322, %v4318
      %v5443 = vpack.c.b16 %v4327, %v4323
      %v5444 = vpack.c.b16 %v4328, %v4324
      %v5445 = vpack.c.b16 %v4329, %v4325
      %v5446 = vpack.c.b16 %v4330, %v4326
      %v5447 = vpack.c.b16 %v4335, %v4331
      %v5448 = vpack.c.b16 %v4336, %v4332
      %v5449 = vpack.c.b16 %v4337, %v4333
      %v5450 = vpack.c.b16 %v4338, %v4334
      %v5451 = vpack.c.b16 %v4343, %v4339
      %v5452 = vpack.c.b16 %v4344, %v4340
      %v5453 = vpack.c.b16 %v4345, %v4341
      %v5454 = vpack.c.b16 %v4346, %v4342
      %v5455 = vpack.c.b16 %v4351, %v4347
      %v5456 = vpack.c.b16 %v4352, %v4348
      %v5457 = vpack.c.b16 %v4353, %v4349
      %v5458 = vpack.c.b16 %v4354, %v4350
      %v5459 = vpack.c.b16 %v4359, %v4355
      %v5460 = vpack.c.b16 %v4360, %v4356
      %v5461 = vpack.c.b16 %v4361, %v4357
      %v5462 = vpack.c.b16 %v4362, %v4358
      %v5463 = vpack.c.b16 %v4367, %v4363
      %v5464 = vpack.c.b16 %v4368, %v4364
      %v5465 = vpack.c.b16 %v4369, %v4365
      %v5466 = vpack.c.b16 %v4370, %v4366
      %v5467 = vpack.c.b16 %v4375, %v4371
      %v5468 = vpack.c.b16 %v4376, %v4372
      %v5469 = vpack.c.b16 %v4377, %v4373
      %v5470 = vpack.c.b16 %v4378, %v4374
      %v5471 = vpack.c.b16 %v4383, %v4379
      %v5472 = vpack.c.b16 %v4384, %v4380
      %v5473 = vpack.c.b16 %v4385, %v4381
      %v5474 = vpack.c.b16 %v4386, %v4382
      %v5475 = vpack.c.b16 %v4391, %v4387
      %v5476 = vpack.c.b16 %v4392, %v4388
      %v5477 = vpack.c.b16 %v4393, %v4389
      %v5478 = vpack.c.b16 %v4394, %v4390
      %v5479 = vpack.c.b16 %v4399, %v4395
      %v5480 = vpack.c.b16 %v4400, %v4396
      %v5481 = vpack.c.b16 %v4401, %v4397
      %v5482 = vpack.c.b16 %v4402, %v4398
      %v5483 = vpack.c.b16 %v4407, %v4403
      %v5484 = vpack.c.b16 %v4408, %v4404
      %v5485 = vpack.c.b16 %v4409, %v4405
      %v5486 = vpack.c.b16 %v4410, %v4406
      %v5487 = vpack.c.b16 %v4415, %v4411
      %v5488 = vpack.c.b16 %v4416, %v4412
      %v5489 = vpack.c.b16 %v4417, %v4413
      %v5490 = vpack.c.b16 %v4418, %v4414
      %v5491 = vpack.c.b16 %v4423, %v4419
      %v5492 = vpack.c.b16 %v4424, %v4420
      %v5493 = vpack.c.b16 %v4425, %v4421
      %v5494 = vpack.c.b16 %v4426, %v4422
      %v5495 = vpack.c.b16 %v4431, %v4427
      %v5496 = vpack.c.b16 %v4432, %v4428
      %v5497 = vpack.c.b16 %v4433, %v4429
      %v5498 = vpack.c.b16 %v4434, %v4430
      %v5499 = vpack.c.b16 %v4439, %v4435
      %v5500 = vpack.c.b16 %v4440, %v4436
      %v5501 = vpack.c.b16 %v4441, %v4437
      %v5502 = vpack.c.b16 %v4442, %v4438
      %v5503 = vpack.c.b16 %v4447, %v4443
      %v5504 = vpack.c.b16 %v4448, %v4444
      %v5505 = vpack.c.b16 %v4449, %v4445
      %v5506 = vpack.c.b16 %v4450, %v4446
      %v5507 = vpack.c.b16 %v4455, %v4451
      %v5508 = vpack.c.b16 %v4456, %v4452
      %v5509 = vpack.c.b16 %v4457, %v4453
      %v5510 = vpack.c.b16 %v4458, %v4454
      %v5511 = vpack.c.b16 %v4463, %v4459
      %v5512 = vpack.c.b16 %v4464, %v4460
      %v5513 = vpack.c.b16 %v4465, %v4461
      %v5514 = vpack.c.b16 %v4466, %v4462
      %v5515 = vpack.c.b16 %v4471, %v4467
      %v5516 = vpack.c.b16 %v4472, %v4468
      %v5517 = vpack.c.b16 %v4473, %v4469
      %v5518 = vpack.c.b16 %v4474, %v4470
      %v5519 = vpack.c.b16 %v4479, %v4475
      %v5520 = vpack.c.b16 %v4480, %v4476
      %v5521 = vpack.c.b16 %v4481, %v4477
      %v5522 = vpack.c.b16 %v4482, %v4478
      %v5523 = vpack.c.b16 %v4487, %v4483
      %v5524 = vpack.c.b16 %v4488, %v4484
      %v5525 = vpack.c.b16 %v4489, %v4485
      %v5526 = vpack.c.b16 %v4490, %v4486
      %v5527 = vpack.c.b16 %v4495, %v4491
      %v5528 = vpack.c.b16 %v4496, %v4492
      %v5529 = vpack.c.b16 %v4497, %v4493
      %v5530 = vpack.c.b16 %v4498, %v4494
      %v5531 = vpack.c.b16 %v4503, %v4499
      %v5532 = vpack.c.b16 %v4504, %v4500
      %v5533 = vpack.c.b16 %v4505, %v4501
      %v5534 = vpack.c.b16 %v4506, %v4502
      %v5535 = vpack.c.b16 %v4511, %v4507
      %v5536 = vpack.c.b16 %v4512, %v4508
      %v5537 = vpack.c.b16 %v4513, %v4509
      %v5538 = vpack.c.b16 %v4514, %v4510
      %6563 = vmatprep.subr.bf16.mxu0 %v4516
      %6564 = vmatpush1.bf16.msra.mxu0 %v4515
      %6565 = vmatprep.subr.bf16.mxu0 %v4520
      %6566 = vmatpush1.bf16.msra.mxu0 %v4519
      %6567 = vmatprep.subr.bf16.mxu0 %v4524
      %6568 = vmatpush1.bf16.msra.mxu0 %v4523
      %6569 = vmatprep.subr.bf16.mxu0 %v4528
      %6570 = vmatpush1.bf16.msra.mxu0 %v4527
      %6571 = vmatprep.subr.bf16.mxu0 %v4532
      %6572 = vmatpush1.bf16.msra.mxu0 %v4531
      %6573 = vmatprep.subr.bf16.mxu0 %v4536
      %6574 = vmatpush1.bf16.msra.mxu0 %v4535
      %6575 = vmatprep.subr.bf16.mxu0 %v4540
      %6576 = vmatpush1.bf16.msra.mxu0 %v4539
      %6577 = vmatprep.subr.bf16.mxu0 %v4544
      %6578 = vmatpush1.bf16.msra.mxu0 %v4543
      %6579 = vmatprep.subr.bf16.mxu0 %v4548
      %6580 = vmatpush1.bf16.msra.mxu0 %v4547
      %6581 = vmatprep.subr.bf16.mxu0 %v4552
      %6582 = vmatpush1.bf16.msra.mxu0 %v4551
      %6583 = vmatprep.subr.bf16.mxu0 %v4556
      %6584 = vmatpush1.bf16.msra.mxu0 %v4555
      %6585 = vmatprep.subr.bf16.mxu0 %v4560
      %6586 = vmatpush1.bf16.msra.mxu0 %v4559
      %6587 = vmatprep.subr.bf16.mxu0 %v4564
      %6588 = vmatpush1.bf16.msra.mxu0 %v4563
      %6589 = vmatprep.subr.bf16.mxu0 %v4568
      %6590 = vmatpush1.bf16.msra.mxu0 %v4567
      %6591 = vmatprep.subr.bf16.mxu0 %v4572
      %6592 = vmatpush1.bf16.msra.mxu0 %v4571
      %6593 = vmatprep.subr.bf16.mxu0 %v4576
      %6594 = vmatpush1.bf16.msra.mxu0 %v4575
      %6595 = vmatprep.mubr.bf16.mxu0 %v1380
      %6596 = vmatmul.mubr.bf16.gmra.mrb[0].mxu0 %v1379
      %v6597 = vpop.f32.mrb[0].mxu0
      %v6598 = vadd.f32 0.0, %v6597
      %v6599 = vpop.f32.mrb[0].mxu0
      %v6600 = vadd.f32 0.0, %v6599
      %v6601 = vpop.f32.mrb[0].mxu0
      %v6602 = vadd.f32 0.0, %v6601
      %v6603 = vpop.f32.mrb[0].mxu0
      %v6604 = vadd.f32 0.0, %v6603
      %6605 = vdwg.mxu0
      %6606 = vmatprep.subr.bf16.mxu0 %v4580
      %6607 = vmatpush1.bf16.msra.mxu0 %v4579
      %6608 = vmatprep.subr.bf16.mxu0 %v4584
      %6609 = vmatpush1.bf16.msra.mxu0 %v4583
      %6610 = vmatprep.subr.bf16.mxu0 %v4588
      %6611 = vmatpush1.bf16.msra.mxu0 %v4587
      %6612 = vmatprep.subr.bf16.mxu0 %v4592
      %6613 = vmatpush1.bf16.msra.mxu0 %v4591
      %6614 = vmatprep.subr.bf16.mxu0 %v4596
      %6615 = vmatpush1.bf16.msra.mxu0 %v4595
      %6616 = vmatprep.subr.bf16.mxu0 %v4600
      %6617 = vmatpush1.bf16.msra.mxu0 %v4599
      %6618 = vmatprep.subr.bf16.mxu0 %v4604
      %6619 = vmatpush1.bf16.msra.mxu0 %v4603
      %6620 = vmatprep.subr.bf16.mxu0 %v4608
      %6621 = vmatpush1.bf16.msra.mxu0 %v4607
      %6622 = vmatprep.subr.bf16.mxu0 %v4612
      %6623 = vmatpush1.bf16.msra.mxu0 %v4611
      %6624 = vmatprep.subr.bf16.mxu0 %v4616
      %6625 = vmatpush1.bf16.msra.mxu0 %v4615
      %6626 = vmatprep.subr.bf16.mxu0 %v4620
      %6627 = vmatpush1.bf16.msra.mxu0 %v4619
      %6628 = vmatprep.subr.bf16.mxu0 %v4624
      %6629 = vmatpush1.bf16.msra.mxu0 %v4623
      %6630 = vmatprep.subr.bf16.mxu0 %v4628
      %6631 = vmatpush1.bf16.msra.mxu0 %v4627
      %6632 = vmatprep.subr.bf16.mxu0 %v4632
      %6633 = vmatpush1.bf16.msra.mxu0 %v4631
      %6634 = vmatprep.subr.bf16.mxu0 %v4636
      %6635 = vmatpush1.bf16.msra.mxu0 %v4635
      %6636 = vmatprep.subr.bf16.mxu0 %v4640
      %6637 = vmatpush1.bf16.msra.mxu0 %v4639
      %6638 = vmatprep.mubr.bf16.mxu0 %v1382
      %6639 = vmatmul.mubr.bf16.gmra.mrb[0].mxu0 %v1381
      %v6640 = vpop.f32.mrb[0].mxu0
      %v6641 = vadd.f32 %v6598, %v6640
      %v6642 = vpop.f32.mrb[0].mxu0
      %v6643 = vadd.f32 %v6600, %v6642
      %v6644 = vpop.f32.mrb[0].mxu0
      %v6645 = vadd.f32 %v6602, %v6644
      %v6646 = vpop.f32.mrb[0].mxu0
      %v6647 = vadd.f32 %v6604, %v6646
      %6648 = vdwg.mxu0
      %6649 = vmatprep.subr.bf16.mxu0 %v4644
      %6650 = vmatpush1.bf16.msra.mxu0 %v4643
      %6651 = vmatprep.subr.bf16.mxu0 %v4648
      %6652 = vmatpush1.bf16.msra.mxu0 %v4647
      %6653 = vmatprep.subr.bf16.mxu0 %v4652
      %6654 = vmatpush1.bf16.msra.mxu0 %v4651
      %6655 = vmatprep.subr.bf16.mxu0 %v4656
      %6656 = vmatpush1.bf16.msra.mxu0 %v4655
      %6657 = vmatprep.subr.bf16.mxu0 %v4660
      %6658 = vmatpush1.bf16.msra.mxu0 %v4659
      %6659 = vmatprep.subr.bf16.mxu0 %v4664
      %6660 = vmatpush1.bf16.msra.mxu0 %v4663
      %6661 = vmatprep.subr.bf16.mxu0 %v4668
      %6662 = vmatpush1.bf16.msra.mxu0 %v4667
      %6663 = vmatprep.subr.bf16.mxu0 %v4672
      %6664 = vmatpush1.bf16.msra.mxu0 %v4671
      %6665 = vmatprep.subr.bf16.mxu0 %v4676
      %6666 = vmatpush1.bf16.msra.mxu0 %v4675
      %6667 = vmatprep.subr.bf16.mxu0 %v4680
      %6668 = vmatpush1.bf16.msra.mxu0 %v4679
      %6669 = vmatprep.subr.bf16.mxu0 %v4684
      %6670 = vmatpush1.bf16.msra.mxu0 %v4683
      %6671 = vmatprep.subr.bf16.mxu0 %v4688
      %6672 = vmatpush1.bf16.msra.mxu0 %v4687
      %6673 = vmatprep.subr.bf16.mxu0 %v4692
      %6674 = vmatpush1.bf16.msra.mxu0 %v4691
      %6675 = vmatprep.subr.bf16.mxu0 %v4696
      %6676 = vmatpush1.bf16.msra.mxu0 %v4695
      %6677 = vmatprep.subr.bf16.mxu0 %v4700
      %6678 = vmatpush1.bf16.msra.mxu0 %v4699
      %6679 = vmatprep.subr.bf16.mxu0 %v4704
      %6680 = vmatpush1.bf16.msra.mxu0 %v4703
      %6681 = vmatprep.mubr.bf16.mxu0 %v1384
      %6682 = vmatmul.mubr.bf16.gmra.mrb[0].mxu0 %v1383
      %v6683 = vpop.f32.mrb[0].mxu0
      %v6684 = vadd.f32 %v6641, %v6683
      %v6685 = vpop.f32.mrb[0].mxu0
      %v6686 = vadd.f32 %v6643, %v6685
      %v6687 = vpop.f32.mrb[0].mxu0
      %v6688 = vadd.f32 %v6645, %v6687
      %v6689 = vpop.f32.mrb[0].mxu0
      %v6690 = vadd.f32 %v6647, %v6689
      %6691 = vdwg.mxu0
      %6692 = vmatprep.subr.bf16.mxu0 %v4708
      %6693 = vmatpush1.bf16.msra.mxu0 %v4707
      %6694 = vmatprep.subr.bf16.mxu0 %v4712
      %6695 = vmatpush1.bf16.msra.mxu0 %v4711
      %6696 = vmatprep.subr.bf16.mxu0 %v4716
      %6697 = vmatpush1.bf16.msra.mxu0 %v4715
      %6698 = vmatprep.subr.bf16.mxu0 %v4720
      %6699 = vmatpush1.bf16.msra.mxu0 %v4719
      %6700 = vmatprep.subr.bf16.mxu0 %v4724
      %6701 = vmatpush1.bf16.msra.mxu0 %v4723
      %6702 = vmatprep.subr.bf16.mxu0 %v4728
      %6703 = vmatpush1.bf16.msra.mxu0 %v4727
      %6704 = vmatprep.subr.bf16.mxu0 %v4732
      %6705 = vmatpush1.bf16.msra.mxu0 %v4731
      %6706 = vmatprep.subr.bf16.mxu0 %v4736
      %6707 = vmatpush1.bf16.msra.mxu0 %v4735
      %6708 = vmatprep.subr.bf16.mxu0 %v4740
      %6709 = vmatpush1.bf16.msra.mxu0 %v4739
      %6710 = vmatprep.subr.bf16.mxu0 %v4744
      %6711 = vmatpush1.bf16.msra.mxu0 %v4743
      %6712 = vmatprep.subr.bf16.mxu0 %v4748
      %6713 = vmatpush1.bf16.msra.mxu0 %v4747
      %6714 = vmatprep.subr.bf16.mxu0 %v4752
      %6715 = vmatpush1.bf16.msra.mxu0 %v4751
      %6716 = vmatprep.subr.bf16.mxu0 %v4756
      %6717 = vmatpush1.bf16.msra.mxu0 %v4755
      %6718 = vmatprep.subr.bf16.mxu0 %v4760
      %6719 = vmatpush1.bf16.msra.mxu0 %v4759
      %6720 = vmatprep.subr.bf16.mxu0 %v4764
      %6721 = vmatpush1.bf16.msra.mxu0 %v4763
      %6722 = vmatprep.subr.bf16.mxu0 %v4768
      %6723 = vmatpush1.bf16.msra.mxu0 %v4767
      %6724 = vmatprep.mubr.bf16.mxu0 %v1386
      %6725 = vmatmul.mubr.bf16.gmra.mrb[0].mxu0 %v1385
      %v6726 = vpop.f32.mrb[0].mxu0
      %v6727 = vadd.f32 %v6684, %v6726
      %v6728 = vpop.f32.mrb[0].mxu0
      %v6729 = vadd.f32 %v6686, %v6728
      %v6730 = vpop.f32.mrb[0].mxu0
      %v6731 = vadd.f32 %v6688, %v6730
      %v6732 = vpop.f32.mrb[0].mxu0
      %v6733 = vadd.f32 %v6690, %v6732
      %6734 = vdwg.mxu0
      %6735 = vmatprep.subr.bf16.mxu0 %v4772
      %6736 = vmatpush1.bf16.msra.mxu0 %v4771
      %6737 = vmatprep.subr.bf16.mxu0 %v4776
      %6738 = vmatpush1.bf16.msra.mxu0 %v4775
      %6739 = vmatprep.subr.bf16.mxu0 %v4780
      %6740 = vmatpush1.bf16.msra.mxu0 %v4779
      %6741 = vmatprep.subr.bf16.mxu0 %v4784
      %6742 = vmatpush1.bf16.msra.mxu0 %v4783
      %6743 = vmatprep.subr.bf16.mxu0 %v4788
      %6744 = vmatpush1.bf16.msra.mxu0 %v4787
      %6745 = vmatprep.subr.bf16.mxu0 %v4792
      %6746 = vmatpush1.bf16.msra.mxu0 %v4791
      %6747 = vmatprep.subr.bf16.mxu0 %v4796
      %6748 = vmatpush1.bf16.msra.mxu0 %v4795
      %6749 = vmatprep.subr.bf16.mxu0 %v4800
      %6750 = vmatpush1.bf16.msra.mxu0 %v4799
      %6751 = vmatprep.subr.bf16.mxu0 %v4804
      %6752 = vmatpush1.bf16.msra.mxu0 %v4803
      %6753 = vmatprep.subr.bf16.mxu0 %v4808
      %6754 = vmatpush1.bf16.msra.mxu0 %v4807
      %6755 = vmatprep.subr.bf16.mxu0 %v4812
      %6756 = vmatpush1.bf16.msra.mxu0 %v4811
      %6757 = vmatprep.subr.bf16.mxu0 %v4816
      %6758 = vmatpush1.bf16.msra.mxu0 %v4815
      %6759 = vmatprep.subr.bf16.mxu0 %v4820
      %6760 = vmatpush1.bf16.msra.mxu0 %v4819
      %6761 = vmatprep.subr.bf16.mxu0 %v4824
      %6762 = vmatpush1.bf16.msra.mxu0 %v4823
      %6763 = vmatprep.subr.bf16.mxu0 %v4828
      %6764 = vmatpush1.bf16.msra.mxu0 %v4827
      %6765 = vmatprep.subr.bf16.mxu0 %v4832
      %6766 = vmatpush1.bf16.msra.mxu0 %v4831
      %6767 = vmatprep.mubr.bf16.mxu0 %v1388
      %6768 = vmatmul.mubr.bf16.gmra.mrb[0].mxu0 %v1387
      %v6769 = vpop.f32.mrb[0].mxu0
      %v6770 = vadd.f32 %v6727, %v6769
      %v6771 = vpop.f32.mrb[0].mxu0
      %v6772 = vadd.f32 %v6729, %v6771
      %v6773 = vpop.f32.mrb[0].mxu0
      %v6774 = vadd.f32 %v6731, %v6773
      %v6775 = vpop.f32.mrb[0].mxu0
      %v6776 = vadd.f32 %v6733, %v6775
      %6777 = vdwg.mxu0
      %6778 = vmatprep.subr.bf16.mxu0 %v4836
      %6779 = vmatpush1.bf16.msra.mxu0 %v4835
      %6780 = vmatprep.subr.bf16.mxu0 %v4840
      %6781 = vmatpush1.bf16.msra.mxu0 %v4839
      %6782 = vmatprep.subr.bf16.mxu0 %v4844
      %6783 = vmatpush1.bf16.msra.mxu0 %v4843
      %6784 = vmatprep.subr.bf16.mxu0 %v4848
      %6785 = vmatpush1.bf16.msra.mxu0 %v4847
      %6786 = vmatprep.subr.bf16.mxu0 %v4852
      %6787 = vmatpush1.bf16.msra.mxu0 %v4851
      %6788 = vmatprep.subr.bf16.mxu0 %v4856
      %6789 = vmatpush1.bf16.msra.mxu0 %v4855
      %6790 = vmatprep.subr.bf16.mxu0 %v4860
      %6791 = vmatpush1.bf16.msra.mxu0 %v4859
      %6792 = vmatprep.subr.bf16.mxu0 %v4864
      %6793 = vmatpush1.bf16.msra.mxu0 %v4863
      %6794 = vmatprep.subr.bf16.mxu0 %v4868
      %6795 = vmatpush1.bf16.msra.mxu0 %v4867
      %6796 = vmatprep.subr.bf16.mxu0 %v4872
      %6797 = vmatpush1.bf16.msra.mxu0 %v4871
      %6798 = vmatprep.subr.bf16.mxu0 %v4876
      %6799 = vmatpush1.bf16.msra.mxu0 %v4875
      %6800 = vmatprep.subr.bf16.mxu0 %v4880
      %6801 = vmatpush1.bf16.msra.mxu0 %v4879
      %6802 = vmatprep.subr.bf16.mxu0 %v4884
      %6803 = vmatpush1.bf16.msra.mxu0 %v4883
      %6804 = vmatprep.subr.bf16.mxu0 %v4888
      %6805 = vmatpush1.bf16.msra.mxu0 %v4887
      %6806 = vmatprep.subr.bf16.mxu0 %v4892
      %6807 = vmatpush1.bf16.msra.mxu0 %v4891
      %6808 = vmatprep.subr.bf16.mxu0 %v4896
      %6809 = vmatpush1.bf16.msra.mxu0 %v4895
      %6810 = vmatprep.mubr.bf16.mxu0 %v1390
      %6811 = vmatmul.mubr.bf16.gmra.mrb[0].mxu0 %v1389
      %v6812 = vpop.f32.mrb[0].mxu0
      %v6813 = vadd.f32 %v6770, %v6812
      %v6814 = vpop.f32.mrb[0].mxu0
      %v6815 = vadd.f32 %v6772, %v6814
      %v6816 = vpop.f32.mrb[0].mxu0
      %v6817 = vadd.f32 %v6774, %v6816
      %v6818 = vpop.f32.mrb[0].mxu0
      %v6819 = vadd.f32 %v6776, %v6818
      %6820 = vdwg.mxu0
      %6821 = vmatprep.subr.bf16.mxu0 %v4900
      %6822 = vmatpush1.bf16.msra.mxu0 %v4899
      %6823 = vmatprep.subr.bf16.mxu0 %v4904
      %6824 = vmatpush1.bf16.msra.mxu0 %v4903
      %6825 = vmatprep.subr.bf16.mxu0 %v4908
      %6826 = vmatpush1.bf16.msra.mxu0 %v4907
      %6827 = vmatprep.subr.bf16.mxu0 %v4912
      %6828 = vmatpush1.bf16.msra.mxu0 %v4911
      %6829 = vmatprep.subr.bf16.mxu0 %v4916
      %6830 = vmatpush1.bf16.msra.mxu0 %v4915
      %6831 = vmatprep.subr.bf16.mxu0 %v4920
      %6832 = vmatpush1.bf16.msra.mxu0 %v4919
      %6833 = vmatprep.subr.bf16.mxu0 %v4924
      %6834 = vmatpush1.bf16.msra.mxu0 %v4923
      %6835 = vmatprep.subr.bf16.mxu0 %v4928
      %6836 = vmatpush1.bf16.msra.mxu0 %v4927
      %6837 = vmatprep.subr.bf16.mxu0 %v4932
      %6838 = vmatpush1.bf16.msra.mxu0 %v4931
      %6839 = vmatprep.subr.bf16.mxu0 %v4936
      %6840 = vmatpush1.bf16.msra.mxu0 %v4935
      %6841 = vmatprep.subr.bf16.mxu0 %v4940
      %6842 = vmatpush1.bf16.msra.mxu0 %v4939
      %6843 = vmatprep.subr.bf16.mxu0 %v4944
      %6844 = vmatpush1.bf16.msra.mxu0 %v4943
      %6845 = vmatprep.subr.bf16.mxu0 %v4948
      %6846 = vmatpush1.bf16.msra.mxu0 %v4947
      %6847 = vmatprep.subr.bf16.mxu0 %v4952
      %6848 = vmatpush1.bf16.msra.mxu0 %v4951
      %6849 = vmatprep.subr.bf16.mxu0 %v4956
      %6850 = vmatpush1.bf16.msra.mxu0 %v4955
      %6851 = vmatprep.subr.bf16.mxu0 %v4960
      %6852 = vmatpush1.bf16.msra.mxu0 %v4959
      %6853 = vmatprep.mubr.bf16.mxu0 %v1392
      %6854 = vmatmul.mubr.bf16.gmra.mrb[0].mxu0 %v1391
      %v6855 = vpop.f32.mrb[0].mxu0
      %v6856 = vadd.f32 %v6813, %v6855
      %v6857 = vpop.f32.mrb[0].mxu0
      %v6858 = vadd.f32 %v6815, %v6857
      %v6859 = vpop.f32.mrb[0].mxu0
      %v6860 = vadd.f32 %v6817, %v6859
      %v6861 = vpop.f32.mrb[0].mxu0
      %v6862 = vadd.f32 %v6819, %v6861
      %6863 = vdwg.mxu0
      %6864 = vmatprep.subr.bf16.mxu0 %v4964
      %6865 = vmatpush1.bf16.msra.mxu0 %v4963
      %6866 = vmatprep.subr.bf16.mxu0 %v4968
      %6867 = vmatpush1.bf16.msra.mxu0 %v4967
      %6868 = vmatprep.subr.bf16.mxu0 %v4972
      %6869 = vmatpush1.bf16.msra.mxu0 %v4971
      %6870 = vmatprep.subr.bf16.mxu0 %v4976
      %6871 = vmatpush1.bf16.msra.mxu0 %v4975
      %6872 = vmatprep.subr.bf16.mxu0 %v4980
      %6873 = vmatpush1.bf16.msra.mxu0 %v4979
      %6874 = vmatprep.subr.bf16.mxu0 %v4984
      %6875 = vmatpush1.bf16.msra.mxu0 %v4983
      %6876 = vmatprep.subr.bf16.mxu0 %v4988
      %6877 = vmatpush1.bf16.msra.mxu0 %v4987
      %6878 = vmatprep.subr.bf16.mxu0 %v4992
      %6879 = vmatpush1.bf16.msra.mxu0 %v4991
      %6880 = vmatprep.subr.bf16.mxu0 %v4996
      %6881 = vmatpush1.bf16.msra.mxu0 %v4995
      %6882 = vmatprep.subr.bf16.mxu0 %v5000
      %6883 = vmatpush1.bf16.msra.mxu0 %v4999
      %6884 = vmatprep.subr.bf16.mxu0 %v5004
      %6885 = vmatpush1.bf16.msra.mxu0 %v5003
      %6886 = vmatprep.subr.bf16.mxu0 %v5008
      %6887 = vmatpush1.bf16.msra.mxu0 %v5007
      %6888 = vmatprep.subr.bf16.mxu0 %v5012
      %6889 = vmatpush1.bf16.msra.mxu0 %v5011
      %6890 = vmatprep.subr.bf16.mxu0 %v5016
      %6891 = vmatpush1.bf16.msra.mxu0 %v5015
      %6892 = vmatprep.subr.bf16.mxu0 %v5020
      %6893 = vmatpush1.bf16.msra.mxu0 %v5019
      %6894 = vmatprep.subr.bf16.mxu0 %v5024
      %6895 = vmatpush1.bf16.msra.mxu0 %v5023
      %6896 = vmatprep.mubr.bf16.mxu0 %v1394
      %6897 = vmatmul.mubr.bf16.gmra.mrb[0].mxu0 %v1393
      %v6898 = vpop.f32.mrb[0].mxu0
      %v6899 = vadd.f32 %v6856, %v6898
      %v6900 = vpop.f32.mrb[0].mxu0
      %v6901 = vadd.f32 %v6858, %v6900
      %v6902 = vpop.f32.mrb[0].mxu0
      %v6903 = vadd.f32 %v6860, %v6902
      %v6904 = vpop.f32.mrb[0].mxu0
      %v6905 = vadd.f32 %v6862, %v6904
      %6906 = vdwg.mxu0
      %6907 = vmatprep.subr.bf16.mxu0 %v5028
      %6908 = vmatpush1.bf16.msra.mxu0 %v5027
      %6909 = vmatprep.subr.bf16.mxu0 %v5032
      %6910 = vmatpush1.bf16.msra.mxu0 %v5031
      %6911 = vmatprep.subr.bf16.mxu0 %v5036
      %6912 = vmatpush1.bf16.msra.mxu0 %v5035
      %6913 = vmatprep.subr.bf16.mxu0 %v5040
      %6914 = vmatpush1.bf16.msra.mxu0 %v5039
      %6915 = vmatprep.subr.bf16.mxu0 %v5044
      %6916 = vmatpush1.bf16.msra.mxu0 %v5043
      %6917 = vmatprep.subr.bf16.mxu0 %v5048
      %6918 = vmatpush1.bf16.msra.mxu0 %v5047
      %6919 = vmatprep.subr.bf16.mxu0 %v5052
      %6920 = vmatpush1.bf16.msra.mxu0 %v5051
      %6921 = vmatprep.subr.bf16.mxu0 %v5056
      %6922 = vmatpush1.bf16.msra.mxu0 %v5055
      %6923 = vmatprep.subr.bf16.mxu0 %v5060
      %6924 = vmatpush1.bf16.msra.mxu0 %v5059
      %6925 = vmatprep.subr.bf16.mxu0 %v5064
      %6926 = vmatpush1.bf16.msra.mxu0 %v5063
      %6927 = vmatprep.subr.bf16.mxu0 %v5068
      %6928 = vmatpush1.bf16.msra.mxu0 %v5067
      %6929 = vmatprep.subr.bf16.mxu0 %v5072
      %6930 = vmatpush1.bf16.msra.mxu0 %v5071
      %6931 = vmatprep.subr.bf16.mxu0 %v5076
      %6932 = vmatpush1.bf16.msra.mxu0 %v5075
      %6933 = vmatprep.subr.bf16.mxu0 %v5080
      %6934 = vmatpush1.bf16.msra.mxu0 %v5079
      %6935 = vmatprep.subr.bf16.mxu0 %v5084
      %6936 = vmatpush1.bf16.msra.mxu0 %v5083
      %6937 = vmatprep.subr.bf16.mxu0 %v5088
      %6938 = vmatpush1.bf16.msra.mxu0 %v5087
      %6939 = vmatprep.mubr.bf16.mxu0 %v1396
      %6940 = vmatmul.mubr.bf16.gmra.mrb[0].mxu0 %v1395
      %v6941 = vpop.f32.mrb[0].mxu0
      %v6942 = vadd.f32 %v6899, %v6941
      %v6943 = vpop.f32.mrb[0].mxu0
      %v6944 = vadd.f32 %v6901, %v6943
      %v6945 = vpop.f32.mrb[0].mxu0
      %v6946 = vadd.f32 %v6903, %v6945
      %v6947 = vpop.f32.mrb[0].mxu0
      %v6948 = vadd.f32 %v6905, %v6947
      %6949 = vdwg.mxu0
      %6950 = vmatprep.subr.bf16.mxu0 %v5092
      %6951 = vmatpush1.bf16.msra.mxu0 %v5091
      %6952 = vmatprep.subr.bf16.mxu0 %v5096
      %6953 = vmatpush1.bf16.msra.mxu0 %v5095
      %6954 = vmatprep.subr.bf16.mxu0 %v5100
      %6955 = vmatpush1.bf16.msra.mxu0 %v5099
      %6956 = vmatprep.subr.bf16.mxu0 %v5104
      %6957 = vmatpush1.bf16.msra.mxu0 %v5103
      %6958 = vmatprep.subr.bf16.mxu0 %v5108
      %6959 = vmatpush1.bf16.msra.mxu0 %v5107
      %6960 = vmatprep.subr.bf16.mxu0 %v5112
      %6961 = vmatpush1.bf16.msra.mxu0 %v5111
      %6962 = vmatprep.subr.bf16.mxu0 %v5116
      %6963 = vmatpush1.bf16.msra.mxu0 %v5115
      %6964 = vmatprep.subr.bf16.mxu0 %v5120
      %6965 = vmatpush1.bf16.msra.mxu0 %v5119
      %6966 = vmatprep.subr.bf16.mxu0 %v5124
      %6967 = vmatpush1.bf16.msra.mxu0 %v5123
      %6968 = vmatprep.subr.bf16.mxu0 %v5128
      %6969 = vmatpush1.bf16.msra.mxu0 %v5127
      %6970 = vmatprep.subr.bf16.mxu0 %v5132
      %6971 = vmatpush1.bf16.msra.mxu0 %v5131
      %6972 = vmatprep.subr.bf16.mxu0 %v5136
      %6973 = vmatpush1.bf16.msra.mxu0 %v5135
      %6974 = vmatprep.subr.bf16.mxu0 %v5140
      %6975 = vmatpush1.bf16.msra.mxu0 %v5139
      %6976 = vmatprep.subr.bf16.mxu0 %v5144
      %6977 = vmatpush1.bf16.msra.mxu0 %v5143
      %6978 = vmatprep.subr.bf16.mxu0 %v5148
      %6979 = vmatpush1.bf16.msra.mxu0 %v5147
      %6980 = vmatprep.subr.bf16.mxu0 %v5152
      %6981 = vmatpush1.bf16.msra.mxu0 %v5151
      %6982 = vmatprep.mubr.bf16.mxu0 %v1398
      %6983 = vmatmul.mubr.bf16.gmra.mrb[0].mxu0 %v1397
      %v6984 = vpop.f32.mrb[0].mxu0
      %v6985 = vadd.f32 %v6942, %v6984
      %v6986 = vpop.f32.mrb[0].mxu0
      %v6987 = vadd.f32 %v6944, %v6986
      %v6988 = vpop.f32.mrb[0].mxu0
      %v6989 = vadd.f32 %v6946, %v6988
      %v6990 = vpop.f32.mrb[0].mxu0
      %v6991 = vadd.f32 %v6948, %v6990
      %6992 = vdwg.mxu0
      %6993 = vmatprep.subr.bf16.mxu0 %v5156
      %6994 = vmatpush1.bf16.msra.mxu0 %v5155
      %6995 = vmatprep.subr.bf16.mxu0 %v5160
      %6996 = vmatpush1.bf16.msra.mxu0 %v5159
      %6997 = vmatprep.subr.bf16.mxu0 %v5164
      %6998 = vmatpush1.bf16.msra.mxu0 %v5163
      %6999 = vmatprep.subr.bf16.mxu0 %v5168
      %7000 = vmatpush1.bf16.msra.mxu0 %v5167
      %7001 = vmatprep.subr.bf16.mxu0 %v5172
      %7002 = vmatpush1.bf16.msra.mxu0 %v5171
      %7003 = vmatprep.subr.bf16.mxu0 %v5176
      %7004 = vmatpush1.bf16.msra.mxu0 %v5175
      %7005 = vmatprep.subr.bf16.mxu0 %v5180
      %7006 = vmatpush1.bf16.msra.mxu0 %v5179
      %7007 = vmatprep.subr.bf16.mxu0 %v5184
      %7008 = vmatpush1.bf16.msra.mxu0 %v5183
      %7009 = vmatprep.subr.bf16.mxu0 %v5188
      %7010 = vmatpush1.bf16.msra.mxu0 %v5187
      %7011 = vmatprep.subr.bf16.mxu0 %v5192
      %7012 = vmatpush1.bf16.msra.mxu0 %v5191
      %7013 = vmatprep.subr.bf16.mxu0 %v5196
      %7014 = vmatpush1.bf16.msra.mxu0 %v5195
      %7015 = vmatprep.subr.bf16.mxu0 %v5200
      %7016 = vmatpush1.bf16.msra.mxu0 %v5199
      %7017 = vmatprep.subr.bf16.mxu0 %v5204
      %7018 = vmatpush1.bf16.msra.mxu0 %v5203
      %7019 = vmatprep.subr.bf16.mxu0 %v5208
      %7020 = vmatpush1.bf16.msra.mxu0 %v5207
      %7021 = vmatprep.subr.bf16.mxu0 %v5212
      %7022 = vmatpush1.bf16.msra.mxu0 %v5211
      %7023 = vmatprep.subr.bf16.mxu0 %v5216
      %7024 = vmatpush1.bf16.msra.mxu0 %v5215
      %7025 = vmatprep.mubr.bf16.mxu0 %v1400
      %7026 = vmatmul.mubr.bf16.gmra.mrb[0].mxu0 %v1399
      %v7027 = vpop.f32.mrb[0].mxu0
      %v7028 = vadd.f32 %v6985, %v7027
      %v7029 = vpop.f32.mrb[0].mxu0
      %v7030 = vadd.f32 %v6987, %v7029
      %v7031 = vpop.f32.mrb[0].mxu0
      %v7032 = vadd.f32 %v6989, %v7031
      %v7033 = vpop.f32.mrb[0].mxu0
      %v7034 = vadd.f32 %v6991, %v7033
      %7035 = vdwg.mxu0
      %7036 = vmatprep.subr.bf16.mxu0 %v5220
      %7037 = vmatpush1.bf16.msra.mxu0 %v5219
      %7038 = vmatprep.subr.bf16.mxu0 %v5224
      %7039 = vmatpush1.bf16.msra.mxu0 %v5223
      %7040 = vmatprep.subr.bf16.mxu0 %v5228
      %7041 = vmatpush1.bf16.msra.mxu0 %v5227
      %7042 = vmatprep.subr.bf16.mxu0 %v5232
      %7043 = vmatpush1.bf16.msra.mxu0 %v5231
      %7044 = vmatprep.subr.bf16.mxu0 %v5236
      %7045 = vmatpush1.bf16.msra.mxu0 %v5235
      %7046 = vmatprep.subr.bf16.mxu0 %v5240
      %7047 = vmatpush1.bf16.msra.mxu0 %v5239
      %7048 = vmatprep.subr.bf16.mxu0 %v5244
      %7049 = vmatpush1.bf16.msra.mxu0 %v5243
      %7050 = vmatprep.subr.bf16.mxu0 %v5248
      %7051 = vmatpush1.bf16.msra.mxu0 %v5247
      %7052 = vmatprep.subr.bf16.mxu0 %v5252
      %7053 = vmatpush1.bf16.msra.mxu0 %v5251
      %7054 = vmatprep.subr.bf16.mxu0 %v5256
      %7055 = vmatpush1.bf16.msra.mxu0 %v5255
      %7056 = vmatprep.subr.bf16.mxu0 %v5260
      %7057 = vmatpush1.bf16.msra.mxu0 %v5259
      %7058 = vmatprep.subr.bf16.mxu0 %v5264
      %7059 = vmatpush1.bf16.msra.mxu0 %v5263
      %7060 = vmatprep.subr.bf16.mxu0 %v5268
      %7061 = vmatpush1.bf16.msra.mxu0 %v5267
      %7062 = vmatprep.subr.bf16.mxu0 %v5272
      %7063 = vmatpush1.bf16.msra.mxu0 %v5271
      %7064 = vmatprep.subr.bf16.mxu0 %v5276
      %7065 = vmatpush1.bf16.msra.mxu0 %v5275
      %7066 = vmatprep.subr.bf16.mxu0 %v5280
      %7067 = vmatpush1.bf16.msra.mxu0 %v5279
      %7068 = vmatprep.mubr.bf16.mxu0 %v1402
      %7069 = vmatmul.mubr.bf16.gmra.mrb[0].mxu0 %v1401
      %v7070 = vpop.f32.mrb[0].mxu0
      %v7071 = vadd.f32 %v7028, %v7070
      %v7072 = vpop.f32.mrb[0].mxu0
      %v7073 = vadd.f32 %v7030, %v7072
      %v7074 = vpop.f32.mrb[0].mxu0
      %v7075 = vadd.f32 %v7032, %v7074
      %v7076 = vpop.f32.mrb[0].mxu0
      %v7077 = vadd.f32 %v7034, %v7076
      %7078 = vdwg.mxu0
      %7079 = vmatprep.subr.bf16.mxu0 %v5284
      %7080 = vmatpush1.bf16.msra.mxu0 %v5283
      %7081 = vmatprep.subr.bf16.mxu0 %v5288
      %7082 = vmatpush1.bf16.msra.mxu0 %v5287
      %7083 = vmatprep.subr.bf16.mxu0 %v5292
      %7084 = vmatpush1.bf16.msra.mxu0 %v5291
      %7085 = vmatprep.subr.bf16.mxu0 %v5296
      %7086 = vmatpush1.bf16.msra.mxu0 %v5295
      %7087 = vmatprep.subr.bf16.mxu0 %v5300
      %7088 = vmatpush1.bf16.msra.mxu0 %v5299
      %7089 = vmatprep.subr.bf16.mxu0 %v5304
      %7090 = vmatpush1.bf16.msra.mxu0 %v5303
      %7091 = vmatprep.subr.bf16.mxu0 %v5308
      %7092 = vmatpush1.bf16.msra.mxu0 %v5307
      %7093 = vmatprep.subr.bf16.mxu0 %v5312
      %7094 = vmatpush1.bf16.msra.mxu0 %v5311
      %7095 = vmatprep.subr.bf16.mxu0 %v5316
      %7096 = vmatpush1.bf16.msra.mxu0 %v5315
      %7097 = vmatprep.subr.bf16.mxu0 %v5320
      %7098 = vmatpush1.bf16.msra.mxu0 %v5319
      %7099 = vmatprep.subr.bf16.mxu0 %v5324
      %7100 = vmatpush1.bf16.msra.mxu0 %v5323
      %7101 = vmatprep.subr.bf16.mxu0 %v5328
      %7102 = vmatpush1.bf16.msra.mxu0 %v5327
      %7103 = vmatprep.subr.bf16.mxu0 %v5332
      %7104 = vmatpush1.bf16.msra.mxu0 %v5331
      %7105 = vmatprep.subr.bf16.mxu0 %v5336
      %7106 = vmatpush1.bf16.msra.mxu0 %v5335
      %7107 = vmatprep.subr.bf16.mxu0 %v5340
      %7108 = vmatpush1.bf16.msra.mxu0 %v5339
      %7109 = vmatprep.subr.bf16.mxu0 %v5344
      %7110 = vmatpush1.bf16.msra.mxu0 %v5343
      %7111 = vmatprep.mubr.bf16.mxu0 %v1404
      %7112 = vmatmul.mubr.bf16.gmra.mrb[0].mxu0 %v1403
      %v7113 = vpop.f32.mrb[0].mxu0
      %v7114 = vadd.f32 %v7071, %v7113
      %v7115 = vpop.f32.mrb[0].mxu0
      %v7116 = vadd.f32 %v7073, %v7115
      %v7117 = vpop.f32.mrb[0].mxu0
      %v7118 = vadd.f32 %v7075, %v7117
      %v7119 = vpop.f32.mrb[0].mxu0
      %v7120 = vadd.f32 %v7077, %v7119
      %7121 = vdwg.mxu0
      %7122 = vmatprep.subr.bf16.mxu0 %v5348
      %7123 = vmatpush1.bf16.msra.mxu0 %v5347
      %7124 = vmatprep.subr.bf16.mxu0 %v5352
      %7125 = vmatpush1.bf16.msra.mxu0 %v5351
      %7126 = vmatprep.subr.bf16.mxu0 %v5356
      %7127 = vmatpush1.bf16.msra.mxu0 %v5355
      %7128 = vmatprep.subr.bf16.mxu0 %v5360
      %7129 = vmatpush1.bf16.msra.mxu0 %v5359
      %7130 = vmatprep.subr.bf16.mxu0 %v5364
      %7131 = vmatpush1.bf16.msra.mxu0 %v5363
      %7132 = vmatprep.subr.bf16.mxu0 %v5368
      %7133 = vmatpush1.bf16.msra.mxu0 %v5367
      %7134 = vmatprep.subr.bf16.mxu0 %v5372
      %7135 = vmatpush1.bf16.msra.mxu0 %v5371
      %7136 = vmatprep.subr.bf16.mxu0 %v5376
      %7137 = vmatpush1.bf16.msra.mxu0 %v5375
      %7138 = vmatprep.subr.bf16.mxu0 %v5380
      %7139 = vmatpush1.bf16.msra.mxu0 %v5379
      %7140 = vmatprep.subr.bf16.mxu0 %v5384
      %7141 = vmatpush1.bf16.msra.mxu0 %v5383
      %7142 = vmatprep.subr.bf16.mxu0 %v5388
      %7143 = vmatpush1.bf16.msra.mxu0 %v5387
      %7144 = vmatprep.subr.bf16.mxu0 %v5392
      %7145 = vmatpush1.bf16.msra.mxu0 %v5391
      %7146 = vmatprep.subr.bf16.mxu0 %v5396
      %7147 = vmatpush1.bf16.msra.mxu0 %v5395
      %7148 = vmatprep.subr.bf16.mxu0 %v5400
      %7149 = vmatpush1.bf16.msra.mxu0 %v5399
      %7150 = vmatprep.subr.bf16.mxu0 %v5404
      %7151 = vmatpush1.bf16.msra.mxu0 %v5403
      %7152 = vmatprep.subr.bf16.mxu0 %v5408
      %7153 = vmatpush1.bf16.msra.mxu0 %v5407
      %7154 = vmatprep.mubr.bf16.mxu0 %v1406
      %7155 = vmatmul.mubr.bf16.gmra.mrb[0].mxu0 %v1405
      %v7156 = vpop.f32.mrb[0].mxu0
      %v7157 = vadd.f32 %v7114, %v7156
      %v7158 = vpop.f32.mrb[0].mxu0
      %v7159 = vadd.f32 %v7116, %v7158
      %v7160 = vpop.f32.mrb[0].mxu0
      %v7161 = vadd.f32 %v7118, %v7160
      %v7162 = vpop.f32.mrb[0].mxu0
      %v7163 = vadd.f32 %v7120, %v7162
      %7164 = vdwg.mxu0
      %7165 = vmatprep.subr.bf16.mxu0 %v5412
      %7166 = vmatpush1.bf16.msra.mxu0 %v5411
      %7167 = vmatprep.subr.bf16.mxu0 %v5416
      %7168 = vmatpush1.bf16.msra.mxu0 %v5415
      %7169 = vmatprep.subr.bf16.mxu0 %v5420
      %7170 = vmatpush1.bf16.msra.mxu0 %v5419
      %7171 = vmatprep.subr.bf16.mxu0 %v5424
      %7172 = vmatpush1.bf16.msra.mxu0 %v5423
      %7173 = vmatprep.subr.bf16.mxu0 %v5428
      %7174 = vmatpush1.bf16.msra.mxu0 %v5427
      %7175 = vmatprep.subr.bf16.mxu0 %v5432
      %7176 = vmatpush1.bf16.msra.mxu0 %v5431
      %7177 = vmatprep.subr.bf16.mxu0 %v5436
      %7178 = vmatpush1.bf16.msra.mxu0 %v5435
      %7179 = vmatprep.subr.bf16.mxu0 %v5440
      %7180 = vmatpush1.bf16.msra.mxu0 %v5439
      %7181 = vmatprep.subr.bf16.mxu0 %v5444
      %7182 = vmatpush1.bf16.msra.mxu0 %v5443
      %7183 = vmatprep.subr.bf16.mxu0 %v5448
      %7184 = vmatpush1.bf16.msra.mxu0 %v5447
      %7185 = vmatprep.subr.bf16.mxu0 %v5452
      %7186 = vmatpush1.bf16.msra.mxu0 %v5451
      %7187 = vmatprep.subr.bf16.mxu0 %v5456
      %7188 = vmatpush1.bf16.msra.mxu0 %v5455
      %7189 = vmatprep.subr.bf16.mxu0 %v5460
      %7190 = vmatpush1.bf16.msra.mxu0 %v5459
      %7191 = vmatprep.subr.bf16.mxu0 %v5464
      %7192 = vmatpush1.bf16.msra.mxu0 %v5463
      %7193 = vmatprep.subr.bf16.mxu0 %v5468
      %7194 = vmatpush1.bf16.msra.mxu0 %v5467
      %7195 = vmatprep.subr.bf16.mxu0 %v5472
      %7196 = vmatpush1.bf16.msra.mxu0 %v5471
      %7197 = vmatprep.mubr.bf16.mxu0 %v1408
      %7198 = vmatmul.mubr.bf16.gmra.mrb[0].mxu0 %v1407
      %v7199 = vpop.f32.mrb[0].mxu0
      %v7200 = vadd.f32 %v7157, %v7199
      %v7201 = vpop.f32.mrb[0].mxu0
      %v7202 = vadd.f32 %v7159, %v7201
      %v7203 = vpop.f32.mrb[0].mxu0
      %v7204 = vadd.f32 %v7161, %v7203
      %v7205 = vpop.f32.mrb[0].mxu0
      %v7206 = vadd.f32 %v7163, %v7205
      %7207 = vdwg.mxu0
      %7208 = vmatprep.subr.bf16.mxu0 %v5476
      %7209 = vmatpush1.bf16.msra.mxu0 %v5475
      %7210 = vmatprep.subr.bf16.mxu0 %v5480
      %7211 = vmatpush1.bf16.msra.mxu0 %v5479
      %7212 = vmatprep.subr.bf16.mxu0 %v5484
      %7213 = vmatpush1.bf16.msra.mxu0 %v5483
      %7214 = vmatprep.subr.bf16.mxu0 %v5488
      %7215 = vmatpush1.bf16.msra.mxu0 %v5487
      %7216 = vmatprep.subr.bf16.mxu0 %v5492
      %7217 = vmatpush1.bf16.msra.mxu0 %v5491
      %7218 = vmatprep.subr.bf16.mxu0 %v5496
      %7219 = vmatpush1.bf16.msra.mxu0 %v5495
      %7220 = vmatprep.subr.bf16.mxu0 %v5500
      %7221 = vmatpush1.bf16.msra.mxu0 %v5499
      %7222 = vmatprep.subr.bf16.mxu0 %v5504
      %7223 = vmatpush1.bf16.msra.mxu0 %v5503
      %7224 = vmatprep.subr.bf16.mxu0 %v5508
      %7225 = vmatpush1.bf16.msra.mxu0 %v5507
      %7226 = vmatprep.subr.bf16.mxu0 %v5512
      %7227 = vmatpush1.bf16.msra.mxu0 %v5511
      %7228 = vmatprep.subr.bf16.mxu0 %v5516
      %7229 = vmatpush1.bf16.msra.mxu0 %v5515
      %7230 = vmatprep.subr.bf16.mxu0 %v5520
      %7231 = vmatpush1.bf16.msra.mxu0 %v5519
      %7232 = vmatprep.subr.bf16.mxu0 %v5524
      %7233 = vmatpush1.bf16.msra.mxu0 %v5523
      %7234 = vmatprep.subr.bf16.mxu0 %v5528
      %7235 = vmatpush1.bf16.msra.mxu0 %v5527
      %7236 = vmatprep.subr.bf16.mxu0 %v5532
      %7237 = vmatpush1.bf16.msra.mxu0 %v5531
      %7238 = vmatprep.subr.bf16.mxu0 %v5536
      %7239 = vmatpush1.bf16.msra.mxu0 %v5535
      %7240 = vmatprep.mubr.bf16.mxu0 %v1410
      %7241 = vmatmul.mubr.bf16.gmra.mrb[0].mxu0 %v1409
      %v7242 = vpop.f32.mrb[0].mxu0
      %v7243 = vadd.f32 %v7200, %v7242
      %v7244 = vpop.f32.mrb[0].mxu0
      %v7245 = vadd.f32 %v7202, %v7244
      %v7246 = vpop.f32.mrb[0].mxu0
      %v7247 = vadd.f32 %v7204, %v7246
      %v7248 = vpop.f32.mrb[0].mxu0
      %v7249 = vadd.f32 %v7206, %v7248
      %7250 = vdwg.mxu0
      %7251 = vmatprep.subr.bf16.mxu0 %v4518
      %7252 = vmatpush1.bf16.msra.mxu0 %v4517
      %7253 = vmatprep.subr.bf16.mxu0 %v4522
      %7254 = vmatpush1.bf16.msra.mxu0 %v4521
      %7255 = vmatprep.subr.bf16.mxu0 %v4526
      %7256 = vmatpush1.bf16.msra.mxu0 %v4525
      %7257 = vmatprep.subr.bf16.mxu0 %v4530
      %7258 = vmatpush1.bf16.msra.mxu0 %v4529
      %7259 = vmatprep.subr.bf16.mxu0 %v4534
      %7260 = vmatpush1.bf16.msra.mxu0 %v4533
      %7261 = vmatprep.subr.bf16.mxu0 %v4538
      %7262 = vmatpush1.bf16.msra.mxu0 %v4537
      %7263 = vmatprep.subr.bf16.mxu0 %v4542
      %7264 = vmatpush1.bf16.msra.mxu0 %v4541
      %7265 = vmatprep.subr.bf16.mxu0 %v4546
      %7266 = vmatpush1.bf16.msra.mxu0 %v4545
      %7267 = vmatprep.subr.bf16.mxu0 %v4550
      %7268 = vmatpush1.bf16.msra.mxu0 %v4549
      %7269 = vmatprep.subr.bf16.mxu0 %v4554
      %7270 = vmatpush1.bf16.msra.mxu0 %v4553
      %7271 = vmatprep.subr.bf16.mxu0 %v4558
      %7272 = vmatpush1.bf16.msra.mxu0 %v4557
      %7273 = vmatprep.subr.bf16.mxu0 %v4562
      %7274 = vmatpush1.bf16.msra.mxu0 %v4561
      %7275 = vmatprep.subr.bf16.mxu0 %v4566
      %7276 = vmatpush1.bf16.msra.mxu0 %v4565
      %7277 = vmatprep.subr.bf16.mxu0 %v4570
      %7278 = vmatpush1.bf16.msra.mxu0 %v4569
      %7279 = vmatprep.subr.bf16.mxu0 %v4574
      %7280 = vmatpush1.bf16.msra.mxu0 %v4573
      %7281 = vmatprep.subr.bf16.mxu0 %v4578
      %7282 = vmatpush1.bf16.msra.mxu0 %v4577
      %7283 = vmatprep.mubr.bf16.mxu0 %v1380
      %7284 = vmatmul.mubr.bf16.gmra.mrb[0].mxu0 %v1379
      %v7285 = vpop.f32.mrb[0].mxu0
      %v7286 = vadd.f32 0.0, %v7285
      %v7287 = vpop.f32.mrb[0].mxu0
      %v7288 = vadd.f32 0.0, %v7287
      %v7289 = vpop.f32.mrb[0].mxu0
      %v7290 = vadd.f32 0.0, %v7289
      %v7291 = vpop.f32.mrb[0].mxu0
      %v7292 = vadd.f32 0.0, %v7291
      %7293 = vdwg.mxu0
      %7294 = vmatprep.subr.bf16.mxu0 %v4582
      %7295 = vmatpush1.bf16.msra.mxu0 %v4581
      %7296 = vmatprep.subr.bf16.mxu0 %v4586
      %7297 = vmatpush1.bf16.msra.mxu0 %v4585
      %7298 = vmatprep.subr.bf16.mxu0 %v4590
      %7299 = vmatpush1.bf16.msra.mxu0 %v4589
      %7300 = vmatprep.subr.bf16.mxu0 %v4594
      %7301 = vmatpush1.bf16.msra.mxu0 %v4593
      %7302 = vmatprep.subr.bf16.mxu0 %v4598
      %7303 = vmatpush1.bf16.msra.mxu0 %v4597
      %7304 = vmatprep.subr.bf16.mxu0 %v4602
      %7305 = vmatpush1.bf16.msra.mxu0 %v4601
      %7306 = vmatprep.subr.bf16.mxu0 %v4606
      %7307 = vmatpush1.bf16.msra.mxu0 %v4605
      %7308 = vmatprep.subr.bf16.mxu0 %v4610
      %7309 = vmatpush1.bf16.msra.mxu0 %v4609
      %7310 = vmatprep.subr.bf16.mxu0 %v4614
      %7311 = vmatpush1.bf16.msra.mxu0 %v4613
      %7312 = vmatprep.subr.bf16.mxu0 %v4618
      %7313 = vmatpush1.bf16.msra.mxu0 %v4617
      %7314 = vmatprep.subr.bf16.mxu0 %v4622
      %7315 = vmatpush1.bf16.msra.mxu0 %v4621
      %7316 = vmatprep.subr.bf16.mxu0 %v4626
      %7317 = vmatpush1.bf16.msra.mxu0 %v4625
      %7318 = vmatprep.subr.bf16.mxu0 %v4630
      %7319 = vmatpush1.bf16.msra.mxu0 %v4629
      %7320 = vmatprep.subr.bf16.mxu0 %v4634
      %7321 = vmatpush1.bf16.msra.mxu0 %v4633
      %7322 = vmatprep.subr.bf16.mxu0 %v4638
      %7323 = vmatpush1.bf16.msra.mxu0 %v4637
      %7324 = vmatprep.subr.bf16.mxu0 %v4642
      %7325 = vmatpush1.bf16.msra.mxu0 %v4641
      %7326 = vmatprep.mubr.bf16.mxu0 %v1382
      %7327 = vmatmul.mubr.bf16.gmra.mrb[0].mxu0 %v1381
      %v7328 = vpop.f32.mrb[0].mxu0
      %v7329 = vadd.f32 %v7286, %v7328
      %v7330 = vpop.f32.mrb[0].mxu0
      %v7331 = vadd.f32 %v7288, %v7330
      %v7332 = vpop.f32.mrb[0].mxu0
      %v7333 = vadd.f32 %v7290, %v7332
      %v7334 = vpop.f32.mrb[0].mxu0
      %v7335 = vadd.f32 %v7292, %v7334
      %7336 = vdwg.mxu0
      %7337 = vmatprep.subr.bf16.mxu0 %v4646
      %7338 = vmatpush1.bf16.msra.mxu0 %v4645
      %7339 = vmatprep.subr.bf16.mxu0 %v4650
      %7340 = vmatpush1.bf16.msra.mxu0 %v4649
      %7341 = vmatprep.subr.bf16.mxu0 %v4654
      %7342 = vmatpush1.bf16.msra.mxu0 %v4653
      %7343 = vmatprep.subr.bf16.mxu0 %v4658
      %7344 = vmatpush1.bf16.msra.mxu0 %v4657
      %7345 = vmatprep.subr.bf16.mxu0 %v4662
      %7346 = vmatpush1.bf16.msra.mxu0 %v4661
      %7347 = vmatprep.subr.bf16.mxu0 %v4666
      %7348 = vmatpush1.bf16.msra.mxu0 %v4665
      %7349 = vmatprep.subr.bf16.mxu0 %v4670
      %7350 = vmatpush1.bf16.msra.mxu0 %v4669
      %7351 = vmatprep.subr.bf16.mxu0 %v4674
      %7352 = vmatpush1.bf16.msra.mxu0 %v4673
      %7353 = vmatprep.subr.bf16.mxu0 %v4678
      %7354 = vmatpush1.bf16.msra.mxu0 %v4677
      %7355 = vmatprep.subr.bf16.mxu0 %v4682
      %7356 = vmatpush1.bf16.msra.mxu0 %v4681
      %7357 = vmatprep.subr.bf16.mxu0 %v4686
      %7358 = vmatpush1.bf16.msra.mxu0 %v4685
      %7359 = vmatprep.subr.bf16.mxu0 %v4690
      %7360 = vmatpush1.bf16.msra.mxu0 %v4689
      %7361 = vmatprep.subr.bf16.mxu0 %v4694
      %7362 = vmatpush1.bf16.msra.mxu0 %v4693
      %7363 = vmatprep.subr.bf16.mxu0 %v4698
      %7364 = vmatpush1.bf16.msra.mxu0 %v4697
      %7365 = vmatprep.subr.bf16.mxu0 %v4702
      %7366 = vmatpush1.bf16.msra.mxu0 %v4701
      %7367 = vmatprep.subr.bf16.mxu0 %v4706
      %7368 = vmatpush1.bf16.msra.mxu0 %v4705
      %7369 = vmatprep.mubr.bf16.mxu0 %v1384
      %7370 = vmatmul.mubr.bf16.gmra.mrb[0].mxu0 %v1383
      %v7371 = vpop.f32.mrb[0].mxu0
      %v7372 = vadd.f32 %v7329, %v7371
      %v7373 = vpop.f32.mrb[0].mxu0
      %v7374 = vadd.f32 %v7331, %v7373
      %v7375 = vpop.f32.mrb[0].mxu0
      %v7376 = vadd.f32 %v7333, %v7375
      %v7377 = vpop.f32.mrb[0].mxu0
      %v7378 = vadd.f32 %v7335, %v7377
      %7379 = vdwg.mxu0
      %7380 = vmatprep.subr.bf16.mxu0 %v4710
      %7381 = vmatpush1.bf16.msra.mxu0 %v4709
      %7382 = vmatprep.subr.bf16.mxu0 %v4714
      %7383 = vmatpush1.bf16.msra.mxu0 %v4713
      %7384 = vmatprep.subr.bf16.mxu0 %v4718
      %7385 = vmatpush1.bf16.msra.mxu0 %v4717
      %7386 = vmatprep.subr.bf16.mxu0 %v4722
      %7387 = vmatpush1.bf16.msra.mxu0 %v4721
      %7388 = vmatprep.subr.bf16.mxu0 %v4726
      %7389 = vmatpush1.bf16.msra.mxu0 %v4725
      %7390 = vmatprep.subr.bf16.mxu0 %v4730
      %7391 = vmatpush1.bf16.msra.mxu0 %v4729
      %7392 = vmatprep.subr.bf16.mxu0 %v4734
      %7393 = vmatpush1.bf16.msra.mxu0 %v4733
      %7394 = vmatprep.subr.bf16.mxu0 %v4738
      %7395 = vmatpush1.bf16.msra.mxu0 %v4737
      %7396 = vmatprep.subr.bf16.mxu0 %v4742
      %7397 = vmatpush1.bf16.msra.mxu0 %v4741
      %7398 = vmatprep.subr.bf16.mxu0 %v4746
      %7399 = vmatpush1.bf16.msra.mxu0 %v4745
      %7400 = vmatprep.subr.bf16.mxu0 %v4750
      %7401 = vmatpush1.bf16.msra.mxu0 %v4749
      %7402 = vmatprep.subr.bf16.mxu0 %v4754
      %7403 = vmatpush1.bf16.msra.mxu0 %v4753
      %7404 = vmatprep.subr.bf16.mxu0 %v4758
      %7405 = vmatpush1.bf16.msra.mxu0 %v4757
      %7406 = vmatprep.subr.bf16.mxu0 %v4762
      %7407 = vmatpush1.bf16.msra.mxu0 %v4761
      %7408 = vmatprep.subr.bf16.mxu0 %v4766
      %7409 = vmatpush1.bf16.msra.mxu0 %v4765
      %7410 = vmatprep.subr.bf16.mxu0 %v4770
      %7411 = vmatpush1.bf16.msra.mxu0 %v4769
      %7412 = vmatprep.mubr.bf16.mxu0 %v1386
      %7413 = vmatmul.mubr.bf16.gmra.mrb[0].mxu0 %v1385
      %v7414 = vpop.f32.mrb[0].mxu0
      %v7415 = vadd.f32 %v7372, %v7414
      %v7416 = vpop.f32.mrb[0].mxu0
      %v7417 = vadd.f32 %v7374, %v7416
      %v7418 = vpop.f32.mrb[0].mxu0
      %v7419 = vadd.f32 %v7376, %v7418
      %v7420 = vpop.f32.mrb[0].mxu0
      %v7421 = vadd.f32 %v7378, %v7420
      %7422 = vdwg.mxu0
      %7423 = vmatprep.subr.bf16.mxu0 %v4774
      %7424 = vmatpush1.bf16.msra.mxu0 %v4773
      %7425 = vmatprep.subr.bf16.mxu0 %v4778
      %7426 = vmatpush1.bf16.msra.mxu0 %v4777
      %7427 = vmatprep.subr.bf16.mxu0 %v4782
      %7428 = vmatpush1.bf16.msra.mxu0 %v4781
      %7429 = vmatprep.subr.bf16.mxu0 %v4786
      %7430 = vmatpush1.bf16.msra.mxu0 %v4785
      %7431 = vmatprep.subr.bf16.mxu0 %v4790
      %7432 = vmatpush1.bf16.msra.mxu0 %v4789
      %7433 = vmatprep.subr.bf16.mxu0 %v4794
      %7434 = vmatpush1.bf16.msra.mxu0 %v4793
      %7435 = vmatprep.subr.bf16.mxu0 %v4798
      %7436 = vmatpush1.bf16.msra.mxu0 %v4797
      %7437 = vmatprep.subr.bf16.mxu0 %v4802
      %7438 = vmatpush1.bf16.msra.mxu0 %v4801
      %7439 = vmatprep.subr.bf16.mxu0 %v4806
      %7440 = vmatpush1.bf16.msra.mxu0 %v4805
      %7441 = vmatprep.subr.bf16.mxu0 %v4810
      %7442 = vmatpush1.bf16.msra.mxu0 %v4809
      %7443 = vmatprep.subr.bf16.mxu0 %v4814
      %7444 = vmatpush1.bf16.msra.mxu0 %v4813
      %7445 = vmatprep.subr.bf16.mxu0 %v4818
      %7446 = vmatpush1.bf16.msra.mxu0 %v4817
      %7447 = vmatprep.subr.bf16.mxu0 %v4822
      %7448 = vmatpush1.bf16.msra.mxu0 %v4821
      %7449 = vmatprep.subr.bf16.mxu0 %v4826
      %7450 = vmatpush1.bf16.msra.mxu0 %v4825
      %7451 = vmatprep.subr.bf16.mxu0 %v4830
      %7452 = vmatpush1.bf16.msra.mxu0 %v4829
      %7453 = vmatprep.subr.bf16.mxu0 %v4834
      %7454 = vmatpush1.bf16.msra.mxu0 %v4833
      %7455 = vmatprep.mubr.bf16.mxu0 %v1388
      %7456 = vmatmul.mubr.bf16.gmra.mrb[0].mxu0 %v1387
      %v7457 = vpop.f32.mrb[0].mxu0
      %v7458 = vadd.f32 %v7415, %v7457
      %v7459 = vpop.f32.mrb[0].mxu0
      %v7460 = vadd.f32 %v7417, %v7459
      %v7461 = vpop.f32.mrb[0].mxu0
      %v7462 = vadd.f32 %v7419, %v7461
      %v7463 = vpop.f32.mrb[0].mxu0
      %v7464 = vadd.f32 %v7421, %v7463
      %7465 = vdwg.mxu0
      %7466 = vmatprep.subr.bf16.mxu0 %v4838
      %7467 = vmatpush1.bf16.msra.mxu0 %v4837
      %7468 = vmatprep.subr.bf16.mxu0 %v4842
      %7469 = vmatpush1.bf16.msra.mxu0 %v4841
      %7470 = vmatprep.subr.bf16.mxu0 %v4846
      %7471 = vmatpush1.bf16.msra.mxu0 %v4845
      %7472 = vmatprep.subr.bf16.mxu0 %v4850
      %7473 = vmatpush1.bf16.msra.mxu0 %v4849
      %7474 = vmatprep.subr.bf16.mxu0 %v4854
      %7475 = vmatpush1.bf16.msra.mxu0 %v4853
      %7476 = vmatprep.subr.bf16.mxu0 %v4858
      %7477 = vmatpush1.bf16.msra.mxu0 %v4857
      %7478 = vmatprep.subr.bf16.mxu0 %v4862
      %7479 = vmatpush1.bf16.msra.mxu0 %v4861
      %7480 = vmatprep.subr.bf16.mxu0 %v4866
      %7481 = vmatpush1.bf16.msra.mxu0 %v4865
      %7482 = vmatprep.subr.bf16.mxu0 %v4870
      %7483 = vmatpush1.bf16.msra.mxu0 %v4869
      %7484 = vmatprep.subr.bf16.mxu0 %v4874
      %7485 = vmatpush1.bf16.msra.mxu0 %v4873
      %7486 = vmatprep.subr.bf16.mxu0 %v4878
      %7487 = vmatpush1.bf16.msra.mxu0 %v4877
      %7488 = vmatprep.subr.bf16.mxu0 %v4882
      %7489 = vmatpush1.bf16.msra.mxu0 %v4881
      %7490 = vmatprep.subr.bf16.mxu0 %v4886
      %7491 = vmatpush1.bf16.msra.mxu0 %v4885
      %7492 = vmatprep.subr.bf16.mxu0 %v4890
      %7493 = vmatpush1.bf16.msra.mxu0 %v4889
      %7494 = vmatprep.subr.bf16.mxu0 %v4894
      %7495 = vmatpush1.bf16.msra.mxu0 %v4893
      %7496 = vmatprep.subr.bf16.mxu0 %v4898
      %7497 = vmatpush1.bf16.msra.mxu0 %v4897
      %7498 = vmatprep.mubr.bf16.mxu0 %v1390
      %7499 = vmatmul.mubr.bf16.gmra.mrb[0].mxu0 %v1389
      %v7500 = vpop.f32.mrb[0].mxu0
      %v7501 = vadd.f32 %v7458, %v7500
      %v7502 = vpop.f32.mrb[0].mxu0
      %v7503 = vadd.f32 %v7460, %v7502
      %v7504 = vpop.f32.mrb[0].mxu0
      %v7505 = vadd.f32 %v7462, %v7504
      %v7506 = vpop.f32.mrb[0].mxu0
      %v7507 = vadd.f32 %v7464, %v7506
      %7508 = vdwg.mxu0
      %7509 = vmatprep.subr.bf16.mxu0 %v4902
      %7510 = vmatpush1.bf16.msra.mxu0 %v4901
      %7511 = vmatprep.subr.bf16.mxu0 %v4906
      %7512 = vmatpush1.bf16.msra.mxu0 %v4905
      %7513 = vmatprep.subr.bf16.mxu0 %v4910
      %7514 = vmatpush1.bf16.msra.mxu0 %v4909
      %7515 = vmatprep.subr.bf16.mxu0 %v4914
      %7516 = vmatpush1.bf16.msra.mxu0 %v4913
      %7517 = vmatprep.subr.bf16.mxu0 %v4918
      %7518 = vmatpush1.bf16.msra.mxu0 %v4917
      %7519 = vmatprep.subr.bf16.mxu0 %v4922
      %7520 = vmatpush1.bf16.msra.mxu0 %v4921
      %7521 = vmatprep.subr.bf16.mxu0 %v4926
      %7522 = vmatpush1.bf16.msra.mxu0 %v4925
      %7523 = vmatprep.subr.bf16.mxu0 %v4930
      %7524 = vmatpush1.bf16.msra.mxu0 %v4929
      %7525 = vmatprep.subr.bf16.mxu0 %v4934
      %7526 = vmatpush1.bf16.msra.mxu0 %v4933
      %7527 = vmatprep.subr.bf16.mxu0 %v4938
      %7528 = vmatpush1.bf16.msra.mxu0 %v4937
      %7529 = vmatprep.subr.bf16.mxu0 %v4942
      %7530 = vmatpush1.bf16.msra.mxu0 %v4941
      %7531 = vmatprep.subr.bf16.mxu0 %v4946
      %7532 = vmatpush1.bf16.msra.mxu0 %v4945
      %7533 = vmatprep.subr.bf16.mxu0 %v4950
      %7534 = vmatpush1.bf16.msra.mxu0 %v4949
      %7535 = vmatprep.subr.bf16.mxu0 %v4954
      %7536 = vmatpush1.bf16.msra.mxu0 %v4953
      %7537 = vmatprep.subr.bf16.mxu0 %v4958
      %7538 = vmatpush1.bf16.msra.mxu0 %v4957
      %7539 = vmatprep.subr.bf16.mxu0 %v4962
      %7540 = vmatpush1.bf16.msra.mxu0 %v4961
      %7541 = vmatprep.mubr.bf16.mxu0 %v1392
      %7542 = vmatmul.mubr.bf16.gmra.mrb[0].mxu0 %v1391
      %v7543 = vpop.f32.mrb[0].mxu0
      %v7544 = vadd.f32 %v7501, %v7543
      %v7545 = vpop.f32.mrb[0].mxu0
      %v7546 = vadd.f32 %v7503, %v7545
      %v7547 = vpop.f32.mrb[0].mxu0
      %v7548 = vadd.f32 %v7505, %v7547
      %v7549 = vpop.f32.mrb[0].mxu0
      %v7550 = vadd.f32 %v7507, %v7549
      %7551 = vdwg.mxu0
      %7552 = vmatprep.subr.bf16.mxu0 %v4966
      %7553 = vmatpush1.bf16.msra.mxu0 %v4965
      %7554 = vmatprep.subr.bf16.mxu0 %v4970
      %7555 = vmatpush1.bf16.msra.mxu0 %v4969
      %7556 = vmatprep.subr.bf16.mxu0 %v4974
      %7557 = vmatpush1.bf16.msra.mxu0 %v4973
      %7558 = vmatprep.subr.bf16.mxu0 %v4978
      %7559 = vmatpush1.bf16.msra.mxu0 %v4977
      %7560 = vmatprep.subr.bf16.mxu0 %v4982
      %7561 = vmatpush1.bf16.msra.mxu0 %v4981
      %7562 = vmatprep.subr.bf16.mxu0 %v4986
      %7563 = vmatpush1.bf16.msra.mxu0 %v4985
      %7564 = vmatprep.subr.bf16.mxu0 %v4990
      %7565 = vmatpush1.bf16.msra.mxu0 %v4989
      %7566 = vmatprep.subr.bf16.mxu0 %v4994
      %7567 = vmatpush1.bf16.msra.mxu0 %v4993
      %7568 = vmatprep.subr.bf16.mxu0 %v4998
      %7569 = vmatpush1.bf16.msra.mxu0 %v4997
      %7570 = vmatprep.subr.bf16.mxu0 %v5002
      %7571 = vmatpush1.bf16.msra.mxu0 %v5001
      %7572 = vmatprep.subr.bf16.mxu0 %v5006
      %7573 = vmatpush1.bf16.msra.mxu0 %v5005
      %7574 = vmatprep.subr.bf16.mxu0 %v5010
      %7575 = vmatpush1.bf16.msra.mxu0 %v5009
      %7576 = vmatprep.subr.bf16.mxu0 %v5014
      %7577 = vmatpush1.bf16.msra.mxu0 %v5013
      %7578 = vmatprep.subr.bf16.mxu0 %v5018
      %7579 = vmatpush1.bf16.msra.mxu0 %v5017
      %7580 = vmatprep.subr.bf16.mxu0 %v5022
      %7581 = vmatpush1.bf16.msra.mxu0 %v5021
      %7582 = vmatprep.subr.bf16.mxu0 %v5026
      %7583 = vmatpush1.bf16.msra.mxu0 %v5025
      %7584 = vmatprep.mubr.bf16.mxu0 %v1394
      %7585 = vmatmul.mubr.bf16.gmra.mrb[0].mxu0 %v1393
      %v7586 = vpop.f32.mrb[0].mxu0
      %v7587 = vadd.f32 %v7544, %v7586
      %v7588 = vpop.f32.mrb[0].mxu0
      %v7589 = vadd.f32 %v7546, %v7588
      %v7590 = vpop.f32.mrb[0].mxu0
      %v7591 = vadd.f32 %v7548, %v7590
      %v7592 = vpop.f32.mrb[0].mxu0
      %v7593 = vadd.f32 %v7550, %v7592
      %7594 = vdwg.mxu0
      %7595 = vmatprep.subr.bf16.mxu0 %v5030
      %7596 = vmatpush1.bf16.msra.mxu0 %v5029
      %7597 = vmatprep.subr.bf16.mxu0 %v5034
      %7598 = vmatpush1.bf16.msra.mxu0 %v5033
      %7599 = vmatprep.subr.bf16.mxu0 %v5038
      %7600 = vmatpush1.bf16.msra.mxu0 %v5037
      %7601 = vmatprep.subr.bf16.mxu0 %v5042
      %7602 = vmatpush1.bf16.msra.mxu0 %v5041
      %7603 = vmatprep.subr.bf16.mxu0 %v5046
      %7604 = vmatpush1.bf16.msra.mxu0 %v5045
      %7605 = vmatprep.subr.bf16.mxu0 %v5050
      %7606 = vmatpush1.bf16.msra.mxu0 %v5049
      %7607 = vmatprep.subr.bf16.mxu0 %v5054
      %7608 = vmatpush1.bf16.msra.mxu0 %v5053
      %7609 = vmatprep.subr.bf16.mxu0 %v5058
      %7610 = vmatpush1.bf16.msra.mxu0 %v5057
      %7611 = vmatprep.subr.bf16.mxu0 %v5062
      %7612 = vmatpush1.bf16.msra.mxu0 %v5061
      %7613 = vmatprep.subr.bf16.mxu0 %v5066
      %7614 = vmatpush1.bf16.msra.mxu0 %v5065
      %7615 = vmatprep.subr.bf16.mxu0 %v5070
      %7616 = vmatpush1.bf16.msra.mxu0 %v5069
      %7617 = vmatprep.subr.bf16.mxu0 %v5074
      %7618 = vmatpush1.bf16.msra.mxu0 %v5073
      %7619 = vmatprep.subr.bf16.mxu0 %v5078
      %7620 = vmatpush1.bf16.msra.mxu0 %v5077
      %7621 = vmatprep.subr.bf16.mxu0 %v5082
      %7622 = vmatpush1.bf16.msra.mxu0 %v5081
      %7623 = vmatprep.subr.bf16.mxu0 %v5086
      %7624 = vmatpush1.bf16.msra.mxu0 %v5085
      %7625 = vmatprep.subr.bf16.mxu0 %v5090
      %7626 = vmatpush1.bf16.msra.mxu0 %v5089
      %7627 = vmatprep.mubr.bf16.mxu0 %v1396
      %7628 = vmatmul.mubr.bf16.gmra.mrb[0].mxu0 %v1395
      %v7629 = vpop.f32.mrb[0].mxu0
      %v7630 = vadd.f32 %v7587, %v7629
      %v7631 = vpop.f32.mrb[0].mxu0
      %v7632 = vadd.f32 %v7589, %v7631
      %v7633 = vpop.f32.mrb[0].mxu0
      %v7634 = vadd.f32 %v7591, %v7633
      %v7635 = vpop.f32.mrb[0].mxu0
      %v7636 = vadd.f32 %v7593, %v7635
      %7637 = vdwg.mxu0
      %7638 = vmatprep.subr.bf16.mxu0 %v5094
      %7639 = vmatpush1.bf16.msra.mxu0 %v5093
      %7640 = vmatprep.subr.bf16.mxu0 %v5098
      %7641 = vmatpush1.bf16.msra.mxu0 %v5097
      %7642 = vmatprep.subr.bf16.mxu0 %v5102
      %7643 = vmatpush1.bf16.msra.mxu0 %v5101
      %7644 = vmatprep.subr.bf16.mxu0 %v5106
      %7645 = vmatpush1.bf16.msra.mxu0 %v5105
      %7646 = vmatprep.subr.bf16.mxu0 %v5110
      %7647 = vmatpush1.bf16.msra.mxu0 %v5109
      %7648 = vmatprep.subr.bf16.mxu0 %v5114
      %7649 = vmatpush1.bf16.msra.mxu0 %v5113
      %7650 = vmatprep.subr.bf16.mxu0 %v5118
      %7651 = vmatpush1.bf16.msra.mxu0 %v5117
      %7652 = vmatprep.subr.bf16.mxu0 %v5122
      %7653 = vmatpush1.bf16.msra.mxu0 %v5121
      %7654 = vmatprep.subr.bf16.mxu0 %v5126
      %7655 = vmatpush1.bf16.msra.mxu0 %v5125
      %7656 = vmatprep.subr.bf16.mxu0 %v5130
      %7657 = vmatpush1.bf16.msra.mxu0 %v5129
      %7658 = vmatprep.subr.bf16.mxu0 %v5134
      %7659 = vmatpush1.bf16.msra.mxu0 %v5133
      %7660 = vmatprep.subr.bf16.mxu0 %v5138
      %7661 = vmatpush1.bf16.msra.mxu0 %v5137
      %7662 = vmatprep.subr.bf16.mxu0 %v5142
      %7663 = vmatpush1.bf16.msra.mxu0 %v5141
      %7664 = vmatprep.subr.bf16.mxu0 %v5146
      %7665 = vmatpush1.bf16.msra.mxu0 %v5145
      %7666 = vmatprep.subr.bf16.mxu0 %v5150
      %7667 = vmatpush1.bf16.msra.mxu0 %v5149
      %7668 = vmatprep.subr.bf16.mxu0 %v5154
      %7669 = vmatpush1.bf16.msra.mxu0 %v5153
      %7670 = vmatprep.mubr.bf16.mxu0 %v1398
      %7671 = vmatmul.mubr.bf16.gmra.mrb[0].mxu0 %v1397
      %v7672 = vpop.f32.mrb[0].mxu0
      %v7673 = vadd.f32 %v7630, %v7672
      %v7674 = vpop.f32.mrb[0].mxu0
      %v7675 = vadd.f32 %v7632, %v7674
      %v7676 = vpop.f32.mrb[0].mxu0
      %v7677 = vadd.f32 %v7634, %v7676
      %v7678 = vpop.f32.mrb[0].mxu0
      %v7679 = vadd.f32 %v7636, %v7678
      %7680 = vdwg.mxu0
      %7681 = vmatprep.subr.bf16.mxu0 %v5158
      %7682 = vmatpush1.bf16.msra.mxu0 %v5157
      %7683 = vmatprep.subr.bf16.mxu0 %v5162
      %7684 = vmatpush1.bf16.msra.mxu0 %v5161
      %7685 = vmatprep.subr.bf16.mxu0 %v5166
      %7686 = vmatpush1.bf16.msra.mxu0 %v5165
      %7687 = vmatprep.subr.bf16.mxu0 %v5170
      %7688 = vmatpush1.bf16.msra.mxu0 %v5169
      %7689 = vmatprep.subr.bf16.mxu0 %v5174
      %7690 = vmatpush1.bf16.msra.mxu0 %v5173
      %7691 = vmatprep.subr.bf16.mxu0 %v5178
      %7692 = vmatpush1.bf16.msra.mxu0 %v5177
      %7693 = vmatprep.subr.bf16.mxu0 %v5182
      %7694 = vmatpush1.bf16.msra.mxu0 %v5181
      %7695 = vmatprep.subr.bf16.mxu0 %v5186
      %7696 = vmatpush1.bf16.msra.mxu0 %v5185
      %7697 = vmatprep.subr.bf16.mxu0 %v5190
      %7698 = vmatpush1.bf16.msra.mxu0 %v5189
      %7699 = vmatprep.subr.bf16.mxu0 %v5194
      %7700 = vmatpush1.bf16.msra.mxu0 %v5193
      %7701 = vmatprep.subr.bf16.mxu0 %v5198
      %7702 = vmatpush1.bf16.msra.mxu0 %v5197
      %7703 = vmatprep.subr.bf16.mxu0 %v5202
      %7704 = vmatpush1.bf16.msra.mxu0 %v5201
      %7705 = vmatprep.subr.bf16.mxu0 %v5206
      %7706 = vmatpush1.bf16.msra.mxu0 %v5205
      %7707 = vmatprep.subr.bf16.mxu0 %v5210
      %7708 = vmatpush1.bf16.msra.mxu0 %v5209
      %7709 = vmatprep.subr.bf16.mxu0 %v5214
      %7710 = vmatpush1.bf16.msra.mxu0 %v5213
      %7711 = vmatprep.subr.bf16.mxu0 %v5218
      %7712 = vmatpush1.bf16.msra.mxu0 %v5217
      %7713 = vmatprep.mubr.bf16.mxu0 %v1400
      %7714 = vmatmul.mubr.bf16.gmra.mrb[0].mxu0 %v1399
      %v7715 = vpop.f32.mrb[0].mxu0
      %v7716 = vadd.f32 %v7673, %v7715
      %v7717 = vpop.f32.mrb[0].mxu0
      %v7718 = vadd.f32 %v7675, %v7717
      %v7719 = vpop.f32.mrb[0].mxu0
      %v7720 = vadd.f32 %v7677, %v7719
      %v7721 = vpop.f32.mrb[0].mxu0
      %v7722 = vadd.f32 %v7679, %v7721
      %7723 = vdwg.mxu0
      %7724 = vmatprep.subr.bf16.mxu0 %v5222
      %7725 = vmatpush1.bf16.msra.mxu0 %v5221
      %7726 = vmatprep.subr.bf16.mxu0 %v5226
      %7727 = vmatpush1.bf16.msra.mxu0 %v5225
      %7728 = vmatprep.subr.bf16.mxu0 %v5230
      %7729 = vmatpush1.bf16.msra.mxu0 %v5229
      %7730 = vmatprep.subr.bf16.mxu0 %v5234
      %7731 = vmatpush1.bf16.msra.mxu0 %v5233
      %7732 = vmatprep.subr.bf16.mxu0 %v5238
      %7733 = vmatpush1.bf16.msra.mxu0 %v5237
      %7734 = vmatprep.subr.bf16.mxu0 %v5242
      %7735 = vmatpush1.bf16.msra.mxu0 %v5241
      %7736 = vmatprep.subr.bf16.mxu0 %v5246
      %7737 = vmatpush1.bf16.msra.mxu0 %v5245
      %7738 = vmatprep.subr.bf16.mxu0 %v5250
      %7739 = vmatpush1.bf16.msra.mxu0 %v5249
      %7740 = vmatprep.subr.bf16.mxu0 %v5254
      %7741 = vmatpush1.bf16.msra.mxu0 %v5253
      %7742 = vmatprep.subr.bf16.mxu0 %v5258
      %7743 = vmatpush1.bf16.msra.mxu0 %v5257
      %7744 = vmatprep.subr.bf16.mxu0 %v5262
      %7745 = vmatpush1.bf16.msra.mxu0 %v5261
      %7746 = vmatprep.subr.bf16.mxu0 %v5266
      %7747 = vmatpush1.bf16.msra.mxu0 %v5265
      %7748 = vmatprep.subr.bf16.mxu0 %v5270
      %7749 = vmatpush1.bf16.msra.mxu0 %v5269
      %7750 = vmatprep.subr.bf16.mxu0 %v5274
      %7751 = vmatpush1.bf16.msra.mxu0 %v5273
      %7752 = vmatprep.subr.bf16.mxu0 %v5278
      %7753 = vmatpush1.bf16.msra.mxu0 %v5277
      %7754 = vmatprep.subr.bf16.mxu0 %v5282
      %7755 = vmatpush1.bf16.msra.mxu0 %v5281
      %7756 = vmatprep.mubr.bf16.mxu0 %v1402
      %7757 = vmatmul.mubr.bf16.gmra.mrb[0].mxu0 %v1401
      %v7758 = vpop.f32.mrb[0].mxu0
      %v7759 = vadd.f32 %v7716, %v7758
      %v7760 = vpop.f32.mrb[0].mxu0
      %v7761 = vadd.f32 %v7718, %v7760
      %v7762 = vpop.f32.mrb[0].mxu0
      %v7763 = vadd.f32 %v7720, %v7762
      %v7764 = vpop.f32.mrb[0].mxu0
      %v7765 = vadd.f32 %v7722, %v7764
      %7766 = vdwg.mxu0
      %7767 = vmatprep.subr.bf16.mxu0 %v5286
      %7768 = vmatpush1.bf16.msra.mxu0 %v5285
      %7769 = vmatprep.subr.bf16.mxu0 %v5290
      %7770 = vmatpush1.bf16.msra.mxu0 %v5289
      %7771 = vmatprep.subr.bf16.mxu0 %v5294
      %7772 = vmatpush1.bf16.msra.mxu0 %v5293
      %7773 = vmatprep.subr.bf16.mxu0 %v5298
      %7774 = vmatpush1.bf16.msra.mxu0 %v5297
      %7775 = vmatprep.subr.bf16.mxu0 %v5302
      %7776 = vmatpush1.bf16.msra.mxu0 %v5301
      %7777 = vmatprep.subr.bf16.mxu0 %v5306
      %7778 = vmatpush1.bf16.msra.mxu0 %v5305
      %7779 = vmatprep.subr.bf16.mxu0 %v5310
      %7780 = vmatpush1.bf16.msra.mxu0 %v5309
      %7781 = vmatprep.subr.bf16.mxu0 %v5314
      %7782 = vmatpush1.bf16.msra.mxu0 %v5313
      %7783 = vmatprep.subr.bf16.mxu0 %v5318
      %7784 = vmatpush1.bf16.msra.mxu0 %v5317
      %7785 = vmatprep.subr.bf16.mxu0 %v5322
      %7786 = vmatpush1.bf16.msra.mxu0 %v5321
      %7787 = vmatprep.subr.bf16.mxu0 %v5326
      %7788 = vmatpush1.bf16.msra.mxu0 %v5325
      %7789 = vmatprep.subr.bf16.mxu0 %v5330
      %7790 = vmatpush1.bf16.msra.mxu0 %v5329
      %7791 = vmatprep.subr.bf16.mxu0 %v5334
      %7792 = vmatpush1.bf16.msra.mxu0 %v5333
      %7793 = vmatprep.subr.bf16.mxu0 %v5338
      %7794 = vmatpush1.bf16.msra.mxu0 %v5337
      %7795 = vmatprep.subr.bf16.mxu0 %v5342
      %7796 = vmatpush1.bf16.msra.mxu0 %v5341
      %7797 = vmatprep.subr.bf16.mxu0 %v5346
      %7798 = vmatpush1.bf16.msra.mxu0 %v5345
      %7799 = vmatprep.mubr.bf16.mxu0 %v1404
      %7800 = vmatmul.mubr.bf16.gmra.mrb[0].mxu0 %v1403
      %v7801 = vpop.f32.mrb[0].mxu0
      %v7802 = vadd.f32 %v7759, %v7801
      %v7803 = vpop.f32.mrb[0].mxu0
      %v7804 = vadd.f32 %v7761, %v7803
      %v7805 = vpop.f32.mrb[0].mxu0
      %v7806 = vadd.f32 %v7763, %v7805
      %v7807 = vpop.f32.mrb[0].mxu0
      %v7808 = vadd.f32 %v7765, %v7807
      %7809 = vdwg.mxu0
      %7810 = vmatprep.subr.bf16.mxu0 %v5350
      %7811 = vmatpush1.bf16.msra.mxu0 %v5349
      %7812 = vmatprep.subr.bf16.mxu0 %v5354
      %7813 = vmatpush1.bf16.msra.mxu0 %v5353
      %7814 = vmatprep.subr.bf16.mxu0 %v5358
      %7815 = vmatpush1.bf16.msra.mxu0 %v5357
      %7816 = vmatprep.subr.bf16.mxu0 %v5362
      %7817 = vmatpush1.bf16.msra.mxu0 %v5361
      %7818 = vmatprep.subr.bf16.mxu0 %v5366
      %7819 = vmatpush1.bf16.msra.mxu0 %v5365
      %7820 = vmatprep.subr.bf16.mxu0 %v5370
      %7821 = vmatpush1.bf16.msra.mxu0 %v5369
      %7822 = vmatprep.subr.bf16.mxu0 %v5374
      %7823 = vmatpush1.bf16.msra.mxu0 %v5373
      %7824 = vmatprep.subr.bf16.mxu0 %v5378
      %7825 = vmatpush1.bf16.msra.mxu0 %v5377
      %7826 = vmatprep.subr.bf16.mxu0 %v5382
      %7827 = vmatpush1.bf16.msra.mxu0 %v5381
      %7828 = vmatprep.subr.bf16.mxu0 %v5386
      %7829 = vmatpush1.bf16.msra.mxu0 %v5385
      %7830 = vmatprep.subr.bf16.mxu0 %v5390
      %7831 = vmatpush1.bf16.msra.mxu0 %v5389
      %7832 = vmatprep.subr.bf16.mxu0 %v5394
      %7833 = vmatpush1.bf16.msra.mxu0 %v5393
      %7834 = vmatprep.subr.bf16.mxu0 %v5398
      %7835 = vmatpush1.bf16.msra.mxu0 %v5397
      %7836 = vmatprep.subr.bf16.mxu0 %v5402
      %7837 = vmatpush1.bf16.msra.mxu0 %v5401
      %7838 = vmatprep.subr.bf16.mxu0 %v5406
      %7839 = vmatpush1.bf16.msra.mxu0 %v5405
      %7840 = vmatprep.subr.bf16.mxu0 %v5410
      %7841 = vmatpush1.bf16.msra.mxu0 %v5409
      %7842 = vmatprep.mubr.bf16.mxu0 %v1406
      %7843 = vmatmul.mubr.bf16.gmra.mrb[0].mxu0 %v1405
      %v7844 = vpop.f32.mrb[0].mxu0
      %v7845 = vadd.f32 %v7802, %v7844
      %v7846 = vpop.f32.mrb[0].mxu0
      %v7847 = vadd.f32 %v7804, %v7846
      %v7848 = vpop.f32.mrb[0].mxu0
      %v7849 = vadd.f32 %v7806, %v7848
      %v7850 = vpop.f32.mrb[0].mxu0
      %v7851 = vadd.f32 %v7808, %v7850
      %7852 = vdwg.mxu0
      %7853 = vmatprep.subr.bf16.mxu0 %v5414
      %7854 = vmatpush1.bf16.msra.mxu0 %v5413
      %7855 = vmatprep.subr.bf16.mxu0 %v5418
      %7856 = vmatpush1.bf16.msra.mxu0 %v5417
      %7857 = vmatprep.subr.bf16.mxu0 %v5422
      %7858 = vmatpush1.bf16.msra.mxu0 %v5421
      %7859 = vmatprep.subr.bf16.mxu0 %v5426
      %7860 = vmatpush1.bf16.msra.mxu0 %v5425
      %7861 = vmatprep.subr.bf16.mxu0 %v5430
      %7862 = vmatpush1.bf16.msra.mxu0 %v5429
      %7863 = vmatprep.subr.bf16.mxu0 %v5434
      %7864 = vmatpush1.bf16.msra.mxu0 %v5433
      %7865 = vmatprep.subr.bf16.mxu0 %v5438
      %7866 = vmatpush1.bf16.msra.mxu0 %v5437
      %7867 = vmatprep.subr.bf16.mxu0 %v5442
      %7868 = vmatpush1.bf16.msra.mxu0 %v5441
      %7869 = vmatprep.subr.bf16.mxu0 %v5446
      %7870 = vmatpush1.bf16.msra.mxu0 %v5445
      %7871 = vmatprep.subr.bf16.mxu0 %v5450
      %7872 = vmatpush1.bf16.msra.mxu0 %v5449
      %7873 = vmatprep.subr.bf16.mxu0 %v5454
      %7874 = vmatpush1.bf16.msra.mxu0 %v5453
      %7875 = vmatprep.subr.bf16.mxu0 %v5458
      %7876 = vmatpush1.bf16.msra.mxu0 %v5457
      %7877 = vmatprep.subr.bf16.mxu0 %v5462
      %7878 = vmatpush1.bf16.msra.mxu0 %v5461
      %7879 = vmatprep.subr.bf16.mxu0 %v5466
      %7880 = vmatpush1.bf16.msra.mxu0 %v5465
      %7881 = vmatprep.subr.bf16.mxu0 %v5470
      %7882 = vmatpush1.bf16.msra.mxu0 %v5469
      %7883 = vmatprep.subr.bf16.mxu0 %v5474
      %7884 = vmatpush1.bf16.msra.mxu0 %v5473
      %7885 = vmatprep.mubr.bf16.mxu0 %v1408
      %7886 = vmatmul.mubr.bf16.gmra.mrb[0].mxu0 %v1407
      %v7887 = vpop.f32.mrb[0].mxu0
      %v7888 = vadd.f32 %v7845, %v7887
      %v7889 = vpop.f32.mrb[0].mxu0
      %v7890 = vadd.f32 %v7847, %v7889
      %v7891 = vpop.f32.mrb[0].mxu0
      %v7892 = vadd.f32 %v7849, %v7891
      %v7893 = vpop.f32.mrb[0].mxu0
      %v7894 = vadd.f32 %v7851, %v7893
      %7895 = vdwg.mxu0
      %7896 = vmatprep.subr.bf16.mxu0 %v5478
      %7897 = vmatpush1.bf16.msra.mxu0 %v5477
      %7898 = vmatprep.subr.bf16.mxu0 %v5482
      %7899 = vmatpush1.bf16.msra.mxu0 %v5481
      %7900 = vmatprep.subr.bf16.mxu0 %v5486
      %7901 = vmatpush1.bf16.msra.mxu0 %v5485
      %7902 = vmatprep.subr.bf16.mxu0 %v5490
      %7903 = vmatpush1.bf16.msra.mxu0 %v5489
      %7904 = vmatprep.subr.bf16.mxu0 %v5494
      %7905 = vmatpush1.bf16.msra.mxu0 %v5493
      %7906 = vmatprep.subr.bf16.mxu0 %v5498
      %7907 = vmatpush1.bf16.msra.mxu0 %v5497
      %7908 = vmatprep.subr.bf16.mxu0 %v5502
      %7909 = vmatpush1.bf16.msra.mxu0 %v5501
      %7910 = vmatprep.subr.bf16.mxu0 %v5506
      %7911 = vmatpush1.bf16.msra.mxu0 %v5505
      %7912 = vmatprep.subr.bf16.mxu0 %v5510
      %7913 = vmatpush1.bf16.msra.mxu0 %v5509
      %7914 = vmatprep.subr.bf16.mxu0 %v5514
      %7915 = vmatpush1.bf16.msra.mxu0 %v5513
      %7916 = vmatprep.subr.bf16.mxu0 %v5518
      %7917 = vmatpush1.bf16.msra.mxu0 %v5517
      %7918 = vmatprep.subr.bf16.mxu0 %v5522
      %7919 = vmatpush1.bf16.msra.mxu0 %v5521
      %7920 = vmatprep.subr.bf16.mxu0 %v5526
      %7921 = vmatpush1.bf16.msra.mxu0 %v5525
      %7922 = vmatprep.subr.bf16.mxu0 %v5530
      %7923 = vmatpush1.bf16.msra.mxu0 %v5529
      %7924 = vmatprep.subr.bf16.mxu0 %v5534
      %7925 = vmatpush1.bf16.msra.mxu0 %v5533
      %7926 = vmatprep.subr.bf16.mxu0 %v5538
      %7927 = vmatpush1.bf16.msra.mxu0 %v5537
      %7928 = vmatprep.mubr.bf16.mxu0 %v1410
      %7929 = vmatmul.mubr.bf16.gmra.mrb[0].mxu0 %v1409
      %v7930 = vpop.f32.mrb[0].mxu0
      %v7931 = vadd.f32 %v7888, %v7930
      %v7932 = vpop.f32.mrb[0].mxu0
      %v7933 = vadd.f32 %v7890, %v7932
      %v7934 = vpop.f32.mrb[0].mxu0
      %v7935 = vadd.f32 %v7892, %v7934
      %v7936 = vpop.f32.mrb[0].mxu0
      %v7937 = vadd.f32 %v7894, %v7936
      %7938 = vdwg.mxu0
      %7939 = vst [vmem:[%s217] sm:$0xff] %v7243
      %7940 = vst [vmem:[%s217 + $0x8] sm:$0xff] %v7245
      %7941 = vst [vmem:[%s217 + $0x10] sm:$0xff] %v7931
      %7942 = vst [vmem:[%s217 + $0x18] sm:$0xff] %v7933
      %7943 = vst [vmem:[%s217 + $0x20] sm:$0xff] %v7247
      %7944 = vst [vmem:[%s217 + $0x28] sm:$0xff] %v7249
      %7945 = vst [vmem:[%s217 + $0x30] sm:$0xff] %v7935
      %7946 = vst [vmem:[%s217 + $0x38] sm:$0xff] %v7937
      %v7947 = vadd.f32 %v7243, %v7247
      %v7948 = vrot.slane %v7947, 4
      %v7949 = vadd.f32 %v7947, %v7948
      %v7950 = vrot.slane %v7949, 2
      %v7951 = vadd.f32 %v7949, %v7950
      %v7952 = vrot.slane %v7951, 1
      %v7953 = vadd.f32 %v7951, %v7952
      %v7954 = vadd.f32 %v7245, %v7249
      %v7955 = vrot.slane %v7954, 4
      %v7956 = vadd.f32 %v7954, %v7955
      %v7957 = vrot.slane %v7956, 2
      %v7958 = vadd.f32 %v7956, %v7957
      %v7959 = vrot.slane %v7958, 1
      %v7960 = vadd.f32 %v7958, %v7959
      %v7961 = vadd.f32 %v7931, %v7935
      %v7962 = vrot.slane %v7961, 4
      %v7963 = vadd.f32 %v7961, %v7962
      %v7964 = vrot.slane %v7963, 2
      %v7965 = vadd.f32 %v7963, %v7964
      %v7966 = vrot.slane %v7965, 1
      %v7967 = vadd.f32 %v7965, %v7966
      %v7968 = vadd.f32 %v7933, %v7937
      %v7969 = vrot.slane %v7968, 4
      %v7970 = vadd.f32 %v7968, %v7969
      %v7971 = vrot.slane %v7970, 2
      %v7972 = vadd.f32 %v7970, %v7971
      %v7973 = vrot.slane %v7972, 1
      %v7974 = vadd.f32 %v7972, %v7973
      %v7979 = vcombine.low %v7953, %v7960
      %v7980 = vcombine.low %v7967, %v7974
      %v7982 = vunpack.c.l.s4 1966171168
      %v7983 = vunpack.c.0.s8 %v7982
      %v7984 = vlaneseq
      %v7985 = vshrl.u32 %v7984, 7
      %v7986 = vsub.s32 %v7983, %v7985
      %v7987 = vrot.slane %v7979, %v7986
      %v7989 = vunpack.c.l.s4 1966171168
      %v7990 = vunpack.c.0.s8 %v7989
      %v7991 = vlaneseq
      %v7992 = vshrl.u32 %v7991, 7
      %v7993 = vsub.s32 %v7990, %v7992
      %v7994 = vrot.slane %v7980, %v7993
      %v7995 = vcombine.low %v7987, %v7994
      %v7997 = vunpack.c.l.s4 1966171168
      %v7998 = vunpack.c.0.s8 %v7997
      %v7999 = vlaneseq
      %v8000 = vshrl.u32 %v7999, 7
      %v8001 = vsub.s32 %v7998, %v8000
      %v8002 = vrot.slane %v7995, %v8001
      %v8004 = vlaneseq
      %vm8005 = vcmp.ge.s32.totalorder %v8004, 0
      %vm8006 = vcmp.lt.s32.totalorder %v8004, 512
      %vm8007 = vmand %vm8005, %vm8006
      %8008 = vst.msk [vmem:[%s222] sm:$0xf] %vm8007, %v8002
      %v8009 = vmul.f32 %v7243, %v7243
      %v8010 = vmul.f32 %v7245, %v7245
      %v8011 = vmul.f32 %v7931, %v7931
      %v8012 = vmul.f32 %v7933, %v7933
      %v8013 = vmul.f32 %v7247, %v7247
      %v8014 = vmul.f32 %v7249, %v7249
      %v8015 = vmul.f32 %v7935, %v7935
      %v8016 = vmul.f32 %v7937, %v7937
      %v8017 = vadd.f32 %v8009, %v8013
      %v8018 = vrot.slane %v8017, 4
      %v8019 = vadd.f32 %v8017, %v8018
      %v8020 = vrot.slane %v8019, 2
      %v8021 = vadd.f32 %v8019, %v8020
      %v8022 = vrot.slane %v8021, 1
      %v8023 = vadd.f32 %v8021, %v8022
      %v8024 = vadd.f32 %v8010, %v8014
      %v8025 = vrot.slane %v8024, 4
      %v8026 = vadd.f32 %v8024, %v8025
      %v8027 = vrot.slane %v8026, 2
      %v8028 = vadd.f32 %v8026, %v8027
      %v8029 = vrot.slane %v8028, 1
      %v8030 = vadd.f32 %v8028, %v8029
      %v8031 = vadd.f32 %v8011, %v8015
      %v8032 = vrot.slane %v8031, 4
      %v8033 = vadd.f32 %v8031, %v8032
      %v8034 = vrot.slane %v8033, 2
      %v8035 = vadd.f32 %v8033, %v8034
      %v8036 = vrot.slane %v8035, 1
      %v8037 = vadd.f32 %v8035, %v8036
      %v8038 = vadd.f32 %v8012, %v8016
      %v8039 = vrot.slane %v8038, 4
      %v8040 = vadd.f32 %v8038, %v8039
      %v8041 = vrot.slane %v8040, 2
      %v8042 = vadd.f32 %v8040, %v8041
      %v8043 = vrot.slane %v8042, 1
      %v8044 = vadd.f32 %v8042, %v8043
      %v8049 = vcombine.low %v8023, %v8030
      %v8050 = vcombine.low %v8037, %v8044
      %v8052 = vunpack.c.l.s4 1966171168
      %v8053 = vunpack.c.0.s8 %v8052
      %v8054 = vlaneseq
      %v8055 = vshrl.u32 %v8054, 7
      %v8056 = vsub.s32 %v8053, %v8055
      %v8057 = vrot.slane %v8049, %v8056
      %v8059 = vunpack.c.l.s4 1966171168
      %v8060 = vunpack.c.0.s8 %v8059
      %v8061 = vlaneseq
      %v8062 = vshrl.u32 %v8061, 7
      %v8063 = vsub.s32 %v8060, %v8062
      %v8064 = vrot.slane %v8050, %v8063
      %v8065 = vcombine.low %v8057, %v8064
      %v8067 = vunpack.c.l.s4 1966171168
      %v8068 = vunpack.c.0.s8 %v8067
      %v8069 = vlaneseq
      %v8070 = vshrl.u32 %v8069, 7
      %v8071 = vsub.s32 %v8068, %v8070
      %v8072 = vrot.slane %v8065, %v8071
      %8074 = vst.msk [vmem:[%s226] sm:$0xf] %vm8007, %v8072
      %s8075 = smul.u32 2, %s16
      %p8076 = scmp.lt.s32.totalorder %s8075, 3
      %s8077 = scalar_select %p8076, %s8075, 3
      %s8078 = smul.addr %s8077, 4
      %s8079 = smul.addr %s8078, 8
      %s8080 = scalar_lea.vmem %s2, %s8079
      %p8081 = scmp.lt.s32.totalorder %s16, 1
      %s8082 = scalar_select %p8081, %s16, 1
      %s8083 = smul.addr %s8082, 4
      %s8084 = scalar_lea.vmem %s3, %s8083
      %p8085 = scmp.lt.s32.totalorder %s16, 1
      %s8086 = scalar_select %p8085, %s16, 1
      %s8087 = smul.addr %s8086, 4
      %s8088 = scalar_lea.vmem %s4, %s8087
      // Predicated region
      $region29: #{discriminator_forward.8} parent=27 // pred_check
        %p8089 = pneg %p81
      $region30: #{discriminator_forward.8} parent=27 // pred_check_branch
        %8091 = sbr.rel (%p8089) target = $region32
      $region31: #{discriminator_forward.8} parent=27 // pred_region
        %s8092 = smul.u32 2, %s16
      $region32: #{discriminator_forward.8} parent=27 // pred_fallthru
        _
      // Predicated region
      $region33: #{discriminator_forward.8} parent=27 // pred_check
        %p8093 = pneg %p107
      $region34: #{discriminator_forward.8} parent=27 // pred_check_branch
        %8095 = sbr.rel (%p8093) target = $region36
      $region35: #{discriminator_forward.8} parent=27 // pred_region
        _
      $region36: #{discriminator_forward.8} parent=27 // pred_fallthru
        _
      // Predicated region
      $region37: #{discriminator_forward.8} parent=27 // pred_check
        %p8096 = pneg %p133
      $region38: #{discriminator_forward.8} parent=27 // pred_check_branch
        %8098 = sbr.rel (%p8096) target = $region40
      $region39: #{discriminator_forward.8} parent=27 // pred_region
        _
      $region40: #{discriminator_forward.8} parent=27 // pred_fallthru
        _
    $region28: #{discriminator_forward.8} parent=5 // pred_fallthru
      _
    %p8099 = scmp.le.s32.totalorder 2, %s11
    // Predicated region
    $region41: #{discriminator_forward.8} parent=5 // pred_check
      %p8100 = pneg %p8099
    $region42: #{discriminator_forward.8} parent=5 // pred_check_branch
      %8102 = sbr.rel (%p8100) target = $region44
    $region43: #{discriminator_forward.8} parent=5 // pred_region
      %s8103 = ssub.s32 %s11, 2
      // Predicated region
      $region45: #{discriminator_forward.8} parent=43 // pred_check
        %p8104 = pneg %p87
      $region46: #{discriminator_forward.8} parent=43 // pred_check_branch
        %8106 = sbr.rel (%p8104) target = $region48
      $region47: #{discriminator_forward.8} parent=43 // pred_region
        %s8107 = smul.u32 2, %s17
        %p8108 = scmp.lt.s32.totalorder %s8107, 3
        %s8109 = scalar_select %p8108, %s8107, 3
        %s8110 = smul.addr %s8109, 4
        %s8111 = smul.addr %s8110, 8
        %s8112 = scalar_lea.vmem %s2, %s8111
      $region48: #{discriminator_forward.8} parent=43 // pred_fallthru
        _
      // Predicated region
      $region49: #{discriminator_forward.8} parent=43 // pred_check
        %p8113 = pneg %p113
      $region50: #{discriminator_forward.8} parent=43 // pred_check_branch
        %8115 = sbr.rel (%p8113) target = $region52
      $region51: #{discriminator_forward.8} parent=43 // pred_region
        %p8116 = scmp.lt.s32.totalorder %s17, 1
        %s8117 = scalar_select %p8116, %s17, 1
        %s8118 = smul.addr %s8117, 4
        %s8119 = scalar_lea.vmem %s3, %s8118
      $region52: #{discriminator_forward.8} parent=43 // pred_fallthru
        _
      // Predicated region
      $region53: #{discriminator_forward.8} parent=43 // pred_check
        %p8120 = pneg %p139
      $region54: #{discriminator_forward.8} parent=43 // pred_check_branch
        %8122 = sbr.rel (%p8120) target = $region56
      $region55: #{discriminator_forward.8} parent=43 // pred_region
        %p8123 = scmp.lt.s32.totalorder %s17, 1
        %s8124 = scalar_select %p8123, %s17, 1
        %s8125 = smul.addr %s8124, 4
        %s8126 = scalar_lea.vmem %s4, %s8125
      $region56: #{discriminator_forward.8} parent=43 // pred_fallthru
        _
    $region44: #{discriminator_forward.8} parent=5 // pred_fallthru
      _
  $region6: #{discriminator_forward.8} parent=0 // loop_footer
    %s15 = sadd.s32 1, %s11
  $region7: #{discriminator_forward.8} parent=0 // loop_footer_branch
    %10 = sbr.rel target = $region3
  $region8: #{discriminator_forward.8} parent=0 // loop_exit
    _

</llo_original>
